<compile_context>
chip_gen: v6e
topology: v6e:2x2x1
jax: 0.10.0
libtpu: 0.0.40
codegen_flags: <defaults>
</compile_context>

<pallas_src>
import functools

import numpy as np

import jax
import jax.numpy as jnp
from jax import lax
from jax.experimental import pallas as pl
from jax.experimental.pallas import tpu as pltpu


def _round_up(x, m):
    return (x + m - 1) // m * m


def _pad_to(x, shape):
    return jnp.pad(x, [(0, s - d) for d, s in zip(x.shape, shape)])


def _fast_sigmoid(x):
    # sigmoid(x) == 0.5*tanh(0.5*x) + 0.5  -> one EUP pass instead of exp+recip.
    half = jnp.asarray(0.5, x.dtype)
    return half * jnp.tanh(half * x) + half


def _tpu_vmem_and_bf16():
    """Returns (vmem_capacity_bytes, has_bf16_vpu_eup) with safe fallbacks."""
    kind = ""
    try:
        kind = jax.devices()[0].device_kind.lower()
    except Exception:
        pass
    vmem = None
    try:
        info = pltpu.get_tpu_info()
        for attr in ("vmem_capacity_bytes", "vmem_bytes", "vmem_size_bytes"):
            val = getattr(info, attr, None)
            if val:
                vmem = int(val)
                break
    except Exception:
        pass
    if vmem is None:
        vmem = (64 << 20) if "v7" in kind else (128 << 20)
    old_gen = any(tag in kind for tag in ("v2", "v3", "v4", "v5"))
    return vmem, (not old_gen)


# ---------------------------------------------------------------------------
# Kernel 1: LSTM over a time-chunk + fused online-softmax attention pooling.
#   grid = (batch tiles [parallel], time chunks [arbitrary]).
#   inputs : emb (W, N_pad, E)  time-major, tiled (WC, TN, E)
#            w_ih (E, 4Hp), w_hh (Hp, 4Hp), bias (1, 4Hp)  gate order [i,f,g,o]
#            w_tok (1, Hp), b_tok (1, 1)
#   output : attention vectors (N_pad, Hp), tiled (TN, Hp)
# ---------------------------------------------------------------------------
def lstm_attention_kernel(emb_ref, wih_ref, whh_ref, b_ref, wtok_ref, btok_ref,
                          out_ref,
                          gx_ref, h_ref, c_ref, m_ref, l_ref, acc_ref,
                          *, act_dtype, approx_recip, unroll):
    wc = pl.program_id(1)
    WC, TN, _ = emb_ref.shape
    Hp = h_ref.shape[-1]

    # ---- init recurrent + online-softmax state at the first time chunk ----
    @pl.when(wc == 0)
    def _init():
        h_ref[...] = jnp.zeros_like(h_ref)
        c_ref[...] = jnp.zeros_like(c_ref)
        acc_ref[...] = jnp.zeros_like(acc_ref)
        l_ref[...] = jnp.zeros_like(l_ref)
        m_ref[...] = jnp.full_like(m_ref, -1e30)

    # ---- hoisted input projection: one MXU matmul for the whole chunk ----
    emb2d = emb_ref[...].reshape(WC * TN, emb_ref.shape[-1])
    gx_ref[...] = (jnp.dot(emb2d, wih_ref[...],
                           preferred_element_type=jnp.float32)
                   + b_ref[...]).astype(gx_ref.dtype)

    whh = whh_ref[...]                               # (Hp, 4Hp) compute dtype
    wtok = wtok_ref[...].astype(jnp.float32)         # (1, Hp)
    btok = btok_ref[...].astype(jnp.float32)         # (1, 1)

    def step(t, carry):
        start = pl.multiple_of(t * TN, TN)
        gates = (gx_ref[pl.ds(start, TN), :].astype(jnp.float32)
                 + jnp.dot(h_ref[...].astype(whh.dtype), whh,
                           preferred_element_type=jnp.float32))   # (TN, 4Hp) f32
        ga = gates.astype(act_dtype)  # bf16 on v6e/v7x: cheaper EUP/VPU passes
        i = _fast_sigmoid(ga[:, 0 * Hp:1 * Hp]).astype(jnp.float32)
        f = _fast_sigmoid(ga[:, 1 * Hp:2 * Hp]).astype(jnp.float32)
        g = jnp.tanh(ga[:, 2 * Hp:3 * Hp]).astype(jnp.float32)
        o = _fast_sigmoid(ga[:, 3 * Hp:4 * Hp]).astype(jnp.float32)
        c_new = f * c_ref[...] + i * g               # f32 state
        h_new = o * jnp.tanh(c_new)
        c_ref[...] = c_new
        h_ref[...] = h_new

        # ---- online softmax over the word axis, fused into the recurrence ----
        s_t = jnp.sum(h_new * wtok, axis=-1, keepdims=True) + btok   # (TN, 1)
        m_new = jnp.maximum(m_ref[...], s_t)
        alpha = jnp.exp(m_ref[...] - m_new)
        p = jnp.exp(s_t - m_new)
        l_ref[...] = alpha * l_ref[...] + p
        acc_ref[...] = alpha * acc_ref[...] + p * h_new
        m_ref[...] = m_new
        return carry

    # capped-unroll recurrent loop over this chunk's timesteps
    lax.fori_loop(0, WC, step, 0, unroll=unroll)

    # ---- normalize + write out only after the last time chunk ----
    @pl.when(wc == pl.num_programs(1) - 1)
    def _finalize():
        inv_l = pl.reciprocal(l_ref[...], approx=approx_recip)
        out_ref[...] = (acc_ref[...] * inv_l).astype(out_ref.dtype)


# ---------------------------------------------------------------------------
# Kernel 2: sum over sentences + classifier linear, tiled over batch.
#   inputs : attn_vecs (B_pad, S, Hp) tiled (TB, S, Hp); w_cls (Hp, Cp); b_cls (1, Cp)
#   output : logits (B_pad, Cp) tiled (TB, Cp)
# ---------------------------------------------------------------------------
def classifier_kernel(x_ref, wc_ref, bc_ref, out_ref):
    v = jnp.sum(x_ref[...].astype(jnp.float32), axis=1)              # (TB, Hp)
    out_ref[...] = (jnp.dot(v, wc_ref[...], preferred_element_type=jnp.float32)
                    + bc_ref[...]).astype(out_ref.dtype)


# ---------------------------------------------------------------------------
# Wrapper
# ---------------------------------------------------------------------------
def lstm_forward(x, params, *, compute_dtype=jnp.bfloat16):
    """Forward pass of the attention-pooled LSTM classifier.

    compute_dtype is the matmul / storage dtype for emb, w_ih, w_hh and the
    hoisted projection; all recurrent state and accumulation stay f32.
    """
    B, S, W = x.shape
    emb_table = params["embedding"]                   # (V, E)
    E = emb_table.shape[1]
    H = params["w_hh_t"].shape[0]
    C = params["w_cls_t"].shape[1]
    N = B * S

    Hp = _round_up(H, 128)                            # lane-dense hidden size
    G = 4 * Hp
    Cp = _round_up(C, 128)                            # lane-dense logits

    # ---- chip-aware VMEM budgeting ----
    vmem_cap, has_bf16_alu = _tpu_vmem_and_bf16()
    if vmem_cap <= (64 << 20):           # v7x: 64 MiB / TC -> leave headroom
        tile_budget = 26 << 20
        vmem_cap_limit = 52 << 20
    else:                                # v5e / v6e: 128 MiB
        tile_budget = 72 << 20
        vmem_cap_limit = 100 << 20

    is_bf16 = np.dtype(compute_dtype) == np.dtype(jnp.bfloat16)
    cbytes = np.dtype(compute_dtype).itemsize
    gx_dtype = compute_dtype                          # compact hoisted projection
    attn_dtype = compute_dtype
    act_dtype = jnp.bfloat16 if (is_bf16 and has_bf16_alu) else jnp.float32
    approx_recip = bool(is_bf16)

    e_lane = _round_up(E, 128)                        # emb block is lane-padded

    def tile_bytes(tn, wc):
        emb_blk = 2 * wc * tn * e_lane * cbytes                     # dbl-buffered
        gx = wc * tn * G * np.dtype(gx_dtype).itemsize
        state = 3 * tn * Hp * 4 + 2 * tn * 128 * 4                  # h,c,acc,m,l
        weights = ((_round_up(E, 8) + Hp) * G * cbytes              # single-buf
                   + 8 * (G + Hp + 128) * 4)
        out_blk = 2 * tn * Hp * np.dtype(attn_dtype).itemsize
        return emb_blk + gx + state + weights + out_blk

    # ---- pick batch tile TN and time-chunk WC (divisor of W) ----
    tn_candidates = [t for t in (256, 128, 64, 32, 16, 8)
                     if t <= max(_round_up(N, 8), 8)]
    w_divisors = [d for d in range(W, 0, -1) if W % d == 0]
    TN, WC = 8, 1
    done = False
    for tn in tn_candidates:
        for wc in w_divisors:
            if tile_bytes(tn, wc) <= tile_budget:
                TN, WC = tn, wc
                done = True
                break
        if done:
            break
    # ensure the "parallel" batch axis has >= 2 steps (v7x: 2 TensorCores)
    while TN >= 16 and _round_up(N, TN) // TN < 2:
        TN //= 2
    N_pad = _round_up(N, TN)
    vmem_limit = int(min(max(2 * tile_bytes(TN, WC), 32 << 20), vmem_cap_limit))
    unroll_n = WC if WC <= 16 else 4                  # cap unroll for long chunks

    # ---- zero-pad weights to lane-dense shapes (padded hidden units stay 0) ----
    def pad_gates(w, in_dim_pad):
        # w: (in_dim, 4H) gate-ordered [i, f, g, o] -> (in_dim_pad, 4*Hp)
        in_dim = w.shape[0]
        blocks = [_pad_to(w[:, k * H:(k + 1) * H], (in_dim, Hp)) for k in range(4)]
        return _pad_to(jnp.concatenate(blocks, axis=1), (in_dim_pad, G))

    w_ih_p = pad_gates(params["w_ih_t"], E).astype(compute_dtype)
    w_hh_p = pad_gates(params["w_hh_t"], Hp).astype(compute_dtype)
    bias_p = pad_gates(params["bias"], 1).astype(jnp.float32)
    w_tok_p = _pad_to(params["w_tok"], (1, Hp)).astype(jnp.float32)
    b_tok = params["b_tok"].astype(jnp.float32)
    w_cls_p = _pad_to(params["w_cls_t"], (Hp, Cp)).astype(jnp.float32)
    b_cls_p = _pad_to(params["b_cls"], (1, Cp)).astype(jnp.float32)

    # ---- embedding lookup (data-dependent gather) stays in plain JAX glue ----
    emb = emb_table[x.reshape(N, W)]                  # (N, W, E)
    emb = jnp.transpose(emb, (1, 0, 2))               # (W, N, E) time-major
    if N_pad != N:
        emb = jnp.pad(emb, ((0, 0), (0, N_pad - N), (0, 0)))
    emb = emb.astype(compute_dtype)

    kernel = functools.partial(lstm_attention_kernel, act_dtype=act_dtype,
                               approx_recip=approx_recip, unroll=unroll_n)

    def run_attention(single_buffer_weights):
        def weight_spec(shape):
            zeros = (0,) * len(shape)
            if single_buffer_weights:
                return pl.BlockSpec(shape, lambda n, wc, _z=zeros: _z,
                                    pipeline_mode=pl.Buffered(1))
            return pl.BlockSpec(shape, lambda n, wc, _z=zeros: _z)

        return pl.pallas_call(
            kernel,
            out_shape=jax.ShapeDtypeStruct((N_pad, Hp), attn_dtype),
            grid=(N_pad // TN, W // WC),
            in_specs=[
                pl.BlockSpec((WC, TN, E), lambda n, wc: (wc, n, 0)),
                weight_spec((E, G)),
                weight_spec((Hp, G)),
                weight_spec((1, G)),
                weight_spec((1, Hp)),
                weight_spec((1, 1)),
            ],
            out_specs=pl.BlockSpec((TN, Hp), lambda n, wc: (n, 0)),
            scratch_shapes=[
                pltpu.VMEM((WC * TN, G), gx_dtype),   # gx: hoisted input proj
                pltpu.VMEM((TN, Hp), jnp.float32),    # h
                pltpu.VMEM((TN, Hp), jnp.float32),    # c
                pltpu.VMEM((TN, 1), jnp.float32),     # running max
                pltpu.VMEM((TN, 1), jnp.float32),     # running denom
                pltpu.VMEM((TN, Hp), jnp.float32),    # weighted accumulator
            ],
            compiler_params=pltpu.CompilerParams(
                dimension_semantics=("parallel", "arbitrary"),
                vmem_limit_bytes=vmem_limit),
        )(emb, w_ih_p, w_hh_p, bias_p, w_tok_p, b_tok)

    try:
        attn = run_attention(True)          # single-buffered invariant weights
    except Exception:
        attn = run_attention(False)         # fallback: default double-buffering

    attn = attn[:N].reshape(B, S, Hp)

    # ---- classifier: sentence sum + (B, Hp) @ (Hp, Cp), tiled over batch ----
    TB = min(B, 128)
    B_pad = _round_up(B, TB)
    if B_pad != B:
        attn = jnp.pad(attn, ((0, B_pad - B), (0, 0), (0, 0)))
    cls_bytes = (2 * TB * S * Hp * np.dtype(attn_dtype).itemsize
                 + 2 * TB * Cp * 4 + Hp * Cp * 4 + 8 * Cp * 4)
    cls_vmem_limit = int(min(max(4 * cls_bytes, 16 << 20), vmem_cap_limit))

    logits = pl.pallas_call(
        classifier_kernel,
        out_shape=jax.ShapeDtypeStruct((B_pad, Cp), jnp.float32),
        grid=(B_pad // TB,),
        in_specs=[
            pl.BlockSpec((TB, S, Hp), lambda b: (b, 0, 0)),
            pl.BlockSpec((Hp, Cp), lambda b: (0, 0)),
            pl.BlockSpec((1, Cp), lambda b: (0, 0)),
        ],
        out_specs=pl.BlockSpec((TB, Cp), lambda b: (b, 0)),
        compiler_params=pltpu.CompilerParams(
            dimension_semantics=("parallel",),
            vmem_limit_bytes=cls_vmem_limit),
    )(attn, w_cls_p, b_cls_p)

    return logits[:B, :C]


# ---------------------------------------------------------------------------
# Pure-JAX reference (mirrors the PyTorch forward) for a sanity check.
# ---------------------------------------------------------------------------
def reference_forward(x, p):
    B, S, W = x.shape
    H = p["w_hh_t"].shape[0]
    emb = p["embedding"][x].reshape(B * S, W, -1)

    def step(carry, x_t):
        h, c = carry
        gates = x_t @ p["w_ih_t"] + h @ p["w_hh_t"] + p["bias"][0]
        i = jax.nn.sigmoid(gates[:, :H])
        f = jax.nn.sigmoid(gates[:, H:2 * H])
        g = jnp.tanh(gates[:, 2 * H:3 * H])
        o = jax.nn.sigmoid(gates[:, 3 * H:])
        c = f * c + i * g
        h = o * jnp.tanh(c)
        return (h, c), h

    h0 = jnp.zeros((B * S, H), jnp.float32)
    c0 = jnp.zeros((B * S, H), jnp.float32)
    _, hs = lax.scan(step, (h0, c0), jnp.transpose(emb, (1, 0, 2)))
    lstm_out = jnp.transpose(hs, (1, 0, 2))              # (N, W, H)

    align = jnp.einsum("nwh,h->nw", lstm_out, p["w_tok"][0]) + p["b_tok"][0, 0]
    attn = jax.nn.softmax(align, axis=-1)
    av = jnp.einsum("nw,nwh->nh", attn, lstm_out)        # (N, H)
    av = av.reshape(B, S, H).sum(axis=1)                 # (B, H)
    return av @ p["w_cls_t"] + p["b_cls"][0]


if __name__ == "__main__":
    # small shapes consistent with the module
    B, S, W = 2, 4, 8            # batch, sentences, words
    V, E, H, C = 50, 16, 32, 5   # vocab, embedding_dim, hidden_dim, n_classes

    key = jax.random.PRNGKey(0)
    ks = jax.random.split(key, 10)

    params = {
        "embedding": jax.random.normal(ks[0], (V, E), jnp.float32) * 0.5,
        # PyTorch weight_ih (4H, E) / weight_hh (4H, H) -> transposed, gate order i,f,g,o
        "w_ih_t": jax.random.normal(ks[1], (E, 4 * H), jnp.float32) * 0.1,
        "w_hh_t": jax.random.normal(ks[2], (H, 4 * H), jnp.float32) * 0.1,
        # bias = bias_ih + bias_hh, folded into one (1, 4H)
        "bias": jax.random.normal(ks[3], (1, 4 * H), jnp.float32) * 0.1,
        # token_alignment: Linear(H, 1) -> weight (1, H), bias scalar
        "w_tok": jax.random.normal(ks[4], (1, H), jnp.float32) * 0.1,
        "b_tok": jax.random.normal(ks[5], (1, 1), jnp.float32) * 0.1,
        # classifier: Linear(H, C) -> transposed weight (H, C), bias (1, C)
        "w_cls_t": jax.random.normal(ks[6], (H, C), jnp.float32) * 0.1,
        "b_cls": jax.random.normal(ks[7], (1, C), jnp.float32) * 0.1,
    }

    x = jax.random.randint(ks[8], (B, S, W), 0, V, dtype=jnp.int32)

    ref = jax.block_until_ready(reference_forward(x, params))

    # f32 path: tight numerical check against the reference
    out_f32 = jax.block_until_ready(
        lstm_forward(x, params, compute_dtype=jnp.float32))
    assert out_f32.shape == (B, C), out_f32.shape
    assert jnp.allclose(out_f32, ref, rtol=2e-3, atol=2e-3), (
        f"f32 mismatch: max abs diff {jnp.max(jnp.abs(out_f32 - ref))}")

    # default bf16 (performance) path: looser tolerance (bf16 gate math)
    out_bf16 = jax.block_until_ready(lstm_forward(x, params))
    assert out_bf16.shape == (B, C), out_bf16.shape
    assert jnp.allclose(out_bf16, ref, rtol=6e-2, atol=6e-2), (
        f"bf16 mismatch: max abs diff {jnp.max(jnp.abs(out_bf16 - ref))}")

    print("KERNEL_OK")
</pallas_src>

<mosaic_0001>
module attributes {stable_mosaic.version = 11 : i64} {
  func.func @lstm_attention_kernel(%arg0: i32, %arg1: i32, %arg2: memref<8x8x16xf32, #tpu.memory_space<vmem>>, %arg3: memref<16x512xf32, #tpu.memory_space<vmem>>, %arg4: memref<128x512xf32, #tpu.memory_space<vmem>>, %arg5: memref<1x512xf32, #tpu.memory_space<vmem>>, %arg6: memref<1x128xf32, #tpu.memory_space<vmem>>, %arg7: memref<1x1xf32, #tpu.memory_space<vmem>>, %arg8: memref<8x128xf32, #tpu.memory_space<vmem>>, %arg9: memref<64x512xf32, #tpu.memory_space<vmem>>, %arg10: memref<8x128xf32, #tpu.memory_space<vmem>>, %arg11: memref<8x128xf32, #tpu.memory_space<vmem>>, %arg12: memref<8x1xf32, #tpu.memory_space<vmem>>, %arg13: memref<8x1xf32, #tpu.memory_space<vmem>>, %arg14: memref<8x128xf32, #tpu.memory_space<vmem>>) attributes {dimension_semantics = [#tpu.dimension_semantics<parallel>, #tpu.dimension_semantics<arbitrary>], iteration_bounds = array<i64: 1, 1>, scalar_prefetch = 0 : i64, scratch_operands = 6 : i64, tpu.core_type = #tpu.core_type<tc>, window_params = [{transform_indices = @transform_0, window_bounds = array<i64: 8, 8, 16>}, {pipeline_mode = #tpu.pipeline_mode<synchronous>, transform_indices = @transform_1, window_bounds = array<i64: 16, 512>}, {pipeline_mode = #tpu.pipeline_mode<synchronous>, transform_indices = @transform_2, window_bounds = array<i64: 128, 512>}, {pipeline_mode = #tpu.pipeline_mode<synchronous>, transform_indices = @transform_3, window_bounds = array<i64: 1, 512>}, {pipeline_mode = #tpu.pipeline_mode<synchronous>, transform_indices = @transform_4, window_bounds = array<i64: 1, 128>}, {pipeline_mode = #tpu.pipeline_mode<synchronous>, transform_indices = @transform_5, window_bounds = array<i64: 1, 1>}, {transform_indices = @transform_6, window_bounds = array<i64: 8, 128>}]} {
    %c0_i32 = arith.constant 0 : i32
    %0 = arith.cmpi eq, %arg1, %c0_i32 : i32
    %1 = arith.extui %0 : i1 to i32
    %c0_i32_0 = arith.constant 0 : i32
    %2 = arith.cmpi ne, %1, %c0_i32_0 : i32
    scf.if %2 {
      %cst_298 = arith.constant 0.000000e+00 : f32
      %545 = vector.broadcast %cst_298 : f32 to vector<8x128xf32>
      %c0_299 = arith.constant 0 : index
      %c0_300 = arith.constant 0 : index
      %546 = vector.load %arg10[%c0_299, %c0_300] : memref<8x128xf32, #tpu.memory_space<vmem>>, vector<8x128xf32>
      tpu.vector_store %arg10[%c0_299, %c0_300], %545 {strides = array<i32>} : memref<8x128xf32, #tpu.memory_space<vmem>>, vector<8x128xf32>,
      %cst_301 = arith.constant 0.000000e+00 : f32
      %547 = vector.broadcast %cst_301 : f32 to vector<8x128xf32>
      %c0_302 = arith.constant 0 : index
      %c0_303 = arith.constant 0 : index
      %548 = vector.load %arg11[%c0_302, %c0_303] : memref<8x128xf32, #tpu.memory_space<vmem>>, vector<8x128xf32>
      tpu.vector_store %arg11[%c0_302, %c0_303], %547 {strides = array<i32>} : memref<8x128xf32, #tpu.memory_space<vmem>>, vector<8x128xf32>,
      %cst_304 = arith.constant 0.000000e+00 : f32
      %549 = vector.broadcast %cst_304 : f32 to vector<8x128xf32>
      %c0_305 = arith.constant 0 : index
      %c0_306 = arith.constant 0 : index
      %550 = vector.load %arg14[%c0_305, %c0_306] : memref<8x128xf32, #tpu.memory_space<vmem>>, vector<8x128xf32>
      tpu.vector_store %arg14[%c0_305, %c0_306], %549 {strides = array<i32>} : memref<8x128xf32, #tpu.memory_space<vmem>>, vector<8x128xf32>,
      %cst_307 = arith.constant 0.000000e+00 : f32
      %551 = vector.broadcast %cst_307 : f32 to vector<8x1xf32>
      %c0_308 = arith.constant 0 : index
      %c0_309 = arith.constant 0 : index
      %552 = vector.load %arg13[%c0_308, %c0_309] : memref<8x1xf32, #tpu.memory_space<vmem>>, vector<8x1xf32>
      tpu.vector_store %arg13[%c0_308, %c0_309], %551 {strides = array<i32>} : memref<8x1xf32, #tpu.memory_space<vmem>>, vector<8x1xf32>,
      %cst_310 = arith.constant -1.000000e+30 : f32
      %553 = vector.broadcast %cst_310 : f32 to vector<8x1xf32>
      %c0_311 = arith.constant 0 : index
      %c0_312 = arith.constant 0 : index
      %554 = vector.load %arg12[%c0_311, %c0_312] : memref<8x1xf32, #tpu.memory_space<vmem>>, vector<8x1xf32>
      tpu.vector_store %arg12[%c0_311, %c0_312], %553 {strides = array<i32>} : memref<8x1xf32, #tpu.memory_space<vmem>>, vector<8x1xf32>,
    } else {
    }
    %c0 = arith.constant 0 : index
    %c0_1 = arith.constant 0 : index
    %c0_2 = arith.constant 0 : index
    %3 = vector.load %arg2[%c0, %c0_1, %c0_2] : memref<8x8x16xf32, #tpu.memory_space<vmem>>, vector<8x8x16xf32>
    %4 = vector.shape_cast %3 : vector<8x8x16xf32> to vector<64x16xf32>
    %c0_3 = arith.constant 0 : index
    %c0_4 = arith.constant 0 : index
    %5 = vector.load %arg3[%c0_3, %c0_4] : memref<16x512xf32, #tpu.memory_space<vmem>>, vector<16x512xf32>
    %cst = arith.constant dense<0.000000e+00> : vector<64x512xf32>
    %6 = tpu.matmul %4, %5, %cst {dimension_numbers = #tpu.dot_dimension_numbers<[1], [0], [0], [1], [0, 0, 1, 1], [], []>} : vector<64x16xf32>, vector<16x512xf32>, vector<64x512xf32> -> vector<64x512xf32>
    %c0_5 = arith.constant 0 : index
    %c0_6 = arith.constant 0 : index
    %7 = vector.load %arg5[%c0_5, %c0_6] : memref<1x512xf32, #tpu.memory_space<vmem>>, vector<1x512xf32>
    %8 = vector.broadcast %7 : vector<1x512xf32> to vector<64x512xf32>
    %9 = arith.addf %6, %8 : vector<64x512xf32>
    %c0_7 = arith.constant 0 : index
    %c0_8 = arith.constant 0 : index
    %10 = vector.load %arg9[%c0_7, %c0_8] : memref<64x512xf32, #tpu.memory_space<vmem>>, vector<64x512xf32>
    tpu.vector_store %arg9[%c0_7, %c0_8], %9 {strides = array<i32>} : memref<64x512xf32, #tpu.memory_space<vmem>>, vector<64x512xf32>,
    %c0_9 = arith.constant 0 : index
    %c0_10 = arith.constant 0 : index
    %11 = vector.load %arg4[%c0_9, %c0_10] : memref<128x512xf32, #tpu.memory_space<vmem>>, vector<128x512xf32>
    %c0_11 = arith.constant 0 : index
    %c0_12 = arith.constant 0 : index
    %12 = vector.load %arg6[%c0_11, %c0_12] : memref<1x128xf32, #tpu.memory_space<vmem>>, vector<1x128xf32>
    %c0_13 = arith.constant 0 : index
    %c0_14 = arith.constant 0 : index
    %13 = vector.load %arg7[%c0_13, %c0_14] : memref<1x1xf32, #tpu.memory_space<vmem>>, vector<1x1xf32>
    %c0_i32_15 = arith.constant 0 : i32
    %c8_i32 = arith.constant 8 : i32
    %14 = arith.muli %c0_i32_15, %c8_i32 : i32
    %15 = tpu.assume_multiple %14, 8 : i32
    %16 = arith.index_cast %15 : i32 to index
    %c0_16 = arith.constant 0 : index
    %17 = vector.load %arg9[%16, %c0_16] : memref<64x512xf32, #tpu.memory_space<vmem>>, vector<8x512xf32>
    %c0_17 = arith.constant 0 : index
    %c0_18 = arith.constant 0 : index
    %18 = vector.load %arg10[%c0_17, %c0_18] : memref<8x128xf32, #tpu.memory_space<vmem>>, vector<8x128xf32>
    %cst_19 = arith.constant dense<0.000000e+00> : vector<8x512xf32>
    %19 = tpu.matmul %18, %11, %cst_19 {dimension_numbers = #tpu.dot_dimension_numbers<[1], [0], [0], [1], [0, 0, 1, 1], [], []>} : vector<8x128xf32>, vector<128x512xf32>, vector<8x512xf32> -> vector<8x512xf32>
    %20 = arith.addf %17, %19 : vector<8x512xf32>
    %21 = vector.extract_strided_slice %20 {offsets = [0, 0], sizes = [8, 128], strides = [1, 1]} : vector<8x512xf32> to vector<8x128xf32>
    %cst_20 = arith.constant 5.000000e-01 : f32
    %22 = vector.broadcast %cst_20 : f32 to vector<8x128xf32>
    %23 = arith.mulf %22, %21 : vector<8x128xf32>
    %24 = math.tanh %23 : vector<8x128xf32>
    %cst_21 = arith.constant 5.000000e-01 : f32
    %25 = vector.broadcast %cst_21 : f32 to vector<8x128xf32>
    %26 = arith.mulf %25, %24 : vector<8x128xf32>
    %cst_22 = arith.constant 5.000000e-01 : f32
    %27 = vector.broadcast %cst_22 : f32 to vector<8x128xf32>
    %28 = arith.addf %26, %27 : vector<8x128xf32>
    %29 = vector.extract_strided_slice %20 {offsets = [0, 128], sizes = [8, 128], strides = [1, 1]} : vector<8x512xf32> to vector<8x128xf32>
    %cst_23 = arith.constant 5.000000e-01 : f32
    %30 = vector.broadcast %cst_23 : f32 to vector<8x128xf32>
    %31 = arith.mulf %30, %29 : vector<8x128xf32>
    %32 = math.tanh %31 : vector<8x128xf32>
    %cst_24 = arith.constant 5.000000e-01 : f32
    %33 = vector.broadcast %cst_24 : f32 to vector<8x128xf32>
    %34 = arith.mulf %33, %32 : vector<8x128xf32>
    %cst_25 = arith.constant 5.000000e-01 : f32
    %35 = vector.broadcast %cst_25 : f32 to vector<8x128xf32>
    %36 = arith.addf %34, %35 : vector<8x128xf32>
    %37 = vector.extract_strided_slice %20 {offsets = [0, 256], sizes = [8, 128], strides = [1, 1]} : vector<8x512xf32> to vector<8x128xf32>
    %38 = math.tanh %37 : vector<8x128xf32>
    %39 = vector.extract_strided_slice %20 {offsets = [0, 384], sizes = [8, 128], strides = [1, 1]} : vector<8x512xf32> to vector<8x128xf32>
    %cst_26 = arith.constant 5.000000e-01 : f32
    %40 = vector.broadcast %cst_26 : f32 to vector<8x128xf32>
    %41 = arith.mulf %40, %39 : vector<8x128xf32>
    %42 = math.tanh %41 : vector<8x128xf32>
    %cst_27 = arith.constant 5.000000e-01 : f32
    %43 = vector.broadcast %cst_27 : f32 to vector<8x128xf32>
    %44 = arith.mulf %43, %42 : vector<8x128xf32>
    %cst_28 = arith.constant 5.000000e-01 : f32
    %45 = vector.broadcast %cst_28 : f32 to vector<8x128xf32>
    %46 = arith.addf %44, %45 : vector<8x128xf32>
    %c0_29 = arith.constant 0 : index
    %c0_30 = arith.constant 0 : index
    %47 = vector.load %arg11[%c0_29, %c0_30] : memref<8x128xf32, #tpu.memory_space<vmem>>, vector<8x128xf32>
    %48 = arith.mulf %36, %47 : vector<8x128xf32>
    %49 = arith.mulf %28, %38 : vector<8x128xf32>
    %50 = arith.addf %48, %49 : vector<8x128xf32>
    %51 = math.tanh %50 : vector<8x128xf32>
    %52 = arith.mulf %46, %51 : vector<8x128xf32>
    %c0_31 = arith.constant 0 : index
    %c0_32 = arith.constant 0 : index
    %53 = vector.load %arg11[%c0_31, %c0_32] : memref<8x128xf32, #tpu.memory_space<vmem>>, vector<8x128xf32>
    tpu.vector_store %arg11[%c0_31, %c0_32], %50 {strides = array<i32>} : memref<8x128xf32, #tpu.memory_space<vmem>>, vector<8x128xf32>,
    %c0_33 = arith.constant 0 : index
    %c0_34 = arith.constant 0 : index
    %54 = vector.load %arg10[%c0_33, %c0_34] : memref<8x128xf32, #tpu.memory_space<vmem>>, vector<8x128xf32>
    tpu.vector_store %arg10[%c0_33, %c0_34], %52 {strides = array<i32>} : memref<8x128xf32, #tpu.memory_space<vmem>>, vector<8x128xf32>,
    %55 = vector.broadcast %12 : vector<1x128xf32> to vector<8x128xf32>
    %56 = arith.mulf %52, %55 : vector<8x128xf32>
    %cst_35 = arith.constant dense<0.000000e+00> : vector<8xf32>
    %57 = vector.multi_reduction <add>, %56, %cst_35 [1] : vector<8x128xf32> to vector<8xf32>
    %58 = vector.shape_cast %57 : vector<8xf32> to vector<8x1xf32>
    %59 = vector.broadcast %13 : vector<1x1xf32> to vector<8x1xf32>
    %60 = arith.addf %58, %59 : vector<8x1xf32>
    %c0_36 = arith.constant 0 : index
    %c0_37 = arith.constant 0 : index
    %61 = vector.load %arg12[%c0_36, %c0_37] : memref<8x1xf32, #tpu.memory_space<vmem>>, vector<8x1xf32>
    %62 = arith.maximumf %61, %60 : vector<8x1xf32>
    %c0_38 = arith.constant 0 : index
    %c0_39 = arith.constant 0 : index
    %63 = vector.load %arg12[%c0_38, %c0_39] : memref<8x1xf32, #tpu.memory_space<vmem>>, vector<8x1xf32>
    %64 = arith.subf %63, %62 : vector<8x1xf32>
    %65 = math.exp %64 : vector<8x1xf32>
    %66 = arith.subf %60, %62 : vector<8x1xf32>
    %67 = math.exp %66 : vector<8x1xf32>
    %c0_40 = arith.constant 0 : index
    %c0_41 = arith.constant 0 : index
    %68 = vector.load %arg13[%c0_40, %c0_41] : memref<8x1xf32, #tpu.memory_space<vmem>>, vector<8x1xf32>
    %69 = arith.mulf %65, %68 : vector<8x1xf32>
    %70 = arith.addf %69, %67 : vector<8x1xf32>
    %c0_42 = arith.constant 0 : index
    %c0_43 = arith.constant 0 : index
    %71 = vector.load %arg13[%c0_42, %c0_43] : memref<8x1xf32, #tpu.memory_space<vmem>>, vector<8x1xf32>
    tpu.vector_store %arg13[%c0_42, %c0_43], %70 {strides = array<i32>} : memref<8x1xf32, #tpu.memory_space<vmem>>, vector<8x1xf32>,
    %c0_44 = arith.constant 0 : index
    %c0_45 = arith.constant 0 : index
    %72 = vector.load %arg14[%c0_44, %c0_45] : memref<8x128xf32, #tpu.memory_space<vmem>>, vector<8x128xf32>
    %73 = vector.broadcast %65 : vector<8x1xf32> to vector<8x128xf32>
    %74 = arith.mulf %73, %72 : vector<8x128xf32>
    %75 = vector.broadcast %67 : vector<8x1xf32> to vector<8x128xf32>
    %76 = arith.mulf %75, %52 : vector<8x128xf32>
    %77 = arith.addf %74, %76 : vector<8x128xf32>
    %c0_46 = arith.constant 0 : index
    %c0_47 = arith.constant 0 : index
    %78 = vector.load %arg14[%c0_46, %c0_47] : memref<8x128xf32, #tpu.memory_space<vmem>>, vector<8x128xf32>
    tpu.vector_store %arg14[%c0_46, %c0_47], %77 {strides = array<i32>} : memref<8x128xf32, #tpu.memory_space<vmem>>, vector<8x128xf32>,
    %c0_48 = arith.constant 0 : index
    %c0_49 = arith.constant 0 : index
    %79 = vector.load %arg12[%c0_48, %c0_49] : memref<8x1xf32, #tpu.memory_space<vmem>>, vector<8x1xf32>
    tpu.vector_store %arg12[%c0_48, %c0_49], %62 {strides = array<i32>} : memref<8x1xf32, #tpu.memory_space<vmem>>, vector<8x1xf32>,
    %c1_i32 = arith.constant 1 : i32
    %c8_i32_50 = arith.constant 8 : i32
    %80 = arith.muli %c1_i32, %c8_i32_50 : i32
    %81 = tpu.assume_multiple %80, 8 : i32
    %82 = arith.index_cast %81 : i32 to index
    %c0_51 = arith.constant 0 : index
    %83 = vector.load %arg9[%82, %c0_51] : memref<64x512xf32, #tpu.memory_space<vmem>>, vector<8x512xf32>
    %c0_52 = arith.constant 0 : index
    %c0_53 = arith.constant 0 : index
    %84 = vector.load %arg10[%c0_52, %c0_53] : memref<8x128xf32, #tpu.memory_space<vmem>>, vector<8x128xf32>
    %cst_54 = arith.constant dense<0.000000e+00> : vector<8x512xf32>
    %85 = tpu.matmul %84, %11, %cst_54 {dimension_numbers = #tpu.dot_dimension_numbers<[1], [0], [0], [1], [0, 0, 1, 1], [], []>} : vector<8x128xf32>, vector<128x512xf32>, vector<8x512xf32> -> vector<8x512xf32>
    %86 = arith.addf %83, %85 : vector<8x512xf32>
    %87 = vector.extract_strided_slice %86 {offsets = [0, 0], sizes = [8, 128], strides = [1, 1]} : vector<8x512xf32> to vector<8x128xf32>
    %cst_55 = arith.constant 5.000000e-01 : f32
    %88 = vector.broadcast %cst_55 : f32 to vector<8x128xf32>
    %89 = arith.mulf %88, %87 : vector<8x128xf32>
    %90 = math.tanh %89 : vector<8x128xf32>
    %cst_56 = arith.constant 5.000000e-01 : f32
    %91 = vector.broadcast %cst_56 : f32 to vector<8x128xf32>
    %92 = arith.mulf %91, %90 : vector<8x128xf32>
    %cst_57 = arith.constant 5.000000e-01 : f32
    %93 = vector.broadcast %cst_57 : f32 to vector<8x128xf32>
    %94 = arith.addf %92, %93 : vector<8x128xf32>
    %95 = vector.extract_strided_slice %86 {offsets = [0, 128], sizes = [8, 128], strides = [1, 1]} : vector<8x512xf32> to vector<8x128xf32>
    %cst_58 = arith.constant 5.000000e-01 : f32
    %96 = vector.broadcast %cst_58 : f32 to vector<8x128xf32>
    %97 = arith.mulf %96, %95 : vector<8x128xf32>
    %98 = math.tanh %97 : vector<8x128xf32>
    %cst_59 = arith.constant 5.000000e-01 : f32
    %99 = vector.broadcast %cst_59 : f32 to vector<8x128xf32>
    %100 = arith.mulf %99, %98 : vector<8x128xf32>
    %cst_60 = arith.constant 5.000000e-01 : f32
    %101 = vector.broadcast %cst_60 : f32 to vector<8x128xf32>
    %102 = arith.addf %100, %101 : vector<8x128xf32>
    %103 = vector.extract_strided_slice %86 {offsets = [0, 256], sizes = [8, 128], strides = [1, 1]} : vector<8x512xf32> to vector<8x128xf32>
    %104 = math.tanh %103 : vector<8x128xf32>
    %105 = vector.extract_strided_slice %86 {offsets = [0, 384], sizes = [8, 128], strides = [1, 1]} : vector<8x512xf32> to vector<8x128xf32>
    %cst_61 = arith.constant 5.000000e-01 : f32
    %106 = vector.broadcast %cst_61 : f32 to vector<8x128xf32>
    %107 = arith.mulf %106, %105 : vector<8x128xf32>
    %108 = math.tanh %107 : vector<8x128xf32>
    %cst_62 = arith.constant 5.000000e-01 : f32
    %109 = vector.broadcast %cst_62 : f32 to vector<8x128xf32>
    %110 = arith.mulf %109, %108 : vector<8x128xf32>
    %cst_63 = arith.constant 5.000000e-01 : f32
    %111 = vector.broadcast %cst_63 : f32 to vector<8x128xf32>
    %112 = arith.addf %110, %111 : vector<8x128xf32>
    %c0_64 = arith.constant 0 : index
    %c0_65 = arith.constant 0 : index
    %113 = vector.load %arg11[%c0_64, %c0_65] : memref<8x128xf32, #tpu.memory_space<vmem>>, vector<8x128xf32>
    %114 = arith.mulf %102, %113 : vector<8x128xf32>
    %115 = arith.mulf %94, %104 : vector<8x128xf32>
    %116 = arith.addf %114, %115 : vector<8x128xf32>
    %117 = math.tanh %116 : vector<8x128xf32>
    %118 = arith.mulf %112, %117 : vector<8x128xf32>
    %c0_66 = arith.constant 0 : index
    %c0_67 = arith.constant 0 : index
    %119 = vector.load %arg11[%c0_66, %c0_67] : memref<8x128xf32, #tpu.memory_space<vmem>>, vector<8x128xf32>
    tpu.vector_store %arg11[%c0_66, %c0_67], %116 {strides = array<i32>} : memref<8x128xf32, #tpu.memory_space<vmem>>, vector<8x128xf32>,
    %c0_68 = arith.constant 0 : index
    %c0_69 = arith.constant 0 : index
    %120 = vector.load %arg10[%c0_68, %c0_69] : memref<8x128xf32, #tpu.memory_space<vmem>>, vector<8x128xf32>
    tpu.vector_store %arg10[%c0_68, %c0_69], %118 {strides = array<i32>} : memref<8x128xf32, #tpu.memory_space<vmem>>, vector<8x128xf32>,
    %121 = vector.broadcast %12 : vector<1x128xf32> to vector<8x128xf32>
    %122 = arith.mulf %118, %121 : vector<8x128xf32>
    %cst_70 = arith.constant dense<0.000000e+00> : vector<8xf32>
    %123 = vector.multi_reduction <add>, %122, %cst_70 [1] : vector<8x128xf32> to vector<8xf32>
    %124 = vector.shape_cast %123 : vector<8xf32> to vector<8x1xf32>
    %125 = vector.broadcast %13 : vector<1x1xf32> to vector<8x1xf32>
    %126 = arith.addf %124, %125 : vector<8x1xf32>
    %c0_71 = arith.constant 0 : index
    %c0_72 = arith.constant 0 : index
    %127 = vector.load %arg12[%c0_71, %c0_72] : memref<8x1xf32, #tpu.memory_space<vmem>>, vector<8x1xf32>
    %128 = arith.maximumf %127, %126 : vector<8x1xf32>
    %c0_73 = arith.constant 0 : index
    %c0_74 = arith.constant 0 : index
    %129 = vector.load %arg12[%c0_73, %c0_74] : memref<8x1xf32, #tpu.memory_space<vmem>>, vector<8x1xf32>
    %130 = arith.subf %129, %128 : vector<8x1xf32>
    %131 = math.exp %130 : vector<8x1xf32>
    %132 = arith.subf %126, %128 : vector<8x1xf32>
    %133 = math.exp %132 : vector<8x1xf32>
    %c0_75 = arith.constant 0 : index
    %c0_76 = arith.constant 0 : index
    %134 = vector.load %arg13[%c0_75, %c0_76] : memref<8x1xf32, #tpu.memory_space<vmem>>, vector<8x1xf32>
    %135 = arith.mulf %131, %134 : vector<8x1xf32>
    %136 = arith.addf %135, %133 : vector<8x1xf32>
    %c0_77 = arith.constant 0 : index
    %c0_78 = arith.constant 0 : index
    %137 = vector.load %arg13[%c0_77, %c0_78] : memref<8x1xf32, #tpu.memory_space<vmem>>, vector<8x1xf32>
    tpu.vector_store %arg13[%c0_77, %c0_78], %136 {strides = array<i32>} : memref<8x1xf32, #tpu.memory_space<vmem>>, vector<8x1xf32>,
    %c0_79 = arith.constant 0 : index
    %c0_80 = arith.constant 0 : index
    %138 = vector.load %arg14[%c0_79, %c0_80] : memref<8x128xf32, #tpu.memory_space<vmem>>, vector<8x128xf32>
    %139 = vector.broadcast %131 : vector<8x1xf32> to vector<8x128xf32>
    %140 = arith.mulf %139, %138 : vector<8x128xf32>
    %141 = vector.broadcast %133 : vector<8x1xf32> to vector<8x128xf32>
    %142 = arith.mulf %141, %118 : vector<8x128xf32>
    %143 = arith.addf %140, %142 : vector<8x128xf32>
    %c0_81 = arith.constant 0 : index
    %c0_82 = arith.constant 0 : index
    %144 = vector.load %arg14[%c0_81, %c0_82] : memref<8x128xf32, #tpu.memory_space<vmem>>, vector<8x128xf32>
    tpu.vector_store %arg14[%c0_81, %c0_82], %143 {strides = array<i32>} : memref<8x128xf32, #tpu.memory_space<vmem>>, vector<8x128xf32>,
    %c0_83 = arith.constant 0 : index
    %c0_84 = arith.constant 0 : index
    %145 = vector.load %arg12[%c0_83, %c0_84] : memref<8x1xf32, #tpu.memory_space<vmem>>, vector<8x1xf32>
    tpu.vector_store %arg12[%c0_83, %c0_84], %128 {strides = array<i32>} : memref<8x1xf32, #tpu.memory_space<vmem>>, vector<8x1xf32>,
    %c2_i32 = arith.constant 2 : i32
    %c8_i32_85 = arith.constant 8 : i32
    %146 = arith.muli %c2_i32, %c8_i32_85 : i32
    %147 = tpu.assume_multiple %146, 8 : i32
    %148 = arith.index_cast %147 : i32 to index
    %c0_86 = arith.constant 0 : index
    %149 = vector.load %arg9[%148, %c0_86] : memref<64x512xf32, #tpu.memory_space<vmem>>, vector<8x512xf32>
    %c0_87 = arith.constant 0 : index
    %c0_88 = arith.constant 0 : index
    %150 = vector.load %arg10[%c0_87, %c0_88] : memref<8x128xf32, #tpu.memory_space<vmem>>, vector<8x128xf32>
    %cst_89 = arith.constant dense<0.000000e+00> : vector<8x512xf32>
    %151 = tpu.matmul %150, %11, %cst_89 {dimension_numbers = #tpu.dot_dimension_numbers<[1], [0], [0], [1], [0, 0, 1, 1], [], []>} : vector<8x128xf32>, vector<128x512xf32>, vector<8x512xf32> -> vector<8x512xf32>
    %152 = arith.addf %149, %151 : vector<8x512xf32>
    %153 = vector.extract_strided_slice %152 {offsets = [0, 0], sizes = [8, 128], strides = [1, 1]} : vector<8x512xf32> to vector<8x128xf32>
    %cst_90 = arith.constant 5.000000e-01 : f32
    %154 = vector.broadcast %cst_90 : f32 to vector<8x128xf32>
    %155 = arith.mulf %154, %153 : vector<8x128xf32>
    %156 = math.tanh %155 : vector<8x128xf32>
    %cst_91 = arith.constant 5.000000e-01 : f32
    %157 = vector.broadcast %cst_91 : f32 to vector<8x128xf32>
    %158 = arith.mulf %157, %156 : vector<8x128xf32>
    %cst_92 = arith.constant 5.000000e-01 : f32
    %159 = vector.broadcast %cst_92 : f32 to vector<8x128xf32>
    %160 = arith.addf %158, %159 : vector<8x128xf32>
    %161 = vector.extract_strided_slice %152 {offsets = [0, 128], sizes = [8, 128], strides = [1, 1]} : vector<8x512xf32> to vector<8x128xf32>
    %cst_93 = arith.constant 5.000000e-01 : f32
    %162 = vector.broadcast %cst_93 : f32 to vector<8x128xf32>
    %163 = arith.mulf %162, %161 : vector<8x128xf32>
    %164 = math.tanh %163 : vector<8x128xf32>
    %cst_94 = arith.constant 5.000000e-01 : f32
    %165 = vector.broadcast %cst_94 : f32 to vector<8x128xf32>
    %166 = arith.mulf %165, %164 : vector<8x128xf32>
    %cst_95 = arith.constant 5.000000e-01 : f32
    %167 = vector.broadcast %cst_95 : f32 to vector<8x128xf32>
    %168 = arith.addf %166, %167 : vector<8x128xf32>
    %169 = vector.extract_strided_slice %152 {offsets = [0, 256], sizes = [8, 128], strides = [1, 1]} : vector<8x512xf32> to vector<8x128xf32>
    %170 = math.tanh %169 : vector<8x128xf32>
    %171 = vector.extract_strided_slice %152 {offsets = [0, 384], sizes = [8, 128], strides = [1, 1]} : vector<8x512xf32> to vector<8x128xf32>
    %cst_96 = arith.constant 5.000000e-01 : f32
    %172 = vector.broadcast %cst_96 : f32 to vector<8x128xf32>
    %173 = arith.mulf %172, %171 : vector<8x128xf32>
    %174 = math.tanh %173 : vector<8x128xf32>
    %cst_97 = arith.constant 5.000000e-01 : f32
    %175 = vector.broadcast %cst_97 : f32 to vector<8x128xf32>
    %176 = arith.mulf %175, %174 : vector<8x128xf32>
    %cst_98 = arith.constant 5.000000e-01 : f32
    %177 = vector.broadcast %cst_98 : f32 to vector<8x128xf32>
    %178 = arith.addf %176, %177 : vector<8x128xf32>
    %c0_99 = arith.constant 0 : index
    %c0_100 = arith.constant 0 : index
    %179 = vector.load %arg11[%c0_99, %c0_100] : memref<8x128xf32, #tpu.memory_space<vmem>>, vector<8x128xf32>
    %180 = arith.mulf %168, %179 : vector<8x128xf32>
    %181 = arith.mulf %160, %170 : vector<8x128xf32>
    %182 = arith.addf %180, %181 : vector<8x128xf32>
    %183 = math.tanh %182 : vector<8x128xf32>
    %184 = arith.mulf %178, %183 : vector<8x128xf32>
    %c0_101 = arith.constant 0 : index
    %c0_102 = arith.constant 0 : index
    %185 = vector.load %arg11[%c0_101, %c0_102] : memref<8x128xf32, #tpu.memory_space<vmem>>, vector<8x128xf32>
    tpu.vector_store %arg11[%c0_101, %c0_102], %182 {strides = array<i32>} : memref<8x128xf32, #tpu.memory_space<vmem>>, vector<8x128xf32>,
    %c0_103 = arith.constant 0 : index
    %c0_104 = arith.constant 0 : index
    %186 = vector.load %arg10[%c0_103, %c0_104] : memref<8x128xf32, #tpu.memory_space<vmem>>, vector<8x128xf32>
    tpu.vector_store %arg10[%c0_103, %c0_104], %184 {strides = array<i32>} : memref<8x128xf32, #tpu.memory_space<vmem>>, vector<8x128xf32>,
    %187 = vector.broadcast %12 : vector<1x128xf32> to vector<8x128xf32>
    %188 = arith.mulf %184, %187 : vector<8x128xf32>
    %cst_105 = arith.constant dense<0.000000e+00> : vector<8xf32>
    %189 = vector.multi_reduction <add>, %188, %cst_105 [1] : vector<8x128xf32> to vector<8xf32>
    %190 = vector.shape_cast %189 : vector<8xf32> to vector<8x1xf32>
    %191 = vector.broadcast %13 : vector<1x1xf32> to vector<8x1xf32>
    %192 = arith.addf %190, %191 : vector<8x1xf32>
    %c0_106 = arith.constant 0 : index
    %c0_107 = arith.constant 0 : index
    %193 = vector.load %arg12[%c0_106, %c0_107] : memref<8x1xf32, #tpu.memory_space<vmem>>, vector<8x1xf32>
    %194 = arith.maximumf %193, %192 : vector<8x1xf32>
    %c0_108 = arith.constant 0 : index
    %c0_109 = arith.constant 0 : index
    %195 = vector.load %arg12[%c0_108, %c0_109] : memref<8x1xf32, #tpu.memory_space<vmem>>, vector<8x1xf32>
    %196 = arith.subf %195, %194 : vector<8x1xf32>
    %197 = math.exp %196 : vector<8x1xf32>
    %198 = arith.subf %192, %194 : vector<8x1xf32>
    %199 = math.exp %198 : vector<8x1xf32>
    %c0_110 = arith.constant 0 : index
    %c0_111 = arith.constant 0 : index
    %200 = vector.load %arg13[%c0_110, %c0_111] : memref<8x1xf32, #tpu.memory_space<vmem>>, vector<8x1xf32>
    %201 = arith.mulf %197, %200 : vector<8x1xf32>
    %202 = arith.addf %201, %199 : vector<8x1xf32>
    %c0_112 = arith.constant 0 : index
    %c0_113 = arith.constant 0 : index
    %203 = vector.load %arg13[%c0_112, %c0_113] : memref<8x1xf32, #tpu.memory_space<vmem>>, vector<8x1xf32>
    tpu.vector_store %arg13[%c0_112, %c0_113], %202 {strides = array<i32>} : memref<8x1xf32, #tpu.memory_space<vmem>>, vector<8x1xf32>,
    %c0_114 = arith.constant 0 : index
    %c0_115 = arith.constant 0 : index
    %204 = vector.load %arg14[%c0_114, %c0_115] : memref<8x128xf32, #tpu.memory_space<vmem>>, vector<8x128xf32>
    %205 = vector.broadcast %197 : vector<8x1xf32> to vector<8x128xf32>
    %206 = arith.mulf %205, %204 : vector<8x128xf32>
    %207 = vector.broadcast %199 : vector<8x1xf32> to vector<8x128xf32>
    %208 = arith.mulf %207, %184 : vector<8x128xf32>
    %209 = arith.addf %206, %208 : vector<8x128xf32>
    %c0_116 = arith.constant 0 : index
    %c0_117 = arith.constant 0 : index
    %210 = vector.load %arg14[%c0_116, %c0_117] : memref<8x128xf32, #tpu.memory_space<vmem>>, vector<8x128xf32>
    tpu.vector_store %arg14[%c0_116, %c0_117], %209 {strides = array<i32>} : memref<8x128xf32, #tpu.memory_space<vmem>>, vector<8x128xf32>,
    %c0_118 = arith.constant 0 : index
    %c0_119 = arith.constant 0 : index
    %211 = vector.load %arg12[%c0_118, %c0_119] : memref<8x1xf32, #tpu.memory_space<vmem>>, vector<8x1xf32>
    tpu.vector_store %arg12[%c0_118, %c0_119], %194 {strides = array<i32>} : memref<8x1xf32, #tpu.memory_space<vmem>>, vector<8x1xf32>,
    %c3_i32 = arith.constant 3 : i32
    %c8_i32_120 = arith.constant 8 : i32
    %212 = arith.muli %c3_i32, %c8_i32_120 : i32
    %213 = tpu.assume_multiple %212, 8 : i32
    %214 = arith.index_cast %213 : i32 to index
    %c0_121 = arith.constant 0 : index
    %215 = vector.load %arg9[%214, %c0_121] : memref<64x512xf32, #tpu.memory_space<vmem>>, vector<8x512xf32>
    %c0_122 = arith.constant 0 : index
    %c0_123 = arith.constant 0 : index
    %216 = vector.load %arg10[%c0_122, %c0_123] : memref<8x128xf32, #tpu.memory_space<vmem>>, vector<8x128xf32>
    %cst_124 = arith.constant dense<0.000000e+00> : vector<8x512xf32>
    %217 = tpu.matmul %216, %11, %cst_124 {dimension_numbers = #tpu.dot_dimension_numbers<[1], [0], [0], [1], [0, 0, 1, 1], [], []>} : vector<8x128xf32>, vector<128x512xf32>, vector<8x512xf32> -> vector<8x512xf32>
    %218 = arith.addf %215, %217 : vector<8x512xf32>
    %219 = vector.extract_strided_slice %218 {offsets = [0, 0], sizes = [8, 128], strides = [1, 1]} : vector<8x512xf32> to vector<8x128xf32>
    %cst_125 = arith.constant 5.000000e-01 : f32
    %220 = vector.broadcast %cst_125 : f32 to vector<8x128xf32>
    %221 = arith.mulf %220, %219 : vector<8x128xf32>
    %222 = math.tanh %221 : vector<8x128xf32>
    %cst_126 = arith.constant 5.000000e-01 : f32
    %223 = vector.broadcast %cst_126 : f32 to vector<8x128xf32>
    %224 = arith.mulf %223, %222 : vector<8x128xf32>
    %cst_127 = arith.constant 5.000000e-01 : f32
    %225 = vector.broadcast %cst_127 : f32 to vector<8x128xf32>
    %226 = arith.addf %224, %225 : vector<8x128xf32>
    %227 = vector.extract_strided_slice %218 {offsets = [0, 128], sizes = [8, 128], strides = [1, 1]} : vector<8x512xf32> to vector<8x128xf32>
    %cst_128 = arith.constant 5.000000e-01 : f32
    %228 = vector.broadcast %cst_128 : f32 to vector<8x128xf32>
    %229 = arith.mulf %228, %227 : vector<8x128xf32>
    %230 = math.tanh %229 : vector<8x128xf32>
    %cst_129 = arith.constant 5.000000e-01 : f32
    %231 = vector.broadcast %cst_129 : f32 to vector<8x128xf32>
    %232 = arith.mulf %231, %230 : vector<8x128xf32>
    %cst_130 = arith.constant 5.000000e-01 : f32
    %233 = vector.broadcast %cst_130 : f32 to vector<8x128xf32>
    %234 = arith.addf %232, %233 : vector<8x128xf32>
    %235 = vector.extract_strided_slice %218 {offsets = [0, 256], sizes = [8, 128], strides = [1, 1]} : vector<8x512xf32> to vector<8x128xf32>
    %236 = math.tanh %235 : vector<8x128xf32>
    %237 = vector.extract_strided_slice %218 {offsets = [0, 384], sizes = [8, 128], strides = [1, 1]} : vector<8x512xf32> to vector<8x128xf32>
    %cst_131 = arith.constant 5.000000e-01 : f32
    %238 = vector.broadcast %cst_131 : f32 to vector<8x128xf32>
    %239 = arith.mulf %238, %237 : vector<8x128xf32>
    %240 = math.tanh %239 : vector<8x128xf32>
    %cst_132 = arith.constant 5.000000e-01 : f32
    %241 = vector.broadcast %cst_132 : f32 to vector<8x128xf32>
    %242 = arith.mulf %241, %240 : vector<8x128xf32>
    %cst_133 = arith.constant 5.000000e-01 : f32
    %243 = vector.broadcast %cst_133 : f32 to vector<8x128xf32>
    %244 = arith.addf %242, %243 : vector<8x128xf32>
    %c0_134 = arith.constant 0 : index
    %c0_135 = arith.constant 0 : index
    %245 = vector.load %arg11[%c0_134, %c0_135] : memref<8x128xf32, #tpu.memory_space<vmem>>, vector<8x128xf32>
    %246 = arith.mulf %234, %245 : vector<8x128xf32>
    %247 = arith.mulf %226, %236 : vector<8x128xf32>
    %248 = arith.addf %246, %247 : vector<8x128xf32>
    %249 = math.tanh %248 : vector<8x128xf32>
    %250 = arith.mulf %244, %249 : vector<8x128xf32>
    %c0_136 = arith.constant 0 : index
    %c0_137 = arith.constant 0 : index
    %251 = vector.load %arg11[%c0_136, %c0_137] : memref<8x128xf32, #tpu.memory_space<vmem>>, vector<8x128xf32>
    tpu.vector_store %arg11[%c0_136, %c0_137], %248 {strides = array<i32>} : memref<8x128xf32, #tpu.memory_space<vmem>>, vector<8x128xf32>,
    %c0_138 = arith.constant 0 : index
    %c0_139 = arith.constant 0 : index
    %252 = vector.load %arg10[%c0_138, %c0_139] : memref<8x128xf32, #tpu.memory_space<vmem>>, vector<8x128xf32>
    tpu.vector_store %arg10[%c0_138, %c0_139], %250 {strides = array<i32>} : memref<8x128xf32, #tpu.memory_space<vmem>>, vector<8x128xf32>,
    %253 = vector.broadcast %12 : vector<1x128xf32> to vector<8x128xf32>
    %254 = arith.mulf %250, %253 : vector<8x128xf32>
    %cst_140 = arith.constant dense<0.000000e+00> : vector<8xf32>
    %255 = vector.multi_reduction <add>, %254, %cst_140 [1] : vector<8x128xf32> to vector<8xf32>
    %256 = vector.shape_cast %255 : vector<8xf32> to vector<8x1xf32>
    %257 = vector.broadcast %13 : vector<1x1xf32> to vector<8x1xf32>
    %258 = arith.addf %256, %257 : vector<8x1xf32>
    %c0_141 = arith.constant 0 : index
    %c0_142 = arith.constant 0 : index
    %259 = vector.load %arg12[%c0_141, %c0_142] : memref<8x1xf32, #tpu.memory_space<vmem>>, vector<8x1xf32>
    %260 = arith.maximumf %259, %258 : vector<8x1xf32>
    %c0_143 = arith.constant 0 : index
    %c0_144 = arith.constant 0 : index
    %261 = vector.load %arg12[%c0_143, %c0_144] : memref<8x1xf32, #tpu.memory_space<vmem>>, vector<8x1xf32>
    %262 = arith.subf %261, %260 : vector<8x1xf32>
    %263 = math.exp %262 : vector<8x1xf32>
    %264 = arith.subf %258, %260 : vector<8x1xf32>
    %265 = math.exp %264 : vector<8x1xf32>
    %c0_145 = arith.constant 0 : index
    %c0_146 = arith.constant 0 : index
    %266 = vector.load %arg13[%c0_145, %c0_146] : memref<8x1xf32, #tpu.memory_space<vmem>>, vector<8x1xf32>
    %267 = arith.mulf %263, %266 : vector<8x1xf32>
    %268 = arith.addf %267, %265 : vector<8x1xf32>
    %c0_147 = arith.constant 0 : index
    %c0_148 = arith.constant 0 : index
    %269 = vector.load %arg13[%c0_147, %c0_148] : memref<8x1xf32, #tpu.memory_space<vmem>>, vector<8x1xf32>
    tpu.vector_store %arg13[%c0_147, %c0_148], %268 {strides = array<i32>} : memref<8x1xf32, #tpu.memory_space<vmem>>, vector<8x1xf32>,
    %c0_149 = arith.constant 0 : index
    %c0_150 = arith.constant 0 : index
    %270 = vector.load %arg14[%c0_149, %c0_150] : memref<8x128xf32, #tpu.memory_space<vmem>>, vector<8x128xf32>
    %271 = vector.broadcast %263 : vector<8x1xf32> to vector<8x128xf32>
    %272 = arith.mulf %271, %270 : vector<8x128xf32>
    %273 = vector.broadcast %265 : vector<8x1xf32> to vector<8x128xf32>
    %274 = arith.mulf %273, %250 : vector<8x128xf32>
    %275 = arith.addf %272, %274 : vector<8x128xf32>
    %c0_151 = arith.constant 0 : index
    %c0_152 = arith.constant 0 : index
    %276 = vector.load %arg14[%c0_151, %c0_152] : memref<8x128xf32, #tpu.memory_space<vmem>>, vector<8x128xf32>
    tpu.vector_store %arg14[%c0_151, %c0_152], %275 {strides = array<i32>} : memref<8x128xf32, #tpu.memory_space<vmem>>, vector<8x128xf32>,
    %c0_153 = arith.constant 0 : index
    %c0_154 = arith.constant 0 : index
    %277 = vector.load %arg12[%c0_153, %c0_154] : memref<8x1xf32, #tpu.memory_space<vmem>>, vector<8x1xf32>
    tpu.vector_store %arg12[%c0_153, %c0_154], %260 {strides = array<i32>} : memref<8x1xf32, #tpu.memory_space<vmem>>, vector<8x1xf32>,
    %c4_i32 = arith.constant 4 : i32
    %c8_i32_155 = arith.constant 8 : i32
    %278 = arith.muli %c4_i32, %c8_i32_155 : i32
    %279 = tpu.assume_multiple %278, 8 : i32
    %280 = arith.index_cast %279 : i32 to index
    %c0_156 = arith.constant 0 : index
    %281 = vector.load %arg9[%280, %c0_156] : memref<64x512xf32, #tpu.memory_space<vmem>>, vector<8x512xf32>
    %c0_157 = arith.constant 0 : index
    %c0_158 = arith.constant 0 : index
    %282 = vector.load %arg10[%c0_157, %c0_158] : memref<8x128xf32, #tpu.memory_space<vmem>>, vector<8x128xf32>
    %cst_159 = arith.constant dense<0.000000e+00> : vector<8x512xf32>
    %283 = tpu.matmul %282, %11, %cst_159 {dimension_numbers = #tpu.dot_dimension_numbers<[1], [0], [0], [1], [0, 0, 1, 1], [], []>} : vector<8x128xf32>, vector<128x512xf32>, vector<8x512xf32> -> vector<8x512xf32>
    %284 = arith.addf %281, %283 : vector<8x512xf32>
    %285 = vector.extract_strided_slice %284 {offsets = [0, 0], sizes = [8, 128], strides = [1, 1]} : vector<8x512xf32> to vector<8x128xf32>
    %cst_160 = arith.constant 5.000000e-01 : f32
    %286 = vector.broadcast %cst_160 : f32 to vector<8x128xf32>
    %287 = arith.mulf %286, %285 : vector<8x128xf32>
    %288 = math.tanh %287 : vector<8x128xf32>
    %cst_161 = arith.constant 5.000000e-01 : f32
    %289 = vector.broadcast %cst_161 : f32 to vector<8x128xf32>
    %290 = arith.mulf %289, %288 : vector<8x128xf32>
    %cst_162 = arith.constant 5.000000e-01 : f32
    %291 = vector.broadcast %cst_162 : f32 to vector<8x128xf32>
    %292 = arith.addf %290, %291 : vector<8x128xf32>
    %293 = vector.extract_strided_slice %284 {offsets = [0, 128], sizes = [8, 128], strides = [1, 1]} : vector<8x512xf32> to vector<8x128xf32>
    %cst_163 = arith.constant 5.000000e-01 : f32
    %294 = vector.broadcast %cst_163 : f32 to vector<8x128xf32>
    %295 = arith.mulf %294, %293 : vector<8x128xf32>
    %296 = math.tanh %295 : vector<8x128xf32>
    %cst_164 = arith.constant 5.000000e-01 : f32
    %297 = vector.broadcast %cst_164 : f32 to vector<8x128xf32>
    %298 = arith.mulf %297, %296 : vector<8x128xf32>
    %cst_165 = arith.constant 5.000000e-01 : f32
    %299 = vector.broadcast %cst_165 : f32 to vector<8x128xf32>
    %300 = arith.addf %298, %299 : vector<8x128xf32>
    %301 = vector.extract_strided_slice %284 {offsets = [0, 256], sizes = [8, 128], strides = [1, 1]} : vector<8x512xf32> to vector<8x128xf32>
    %302 = math.tanh %301 : vector<8x128xf32>
    %303 = vector.extract_strided_slice %284 {offsets = [0, 384], sizes = [8, 128], strides = [1, 1]} : vector<8x512xf32> to vector<8x128xf32>
    %cst_166 = arith.constant 5.000000e-01 : f32
    %304 = vector.broadcast %cst_166 : f32 to vector<8x128xf32>
    %305 = arith.mulf %304, %303 : vector<8x128xf32>
    %306 = math.tanh %305 : vector<8x128xf32>
    %cst_167 = arith.constant 5.000000e-01 : f32
    %307 = vector.broadcast %cst_167 : f32 to vector<8x128xf32>
    %308 = arith.mulf %307, %306 : vector<8x128xf32>
    %cst_168 = arith.constant 5.000000e-01 : f32
    %309 = vector.broadcast %cst_168 : f32 to vector<8x128xf32>
    %310 = arith.addf %308, %309 : vector<8x128xf32>
    %c0_169 = arith.constant 0 : index
    %c0_170 = arith.constant 0 : index
    %311 = vector.load %arg11[%c0_169, %c0_170] : memref<8x128xf32, #tpu.memory_space<vmem>>, vector<8x128xf32>
    %312 = arith.mulf %300, %311 : vector<8x128xf32>
    %313 = arith.mulf %292, %302 : vector<8x128xf32>
    %314 = arith.addf %312, %313 : vector<8x128xf32>
    %315 = math.tanh %314 : vector<8x128xf32>
    %316 = arith.mulf %310, %315 : vector<8x128xf32>
    %c0_171 = arith.constant 0 : index
    %c0_172 = arith.constant 0 : index
    %317 = vector.load %arg11[%c0_171, %c0_172] : memref<8x128xf32, #tpu.memory_space<vmem>>, vector<8x128xf32>
    tpu.vector_store %arg11[%c0_171, %c0_172], %314 {strides = array<i32>} : memref<8x128xf32, #tpu.memory_space<vmem>>, vector<8x128xf32>,
    %c0_173 = arith.constant 0 : index
    %c0_174 = arith.constant 0 : index
    %318 = vector.load %arg10[%c0_173, %c0_174] : memref<8x128xf32, #tpu.memory_space<vmem>>, vector<8x128xf32>
    tpu.vector_store %arg10[%c0_173, %c0_174], %316 {strides = array<i32>} : memref<8x128xf32, #tpu.memory_space<vmem>>, vector<8x128xf32>,
    %319 = vector.broadcast %12 : vector<1x128xf32> to vector<8x128xf32>
    %320 = arith.mulf %316, %319 : vector<8x128xf32>
    %cst_175 = arith.constant dense<0.000000e+00> : vector<8xf32>
    %321 = vector.multi_reduction <add>, %320, %cst_175 [1] : vector<8x128xf32> to vector<8xf32>
    %322 = vector.shape_cast %321 : vector<8xf32> to vector<8x1xf32>
    %323 = vector.broadcast %13 : vector<1x1xf32> to vector<8x1xf32>
    %324 = arith.addf %322, %323 : vector<8x1xf32>
    %c0_176 = arith.constant 0 : index
    %c0_177 = arith.constant 0 : index
    %325 = vector.load %arg12[%c0_176, %c0_177] : memref<8x1xf32, #tpu.memory_space<vmem>>, vector<8x1xf32>
    %326 = arith.maximumf %325, %324 : vector<8x1xf32>
    %c0_178 = arith.constant 0 : index
    %c0_179 = arith.constant 0 : index
    %327 = vector.load %arg12[%c0_178, %c0_179] : memref<8x1xf32, #tpu.memory_space<vmem>>, vector<8x1xf32>
    %328 = arith.subf %327, %326 : vector<8x1xf32>
    %329 = math.exp %328 : vector<8x1xf32>
    %330 = arith.subf %324, %326 : vector<8x1xf32>
    %331 = math.exp %330 : vector<8x1xf32>
    %c0_180 = arith.constant 0 : index
    %c0_181 = arith.constant 0 : index
    %332 = vector.load %arg13[%c0_180, %c0_181] : memref<8x1xf32, #tpu.memory_space<vmem>>, vector<8x1xf32>
    %333 = arith.mulf %329, %332 : vector<8x1xf32>
    %334 = arith.addf %333, %331 : vector<8x1xf32>
    %c0_182 = arith.constant 0 : index
    %c0_183 = arith.constant 0 : index
    %335 = vector.load %arg13[%c0_182, %c0_183] : memref<8x1xf32, #tpu.memory_space<vmem>>, vector<8x1xf32>
    tpu.vector_store %arg13[%c0_182, %c0_183], %334 {strides = array<i32>} : memref<8x1xf32, #tpu.memory_space<vmem>>, vector<8x1xf32>,
    %c0_184 = arith.constant 0 : index
    %c0_185 = arith.constant 0 : index
    %336 = vector.load %arg14[%c0_184, %c0_185] : memref<8x128xf32, #tpu.memory_space<vmem>>, vector<8x128xf32>
    %337 = vector.broadcast %329 : vector<8x1xf32> to vector<8x128xf32>
    %338 = arith.mulf %337, %336 : vector<8x128xf32>
    %339 = vector.broadcast %331 : vector<8x1xf32> to vector<8x128xf32>
    %340 = arith.mulf %339, %316 : vector<8x128xf32>
    %341 = arith.addf %338, %340 : vector<8x128xf32>
    %c0_186 = arith.constant 0 : index
    %c0_187 = arith.constant 0 : index
    %342 = vector.load %arg14[%c0_186, %c0_187] : memref<8x128xf32, #tpu.memory_space<vmem>>, vector<8x128xf32>
    tpu.vector_store %arg14[%c0_186, %c0_187], %341 {strides = array<i32>} : memref<8x128xf32, #tpu.memory_space<vmem>>, vector<8x128xf32>,
    %c0_188 = arith.constant 0 : index
    %c0_189 = arith.constant 0 : index
    %343 = vector.load %arg12[%c0_188, %c0_189] : memref<8x1xf32, #tpu.memory_space<vmem>>, vector<8x1xf32>
    tpu.vector_store %arg12[%c0_188, %c0_189], %326 {strides = array<i32>} : memref<8x1xf32, #tpu.memory_space<vmem>>, vector<8x1xf32>,
    %c5_i32 = arith.constant 5 : i32
    %c8_i32_190 = arith.constant 8 : i32
    %344 = arith.muli %c5_i32, %c8_i32_190 : i32
    %345 = tpu.assume_multiple %344, 8 : i32
    %346 = arith.index_cast %345 : i32 to index
    %c0_191 = arith.constant 0 : index
    %347 = vector.load %arg9[%346, %c0_191] : memref<64x512xf32, #tpu.memory_space<vmem>>, vector<8x512xf32>
    %c0_192 = arith.constant 0 : index
    %c0_193 = arith.constant 0 : index
    %348 = vector.load %arg10[%c0_192, %c0_193] : memref<8x128xf32, #tpu.memory_space<vmem>>, vector<8x128xf32>
    %cst_194 = arith.constant dense<0.000000e+00> : vector<8x512xf32>
    %349 = tpu.matmul %348, %11, %cst_194 {dimension_numbers = #tpu.dot_dimension_numbers<[1], [0], [0], [1], [0, 0, 1, 1], [], []>} : vector<8x128xf32>, vector<128x512xf32>, vector<8x512xf32> -> vector<8x512xf32>
    %350 = arith.addf %347, %349 : vector<8x512xf32>
    %351 = vector.extract_strided_slice %350 {offsets = [0, 0], sizes = [8, 128], strides = [1, 1]} : vector<8x512xf32> to vector<8x128xf32>
    %cst_195 = arith.constant 5.000000e-01 : f32
    %352 = vector.broadcast %cst_195 : f32 to vector<8x128xf32>
    %353 = arith.mulf %352, %351 : vector<8x128xf32>
    %354 = math.tanh %353 : vector<8x128xf32>
    %cst_196 = arith.constant 5.000000e-01 : f32
    %355 = vector.broadcast %cst_196 : f32 to vector<8x128xf32>
    %356 = arith.mulf %355, %354 : vector<8x128xf32>
    %cst_197 = arith.constant 5.000000e-01 : f32
    %357 = vector.broadcast %cst_197 : f32 to vector<8x128xf32>
    %358 = arith.addf %356, %357 : vector<8x128xf32>
    %359 = vector.extract_strided_slice %350 {offsets = [0, 128], sizes = [8, 128], strides = [1, 1]} : vector<8x512xf32> to vector<8x128xf32>
    %cst_198 = arith.constant 5.000000e-01 : f32
    %360 = vector.broadcast %cst_198 : f32 to vector<8x128xf32>
    %361 = arith.mulf %360, %359 : vector<8x128xf32>
    %362 = math.tanh %361 : vector<8x128xf32>
    %cst_199 = arith.constant 5.000000e-01 : f32
    %363 = vector.broadcast %cst_199 : f32 to vector<8x128xf32>
    %364 = arith.mulf %363, %362 : vector<8x128xf32>
    %cst_200 = arith.constant 5.000000e-01 : f32
    %365 = vector.broadcast %cst_200 : f32 to vector<8x128xf32>
    %366 = arith.addf %364, %365 : vector<8x128xf32>
    %367 = vector.extract_strided_slice %350 {offsets = [0, 256], sizes = [8, 128], strides = [1, 1]} : vector<8x512xf32> to vector<8x128xf32>
    %368 = math.tanh %367 : vector<8x128xf32>
    %369 = vector.extract_strided_slice %350 {offsets = [0, 384], sizes = [8, 128], strides = [1, 1]} : vector<8x512xf32> to vector<8x128xf32>
    %cst_201 = arith.constant 5.000000e-01 : f32
    %370 = vector.broadcast %cst_201 : f32 to vector<8x128xf32>
    %371 = arith.mulf %370, %369 : vector<8x128xf32>
    %372 = math.tanh %371 : vector<8x128xf32>
    %cst_202 = arith.constant 5.000000e-01 : f32
    %373 = vector.broadcast %cst_202 : f32 to vector<8x128xf32>
    %374 = arith.mulf %373, %372 : vector<8x128xf32>
    %cst_203 = arith.constant 5.000000e-01 : f32
    %375 = vector.broadcast %cst_203 : f32 to vector<8x128xf32>
    %376 = arith.addf %374, %375 : vector<8x128xf32>
    %c0_204 = arith.constant 0 : index
    %c0_205 = arith.constant 0 : index
    %377 = vector.load %arg11[%c0_204, %c0_205] : memref<8x128xf32, #tpu.memory_space<vmem>>, vector<8x128xf32>
    %378 = arith.mulf %366, %377 : vector<8x128xf32>
    %379 = arith.mulf %358, %368 : vector<8x128xf32>
    %380 = arith.addf %378, %379 : vector<8x128xf32>
    %381 = math.tanh %380 : vector<8x128xf32>
    %382 = arith.mulf %376, %381 : vector<8x128xf32>
    %c0_206 = arith.constant 0 : index
    %c0_207 = arith.constant 0 : index
    %383 = vector.load %arg11[%c0_206, %c0_207] : memref<8x128xf32, #tpu.memory_space<vmem>>, vector<8x128xf32>
    tpu.vector_store %arg11[%c0_206, %c0_207], %380 {strides = array<i32>} : memref<8x128xf32, #tpu.memory_space<vmem>>, vector<8x128xf32>,
    %c0_208 = arith.constant 0 : index
    %c0_209 = arith.constant 0 : index
    %384 = vector.load %arg10[%c0_208, %c0_209] : memref<8x128xf32, #tpu.memory_space<vmem>>, vector<8x128xf32>
    tpu.vector_store %arg10[%c0_208, %c0_209], %382 {strides = array<i32>} : memref<8x128xf32, #tpu.memory_space<vmem>>, vector<8x128xf32>,
    %385 = vector.broadcast %12 : vector<1x128xf32> to vector<8x128xf32>
    %386 = arith.mulf %382, %385 : vector<8x128xf32>
    %cst_210 = arith.constant dense<0.000000e+00> : vector<8xf32>
    %387 = vector.multi_reduction <add>, %386, %cst_210 [1] : vector<8x128xf32> to vector<8xf32>
    %388 = vector.shape_cast %387 : vector<8xf32> to vector<8x1xf32>
    %389 = vector.broadcast %13 : vector<1x1xf32> to vector<8x1xf32>
    %390 = arith.addf %388, %389 : vector<8x1xf32>
    %c0_211 = arith.constant 0 : index
    %c0_212 = arith.constant 0 : index
    %391 = vector.load %arg12[%c0_211, %c0_212] : memref<8x1xf32, #tpu.memory_space<vmem>>, vector<8x1xf32>
    %392 = arith.maximumf %391, %390 : vector<8x1xf32>
    %c0_213 = arith.constant 0 : index
    %c0_214 = arith.constant 0 : index
    %393 = vector.load %arg12[%c0_213, %c0_214] : memref<8x1xf32, #tpu.memory_space<vmem>>, vector<8x1xf32>
    %394 = arith.subf %393, %392 : vector<8x1xf32>
    %395 = math.exp %394 : vector<8x1xf32>
    %396 = arith.subf %390, %392 : vector<8x1xf32>
    %397 = math.exp %396 : vector<8x1xf32>
    %c0_215 = arith.constant 0 : index
    %c0_216 = arith.constant 0 : index
    %398 = vector.load %arg13[%c0_215, %c0_216] : memref<8x1xf32, #tpu.memory_space<vmem>>, vector<8x1xf32>
    %399 = arith.mulf %395, %398 : vector<8x1xf32>
    %400 = arith.addf %399, %397 : vector<8x1xf32>
    %c0_217 = arith.constant 0 : index
    %c0_218 = arith.constant 0 : index
    %401 = vector.load %arg13[%c0_217, %c0_218] : memref<8x1xf32, #tpu.memory_space<vmem>>, vector<8x1xf32>
    tpu.vector_store %arg13[%c0_217, %c0_218], %400 {strides = array<i32>} : memref<8x1xf32, #tpu.memory_space<vmem>>, vector<8x1xf32>,
    %c0_219 = arith.constant 0 : index
    %c0_220 = arith.constant 0 : index
    %402 = vector.load %arg14[%c0_219, %c0_220] : memref<8x128xf32, #tpu.memory_space<vmem>>, vector<8x128xf32>
    %403 = vector.broadcast %395 : vector<8x1xf32> to vector<8x128xf32>
    %404 = arith.mulf %403, %402 : vector<8x128xf32>
    %405 = vector.broadcast %397 : vector<8x1xf32> to vector<8x128xf32>
    %406 = arith.mulf %405, %382 : vector<8x128xf32>
    %407 = arith.addf %404, %406 : vector<8x128xf32>
    %c0_221 = arith.constant 0 : index
    %c0_222 = arith.constant 0 : index
    %408 = vector.load %arg14[%c0_221, %c0_222] : memref<8x128xf32, #tpu.memory_space<vmem>>, vector<8x128xf32>
    tpu.vector_store %arg14[%c0_221, %c0_222], %407 {strides = array<i32>} : memref<8x128xf32, #tpu.memory_space<vmem>>, vector<8x128xf32>,
    %c0_223 = arith.constant 0 : index
    %c0_224 = arith.constant 0 : index
    %409 = vector.load %arg12[%c0_223, %c0_224] : memref<8x1xf32, #tpu.memory_space<vmem>>, vector<8x1xf32>
    tpu.vector_store %arg12[%c0_223, %c0_224], %392 {strides = array<i32>} : memref<8x1xf32, #tpu.memory_space<vmem>>, vector<8x1xf32>,
    %c6_i32 = arith.constant 6 : i32
    %c8_i32_225 = arith.constant 8 : i32
    %410 = arith.muli %c6_i32, %c8_i32_225 : i32
    %411 = tpu.assume_multiple %410, 8 : i32
    %412 = arith.index_cast %411 : i32 to index
    %c0_226 = arith.constant 0 : index
    %413 = vector.load %arg9[%412, %c0_226] : memref<64x512xf32, #tpu.memory_space<vmem>>, vector<8x512xf32>
    %c0_227 = arith.constant 0 : index
    %c0_228 = arith.constant 0 : index
    %414 = vector.load %arg10[%c0_227, %c0_228] : memref<8x128xf32, #tpu.memory_space<vmem>>, vector<8x128xf32>
    %cst_229 = arith.constant dense<0.000000e+00> : vector<8x512xf32>
    %415 = tpu.matmul %414, %11, %cst_229 {dimension_numbers = #tpu.dot_dimension_numbers<[1], [0], [0], [1], [0, 0, 1, 1], [], []>} : vector<8x128xf32>, vector<128x512xf32>, vector<8x512xf32> -> vector<8x512xf32>
    %416 = arith.addf %413, %415 : vector<8x512xf32>
    %417 = vector.extract_strided_slice %416 {offsets = [0, 0], sizes = [8, 128], strides = [1, 1]} : vector<8x512xf32> to vector<8x128xf32>
    %cst_230 = arith.constant 5.000000e-01 : f32
    %418 = vector.broadcast %cst_230 : f32 to vector<8x128xf32>
    %419 = arith.mulf %418, %417 : vector<8x128xf32>
    %420 = math.tanh %419 : vector<8x128xf32>
    %cst_231 = arith.constant 5.000000e-01 : f32
    %421 = vector.broadcast %cst_231 : f32 to vector<8x128xf32>
    %422 = arith.mulf %421, %420 : vector<8x128xf32>
    %cst_232 = arith.constant 5.000000e-01 : f32
    %423 = vector.broadcast %cst_232 : f32 to vector<8x128xf32>
    %424 = arith.addf %422, %423 : vector<8x128xf32>
    %425 = vector.extract_strided_slice %416 {offsets = [0, 128], sizes = [8, 128], strides = [1, 1]} : vector<8x512xf32> to vector<8x128xf32>
    %cst_233 = arith.constant 5.000000e-01 : f32
    %426 = vector.broadcast %cst_233 : f32 to vector<8x128xf32>
    %427 = arith.mulf %426, %425 : vector<8x128xf32>
    %428 = math.tanh %427 : vector<8x128xf32>
    %cst_234 = arith.constant 5.000000e-01 : f32
    %429 = vector.broadcast %cst_234 : f32 to vector<8x128xf32>
    %430 = arith.mulf %429, %428 : vector<8x128xf32>
    %cst_235 = arith.constant 5.000000e-01 : f32
    %431 = vector.broadcast %cst_235 : f32 to vector<8x128xf32>
    %432 = arith.addf %430, %431 : vector<8x128xf32>
    %433 = vector.extract_strided_slice %416 {offsets = [0, 256], sizes = [8, 128], strides = [1, 1]} : vector<8x512xf32> to vector<8x128xf32>
    %434 = math.tanh %433 : vector<8x128xf32>
    %435 = vector.extract_strided_slice %416 {offsets = [0, 384], sizes = [8, 128], strides = [1, 1]} : vector<8x512xf32> to vector<8x128xf32>
    %cst_236 = arith.constant 5.000000e-01 : f32
    %436 = vector.broadcast %cst_236 : f32 to vector<8x128xf32>
    %437 = arith.mulf %436, %435 : vector<8x128xf32>
    %438 = math.tanh %437 : vector<8x128xf32>
    %cst_237 = arith.constant 5.000000e-01 : f32
    %439 = vector.broadcast %cst_237 : f32 to vector<8x128xf32>
    %440 = arith.mulf %439, %438 : vector<8x128xf32>
    %cst_238 = arith.constant 5.000000e-01 : f32
    %441 = vector.broadcast %cst_238 : f32 to vector<8x128xf32>
    %442 = arith.addf %440, %441 : vector<8x128xf32>
    %c0_239 = arith.constant 0 : index
    %c0_240 = arith.constant 0 : index
    %443 = vector.load %arg11[%c0_239, %c0_240] : memref<8x128xf32, #tpu.memory_space<vmem>>, vector<8x128xf32>
    %444 = arith.mulf %432, %443 : vector<8x128xf32>
    %445 = arith.mulf %424, %434 : vector<8x128xf32>
    %446 = arith.addf %444, %445 : vector<8x128xf32>
    %447 = math.tanh %446 : vector<8x128xf32>
    %448 = arith.mulf %442, %447 : vector<8x128xf32>
    %c0_241 = arith.constant 0 : index
    %c0_242 = arith.constant 0 : index
    %449 = vector.load %arg11[%c0_241, %c0_242] : memref<8x128xf32, #tpu.memory_space<vmem>>, vector<8x128xf32>
    tpu.vector_store %arg11[%c0_241, %c0_242], %446 {strides = array<i32>} : memref<8x128xf32, #tpu.memory_space<vmem>>, vector<8x128xf32>,
    %c0_243 = arith.constant 0 : index
    %c0_244 = arith.constant 0 : index
    %450 = vector.load %arg10[%c0_243, %c0_244] : memref<8x128xf32, #tpu.memory_space<vmem>>, vector<8x128xf32>
    tpu.vector_store %arg10[%c0_243, %c0_244], %448 {strides = array<i32>} : memref<8x128xf32, #tpu.memory_space<vmem>>, vector<8x128xf32>,
    %451 = vector.broadcast %12 : vector<1x128xf32> to vector<8x128xf32>
    %452 = arith.mulf %448, %451 : vector<8x128xf32>
    %cst_245 = arith.constant dense<0.000000e+00> : vector<8xf32>
    %453 = vector.multi_reduction <add>, %452, %cst_245 [1] : vector<8x128xf32> to vector<8xf32>
    %454 = vector.shape_cast %453 : vector<8xf32> to vector<8x1xf32>
    %455 = vector.broadcast %13 : vector<1x1xf32> to vector<8x1xf32>
    %456 = arith.addf %454, %455 : vector<8x1xf32>
    %c0_246 = arith.constant 0 : index
    %c0_247 = arith.constant 0 : index
    %457 = vector.load %arg12[%c0_246, %c0_247] : memref<8x1xf32, #tpu.memory_space<vmem>>, vector<8x1xf32>
    %458 = arith.maximumf %457, %456 : vector<8x1xf32>
    %c0_248 = arith.constant 0 : index
    %c0_249 = arith.constant 0 : index
    %459 = vector.load %arg12[%c0_248, %c0_249] : memref<8x1xf32, #tpu.memory_space<vmem>>, vector<8x1xf32>
    %460 = arith.subf %459, %458 : vector<8x1xf32>
    %461 = math.exp %460 : vector<8x1xf32>
    %462 = arith.subf %456, %458 : vector<8x1xf32>
    %463 = math.exp %462 : vector<8x1xf32>
    %c0_250 = arith.constant 0 : index
    %c0_251 = arith.constant 0 : index
    %464 = vector.load %arg13[%c0_250, %c0_251] : memref<8x1xf32, #tpu.memory_space<vmem>>, vector<8x1xf32>
    %465 = arith.mulf %461, %464 : vector<8x1xf32>
    %466 = arith.addf %465, %463 : vector<8x1xf32>
    %c0_252 = arith.constant 0 : index
    %c0_253 = arith.constant 0 : index
    %467 = vector.load %arg13[%c0_252, %c0_253] : memref<8x1xf32, #tpu.memory_space<vmem>>, vector<8x1xf32>
    tpu.vector_store %arg13[%c0_252, %c0_253], %466 {strides = array<i32>} : memref<8x1xf32, #tpu.memory_space<vmem>>, vector<8x1xf32>,
    %c0_254 = arith.constant 0 : index
    %c0_255 = arith.constant 0 : index
    %468 = vector.load %arg14[%c0_254, %c0_255] : memref<8x128xf32, #tpu.memory_space<vmem>>, vector<8x128xf32>
    %469 = vector.broadcast %461 : vector<8x1xf32> to vector<8x128xf32>
    %470 = arith.mulf %469, %468 : vector<8x128xf32>
    %471 = vector.broadcast %463 : vector<8x1xf32> to vector<8x128xf32>
    %472 = arith.mulf %471, %448 : vector<8x128xf32>
    %473 = arith.addf %470, %472 : vector<8x128xf32>
    %c0_256 = arith.constant 0 : index
    %c0_257 = arith.constant 0 : index
    %474 = vector.load %arg14[%c0_256, %c0_257] : memref<8x128xf32, #tpu.memory_space<vmem>>, vector<8x128xf32>
    tpu.vector_store %arg14[%c0_256, %c0_257], %473 {strides = array<i32>} : memref<8x128xf32, #tpu.memory_space<vmem>>, vector<8x128xf32>,
    %c0_258 = arith.constant 0 : index
    %c0_259 = arith.constant 0 : index
    %475 = vector.load %arg12[%c0_258, %c0_259] : memref<8x1xf32, #tpu.memory_space<vmem>>, vector<8x1xf32>
    tpu.vector_store %arg12[%c0_258, %c0_259], %458 {strides = array<i32>} : memref<8x1xf32, #tpu.memory_space<vmem>>, vector<8x1xf32>,
    %c7_i32 = arith.constant 7 : i32
    %c8_i32_260 = arith.constant 8 : i32
    %476 = arith.muli %c7_i32, %c8_i32_260 : i32
    %477 = tpu.assume_multiple %476, 8 : i32
    %478 = arith.index_cast %477 : i32 to index
    %c0_261 = arith.constant 0 : index
    %479 = vector.load %arg9[%478, %c0_261] : memref<64x512xf32, #tpu.memory_space<vmem>>, vector<8x512xf32>
    %c0_262 = arith.constant 0 : index
    %c0_263 = arith.constant 0 : index
    %480 = vector.load %arg10[%c0_262, %c0_263] : memref<8x128xf32, #tpu.memory_space<vmem>>, vector<8x128xf32>
    %cst_264 = arith.constant dense<0.000000e+00> : vector<8x512xf32>
    %481 = tpu.matmul %480, %11, %cst_264 {dimension_numbers = #tpu.dot_dimension_numbers<[1], [0], [0], [1], [0, 0, 1, 1], [], []>} : vector<8x128xf32>, vector<128x512xf32>, vector<8x512xf32> -> vector<8x512xf32>
    %482 = arith.addf %479, %481 : vector<8x512xf32>
    %483 = vector.extract_strided_slice %482 {offsets = [0, 0], sizes = [8, 128], strides = [1, 1]} : vector<8x512xf32> to vector<8x128xf32>
    %cst_265 = arith.constant 5.000000e-01 : f32
    %484 = vector.broadcast %cst_265 : f32 to vector<8x128xf32>
    %485 = arith.mulf %484, %483 : vector<8x128xf32>
    %486 = math.tanh %485 : vector<8x128xf32>
    %cst_266 = arith.constant 5.000000e-01 : f32
    %487 = vector.broadcast %cst_266 : f32 to vector<8x128xf32>
    %488 = arith.mulf %487, %486 : vector<8x128xf32>
    %cst_267 = arith.constant 5.000000e-01 : f32
    %489 = vector.broadcast %cst_267 : f32 to vector<8x128xf32>
    %490 = arith.addf %488, %489 : vector<8x128xf32>
    %491 = vector.extract_strided_slice %482 {offsets = [0, 128], sizes = [8, 128], strides = [1, 1]} : vector<8x512xf32> to vector<8x128xf32>
    %cst_268 = arith.constant 5.000000e-01 : f32
    %492 = vector.broadcast %cst_268 : f32 to vector<8x128xf32>
    %493 = arith.mulf %492, %491 : vector<8x128xf32>
    %494 = math.tanh %493 : vector<8x128xf32>
    %cst_269 = arith.constant 5.000000e-01 : f32
    %495 = vector.broadcast %cst_269 : f32 to vector<8x128xf32>
    %496 = arith.mulf %495, %494 : vector<8x128xf32>
    %cst_270 = arith.constant 5.000000e-01 : f32
    %497 = vector.broadcast %cst_270 : f32 to vector<8x128xf32>
    %498 = arith.addf %496, %497 : vector<8x128xf32>
    %499 = vector.extract_strided_slice %482 {offsets = [0, 256], sizes = [8, 128], strides = [1, 1]} : vector<8x512xf32> to vector<8x128xf32>
    %500 = math.tanh %499 : vector<8x128xf32>
    %501 = vector.extract_strided_slice %482 {offsets = [0, 384], sizes = [8, 128], strides = [1, 1]} : vector<8x512xf32> to vector<8x128xf32>
    %cst_271 = arith.constant 5.000000e-01 : f32
    %502 = vector.broadcast %cst_271 : f32 to vector<8x128xf32>
    %503 = arith.mulf %502, %501 : vector<8x128xf32>
    %504 = math.tanh %503 : vector<8x128xf32>
    %cst_272 = arith.constant 5.000000e-01 : f32
    %505 = vector.broadcast %cst_272 : f32 to vector<8x128xf32>
    %506 = arith.mulf %505, %504 : vector<8x128xf32>
    %cst_273 = arith.constant 5.000000e-01 : f32
    %507 = vector.broadcast %cst_273 : f32 to vector<8x128xf32>
    %508 = arith.addf %506, %507 : vector<8x128xf32>
    %c0_274 = arith.constant 0 : index
    %c0_275 = arith.constant 0 : index
    %509 = vector.load %arg11[%c0_274, %c0_275] : memref<8x128xf32, #tpu.memory_space<vmem>>, vector<8x128xf32>
    %510 = arith.mulf %498, %509 : vector<8x128xf32>
    %511 = arith.mulf %490, %500 : vector<8x128xf32>
    %512 = arith.addf %510, %511 : vector<8x128xf32>
    %513 = math.tanh %512 : vector<8x128xf32>
    %514 = arith.mulf %508, %513 : vector<8x128xf32>
    %c0_276 = arith.constant 0 : index
    %c0_277 = arith.constant 0 : index
    %515 = vector.load %arg11[%c0_276, %c0_277] : memref<8x128xf32, #tpu.memory_space<vmem>>, vector<8x128xf32>
    tpu.vector_store %arg11[%c0_276, %c0_277], %512 {strides = array<i32>} : memref<8x128xf32, #tpu.memory_space<vmem>>, vector<8x128xf32>,
    %c0_278 = arith.constant 0 : index
    %c0_279 = arith.constant 0 : index
    %516 = vector.load %arg10[%c0_278, %c0_279] : memref<8x128xf32, #tpu.memory_space<vmem>>, vector<8x128xf32>
    tpu.vector_store %arg10[%c0_278, %c0_279], %514 {strides = array<i32>} : memref<8x128xf32, #tpu.memory_space<vmem>>, vector<8x128xf32>,
    %517 = vector.broadcast %12 : vector<1x128xf32> to vector<8x128xf32>
    %518 = arith.mulf %514, %517 : vector<8x128xf32>
    %cst_280 = arith.constant dense<0.000000e+00> : vector<8xf32>
    %519 = vector.multi_reduction <add>, %518, %cst_280 [1] : vector<8x128xf32> to vector<8xf32>
    %520 = vector.shape_cast %519 : vector<8xf32> to vector<8x1xf32>
    %521 = vector.broadcast %13 : vector<1x1xf32> to vector<8x1xf32>
    %522 = arith.addf %520, %521 : vector<8x1xf32>
    %c0_281 = arith.constant 0 : index
    %c0_282 = arith.constant 0 : index
    %523 = vector.load %arg12[%c0_281, %c0_282] : memref<8x1xf32, #tpu.memory_space<vmem>>, vector<8x1xf32>
    %524 = arith.maximumf %523, %522 : vector<8x1xf32>
    %c0_283 = arith.constant 0 : index
    %c0_284 = arith.constant 0 : index
    %525 = vector.load %arg12[%c0_283, %c0_284] : memref<8x1xf32, #tpu.memory_space<vmem>>, vector<8x1xf32>
    %526 = arith.subf %525, %524 : vector<8x1xf32>
    %527 = math.exp %526 : vector<8x1xf32>
    %528 = arith.subf %522, %524 : vector<8x1xf32>
    %529 = math.exp %528 : vector<8x1xf32>
    %c0_285 = arith.constant 0 : index
    %c0_286 = arith.constant 0 : index
    %530 = vector.load %arg13[%c0_285, %c0_286] : memref<8x1xf32, #tpu.memory_space<vmem>>, vector<8x1xf32>
    %531 = arith.mulf %527, %530 : vector<8x1xf32>
    %532 = arith.addf %531, %529 : vector<8x1xf32>
    %c0_287 = arith.constant 0 : index
    %c0_288 = arith.constant 0 : index
    %533 = vector.load %arg13[%c0_287, %c0_288] : memref<8x1xf32, #tpu.memory_space<vmem>>, vector<8x1xf32>
    tpu.vector_store %arg13[%c0_287, %c0_288], %532 {strides = array<i32>} : memref<8x1xf32, #tpu.memory_space<vmem>>, vector<8x1xf32>,
    %c0_289 = arith.constant 0 : index
    %c0_290 = arith.constant 0 : index
    %534 = vector.load %arg14[%c0_289, %c0_290] : memref<8x128xf32, #tpu.memory_space<vmem>>, vector<8x128xf32>
    %535 = vector.broadcast %527 : vector<8x1xf32> to vector<8x128xf32>
    %536 = arith.mulf %535, %534 : vector<8x128xf32>
    %537 = vector.broadcast %529 : vector<8x1xf32> to vector<8x128xf32>
    %538 = arith.mulf %537, %514 : vector<8x128xf32>
    %539 = arith.addf %536, %538 : vector<8x128xf32>
    %c0_291 = arith.constant 0 : index
    %c0_292 = arith.constant 0 : index
    %540 = vector.load %arg14[%c0_291, %c0_292] : memref<8x128xf32, #tpu.memory_space<vmem>>, vector<8x128xf32>
    tpu.vector_store %arg14[%c0_291, %c0_292], %539 {strides = array<i32>} : memref<8x128xf32, #tpu.memory_space<vmem>>, vector<8x128xf32>,
    %c0_293 = arith.constant 0 : index
    %c0_294 = arith.constant 0 : index
    %541 = vector.load %arg12[%c0_293, %c0_294] : memref<8x1xf32, #tpu.memory_space<vmem>>, vector<8x1xf32>
    tpu.vector_store %arg12[%c0_293, %c0_294], %524 {strides = array<i32>} : memref<8x1xf32, #tpu.memory_space<vmem>>, vector<8x1xf32>,
    %c8_i32_295 = arith.constant 8 : i32
    %c0_i32_296 = arith.constant 0 : i32
    %542 = arith.cmpi eq, %arg1, %c0_i32_296 : i32
    %543 = arith.extui %542 : i1 to i32
    %c0_i32_297 = arith.constant 0 : i32
    %544 = arith.cmpi ne, %543, %c0_i32_297 : i32
    scf.if %544 {
      %c0_298 = arith.constant 0 : index
      %c0_299 = arith.constant 0 : index
      %545 = vector.load %arg13[%c0_298, %c0_299] : memref<8x1xf32, #tpu.memory_space<vmem>>, vector<8x1xf32>
      %546 = tpu.reciprocal %545 : vector<8x1xf32> -> vector<8x1xf32>
      %c0_300 = arith.constant 0 : index
      %c0_301 = arith.constant 0 : index
      %547 = vector.load %arg14[%c0_300, %c0_301] : memref<8x128xf32, #tpu.memory_space<vmem>>, vector<8x128xf32>
      %548 = vector.broadcast %546 : vector<8x1xf32> to vector<8x128xf32>
      %549 = arith.mulf %547, %548 : vector<8x128xf32>
      %c0_302 = arith.constant 0 : index
      %c0_303 = arith.constant 0 : index
      %550 = vector.load %arg8[%c0_302, %c0_303] : memref<8x128xf32, #tpu.memory_space<vmem>>, vector<8x128xf32>
      tpu.vector_store %arg8[%c0_302, %c0_303], %549 {strides = array<i32>} : memref<8x128xf32, #tpu.memory_space<vmem>>, vector<8x128xf32>,
    } else {
    }
    return
  }
  func.func @transform_0(%arg0: i32, %arg1: i32) -> (i32, i32, i32) {
    %c0_i32 = arith.constant 0 : i32
    %c0_i32_0 = arith.constant 0 : i32
    return %arg1, %arg0, %c0_i32 : i32, i32, i32
  }
  func.func @transform_1(%arg0: i32, %arg1: i32) -> (i32, i32) {
    %c0_i32 = arith.constant 0 : i32
    %c0_i32_0 = arith.constant 0 : i32
    %c0_i32_1 = arith.constant 0 : i32
    return %c0_i32, %c0_i32_0 : i32, i32
  }
  func.func @transform_2(%arg0: i32, %arg1: i32) -> (i32, i32) {
    %c0_i32 = arith.constant 0 : i32
    %c0_i32_0 = arith.constant 0 : i32
    %c0_i32_1 = arith.constant 0 : i32
    return %c0_i32, %c0_i32_0 : i32, i32
  }
  func.func @transform_3(%arg0: i32, %arg1: i32) -> (i32, i32) {
    %c0_i32 = arith.constant 0 : i32
    %c0_i32_0 = arith.constant 0 : i32
    %c0_i32_1 = arith.constant 0 : i32
    return %c0_i32, %c0_i32_0 : i32, i32
  }
  func.func @transform_4(%arg0: i32, %arg1: i32) -> (i32, i32) {
    %c0_i32 = arith.constant 0 : i32
    %c0_i32_0 = arith.constant 0 : i32
    %c0_i32_1 = arith.constant 0 : i32
    return %c0_i32, %c0_i32_0 : i32, i32
  }
  func.func @transform_5(%arg0: i32, %arg1: i32) -> (i32, i32) {
    %c0_i32 = arith.constant 0 : i32
    %c0_i32_0 = arith.constant 0 : i32
    %c0_i32_1 = arith.constant 0 : i32
    return %c0_i32, %c0_i32_0 : i32, i32
  }
  func.func @transform_6(%arg0: i32, %arg1: i32) -> (i32, i32) {
    %c0_i32 = arith.constant 0 : i32
    %c0_i32_0 = arith.constant 0 : i32
    return %arg0, %c0_i32 : i32, i32
  }
}

module attributes {stable_mosaic.version = 11 : i64} {
  func.func @lstm_attention_kernel(%arg0: i32, %arg1: i32, %arg2: memref<8x8x16xf32, #tpu.memory_space<vmem>>, %arg3: memref<16x512xf32, #tpu.memory_space<vmem>>, %arg4: memref<128x512xf32, #tpu.memory_space<vmem>>, %arg5: memref<1x512xf32, #tpu.memory_space<vmem>>, %arg6: memref<1x128xf32, #tpu.memory_space<vmem>>, %arg7: memref<1x1xf32, #tpu.memory_space<vmem>>, %arg8: memref<8x128xf32, #tpu.memory_space<vmem>>, %arg9: memref<64x512xf32, #tpu.memory_space<vmem>>, %arg10: memref<8x128xf32, #tpu.memory_space<vmem>>, %arg11: memref<8x128xf32, #tpu.memory_space<vmem>>, %arg12: memref<8x1xf32, #tpu.memory_space<vmem>>, %arg13: memref<8x1xf32, #tpu.memory_space<vmem>>, %arg14: memref<8x128xf32, #tpu.memory_space<vmem>>) attributes {dimension_semantics = [#tpu.dimension_semantics<parallel>, #tpu.dimension_semantics<arbitrary>], iteration_bounds = array<i64: 1, 1>, scalar_prefetch = 0 : i64, scratch_operands = 6 : i64, tpu.core_type = #tpu.core_type<tc>, window_params = [{transform_indices = @transform_0, window_bounds = array<i64: 8, 8, 16>}, {pipeline_mode = #tpu.pipeline_mode<synchronous>, transform_indices = @transform_1, window_bounds = array<i64: 16, 512>}, {pipeline_mode = #tpu.pipeline_mode<synchronous>, transform_indices = @transform_2, window_bounds = array<i64: 128, 512>}, {pipeline_mode = #tpu.pipeline_mode<synchronous>, transform_indices = @transform_3, window_bounds = array<i64: 1, 512>}, {pipeline_mode = #tpu.pipeline_mode<synchronous>, transform_indices = @transform_4, window_bounds = array<i64: 1, 128>}, {pipeline_mode = #tpu.pipeline_mode<synchronous>, transform_indices = @transform_5, window_bounds = array<i64: 1, 1>}, {transform_indices = @transform_6, window_bounds = array<i64: 8, 128>}]} {
    %c0_i32 = arith.constant 0 : i32
    %0 = arith.cmpi eq, %arg1, %c0_i32 : i32
    %1 = arith.extui %0 : i1 to i32
    %c0_i32_0 = arith.constant 0 : i32
    %2 = arith.cmpi ne, %1, %c0_i32_0 : i32
    scf.if %2 {
      %cst_298 = arith.constant 0.000000e+00 : f32
      %545 = vector.broadcast %cst_298 : f32 to vector<8x128xf32>
      %c0_299 = arith.constant 0 : index
      %c0_300 = arith.constant 0 : index
      %546 = vector.load %arg10[%c0_299, %c0_300] : memref<8x128xf32, #tpu.memory_space<vmem>>, vector<8x128xf32>
      tpu.vector_store %arg10[%c0_299, %c0_300], %545 {strides = array<i32>} : memref<8x128xf32, #tpu.memory_space<vmem>>, vector<8x128xf32>,
      %cst_301 = arith.constant 0.000000e+00 : f32
      %547 = vector.broadcast %cst_301 : f32 to vector<8x128xf32>
      %c0_302 = arith.constant 0 : index
      %c0_303 = arith.constant 0 : index
      %548 = vector.load %arg11[%c0_302, %c0_303] : memref<8x128xf32, #tpu.memory_space<vmem>>, vector<8x128xf32>
      tpu.vector_store %arg11[%c0_302, %c0_303], %547 {strides = array<i32>} : memref<8x128xf32, #tpu.memory_space<vmem>>, vector<8x128xf32>,
      %cst_304 = arith.constant 0.000000e+00 : f32
      %549 = vector.broadcast %cst_304 : f32 to vector<8x128xf32>
      %c0_305 = arith.constant 0 : index
      %c0_306 = arith.constant 0 : index
      %550 = vector.load %arg14[%c0_305, %c0_306] : memref<8x128xf32, #tpu.memory_space<vmem>>, vector<8x128xf32>
      tpu.vector_store %arg14[%c0_305, %c0_306], %549 {strides = array<i32>} : memref<8x128xf32, #tpu.memory_space<vmem>>, vector<8x128xf32>,
      %cst_307 = arith.constant 0.000000e+00 : f32
      %551 = vector.broadcast %cst_307 : f32 to vector<8x1xf32>
      %c0_308 = arith.constant 0 : index
      %c0_309 = arith.constant 0 : index
      %552 = vector.load %arg13[%c0_308, %c0_309] : memref<8x1xf32, #tpu.memory_space<vmem>>, vector<8x1xf32>
      tpu.vector_store %arg13[%c0_308, %c0_309], %551 {strides = array<i32>} : memref<8x1xf32, #tpu.memory_space<vmem>>, vector<8x1xf32>,
      %cst_310 = arith.constant -1.000000e+30 : f32
      %553 = vector.broadcast %cst_310 : f32 to vector<8x1xf32>
      %c0_311 = arith.constant 0 : index
      %c0_312 = arith.constant 0 : index
      %554 = vector.load %arg12[%c0_311, %c0_312] : memref<8x1xf32, #tpu.memory_space<vmem>>, vector<8x1xf32>
      tpu.vector_store %arg12[%c0_311, %c0_312], %553 {strides = array<i32>} : memref<8x1xf32, #tpu.memory_space<vmem>>, vector<8x1xf32>,
    } else {
    }
    %c0 = arith.constant 0 : index
    %c0_1 = arith.constant 0 : index
    %c0_2 = arith.constant 0 : index
    %3 = vector.load %arg2[%c0, %c0_1, %c0_2] : memref<8x8x16xf32, #tpu.memory_space<vmem>>, vector<8x8x16xf32>
    %4 = vector.shape_cast %3 : vector<8x8x16xf32> to vector<64x16xf32>
    %c0_3 = arith.constant 0 : index
    %c0_4 = arith.constant 0 : index
    %5 = vector.load %arg3[%c0_3, %c0_4] : memref<16x512xf32, #tpu.memory_space<vmem>>, vector<16x512xf32>
    %cst = arith.constant dense<0.000000e+00> : vector<64x512xf32>
    %6 = tpu.matmul %4, %5, %cst {dimension_numbers = #tpu.dot_dimension_numbers<[1], [0], [0], [1], [0, 0, 1, 1], [], []>} : vector<64x16xf32>, vector<16x512xf32>, vector<64x512xf32> -> vector<64x512xf32>
    %c0_5 = arith.constant 0 : index
    %c0_6 = arith.constant 0 : index
    %7 = vector.load %arg5[%c0_5, %c0_6] : memref<1x512xf32, #tpu.memory_space<vmem>>, vector<1x512xf32>
    %8 = vector.broadcast %7 : vector<1x512xf32> to vector<64x512xf32>
    %9 = arith.addf %6, %8 : vector<64x512xf32>
    %c0_7 = arith.constant 0 : index
    %c0_8 = arith.constant 0 : index
    %10 = vector.load %arg9[%c0_7, %c0_8] : memref<64x512xf32, #tpu.memory_space<vmem>>, vector<64x512xf32>
    tpu.vector_store %arg9[%c0_7, %c0_8], %9 {strides = array<i32>} : memref<64x512xf32, #tpu.memory_space<vmem>>, vector<64x512xf32>,
    %c0_9 = arith.constant 0 : index
    %c0_10 = arith.constant 0 : index
    %11 = vector.load %arg4[%c0_9, %c0_10] : memref<128x512xf32, #tpu.memory_space<vmem>>, vector<128x512xf32>
    %c0_11 = arith.constant 0 : index
    %c0_12 = arith.constant 0 : index
    %12 = vector.load %arg6[%c0_11, %c0_12] : memref<1x128xf32, #tpu.memory_space<vmem>>, vector<1x128xf32>
    %c0_13 = arith.constant 0 : index
    %c0_14 = arith.constant 0 : index
    %13 = vector.load %arg7[%c0_13, %c0_14] : memref<1x1xf32, #tpu.memory_space<vmem>>, vector<1x1xf32>
    %c0_i32_15 = arith.constant 0 : i32
    %c8_i32 = arith.constant 8 : i32
    %14 = arith.muli %c0_i32_15, %c8_i32 : i32
    %15 = tpu.assume_multiple %14, 8 : i32
    %16 = arith.index_cast %15 : i32 to index
    %c0_16 = arith.constant 0 : index
    %17 = vector.load %arg9[%16, %c0_16] : memref<64x512xf32, #tpu.memory_space<vmem>>, vector<8x512xf32>
    %c0_17 = arith.constant 0 : index
    %c0_18 = arith.constant 0 : index
    %18 = vector.load %arg10[%c0_17, %c0_18] : memref<8x128xf32, #tpu.memory_space<vmem>>, vector<8x128xf32>
    %cst_19 = arith.constant dense<0.000000e+00> : vector<8x512xf32>
    %19 = tpu.matmul %18, %11, %cst_19 {dimension_numbers = #tpu.dot_dimension_numbers<[1], [0], [0], [1], [0, 0, 1, 1], [], []>} : vector<8x128xf32>, vector<128x512xf32>, vector<8x512xf32> -> vector<8x512xf32>
    %20 = arith.addf %17, %19 : vector<8x512xf32>
    %21 = vector.extract_strided_slice %20 {offsets = [0, 0], sizes = [8, 128], strides = [1, 1]} : vector<8x512xf32> to vector<8x128xf32>
    %cst_20 = arith.constant 5.000000e-01 : f32
    %22 = vector.broadcast %cst_20 : f32 to vector<8x128xf32>
    %23 = arith.mulf %22, %21 : vector<8x128xf32>
    %24 = math.tanh %23 : vector<8x128xf32>
    %cst_21 = arith.constant 5.000000e-01 : f32
    %25 = vector.broadcast %cst_21 : f32 to vector<8x128xf32>
    %26 = arith.mulf %25, %24 : vector<8x128xf32>
    %cst_22 = arith.constant 5.000000e-01 : f32
    %27 = vector.broadcast %cst_22 : f32 to vector<8x128xf32>
    %28 = arith.addf %26, %27 : vector<8x128xf32>
    %29 = vector.extract_strided_slice %20 {offsets = [0, 128], sizes = [8, 128], strides = [1, 1]} : vector<8x512xf32> to vector<8x128xf32>
    %cst_23 = arith.constant 5.000000e-01 : f32
    %30 = vector.broadcast %cst_23 : f32 to vector<8x128xf32>
    %31 = arith.mulf %30, %29 : vector<8x128xf32>
    %32 = math.tanh %31 : vector<8x128xf32>
    %cst_24 = arith.constant 5.000000e-01 : f32
    %33 = vector.broadcast %cst_24 : f32 to vector<8x128xf32>
    %34 = arith.mulf %33, %32 : vector<8x128xf32>
    %cst_25 = arith.constant 5.000000e-01 : f32
    %35 = vector.broadcast %cst_25 : f32 to vector<8x128xf32>
    %36 = arith.addf %34, %35 : vector<8x128xf32>
    %37 = vector.extract_strided_slice %20 {offsets = [0, 256], sizes = [8, 128], strides = [1, 1]} : vector<8x512xf32> to vector<8x128xf32>
    %38 = math.tanh %37 : vector<8x128xf32>
    %39 = vector.extract_strided_slice %20 {offsets = [0, 384], sizes = [8, 128], strides = [1, 1]} : vector<8x512xf32> to vector<8x128xf32>
    %cst_26 = arith.constant 5.000000e-01 : f32
    %40 = vector.broadcast %cst_26 : f32 to vector<8x128xf32>
    %41 = arith.mulf %40, %39 : vector<8x128xf32>
    %42 = math.tanh %41 : vector<8x128xf32>
    %cst_27 = arith.constant 5.000000e-01 : f32
    %43 = vector.broadcast %cst_27 : f32 to vector<8x128xf32>
    %44 = arith.mulf %43, %42 : vector<8x128xf32>
    %cst_28 = arith.constant 5.000000e-01 : f32
    %45 = vector.broadcast %cst_28 : f32 to vector<8x128xf32>
    %46 = arith.addf %44, %45 : vector<8x128xf32>
    %c0_29 = arith.constant 0 : index
    %c0_30 = arith.constant 0 : index
    %47 = vector.load %arg11[%c0_29, %c0_30] : memref<8x128xf32, #tpu.memory_space<vmem>>, vector<8x128xf32>
    %48 = arith.mulf %36, %47 : vector<8x128xf32>
    %49 = arith.mulf %28, %38 : vector<8x128xf32>
    %50 = arith.addf %48, %49 : vector<8x128xf32>
    %51 = math.tanh %50 : vector<8x128xf32>
    %52 = arith.mulf %46, %51 : vector<8x128xf32>
    %c0_31 = arith.constant 0 : index
    %c0_32 = arith.constant 0 : index
    %53 = vector.load %arg11[%c0_31, %c0_32] : memref<8x128xf32, #tpu.memory_space<vmem>>, vector<8x128xf32>
    tpu.vector_store %arg11[%c0_31, %c0_32], %50 {strides = array<i32>} : memref<8x128xf32, #tpu.memory_space<vmem>>, vector<8x128xf32>,
    %c0_33 = arith.constant 0 : index
    %c0_34 = arith.constant 0 : index
    %54 = vector.load %arg10[%c0_33, %c0_34] : memref<8x128xf32, #tpu.memory_space<vmem>>, vector<8x128xf32>
    tpu.vector_store %arg10[%c0_33, %c0_34], %52 {strides = array<i32>} : memref<8x128xf32, #tpu.memory_space<vmem>>, vector<8x128xf32>,
    %55 = vector.broadcast %12 : vector<1x128xf32> to vector<8x128xf32>
    %56 = arith.mulf %52, %55 : vector<8x128xf32>
    %cst_35 = arith.constant dense<0.000000e+00> : vector<8xf32>
    %57 = vector.multi_reduction <add>, %56, %cst_35 [1] : vector<8x128xf32> to vector<8xf32>
    %58 = vector.shape_cast %57 : vector<8xf32> to vector<8x1xf32>
    %59 = vector.broadcast %13 : vector<1x1xf32> to vector<8x1xf32>
    %60 = arith.addf %58, %59 : vector<8x1xf32>
    %c0_36 = arith.constant 0 : index
    %c0_37 = arith.constant 0 : index
    %61 = vector.load %arg12[%c0_36, %c0_37] : memref<8x1xf32, #tpu.memory_space<vmem>>, vector<8x1xf32>
    %62 = arith.maximumf %61, %60 : vector<8x1xf32>
    %c0_38 = arith.constant 0 : index
    %c0_39 = arith.constant 0 : index
    %63 = vector.load %arg12[%c0_38, %c0_39] : memref<8x1xf32, #tpu.memory_space<vmem>>, vector<8x1xf32>
    %64 = arith.subf %63, %62 : vector<8x1xf32>
    %65 = math.exp %64 : vector<8x1xf32>
    %66 = arith.subf %60, %62 : vector<8x1xf32>
    %67 = math.exp %66 : vector<8x1xf32>
    %c0_40 = arith.constant 0 : index
    %c0_41 = arith.constant 0 : index
    %68 = vector.load %arg13[%c0_40, %c0_41] : memref<8x1xf32, #tpu.memory_space<vmem>>, vector<8x1xf32>
    %69 = arith.mulf %65, %68 : vector<8x1xf32>
    %70 = arith.addf %69, %67 : vector<8x1xf32>
    %c0_42 = arith.constant 0 : index
    %c0_43 = arith.constant 0 : index
    %71 = vector.load %arg13[%c0_42, %c0_43] : memref<8x1xf32, #tpu.memory_space<vmem>>, vector<8x1xf32>
    tpu.vector_store %arg13[%c0_42, %c0_43], %70 {strides = array<i32>} : memref<8x1xf32, #tpu.memory_space<vmem>>, vector<8x1xf32>,
    %c0_44 = arith.constant 0 : index
    %c0_45 = arith.constant 0 : index
    %72 = vector.load %arg14[%c0_44, %c0_45] : memref<8x128xf32, #tpu.memory_space<vmem>>, vector<8x128xf32>
    %73 = vector.broadcast %65 : vector<8x1xf32> to vector<8x128xf32>
    %74 = arith.mulf %73, %72 : vector<8x128xf32>
    %75 = vector.broadcast %67 : vector<8x1xf32> to vector<8x128xf32>
    %76 = arith.mulf %75, %52 : vector<8x128xf32>
    %77 = arith.addf %74, %76 : vector<8x128xf32>
    %c0_46 = arith.constant 0 : index
    %c0_47 = arith.constant 0 : index
    %78 = vector.load %arg14[%c0_46, %c0_47] : memref<8x128xf32, #tpu.memory_space<vmem>>, vector<8x128xf32>
    tpu.vector_store %arg14[%c0_46, %c0_47], %77 {strides = array<i32>} : memref<8x128xf32, #tpu.memory_space<vmem>>, vector<8x128xf32>,
    %c0_48 = arith.constant 0 : index
    %c0_49 = arith.constant 0 : index
    %79 = vector.load %arg12[%c0_48, %c0_49] : memref<8x1xf32, #tpu.memory_space<vmem>>, vector<8x1xf32>
    tpu.vector_store %arg12[%c0_48, %c0_49], %62 {strides = array<i32>} : memref<8x1xf32, #tpu.memory_space<vmem>>, vector<8x1xf32>,
    %c1_i32 = arith.constant 1 : i32
    %c8_i32_50 = arith.constant 8 : i32
    %80 = arith.muli %c1_i32, %c8_i32_50 : i32
    %81 = tpu.assume_multiple %80, 8 : i32
    %82 = arith.index_cast %81 : i32 to index
    %c0_51 = arith.constant 0 : index
    %83 = vector.load %arg9[%82, %c0_51] : memref<64x512xf32, #tpu.memory_space<vmem>>, vector<8x512xf32>
    %c0_52 = arith.constant 0 : index
    %c0_53 = arith.constant 0 : index
    %84 = vector.load %arg10[%c0_52, %c0_53] : memref<8x128xf32, #tpu.memory_space<vmem>>, vector<8x128xf32>
    %cst_54 = arith.constant dense<0.000000e+00> : vector<8x512xf32>
    %85 = tpu.matmul %84, %11, %cst_54 {dimension_numbers = #tpu.dot_dimension_numbers<[1], [0], [0], [1], [0, 0, 1, 1], [], []>} : vector<8x128xf32>, vector<128x512xf32>, vector<8x512xf32> -> vector<8x512xf32>
    %86 = arith.addf %83, %85 : vector<8x512xf32>
    %87 = vector.extract_strided_slice %86 {offsets = [0, 0], sizes = [8, 128], strides = [1, 1]} : vector<8x512xf32> to vector<8x128xf32>
    %cst_55 = arith.constant 5.000000e-01 : f32
    %88 = vector.broadcast %cst_55 : f32 to vector<8x128xf32>
    %89 = arith.mulf %88, %87 : vector<8x128xf32>
    %90 = math.tanh %89 : vector<8x128xf32>
    %cst_56 = arith.constant 5.000000e-01 : f32
    %91 = vector.broadcast %cst_56 : f32 to vector<8x128xf32>
    %92 = arith.mulf %91, %90 : vector<8x128xf32>
    %cst_57 = arith.constant 5.000000e-01 : f32
    %93 = vector.broadcast %cst_57 : f32 to vector<8x128xf32>
    %94 = arith.addf %92, %93 : vector<8x128xf32>
    %95 = vector.extract_strided_slice %86 {offsets = [0, 128], sizes = [8, 128], strides = [1, 1]} : vector<8x512xf32> to vector<8x128xf32>
    %cst_58 = arith.constant 5.000000e-01 : f32
    %96 = vector.broadcast %cst_58 : f32 to vector<8x128xf32>
    %97 = arith.mulf %96, %95 : vector<8x128xf32>
    %98 = math.tanh %97 : vector<8x128xf32>
    %cst_59 = arith.constant 5.000000e-01 : f32
    %99 = vector.broadcast %cst_59 : f32 to vector<8x128xf32>
    %100 = arith.mulf %99, %98 : vector<8x128xf32>
    %cst_60 = arith.constant 5.000000e-01 : f32
    %101 = vector.broadcast %cst_60 : f32 to vector<8x128xf32>
    %102 = arith.addf %100, %101 : vector<8x128xf32>
    %103 = vector.extract_strided_slice %86 {offsets = [0, 256], sizes = [8, 128], strides = [1, 1]} : vector<8x512xf32> to vector<8x128xf32>
    %104 = math.tanh %103 : vector<8x128xf32>
    %105 = vector.extract_strided_slice %86 {offsets = [0, 384], sizes = [8, 128], strides = [1, 1]} : vector<8x512xf32> to vector<8x128xf32>
    %cst_61 = arith.constant 5.000000e-01 : f32
    %106 = vector.broadcast %cst_61 : f32 to vector<8x128xf32>
    %107 = arith.mulf %106, %105 : vector<8x128xf32>
    %108 = math.tanh %107 : vector<8x128xf32>
    %cst_62 = arith.constant 5.000000e-01 : f32
    %109 = vector.broadcast %cst_62 : f32 to vector<8x128xf32>
    %110 = arith.mulf %109, %108 : vector<8x128xf32>
    %cst_63 = arith.constant 5.000000e-01 : f32
    %111 = vector.broadcast %cst_63 : f32 to vector<8x128xf32>
    %112 = arith.addf %110, %111 : vector<8x128xf32>
    %c0_64 = arith.constant 0 : index
    %c0_65 = arith.constant 0 : index
    %113 = vector.load %arg11[%c0_64, %c0_65] : memref<8x128xf32, #tpu.memory_space<vmem>>, vector<8x128xf32>
    %114 = arith.mulf %102, %113 : vector<8x128xf32>
    %115 = arith.mulf %94, %104 : vector<8x128xf32>
    %116 = arith.addf %114, %115 : vector<8x128xf32>
    %117 = math.tanh %116 : vector<8x128xf32>
    %118 = arith.mulf %112, %117 : vector<8x128xf32>
    %c0_66 = arith.constant 0 : index
    %c0_67 = arith.constant 0 : index
    %119 = vector.load %arg11[%c0_66, %c0_67] : memref<8x128xf32, #tpu.memory_space<vmem>>, vector<8x128xf32>
    tpu.vector_store %arg11[%c0_66, %c0_67], %116 {strides = array<i32>} : memref<8x128xf32, #tpu.memory_space<vmem>>, vector<8x128xf32>,
    %c0_68 = arith.constant 0 : index
    %c0_69 = arith.constant 0 : index
    %120 = vector.load %arg10[%c0_68, %c0_69] : memref<8x128xf32, #tpu.memory_space<vmem>>, vector<8x128xf32>
    tpu.vector_store %arg10[%c0_68, %c0_69], %118 {strides = array<i32>} : memref<8x128xf32, #tpu.memory_space<vmem>>, vector<8x128xf32>,
    %121 = vector.broadcast %12 : vector<1x128xf32> to vector<8x128xf32>
    %122 = arith.mulf %118, %121 : vector<8x128xf32>
    %cst_70 = arith.constant dense<0.000000e+00> : vector<8xf32>
    %123 = vector.multi_reduction <add>, %122, %cst_70 [1] : vector<8x128xf32> to vector<8xf32>
    %124 = vector.shape_cast %123 : vector<8xf32> to vector<8x1xf32>
    %125 = vector.broadcast %13 : vector<1x1xf32> to vector<8x1xf32>
    %126 = arith.addf %124, %125 : vector<8x1xf32>
    %c0_71 = arith.constant 0 : index
    %c0_72 = arith.constant 0 : index
    %127 = vector.load %arg12[%c0_71, %c0_72] : memref<8x1xf32, #tpu.memory_space<vmem>>, vector<8x1xf32>
    %128 = arith.maximumf %127, %126 : vector<8x1xf32>
    %c0_73 = arith.constant 0 : index
    %c0_74 = arith.constant 0 : index
    %129 = vector.load %arg12[%c0_73, %c0_74] : memref<8x1xf32, #tpu.memory_space<vmem>>, vector<8x1xf32>
    %130 = arith.subf %129, %128 : vector<8x1xf32>
    %131 = math.exp %130 : vector<8x1xf32>
    %132 = arith.subf %126, %128 : vector<8x1xf32>
    %133 = math.exp %132 : vector<8x1xf32>
    %c0_75 = arith.constant 0 : index
    %c0_76 = arith.constant 0 : index
    %134 = vector.load %arg13[%c0_75, %c0_76] : memref<8x1xf32, #tpu.memory_space<vmem>>, vector<8x1xf32>
    %135 = arith.mulf %131, %134 : vector<8x1xf32>
    %136 = arith.addf %135, %133 : vector<8x1xf32>
    %c0_77 = arith.constant 0 : index
    %c0_78 = arith.constant 0 : index
    %137 = vector.load %arg13[%c0_77, %c0_78] : memref<8x1xf32, #tpu.memory_space<vmem>>, vector<8x1xf32>
    tpu.vector_store %arg13[%c0_77, %c0_78], %136 {strides = array<i32>} : memref<8x1xf32, #tpu.memory_space<vmem>>, vector<8x1xf32>,
    %c0_79 = arith.constant 0 : index
    %c0_80 = arith.constant 0 : index
    %138 = vector.load %arg14[%c0_79, %c0_80] : memref<8x128xf32, #tpu.memory_space<vmem>>, vector<8x128xf32>
    %139 = vector.broadcast %131 : vector<8x1xf32> to vector<8x128xf32>
    %140 = arith.mulf %139, %138 : vector<8x128xf32>
    %141 = vector.broadcast %133 : vector<8x1xf32> to vector<8x128xf32>
    %142 = arith.mulf %141, %118 : vector<8x128xf32>
    %143 = arith.addf %140, %142 : vector<8x128xf32>
    %c0_81 = arith.constant 0 : index
    %c0_82 = arith.constant 0 : index
    %144 = vector.load %arg14[%c0_81, %c0_82] : memref<8x128xf32, #tpu.memory_space<vmem>>, vector<8x128xf32>
    tpu.vector_store %arg14[%c0_81, %c0_82], %143 {strides = array<i32>} : memref<8x128xf32, #tpu.memory_space<vmem>>, vector<8x128xf32>,
    %c0_83 = arith.constant 0 : index
    %c0_84 = arith.constant 0 : index
    %145 = vector.load %arg12[%c0_83, %c0_84] : memref<8x1xf32, #tpu.memory_space<vmem>>, vector<8x1xf32>
    tpu.vector_store %arg12[%c0_83, %c0_84], %128 {strides = array<i32>} : memref<8x1xf32, #tpu.memory_space<vmem>>, vector<8x1xf32>,
    %c2_i32 = arith.constant 2 : i32
    %c8_i32_85 = arith.constant 8 : i32
    %146 = arith.muli %c2_i32, %c8_i32_85 : i32
    %147 = tpu.assume_multiple %146, 8 : i32
    %148 = arith.index_cast %147 : i32 to index
    %c0_86 = arith.constant 0 : index
    %149 = vector.load %arg9[%148, %c0_86] : memref<64x512xf32, #tpu.memory_space<vmem>>, vector<8x512xf32>
    %c0_87 = arith.constant 0 : index
    %c0_88 = arith.constant 0 : index
    %150 = vector.load %arg10[%c0_87, %c0_88] : memref<8x128xf32, #tpu.memory_space<vmem>>, vector<8x128xf32>
    %cst_89 = arith.constant dense<0.000000e+00> : vector<8x512xf32>
    %151 = tpu.matmul %150, %11, %cst_89 {dimension_numbers = #tpu.dot_dimension_numbers<[1], [0], [0], [1], [0, 0, 1, 1], [], []>} : vector<8x128xf32>, vector<128x512xf32>, vector<8x512xf32> -> vector<8x512xf32>
    %152 = arith.addf %149, %151 : vector<8x512xf32>
    %153 = vector.extract_strided_slice %152 {offsets = [0, 0], sizes = [8, 128], strides = [1, 1]} : vector<8x512xf32> to vector<8x128xf32>
    %cst_90 = arith.constant 5.000000e-01 : f32
    %154 = vector.broadcast %cst_90 : f32 to vector<8x128xf32>
    %155 = arith.mulf %154, %153 : vector<8x128xf32>
    %156 = math.tanh %155 : vector<8x128xf32>
    %cst_91 = arith.constant 5.000000e-01 : f32
    %157 = vector.broadcast %cst_91 : f32 to vector<8x128xf32>
    %158 = arith.mulf %157, %156 : vector<8x128xf32>
    %cst_92 = arith.constant 5.000000e-01 : f32
    %159 = vector.broadcast %cst_92 : f32 to vector<8x128xf32>
    %160 = arith.addf %158, %159 : vector<8x128xf32>
    %161 = vector.extract_strided_slice %152 {offsets = [0, 128], sizes = [8, 128], strides = [1, 1]} : vector<8x512xf32> to vector<8x128xf32>
    %cst_93 = arith.constant 5.000000e-01 : f32
    %162 = vector.broadcast %cst_93 : f32 to vector<8x128xf32>
    %163 = arith.mulf %162, %161 : vector<8x128xf32>
    %164 = math.tanh %163 : vector<8x128xf32>
    %cst_94 = arith.constant 5.000000e-01 : f32
    %165 = vector.broadcast %cst_94 : f32 to vector<8x128xf32>
    %166 = arith.mulf %165, %164 : vector<8x128xf32>
    %cst_95 = arith.constant 5.000000e-01 : f32
    %167 = vector.broadcast %cst_95 : f32 to vector<8x128xf32>
    %168 = arith.addf %166, %167 : vector<8x128xf32>
    %169 = vector.extract_strided_slice %152 {offsets = [0, 256], sizes = [8, 128], strides = [1, 1]} : vector<8x512xf32> to vector<8x128xf32>
    %170 = math.tanh %169 : vector<8x128xf32>
    %171 = vector.extract_strided_slice %152 {offsets = [0, 384], sizes = [8, 128], strides = [1, 1]} : vector<8x512xf32> to vector<8x128xf32>
    %cst_96 = arith.constant 5.000000e-01 : f32
    %172 = vector.broadcast %cst_96 : f32 to vector<8x128xf32>
    %173 = arith.mulf %172, %171 : vector<8x128xf32>
    %174 = math.tanh %173 : vector<8x128xf32>
    %cst_97 = arith.constant 5.000000e-01 : f32
    %175 = vector.broadcast %cst_97 : f32 to vector<8x128xf32>
    %176 = arith.mulf %175, %174 : vector<8x128xf32>
    %cst_98 = arith.constant 5.000000e-01 : f32
    %177 = vector.broadcast %cst_98 : f32 to vector<8x128xf32>
    %178 = arith.addf %176, %177 : vector<8x128xf32>
    %c0_99 = arith.constant 0 : index
    %c0_100 = arith.constant 0 : index
    %179 = vector.load %arg11[%c0_99, %c0_100] : memref<8x128xf32, #tpu.memory_space<vmem>>, vector<8x128xf32>
    %180 = arith.mulf %168, %179 : vector<8x128xf32>
    %181 = arith.mulf %160, %170 : vector<8x128xf32>
    %182 = arith.addf %180, %181 : vector<8x128xf32>
    %183 = math.tanh %182 : vector<8x128xf32>
    %184 = arith.mulf %178, %183 : vector<8x128xf32>
    %c0_101 = arith.constant 0 : index
    %c0_102 = arith.constant 0 : index
    %185 = vector.load %arg11[%c0_101, %c0_102] : memref<8x128xf32, #tpu.memory_space<vmem>>, vector<8x128xf32>
    tpu.vector_store %arg11[%c0_101, %c0_102], %182 {strides = array<i32>} : memref<8x128xf32, #tpu.memory_space<vmem>>, vector<8x128xf32>,
    %c0_103 = arith.constant 0 : index
    %c0_104 = arith.constant 0 : index
    %186 = vector.load %arg10[%c0_103, %c0_104] : memref<8x128xf32, #tpu.memory_space<vmem>>, vector<8x128xf32>
    tpu.vector_store %arg10[%c0_103, %c0_104], %184 {strides = array<i32>} : memref<8x128xf32, #tpu.memory_space<vmem>>, vector<8x128xf32>,
    %187 = vector.broadcast %12 : vector<1x128xf32> to vector<8x128xf32>
    %188 = arith.mulf %184, %187 : vector<8x128xf32>
    %cst_105 = arith.constant dense<0.000000e+00> : vector<8xf32>
    %189 = vector.multi_reduction <add>, %188, %cst_105 [1] : vector<8x128xf32> to vector<8xf32>
    %190 = vector.shape_cast %189 : vector<8xf32> to vector<8x1xf32>
    %191 = vector.broadcast %13 : vector<1x1xf32> to vector<8x1xf32>
    %192 = arith.addf %190, %191 : vector<8x1xf32>
    %c0_106 = arith.constant 0 : index
    %c0_107 = arith.constant 0 : index
    %193 = vector.load %arg12[%c0_106, %c0_107] : memref<8x1xf32, #tpu.memory_space<vmem>>, vector<8x1xf32>
    %194 = arith.maximumf %193, %192 : vector<8x1xf32>
    %c0_108 = arith.constant 0 : index
    %c0_109 = arith.constant 0 : index
    %195 = vector.load %arg12[%c0_108, %c0_109] : memref<8x1xf32, #tpu.memory_space<vmem>>, vector<8x1xf32>
    %196 = arith.subf %195, %194 : vector<8x1xf32>
    %197 = math.exp %196 : vector<8x1xf32>
    %198 = arith.subf %192, %194 : vector<8x1xf32>
    %199 = math.exp %198 : vector<8x1xf32>
    %c0_110 = arith.constant 0 : index
    %c0_111 = arith.constant 0 : index
    %200 = vector.load %arg13[%c0_110, %c0_111] : memref<8x1xf32, #tpu.memory_space<vmem>>, vector<8x1xf32>
    %201 = arith.mulf %197, %200 : vector<8x1xf32>
    %202 = arith.addf %201, %199 : vector<8x1xf32>
    %c0_112 = arith.constant 0 : index
    %c0_113 = arith.constant 0 : index
    %203 = vector.load %arg13[%c0_112, %c0_113] : memref<8x1xf32, #tpu.memory_space<vmem>>, vector<8x1xf32>
    tpu.vector_store %arg13[%c0_112, %c0_113], %202 {strides = array<i32>} : memref<8x1xf32, #tpu.memory_space<vmem>>, vector<8x1xf32>,
    %c0_114 = arith.constant 0 : index
    %c0_115 = arith.constant 0 : index
    %204 = vector.load %arg14[%c0_114, %c0_115] : memref<8x128xf32, #tpu.memory_space<vmem>>, vector<8x128xf32>
    %205 = vector.broadcast %197 : vector<8x1xf32> to vector<8x128xf32>
    %206 = arith.mulf %205, %204 : vector<8x128xf32>
    %207 = vector.broadcast %199 : vector<8x1xf32> to vector<8x128xf32>
    %208 = arith.mulf %207, %184 : vector<8x128xf32>
    %209 = arith.addf %206, %208 : vector<8x128xf32>
    %c0_116 = arith.constant 0 : index
    %c0_117 = arith.constant 0 : index
    %210 = vector.load %arg14[%c0_116, %c0_117] : memref<8x128xf32, #tpu.memory_space<vmem>>, vector<8x128xf32>
    tpu.vector_store %arg14[%c0_116, %c0_117], %209 {strides = array<i32>} : memref<8x128xf32, #tpu.memory_space<vmem>>, vector<8x128xf32>,
    %c0_118 = arith.constant 0 : index
    %c0_119 = arith.constant 0 : index
    %211 = vector.load %arg12[%c0_118, %c0_119] : memref<8x1xf32, #tpu.memory_space<vmem>>, vector<8x1xf32>
    tpu.vector_store %arg12[%c0_118, %c0_119], %194 {strides = array<i32>} : memref<8x1xf32, #tpu.memory_space<vmem>>, vector<8x1xf32>,
    %c3_i32 = arith.constant 3 : i32
    %c8_i32_120 = arith.constant 8 : i32
    %212 = arith.muli %c3_i32, %c8_i32_120 : i32
    %213 = tpu.assume_multiple %212, 8 : i32
    %214 = arith.index_cast %213 : i32 to index
    %c0_121 = arith.constant 0 : index
    %215 = vector.load %arg9[%214, %c0_121] : memref<64x512xf32, #tpu.memory_space<vmem>>, vector<8x512xf32>
    %c0_122 = arith.constant 0 : index
    %c0_123 = arith.constant 0 : index
    %216 = vector.load %arg10[%c0_122, %c0_123] : memref<8x128xf32, #tpu.memory_space<vmem>>, vector<8x128xf32>
    %cst_124 = arith.constant dense<0.000000e+00> : vector<8x512xf32>
    %217 = tpu.matmul %216, %11, %cst_124 {dimension_numbers = #tpu.dot_dimension_numbers<[1], [0], [0], [1], [0, 0, 1, 1], [], []>} : vector<8x128xf32>, vector<128x512xf32>, vector<8x512xf32> -> vector<8x512xf32>
    %218 = arith.addf %215, %217 : vector<8x512xf32>
    %219 = vector.extract_strided_slice %218 {offsets = [0, 0], sizes = [8, 128], strides = [1, 1]} : vector<8x512xf32> to vector<8x128xf32>
    %cst_125 = arith.constant 5.000000e-01 : f32
    %220 = vector.broadcast %cst_125 : f32 to vector<8x128xf32>
    %221 = arith.mulf %220, %219 : vector<8x128xf32>
    %222 = math.tanh %221 : vector<8x128xf32>
    %cst_126 = arith.constant 5.000000e-01 : f32
    %223 = vector.broadcast %cst_126 : f32 to vector<8x128xf32>
    %224 = arith.mulf %223, %222 : vector<8x128xf32>
    %cst_127 = arith.constant 5.000000e-01 : f32
    %225 = vector.broadcast %cst_127 : f32 to vector<8x128xf32>
    %226 = arith.addf %224, %225 : vector<8x128xf32>
    %227 = vector.extract_strided_slice %218 {offsets = [0, 128], sizes = [8, 128], strides = [1, 1]} : vector<8x512xf32> to vector<8x128xf32>
    %cst_128 = arith.constant 5.000000e-01 : f32
    %228 = vector.broadcast %cst_128 : f32 to vector<8x128xf32>
    %229 = arith.mulf %228, %227 : vector<8x128xf32>
    %230 = math.tanh %229 : vector<8x128xf32>
    %cst_129 = arith.constant 5.000000e-01 : f32
    %231 = vector.broadcast %cst_129 : f32 to vector<8x128xf32>
    %232 = arith.mulf %231, %230 : vector<8x128xf32>
    %cst_130 = arith.constant 5.000000e-01 : f32
    %233 = vector.broadcast %cst_130 : f32 to vector<8x128xf32>
    %234 = arith.addf %232, %233 : vector<8x128xf32>
    %235 = vector.extract_strided_slice %218 {offsets = [0, 256], sizes = [8, 128], strides = [1, 1]} : vector<8x512xf32> to vector<8x128xf32>
    %236 = math.tanh %235 : vector<8x128xf32>
    %237 = vector.extract_strided_slice %218 {offsets = [0, 384], sizes = [8, 128], strides = [1, 1]} : vector<8x512xf32> to vector<8x128xf32>
    %cst_131 = arith.constant 5.000000e-01 : f32
    %238 = vector.broadcast %cst_131 : f32 to vector<8x128xf32>
    %239 = arith.mulf %238, %237 : vector<8x128xf32>
    %240 = math.tanh %239 : vector<8x128xf32>
    %cst_132 = arith.constant 5.000000e-01 : f32
    %241 = vector.broadcast %cst_132 : f32 to vector<8x128xf32>
    %242 = arith.mulf %241, %240 : vector<8x128xf32>
    %cst_133 = arith.constant 5.000000e-01 : f32
    %243 = vector.broadcast %cst_133 : f32 to vector<8x128xf32>
    %244 = arith.addf %242, %243 : vector<8x128xf32>
    %c0_134 = arith.constant 0 : index
    %c0_135 = arith.constant 0 : index
    %245 = vector.load %arg11[%c0_134, %c0_135] : memref<8x128xf32, #tpu.memory_space<vmem>>, vector<8x128xf32>
    %246 = arith.mulf %234, %245 : vector<8x128xf32>
    %247 = arith.mulf %226, %236 : vector<8x128xf32>
    %248 = arith.addf %246, %247 : vector<8x128xf32>
    %249 = math.tanh %248 : vector<8x128xf32>
    %250 = arith.mulf %244, %249 : vector<8x128xf32>
    %c0_136 = arith.constant 0 : index
    %c0_137 = arith.constant 0 : index
    %251 = vector.load %arg11[%c0_136, %c0_137] : memref<8x128xf32, #tpu.memory_space<vmem>>, vector<8x128xf32>
    tpu.vector_store %arg11[%c0_136, %c0_137], %248 {strides = array<i32>} : memref<8x128xf32, #tpu.memory_space<vmem>>, vector<8x128xf32>,
    %c0_138 = arith.constant 0 : index
    %c0_139 = arith.constant 0 : index
    %252 = vector.load %arg10[%c0_138, %c0_139] : memref<8x128xf32, #tpu.memory_space<vmem>>, vector<8x128xf32>
    tpu.vector_store %arg10[%c0_138, %c0_139], %250 {strides = array<i32>} : memref<8x128xf32, #tpu.memory_space<vmem>>, vector<8x128xf32>,
    %253 = vector.broadcast %12 : vector<1x128xf32> to vector<8x128xf32>
    %254 = arith.mulf %250, %253 : vector<8x128xf32>
    %cst_140 = arith.constant dense<0.000000e+00> : vector<8xf32>
    %255 = vector.multi_reduction <add>, %254, %cst_140 [1] : vector<8x128xf32> to vector<8xf32>
    %256 = vector.shape_cast %255 : vector<8xf32> to vector<8x1xf32>
    %257 = vector.broadcast %13 : vector<1x1xf32> to vector<8x1xf32>
    %258 = arith.addf %256, %257 : vector<8x1xf32>
    %c0_141 = arith.constant 0 : index
    %c0_142 = arith.constant 0 : index
    %259 = vector.load %arg12[%c0_141, %c0_142] : memref<8x1xf32, #tpu.memory_space<vmem>>, vector<8x1xf32>
    %260 = arith.maximumf %259, %258 : vector<8x1xf32>
    %c0_143 = arith.constant 0 : index
    %c0_144 = arith.constant 0 : index
    %261 = vector.load %arg12[%c0_143, %c0_144] : memref<8x1xf32, #tpu.memory_space<vmem>>, vector<8x1xf32>
    %262 = arith.subf %261, %260 : vector<8x1xf32>
    %263 = math.exp %262 : vector<8x1xf32>
    %264 = arith.subf %258, %260 : vector<8x1xf32>
    %265 = math.exp %264 : vector<8x1xf32>
    %c0_145 = arith.constant 0 : index
    %c0_146 = arith.constant 0 : index
    %266 = vector.load %arg13[%c0_145, %c0_146] : memref<8x1xf32, #tpu.memory_space<vmem>>, vector<8x1xf32>
    %267 = arith.mulf %263, %266 : vector<8x1xf32>
    %268 = arith.addf %267, %265 : vector<8x1xf32>
    %c0_147 = arith.constant 0 : index
    %c0_148 = arith.constant 0 : index
    %269 = vector.load %arg13[%c0_147, %c0_148] : memref<8x1xf32, #tpu.memory_space<vmem>>, vector<8x1xf32>
    tpu.vector_store %arg13[%c0_147, %c0_148], %268 {strides = array<i32>} : memref<8x1xf32, #tpu.memory_space<vmem>>, vector<8x1xf32>,
    %c0_149 = arith.constant 0 : index
    %c0_150 = arith.constant 0 : index
    %270 = vector.load %arg14[%c0_149, %c0_150] : memref<8x128xf32, #tpu.memory_space<vmem>>, vector<8x128xf32>
    %271 = vector.broadcast %263 : vector<8x1xf32> to vector<8x128xf32>
    %272 = arith.mulf %271, %270 : vector<8x128xf32>
    %273 = vector.broadcast %265 : vector<8x1xf32> to vector<8x128xf32>
    %274 = arith.mulf %273, %250 : vector<8x128xf32>
    %275 = arith.addf %272, %274 : vector<8x128xf32>
    %c0_151 = arith.constant 0 : index
    %c0_152 = arith.constant 0 : index
    %276 = vector.load %arg14[%c0_151, %c0_152] : memref<8x128xf32, #tpu.memory_space<vmem>>, vector<8x128xf32>
    tpu.vector_store %arg14[%c0_151, %c0_152], %275 {strides = array<i32>} : memref<8x128xf32, #tpu.memory_space<vmem>>, vector<8x128xf32>,
    %c0_153 = arith.constant 0 : index
    %c0_154 = arith.constant 0 : index
    %277 = vector.load %arg12[%c0_153, %c0_154] : memref<8x1xf32, #tpu.memory_space<vmem>>, vector<8x1xf32>
    tpu.vector_store %arg12[%c0_153, %c0_154], %260 {strides = array<i32>} : memref<8x1xf32, #tpu.memory_space<vmem>>, vector<8x1xf32>,
    %c4_i32 = arith.constant 4 : i32
    %c8_i32_155 = arith.constant 8 : i32
    %278 = arith.muli %c4_i32, %c8_i32_155 : i32
    %279 = tpu.assume_multiple %278, 8 : i32
    %280 = arith.index_cast %279 : i32 to index
    %c0_156 = arith.constant 0 : index
    %281 = vector.load %arg9[%280, %c0_156] : memref<64x512xf32, #tpu.memory_space<vmem>>, vector<8x512xf32>
    %c0_157 = arith.constant 0 : index
    %c0_158 = arith.constant 0 : index
    %282 = vector.load %arg10[%c0_157, %c0_158] : memref<8x128xf32, #tpu.memory_space<vmem>>, vector<8x128xf32>
    %cst_159 = arith.constant dense<0.000000e+00> : vector<8x512xf32>
    %283 = tpu.matmul %282, %11, %cst_159 {dimension_numbers = #tpu.dot_dimension_numbers<[1], [0], [0], [1], [0, 0, 1, 1], [], []>} : vector<8x128xf32>, vector<128x512xf32>, vector<8x512xf32> -> vector<8x512xf32>
    %284 = arith.addf %281, %283 : vector<8x512xf32>
    %285 = vector.extract_strided_slice %284 {offsets = [0, 0], sizes = [8, 128], strides = [1, 1]} : vector<8x512xf32> to vector<8x128xf32>
    %cst_160 = arith.constant 5.000000e-01 : f32
    %286 = vector.broadcast %cst_160 : f32 to vector<8x128xf32>
    %287 = arith.mulf %286, %285 : vector<8x128xf32>
    %288 = math.tanh %287 : vector<8x128xf32>
    %cst_161 = arith.constant 5.000000e-01 : f32
    %289 = vector.broadcast %cst_161 : f32 to vector<8x128xf32>
    %290 = arith.mulf %289, %288 : vector<8x128xf32>
    %cst_162 = arith.constant 5.000000e-01 : f32
    %291 = vector.broadcast %cst_162 : f32 to vector<8x128xf32>
    %292 = arith.addf %290, %291 : vector<8x128xf32>
    %293 = vector.extract_strided_slice %284 {offsets = [0, 128], sizes = [8, 128], strides = [1, 1]} : vector<8x512xf32> to vector<8x128xf32>
    %cst_163 = arith.constant 5.000000e-01 : f32
    %294 = vector.broadcast %cst_163 : f32 to vector<8x128xf32>
    %295 = arith.mulf %294, %293 : vector<8x128xf32>
    %296 = math.tanh %295 : vector<8x128xf32>
    %cst_164 = arith.constant 5.000000e-01 : f32
    %297 = vector.broadcast %cst_164 : f32 to vector<8x128xf32>
    %298 = arith.mulf %297, %296 : vector<8x128xf32>
    %cst_165 = arith.constant 5.000000e-01 : f32
    %299 = vector.broadcast %cst_165 : f32 to vector<8x128xf32>
    %300 = arith.addf %298, %299 : vector<8x128xf32>
    %301 = vector.extract_strided_slice %284 {offsets = [0, 256], sizes = [8, 128], strides = [1, 1]} : vector<8x512xf32> to vector<8x128xf32>
    %302 = math.tanh %301 : vector<8x128xf32>
    %303 = vector.extract_strided_slice %284 {offsets = [0, 384], sizes = [8, 128], strides = [1, 1]} : vector<8x512xf32> to vector<8x128xf32>
    %cst_166 = arith.constant 5.000000e-01 : f32
    %304 = vector.broadcast %cst_166 : f32 to vector<8x128xf32>
    %305 = arith.mulf %304, %303 : vector<8x128xf32>
    %306 = math.tanh %305 : vector<8x128xf32>
    %cst_167 = arith.constant 5.000000e-01 : f32
    %307 = vector.broadcast %cst_167 : f32 to vector<8x128xf32>
    %308 = arith.mulf %307, %306 : vector<8x128xf32>
    %cst_168 = arith.constant 5.000000e-01 : f32
    %309 = vector.broadcast %cst_168 : f32 to vector<8x128xf32>
    %310 = arith.addf %308, %309 : vector<8x128xf32>
    %c0_169 = arith.constant 0 : index
    %c0_170 = arith.constant 0 : index
    %311 = vector.load %arg11[%c0_169, %c0_170] : memref<8x128xf32, #tpu.memory_space<vmem>>, vector<8x128xf32>
    %312 = arith.mulf %300, %311 : vector<8x128xf32>
    %313 = arith.mulf %292, %302 : vector<8x128xf32>
    %314 = arith.addf %312, %313 : vector<8x128xf32>
    %315 = math.tanh %314 : vector<8x128xf32>
    %316 = arith.mulf %310, %315 : vector<8x128xf32>
    %c0_171 = arith.constant 0 : index
    %c0_172 = arith.constant 0 : index
    %317 = vector.load %arg11[%c0_171, %c0_172] : memref<8x128xf32, #tpu.memory_space<vmem>>, vector<8x128xf32>
    tpu.vector_store %arg11[%c0_171, %c0_172], %314 {strides = array<i32>} : memref<8x128xf32, #tpu.memory_space<vmem>>, vector<8x128xf32>,
    %c0_173 = arith.constant 0 : index
    %c0_174 = arith.constant 0 : index
    %318 = vector.load %arg10[%c0_173, %c0_174] : memref<8x128xf32, #tpu.memory_space<vmem>>, vector<8x128xf32>
    tpu.vector_store %arg10[%c0_173, %c0_174], %316 {strides = array<i32>} : memref<8x128xf32, #tpu.memory_space<vmem>>, vector<8x128xf32>,
    %319 = vector.broadcast %12 : vector<1x128xf32> to vector<8x128xf32>
    %320 = arith.mulf %316, %319 : vector<8x128xf32>
    %cst_175 = arith.constant dense<0.000000e+00> : vector<8xf32>
    %321 = vector.multi_reduction <add>, %320, %cst_175 [1] : vector<8x128xf32> to vector<8xf32>
    %322 = vector.shape_cast %321 : vector<8xf32> to vector<8x1xf32>
    %323 = vector.broadcast %13 : vector<1x1xf32> to vector<8x1xf32>
    %324 = arith.addf %322, %323 : vector<8x1xf32>
    %c0_176 = arith.constant 0 : index
    %c0_177 = arith.constant 0 : index
    %325 = vector.load %arg12[%c0_176, %c0_177] : memref<8x1xf32, #tpu.memory_space<vmem>>, vector<8x1xf32>
    %326 = arith.maximumf %325, %324 : vector<8x1xf32>
    %c0_178 = arith.constant 0 : index
    %c0_179 = arith.constant 0 : index
    %327 = vector.load %arg12[%c0_178, %c0_179] : memref<8x1xf32, #tpu.memory_space<vmem>>, vector<8x1xf32>
    %328 = arith.subf %327, %326 : vector<8x1xf32>
    %329 = math.exp %328 : vector<8x1xf32>
    %330 = arith.subf %324, %326 : vector<8x1xf32>
    %331 = math.exp %330 : vector<8x1xf32>
    %c0_180 = arith.constant 0 : index
    %c0_181 = arith.constant 0 : index
    %332 = vector.load %arg13[%c0_180, %c0_181] : memref<8x1xf32, #tpu.memory_space<vmem>>, vector<8x1xf32>
    %333 = arith.mulf %329, %332 : vector<8x1xf32>
    %334 = arith.addf %333, %331 : vector<8x1xf32>
    %c0_182 = arith.constant 0 : index
    %c0_183 = arith.constant 0 : index
    %335 = vector.load %arg13[%c0_182, %c0_183] : memref<8x1xf32, #tpu.memory_space<vmem>>, vector<8x1xf32>
    tpu.vector_store %arg13[%c0_182, %c0_183], %334 {strides = array<i32>} : memref<8x1xf32, #tpu.memory_space<vmem>>, vector<8x1xf32>,
    %c0_184 = arith.constant 0 : index
    %c0_185 = arith.constant 0 : index
    %336 = vector.load %arg14[%c0_184, %c0_185] : memref<8x128xf32, #tpu.memory_space<vmem>>, vector<8x128xf32>
    %337 = vector.broadcast %329 : vector<8x1xf32> to vector<8x128xf32>
    %338 = arith.mulf %337, %336 : vector<8x128xf32>
    %339 = vector.broadcast %331 : vector<8x1xf32> to vector<8x128xf32>
    %340 = arith.mulf %339, %316 : vector<8x128xf32>
    %341 = arith.addf %338, %340 : vector<8x128xf32>
    %c0_186 = arith.constant 0 : index
    %c0_187 = arith.constant 0 : index
    %342 = vector.load %arg14[%c0_186, %c0_187] : memref<8x128xf32, #tpu.memory_space<vmem>>, vector<8x128xf32>
    tpu.vector_store %arg14[%c0_186, %c0_187], %341 {strides = array<i32>} : memref<8x128xf32, #tpu.memory_space<vmem>>, vector<8x128xf32>,
    %c0_188 = arith.constant 0 : index
    %c0_189 = arith.constant 0 : index
    %343 = vector.load %arg12[%c0_188, %c0_189] : memref<8x1xf32, #tpu.memory_space<vmem>>, vector<8x1xf32>
    tpu.vector_store %arg12[%c0_188, %c0_189], %326 {strides = array<i32>} : memref<8x1xf32, #tpu.memory_space<vmem>>, vector<8x1xf32>,
    %c5_i32 = arith.constant 5 : i32
    %c8_i32_190 = arith.constant 8 : i32
    %344 = arith.muli %c5_i32, %c8_i32_190 : i32
    %345 = tpu.assume_multiple %344, 8 : i32
    %346 = arith.index_cast %345 : i32 to index
    %c0_191 = arith.constant 0 : index
    %347 = vector.load %arg9[%346, %c0_191] : memref<64x512xf32, #tpu.memory_space<vmem>>, vector<8x512xf32>
    %c0_192 = arith.constant 0 : index
    %c0_193 = arith.constant 0 : index
    %348 = vector.load %arg10[%c0_192, %c0_193] : memref<8x128xf32, #tpu.memory_space<vmem>>, vector<8x128xf32>
    %cst_194 = arith.constant dense<0.000000e+00> : vector<8x512xf32>
    %349 = tpu.matmul %348, %11, %cst_194 {dimension_numbers = #tpu.dot_dimension_numbers<[1], [0], [0], [1], [0, 0, 1, 1], [], []>} : vector<8x128xf32>, vector<128x512xf32>, vector<8x512xf32> -> vector<8x512xf32>
    %350 = arith.addf %347, %349 : vector<8x512xf32>
    %351 = vector.extract_strided_slice %350 {offsets = [0, 0], sizes = [8, 128], strides = [1, 1]} : vector<8x512xf32> to vector<8x128xf32>
    %cst_195 = arith.constant 5.000000e-01 : f32
    %352 = vector.broadcast %cst_195 : f32 to vector<8x128xf32>
    %353 = arith.mulf %352, %351 : vector<8x128xf32>
    %354 = math.tanh %353 : vector<8x128xf32>
    %cst_196 = arith.constant 5.000000e-01 : f32
    %355 = vector.broadcast %cst_196 : f32 to vector<8x128xf32>
    %356 = arith.mulf %355, %354 : vector<8x128xf32>
    %cst_197 = arith.constant 5.000000e-01 : f32
    %357 = vector.broadcast %cst_197 : f32 to vector<8x128xf32>
    %358 = arith.addf %356, %357 : vector<8x128xf32>
    %359 = vector.extract_strided_slice %350 {offsets = [0, 128], sizes = [8, 128], strides = [1, 1]} : vector<8x512xf32> to vector<8x128xf32>
    %cst_198 = arith.constant 5.000000e-01 : f32
    %360 = vector.broadcast %cst_198 : f32 to vector<8x128xf32>
    %361 = arith.mulf %360, %359 : vector<8x128xf32>
    %362 = math.tanh %361 : vector<8x128xf32>
    %cst_199 = arith.constant 5.000000e-01 : f32
    %363 = vector.broadcast %cst_199 : f32 to vector<8x128xf32>
    %364 = arith.mulf %363, %362 : vector<8x128xf32>
    %cst_200 = arith.constant 5.000000e-01 : f32
    %365 = vector.broadcast %cst_200 : f32 to vector<8x128xf32>
    %366 = arith.addf %364, %365 : vector<8x128xf32>
    %367 = vector.extract_strided_slice %350 {offsets = [0, 256], sizes = [8, 128], strides = [1, 1]} : vector<8x512xf32> to vector<8x128xf32>
    %368 = math.tanh %367 : vector<8x128xf32>
    %369 = vector.extract_strided_slice %350 {offsets = [0, 384], sizes = [8, 128], strides = [1, 1]} : vector<8x512xf32> to vector<8x128xf32>
    %cst_201 = arith.constant 5.000000e-01 : f32
    %370 = vector.broadcast %cst_201 : f32 to vector<8x128xf32>
    %371 = arith.mulf %370, %369 : vector<8x128xf32>
    %372 = math.tanh %371 : vector<8x128xf32>
    %cst_202 = arith.constant 5.000000e-01 : f32
    %373 = vector.broadcast %cst_202 : f32 to vector<8x128xf32>
    %374 = arith.mulf %373, %372 : vector<8x128xf32>
    %cst_203 = arith.constant 5.000000e-01 : f32
    %375 = vector.broadcast %cst_203 : f32 to vector<8x128xf32>
    %376 = arith.addf %374, %375 : vector<8x128xf32>
    %c0_204 = arith.constant 0 : index
    %c0_205 = arith.constant 0 : index
    %377 = vector.load %arg11[%c0_204, %c0_205] : memref<8x128xf32, #tpu.memory_space<vmem>>, vector<8x128xf32>
    %378 = arith.mulf %366, %377 : vector<8x128xf32>
    %379 = arith.mulf %358, %368 : vector<8x128xf32>
    %380 = arith.addf %378, %379 : vector<8x128xf32>
    %381 = math.tanh %380 : vector<8x128xf32>
    %382 = arith.mulf %376, %381 : vector<8x128xf32>
    %c0_206 = arith.constant 0 : index
    %c0_207 = arith.constant 0 : index
    %383 = vector.load %arg11[%c0_206, %c0_207] : memref<8x128xf32, #tpu.memory_space<vmem>>, vector<8x128xf32>
    tpu.vector_store %arg11[%c0_206, %c0_207], %380 {strides = array<i32>} : memref<8x128xf32, #tpu.memory_space<vmem>>, vector<8x128xf32>,
    %c0_208 = arith.constant 0 : index
    %c0_209 = arith.constant 0 : index
    %384 = vector.load %arg10[%c0_208, %c0_209] : memref<8x128xf32, #tpu.memory_space<vmem>>, vector<8x128xf32>
    tpu.vector_store %arg10[%c0_208, %c0_209], %382 {strides = array<i32>} : memref<8x128xf32, #tpu.memory_space<vmem>>, vector<8x128xf32>,
    %385 = vector.broadcast %12 : vector<1x128xf32> to vector<8x128xf32>
    %386 = arith.mulf %382, %385 : vector<8x128xf32>
    %cst_210 = arith.constant dense<0.000000e+00> : vector<8xf32>
    %387 = vector.multi_reduction <add>, %386, %cst_210 [1] : vector<8x128xf32> to vector<8xf32>
    %388 = vector.shape_cast %387 : vector<8xf32> to vector<8x1xf32>
    %389 = vector.broadcast %13 : vector<1x1xf32> to vector<8x1xf32>
    %390 = arith.addf %388, %389 : vector<8x1xf32>
    %c0_211 = arith.constant 0 : index
    %c0_212 = arith.constant 0 : index
    %391 = vector.load %arg12[%c0_211, %c0_212] : memref<8x1xf32, #tpu.memory_space<vmem>>, vector<8x1xf32>
    %392 = arith.maximumf %391, %390 : vector<8x1xf32>
    %c0_213 = arith.constant 0 : index
    %c0_214 = arith.constant 0 : index
    %393 = vector.load %arg12[%c0_213, %c0_214] : memref<8x1xf32, #tpu.memory_space<vmem>>, vector<8x1xf32>
    %394 = arith.subf %393, %392 : vector<8x1xf32>
    %395 = math.exp %394 : vector<8x1xf32>
    %396 = arith.subf %390, %392 : vector<8x1xf32>
    %397 = math.exp %396 : vector<8x1xf32>
    %c0_215 = arith.constant 0 : index
    %c0_216 = arith.constant 0 : index
    %398 = vector.load %arg13[%c0_215, %c0_216] : memref<8x1xf32, #tpu.memory_space<vmem>>, vector<8x1xf32>
    %399 = arith.mulf %395, %398 : vector<8x1xf32>
    %400 = arith.addf %399, %397 : vector<8x1xf32>
    %c0_217 = arith.constant 0 : index
    %c0_218 = arith.constant 0 : index
    %401 = vector.load %arg13[%c0_217, %c0_218] : memref<8x1xf32, #tpu.memory_space<vmem>>, vector<8x1xf32>
    tpu.vector_store %arg13[%c0_217, %c0_218], %400 {strides = array<i32>} : memref<8x1xf32, #tpu.memory_space<vmem>>, vector<8x1xf32>,
    %c0_219 = arith.constant 0 : index
    %c0_220 = arith.constant 0 : index
    %402 = vector.load %arg14[%c0_219, %c0_220] : memref<8x128xf32, #tpu.memory_space<vmem>>, vector<8x128xf32>
    %403 = vector.broadcast %395 : vector<8x1xf32> to vector<8x128xf32>
    %404 = arith.mulf %403, %402 : vector<8x128xf32>
    %405 = vector.broadcast %397 : vector<8x1xf32> to vector<8x128xf32>
    %406 = arith.mulf %405, %382 : vector<8x128xf32>
    %407 = arith.addf %404, %406 : vector<8x128xf32>
    %c0_221 = arith.constant 0 : index
    %c0_222 = arith.constant 0 : index
    %408 = vector.load %arg14[%c0_221, %c0_222] : memref<8x128xf32, #tpu.memory_space<vmem>>, vector<8x128xf32>
    tpu.vector_store %arg14[%c0_221, %c0_222], %407 {strides = array<i32>} : memref<8x128xf32, #tpu.memory_space<vmem>>, vector<8x128xf32>,
    %c0_223 = arith.constant 0 : index
    %c0_224 = arith.constant 0 : index
    %409 = vector.load %arg12[%c0_223, %c0_224] : memref<8x1xf32, #tpu.memory_space<vmem>>, vector<8x1xf32>
    tpu.vector_store %arg12[%c0_223, %c0_224], %392 {strides = array<i32>} : memref<8x1xf32, #tpu.memory_space<vmem>>, vector<8x1xf32>,
    %c6_i32 = arith.constant 6 : i32
    %c8_i32_225 = arith.constant 8 : i32
    %410 = arith.muli %c6_i32, %c8_i32_225 : i32
    %411 = tpu.assume_multiple %410, 8 : i32
    %412 = arith.index_cast %411 : i32 to index
    %c0_226 = arith.constant 0 : index
    %413 = vector.load %arg9[%412, %c0_226] : memref<64x512xf32, #tpu.memory_space<vmem>>, vector<8x512xf32>
    %c0_227 = arith.constant 0 : index
    %c0_228 = arith.constant 0 : index
    %414 = vector.load %arg10[%c0_227, %c0_228] : memref<8x128xf32, #tpu.memory_space<vmem>>, vector<8x128xf32>
    %cst_229 = arith.constant dense<0.000000e+00> : vector<8x512xf32>
    %415 = tpu.matmul %414, %11, %cst_229 {dimension_numbers = #tpu.dot_dimension_numbers<[1], [0], [0], [1], [0, 0, 1, 1], [], []>} : vector<8x128xf32>, vector<128x512xf32>, vector<8x512xf32> -> vector<8x512xf32>
    %416 = arith.addf %413, %415 : vector<8x512xf32>
    %417 = vector.extract_strided_slice %416 {offsets = [0, 0], sizes = [8, 128], strides = [1, 1]} : vector<8x512xf32> to vector<8x128xf32>
    %cst_230 = arith.constant 5.000000e-01 : f32
    %418 = vector.broadcast %cst_230 : f32 to vector<8x128xf32>
    %419 = arith.mulf %418, %417 : vector<8x128xf32>
    %420 = math.tanh %419 : vector<8x128xf32>
    %cst_231 = arith.constant 5.000000e-01 : f32
    %421 = vector.broadcast %cst_231 : f32 to vector<8x128xf32>
    %422 = arith.mulf %421, %420 : vector<8x128xf32>
    %cst_232 = arith.constant 5.000000e-01 : f32
    %423 = vector.broadcast %cst_232 : f32 to vector<8x128xf32>
    %424 = arith.addf %422, %423 : vector<8x128xf32>
    %425 = vector.extract_strided_slice %416 {offsets = [0, 128], sizes = [8, 128], strides = [1, 1]} : vector<8x512xf32> to vector<8x128xf32>
    %cst_233 = arith.constant 5.000000e-01 : f32
    %426 = vector.broadcast %cst_233 : f32 to vector<8x128xf32>
    %427 = arith.mulf %426, %425 : vector<8x128xf32>
    %428 = math.tanh %427 : vector<8x128xf32>
    %cst_234 = arith.constant 5.000000e-01 : f32
    %429 = vector.broadcast %cst_234 : f32 to vector<8x128xf32>
    %430 = arith.mulf %429, %428 : vector<8x128xf32>
    %cst_235 = arith.constant 5.000000e-01 : f32
    %431 = vector.broadcast %cst_235 : f32 to vector<8x128xf32>
    %432 = arith.addf %430, %431 : vector<8x128xf32>
    %433 = vector.extract_strided_slice %416 {offsets = [0, 256], sizes = [8, 128], strides = [1, 1]} : vector<8x512xf32> to vector<8x128xf32>
    %434 = math.tanh %433 : vector<8x128xf32>
    %435 = vector.extract_strided_slice %416 {offsets = [0, 384], sizes = [8, 128], strides = [1, 1]} : vector<8x512xf32> to vector<8x128xf32>
    %cst_236 = arith.constant 5.000000e-01 : f32
    %436 = vector.broadcast %cst_236 : f32 to vector<8x128xf32>
    %437 = arith.mulf %436, %435 : vector<8x128xf32>
    %438 = math.tanh %437 : vector<8x128xf32>
    %cst_237 = arith.constant 5.000000e-01 : f32
    %439 = vector.broadcast %cst_237 : f32 to vector<8x128xf32>
    %440 = arith.mulf %439, %438 : vector<8x128xf32>
    %cst_238 = arith.constant 5.000000e-01 : f32
    %441 = vector.broadcast %cst_238 : f32 to vector<8x128xf32>
    %442 = arith.addf %440, %441 : vector<8x128xf32>
    %c0_239 = arith.constant 0 : index
    %c0_240 = arith.constant 0 : index
    %443 = vector.load %arg11[%c0_239, %c0_240] : memref<8x128xf32, #tpu.memory_space<vmem>>, vector<8x128xf32>
    %444 = arith.mulf %432, %443 : vector<8x128xf32>
    %445 = arith.mulf %424, %434 : vector<8x128xf32>
    %446 = arith.addf %444, %445 : vector<8x128xf32>
    %447 = math.tanh %446 : vector<8x128xf32>
    %448 = arith.mulf %442, %447 : vector<8x128xf32>
    %c0_241 = arith.constant 0 : index
    %c0_242 = arith.constant 0 : index
    %449 = vector.load %arg11[%c0_241, %c0_242] : memref<8x128xf32, #tpu.memory_space<vmem>>, vector<8x128xf32>
    tpu.vector_store %arg11[%c0_241, %c0_242], %446 {strides = array<i32>} : memref<8x128xf32, #tpu.memory_space<vmem>>, vector<8x128xf32>,
    %c0_243 = arith.constant 0 : index
    %c0_244 = arith.constant 0 : index
    %450 = vector.load %arg10[%c0_243, %c0_244] : memref<8x128xf32, #tpu.memory_space<vmem>>, vector<8x128xf32>
    tpu.vector_store %arg10[%c0_243, %c0_244], %448 {strides = array<i32>} : memref<8x128xf32, #tpu.memory_space<vmem>>, vector<8x128xf32>,
    %451 = vector.broadcast %12 : vector<1x128xf32> to vector<8x128xf32>
    %452 = arith.mulf %448, %451 : vector<8x128xf32>
    %cst_245 = arith.constant dense<0.000000e+00> : vector<8xf32>
    %453 = vector.multi_reduction <add>, %452, %cst_245 [1] : vector<8x128xf32> to vector<8xf32>
    %454 = vector.shape_cast %453 : vector<8xf32> to vector<8x1xf32>
    %455 = vector.broadcast %13 : vector<1x1xf32> to vector<8x1xf32>
    %456 = arith.addf %454, %455 : vector<8x1xf32>
    %c0_246 = arith.constant 0 : index
    %c0_247 = arith.constant 0 : index
    %457 = vector.load %arg12[%c0_246, %c0_247] : memref<8x1xf32, #tpu.memory_space<vmem>>, vector<8x1xf32>
    %458 = arith.maximumf %457, %456 : vector<8x1xf32>
    %c0_248 = arith.constant 0 : index
    %c0_249 = arith.constant 0 : index
    %459 = vector.load %arg12[%c0_248, %c0_249] : memref<8x1xf32, #tpu.memory_space<vmem>>, vector<8x1xf32>
    %460 = arith.subf %459, %458 : vector<8x1xf32>
    %461 = math.exp %460 : vector<8x1xf32>
    %462 = arith.subf %456, %458 : vector<8x1xf32>
    %463 = math.exp %462 : vector<8x1xf32>
    %c0_250 = arith.constant 0 : index
    %c0_251 = arith.constant 0 : index
    %464 = vector.load %arg13[%c0_250, %c0_251] : memref<8x1xf32, #tpu.memory_space<vmem>>, vector<8x1xf32>
    %465 = arith.mulf %461, %464 : vector<8x1xf32>
    %466 = arith.addf %465, %463 : vector<8x1xf32>
    %c0_252 = arith.constant 0 : index
    %c0_253 = arith.constant 0 : index
    %467 = vector.load %arg13[%c0_252, %c0_253] : memref<8x1xf32, #tpu.memory_space<vmem>>, vector<8x1xf32>
    tpu.vector_store %arg13[%c0_252, %c0_253], %466 {strides = array<i32>} : memref<8x1xf32, #tpu.memory_space<vmem>>, vector<8x1xf32>,
    %c0_254 = arith.constant 0 : index
    %c0_255 = arith.constant 0 : index
    %468 = vector.load %arg14[%c0_254, %c0_255] : memref<8x128xf32, #tpu.memory_space<vmem>>, vector<8x128xf32>
    %469 = vector.broadcast %461 : vector<8x1xf32> to vector<8x128xf32>
    %470 = arith.mulf %469, %468 : vector<8x128xf32>
    %471 = vector.broadcast %463 : vector<8x1xf32> to vector<8x128xf32>
    %472 = arith.mulf %471, %448 : vector<8x128xf32>
    %473 = arith.addf %470, %472 : vector<8x128xf32>
    %c0_256 = arith.constant 0 : index
    %c0_257 = arith.constant 0 : index
    %474 = vector.load %arg14[%c0_256, %c0_257] : memref<8x128xf32, #tpu.memory_space<vmem>>, vector<8x128xf32>
    tpu.vector_store %arg14[%c0_256, %c0_257], %473 {strides = array<i32>} : memref<8x128xf32, #tpu.memory_space<vmem>>, vector<8x128xf32>,
    %c0_258 = arith.constant 0 : index
    %c0_259 = arith.constant 0 : index
    %475 = vector.load %arg12[%c0_258, %c0_259] : memref<8x1xf32, #tpu.memory_space<vmem>>, vector<8x1xf32>
    tpu.vector_store %arg12[%c0_258, %c0_259], %458 {strides = array<i32>} : memref<8x1xf32, #tpu.memory_space<vmem>>, vector<8x1xf32>,
    %c7_i32 = arith.constant 7 : i32
    %c8_i32_260 = arith.constant 8 : i32
    %476 = arith.muli %c7_i32, %c8_i32_260 : i32
    %477 = tpu.assume_multiple %476, 8 : i32
    %478 = arith.index_cast %477 : i32 to index
    %c0_261 = arith.constant 0 : index
    %479 = vector.load %arg9[%478, %c0_261] : memref<64x512xf32, #tpu.memory_space<vmem>>, vector<8x512xf32>
    %c0_262 = arith.constant 0 : index
    %c0_263 = arith.constant 0 : index
    %480 = vector.load %arg10[%c0_262, %c0_263] : memref<8x128xf32, #tpu.memory_space<vmem>>, vector<8x128xf32>
    %cst_264 = arith.constant dense<0.000000e+00> : vector<8x512xf32>
    %481 = tpu.matmul %480, %11, %cst_264 {dimension_numbers = #tpu.dot_dimension_numbers<[1], [0], [0], [1], [0, 0, 1, 1], [], []>} : vector<8x128xf32>, vector<128x512xf32>, vector<8x512xf32> -> vector<8x512xf32>
    %482 = arith.addf %479, %481 : vector<8x512xf32>
    %483 = vector.extract_strided_slice %482 {offsets = [0, 0], sizes = [8, 128], strides = [1, 1]} : vector<8x512xf32> to vector<8x128xf32>
    %cst_265 = arith.constant 5.000000e-01 : f32
    %484 = vector.broadcast %cst_265 : f32 to vector<8x128xf32>
    %485 = arith.mulf %484, %483 : vector<8x128xf32>
    %486 = math.tanh %485 : vector<8x128xf32>
    %cst_266 = arith.constant 5.000000e-01 : f32
    %487 = vector.broadcast %cst_266 : f32 to vector<8x128xf32>
    %488 = arith.mulf %487, %486 : vector<8x128xf32>
    %cst_267 = arith.constant 5.000000e-01 : f32
    %489 = vector.broadcast %cst_267 : f32 to vector<8x128xf32>
    %490 = arith.addf %488, %489 : vector<8x128xf32>
    %491 = vector.extract_strided_slice %482 {offsets = [0, 128], sizes = [8, 128], strides = [1, 1]} : vector<8x512xf32> to vector<8x128xf32>
    %cst_268 = arith.constant 5.000000e-01 : f32
    %492 = vector.broadcast %cst_268 : f32 to vector<8x128xf32>
    %493 = arith.mulf %492, %491 : vector<8x128xf32>
    %494 = math.tanh %493 : vector<8x128xf32>
    %cst_269 = arith.constant 5.000000e-01 : f32
    %495 = vector.broadcast %cst_269 : f32 to vector<8x128xf32>
    %496 = arith.mulf %495, %494 : vector<8x128xf32>
    %cst_270 = arith.constant 5.000000e-01 : f32
    %497 = vector.broadcast %cst_270 : f32 to vector<8x128xf32>
    %498 = arith.addf %496, %497 : vector<8x128xf32>
    %499 = vector.extract_strided_slice %482 {offsets = [0, 256], sizes = [8, 128], strides = [1, 1]} : vector<8x512xf32> to vector<8x128xf32>
    %500 = math.tanh %499 : vector<8x128xf32>
    %501 = vector.extract_strided_slice %482 {offsets = [0, 384], sizes = [8, 128], strides = [1, 1]} : vector<8x512xf32> to vector<8x128xf32>
    %cst_271 = arith.constant 5.000000e-01 : f32
    %502 = vector.broadcast %cst_271 : f32 to vector<8x128xf32>
    %503 = arith.mulf %502, %501 : vector<8x128xf32>
    %504 = math.tanh %503 : vector<8x128xf32>
    %cst_272 = arith.constant 5.000000e-01 : f32
    %505 = vector.broadcast %cst_272 : f32 to vector<8x128xf32>
    %506 = arith.mulf %505, %504 : vector<8x128xf32>
    %cst_273 = arith.constant 5.000000e-01 : f32
    %507 = vector.broadcast %cst_273 : f32 to vector<8x128xf32>
    %508 = arith.addf %506, %507 : vector<8x128xf32>
    %c0_274 = arith.constant 0 : index
    %c0_275 = arith.constant 0 : index
    %509 = vector.load %arg11[%c0_274, %c0_275] : memref<8x128xf32, #tpu.memory_space<vmem>>, vector<8x128xf32>
    %510 = arith.mulf %498, %509 : vector<8x128xf32>
    %511 = arith.mulf %490, %500 : vector<8x128xf32>
    %512 = arith.addf %510, %511 : vector<8x128xf32>
    %513 = math.tanh %512 : vector<8x128xf32>
    %514 = arith.mulf %508, %513 : vector<8x128xf32>
    %c0_276 = arith.constant 0 : index
    %c0_277 = arith.constant 0 : index
    %515 = vector.load %arg11[%c0_276, %c0_277] : memref<8x128xf32, #tpu.memory_space<vmem>>, vector<8x128xf32>
    tpu.vector_store %arg11[%c0_276, %c0_277], %512 {strides = array<i32>} : memref<8x128xf32, #tpu.memory_space<vmem>>, vector<8x128xf32>,
    %c0_278 = arith.constant 0 : index
    %c0_279 = arith.constant 0 : index
    %516 = vector.load %arg10[%c0_278, %c0_279] : memref<8x128xf32, #tpu.memory_space<vmem>>, vector<8x128xf32>
    tpu.vector_store %arg10[%c0_278, %c0_279], %514 {strides = array<i32>} : memref<8x128xf32, #tpu.memory_space<vmem>>, vector<8x128xf32>,
    %517 = vector.broadcast %12 : vector<1x128xf32> to vector<8x128xf32>
    %518 = arith.mulf %514, %517 : vector<8x128xf32>
    %cst_280 = arith.constant dense<0.000000e+00> : vector<8xf32>
    %519 = vector.multi_reduction <add>, %518, %cst_280 [1] : vector<8x128xf32> to vector<8xf32>
    %520 = vector.shape_cast %519 : vector<8xf32> to vector<8x1xf32>
    %521 = vector.broadcast %13 : vector<1x1xf32> to vector<8x1xf32>
    %522 = arith.addf %520, %521 : vector<8x1xf32>
    %c0_281 = arith.constant 0 : index
    %c0_282 = arith.constant 0 : index
    %523 = vector.load %arg12[%c0_281, %c0_282] : memref<8x1xf32, #tpu.memory_space<vmem>>, vector<8x1xf32>
    %524 = arith.maximumf %523, %522 : vector<8x1xf32>
    %c0_283 = arith.constant 0 : index
    %c0_284 = arith.constant 0 : index
    %525 = vector.load %arg12[%c0_283, %c0_284] : memref<8x1xf32, #tpu.memory_space<vmem>>, vector<8x1xf32>
    %526 = arith.subf %525, %524 : vector<8x1xf32>
    %527 = math.exp %526 : vector<8x1xf32>
    %528 = arith.subf %522, %524 : vector<8x1xf32>
    %529 = math.exp %528 : vector<8x1xf32>
    %c0_285 = arith.constant 0 : index
    %c0_286 = arith.constant 0 : index
    %530 = vector.load %arg13[%c0_285, %c0_286] : memref<8x1xf32, #tpu.memory_space<vmem>>, vector<8x1xf32>
    %531 = arith.mulf %527, %530 : vector<8x1xf32>
    %532 = arith.addf %531, %529 : vector<8x1xf32>
    %c0_287 = arith.constant 0 : index
    %c0_288 = arith.constant 0 : index
    %533 = vector.load %arg13[%c0_287, %c0_288] : memref<8x1xf32, #tpu.memory_space<vmem>>, vector<8x1xf32>
    tpu.vector_store %arg13[%c0_287, %c0_288], %532 {strides = array<i32>} : memref<8x1xf32, #tpu.memory_space<vmem>>, vector<8x1xf32>,
    %c0_289 = arith.constant 0 : index
    %c0_290 = arith.constant 0 : index
    %534 = vector.load %arg14[%c0_289, %c0_290] : memref<8x128xf32, #tpu.memory_space<vmem>>, vector<8x128xf32>
    %535 = vector.broadcast %527 : vector<8x1xf32> to vector<8x128xf32>
    %536 = arith.mulf %535, %534 : vector<8x128xf32>
    %537 = vector.broadcast %529 : vector<8x1xf32> to vector<8x128xf32>
    %538 = arith.mulf %537, %514 : vector<8x128xf32>
    %539 = arith.addf %536, %538 : vector<8x128xf32>
    %c0_291 = arith.constant 0 : index
    %c0_292 = arith.constant 0 : index
    %540 = vector.load %arg14[%c0_291, %c0_292] : memref<8x128xf32, #tpu.memory_space<vmem>>, vector<8x128xf32>
    tpu.vector_store %arg14[%c0_291, %c0_292], %539 {strides = array<i32>} : memref<8x128xf32, #tpu.memory_space<vmem>>, vector<8x128xf32>,
    %c0_293 = arith.constant 0 : index
    %c0_294 = arith.constant 0 : index
    %541 = vector.load %arg12[%c0_293, %c0_294] : memref<8x1xf32, #tpu.memory_space<vmem>>, vector<8x1xf32>
    tpu.vector_store %arg12[%c0_293, %c0_294], %524 {strides = array<i32>} : memref<8x1xf32, #tpu.memory_space<vmem>>, vector<8x1xf32>,
    %c8_i32_295 = arith.constant 8 : i32
    %c0_i32_296 = arith.constant 0 : i32
    %542 = arith.cmpi eq, %arg1, %c0_i32_296 : i32
    %543 = arith.extui %542 : i1 to i32
    %c0_i32_297 = arith.constant 0 : i32
    %544 = arith.cmpi ne, %543, %c0_i32_297 : i32
    scf.if %544 {
      %c0_298 = arith.constant 0 : index
      %c0_299 = arith.constant 0 : index
      %545 = vector.load %arg13[%c0_298, %c0_299] : memref<8x1xf32, #tpu.memory_space<vmem>>, vector<8x1xf32>
      %546 = tpu.reciprocal %545 : vector<8x1xf32> -> vector<8x1xf32>
      %c0_300 = arith.constant 0 : index
      %c0_301 = arith.constant 0 : index
      %547 = vector.load %arg14[%c0_300, %c0_301] : memref<8x128xf32, #tpu.memory_space<vmem>>, vector<8x128xf32>
      %548 = vector.broadcast %546 : vector<8x1xf32> to vector<8x128xf32>
      %549 = arith.mulf %547, %548 : vector<8x128xf32>
      %c0_302 = arith.constant 0 : index
      %c0_303 = arith.constant 0 : index
      %550 = vector.load %arg8[%c0_302, %c0_303] : memref<8x128xf32, #tpu.memory_space<vmem>>, vector<8x128xf32>
      tpu.vector_store %arg8[%c0_302, %c0_303], %549 {strides = array<i32>} : memref<8x128xf32, #tpu.memory_space<vmem>>, vector<8x128xf32>,
    } else {
    }
    return
  }
  func.func @transform_0(%arg0: i32, %arg1: i32) -> (i32, i32, i32) {
    %c0_i32 = arith.constant 0 : i32
    %c0_i32_0 = arith.constant 0 : i32
    return %arg1, %arg0, %c0_i32 : i32, i32, i32
  }
  func.func @transform_1(%arg0: i32, %arg1: i32) -> (i32, i32) {
    %c0_i32 = arith.constant 0 : i32
    %c0_i32_0 = arith.constant 0 : i32
    %c0_i32_1 = arith.constant 0 : i32
    return %c0_i32, %c0_i32_0 : i32, i32
  }
  func.func @transform_2(%arg0: i32, %arg1: i32) -> (i32, i32) {
    %c0_i32 = arith.constant 0 : i32
    %c0_i32_0 = arith.constant 0 : i32
    %c0_i32_1 = arith.constant 0 : i32
    return %c0_i32, %c0_i32_0 : i32, i32
  }
  func.func @transform_3(%arg0: i32, %arg1: i32) -> (i32, i32) {
    %c0_i32 = arith.constant 0 : i32
    %c0_i32_0 = arith.constant 0 : i32
    %c0_i32_1 = arith.constant 0 : i32
    return %c0_i32, %c0_i32_0 : i32, i32
  }
  func.func @transform_4(%arg0: i32, %arg1: i32) -> (i32, i32) {
    %c0_i32 = arith.constant 0 : i32
    %c0_i32_0 = arith.constant 0 : i32
    %c0_i32_1 = arith.constant 0 : i32
    return %c0_i32, %c0_i32_0 : i32, i32
  }
  func.func @transform_5(%arg0: i32, %arg1: i32) -> (i32, i32) {
    %c0_i32 = arith.constant 0 : i32
    %c0_i32_0 = arith.constant 0 : i32
    %c0_i32_1 = arith.constant 0 : i32
    return %c0_i32, %c0_i32_0 : i32, i32
  }
  func.func @transform_6(%arg0: i32, %arg1: i32) -> (i32, i32) {
    %c0_i32 = arith.constant 0 : i32
    %c0_i32_0 = arith.constant 0 : i32
    return %arg0, %c0_i32 : i32, i32
  }
}

</mosaic_0001>

<llo_original>
// kernel: tpu_custom_call.1
$region0: #{tpu_custom_call.1}
  #allocation0 [shape = 'u32[]', space=smem, size = 0x4, offset = 0x4, fixed_abs, tag = 'smem constant byte address 0x4 - core index']
  #allocation1 [shape = 'u32[144,128]{1,0:T(1,128)}', space=vmem, size = 0x12000, scoped, tag = 'internal scratch']
  #allocation2 [shape = 'f32[64,512]{1,0:T(8,128)}', space=vmem, size = 0x20000, scoped, tag = 'scratch operand']
  #allocation3 [shape = 'f32[8,128]{1,0:T(8,128)}', space=vmem, size = 0x1000, scoped, tag = 'scratch operand']
  #allocation4 [shape = 'f32[8,128]{1,0:T(8,128)}', space=vmem, size = 0x1000, scoped, tag = 'scratch operand']
  #allocation5 [shape = 'f32[8,1]{1,0:T(8,128)}', space=vmem, size = 0x1000, scoped, tag = 'scratch operand']
  #allocation6 [shape = 'f32[8,1]{1,0:T(8,128)}', space=vmem, size = 0x1000, scoped, tag = 'scratch operand']
  #allocation7 [shape = 'f32[8,128]{1,0:T(8,128)}', space=vmem, size = 0x1000, scoped, tag = 'scratch operand']
  #allocation8 [shape = 'f32[1,1]{1,0:T(1,128)S(1)}', space=vmem, size = 0x200, scoped, tag = 'scoped memory for tpu_custom_call.1']
  %s0 = inlined_call_operand.hbm [shape: f32[8,8,16], index: 0, kind: input, shape index: {}]
  %s1 = inlined_call_operand.hbm [shape: f32[16,512], index: 1, kind: input, shape index: {}]
  %s2 = inlined_call_operand.hbm [shape: f32[128,512], index: 2, kind: input, shape index: {}]
  %s3 = inlined_call_operand.vmem [shape: f32[1,512], index: 3, kind: input, shape index: {}]
  %s4 = inlined_call_operand.vmem [shape: f32[1,128], index: 4, kind: input, shape index: {}]
  %s5 = inlined_call_operand.<no memory space> [shape: f32[1,1], index: 5, kind: input, shape index: {}]
  %s6 = inlined_call_operand.hbm [shape: f32[8,128], index: 6, kind: output, shape index: {}]
  %s7 = sld [smem:[#allocation0]]
  $region54: #{tpu_custom_call.1} parent=0
    _
  %s9 = ssub.s32 1, %s7
  %s10 = scalar_select 0, %s9, %s7
  %v11 = vstv %s5
  %12 = vst [vmem:[#allocation8] sm:$0x1] %v11
  $region1: #{tpu_custom_call.1} parent=0
    #allocation9 [shape = 'u8[32768]{0}', space=vmem, size = 0x8000, scoped, tag = 'input window, operand 0, single buffered']
    #allocation10 [shape = 's32[1]{0}', space=sflag, size = 0x4, scoped, tag = 'scoped memory for tpu_custom_call.1']
    #allocation11 [shape = 's32[1]{0}', space=sflag, size = 0x4, scoped, tag = 'scoped memory for tpu_custom_call.1']
    #allocation12 [shape = 'u8[32768]{0}', space=vmem, size = 0x8000, scoped, tag = 'input window, operand 1, single buffered']
    #allocation13 [shape = 's32[1]{0}', space=sflag, size = 0x4, scoped, tag = 'scoped memory for tpu_custom_call.1']
    #allocation14 [shape = 'u8[262144]{0}', space=vmem, size = 0x40000, scoped, tag = 'input window, operand 2, single buffered']
    #allocation15 [shape = 'u8[4096]{0}', space=vmem, size = 0x1000, scoped, tag = 'output window, operand 0, single buffered']
    %13 = vsyncpa [#allocation10], 0
    %14 = vsyncpa [#allocation13], 0
    %15 = vsyncpa [#allocation11], 0
    // Predicated region
    $region2: #{tpu_custom_call.1} parent=1 // pred_check
      _
    $region3: #{tpu_custom_call.1} parent=1 // pred_check_branch
      %17 = sbr.rel (0) target = $region5
    $region4: #{tpu_custom_call.1} parent=1 // pred_region
      %s19 = ssub.s32 1024, 1024
      %20 = vsyncadd [#allocation10], %s19
      %s21 = sshll.u32 [#allocation9], 4
      %s22 = int_to_ptr.vmem [resolvable:$true] %s21
      %27 = dma.hbm_to_vmem [thread:$0]  %s0, 1024, %s22, [#allocation10], 128, 128, 8
    $region5: #{tpu_custom_call.1} parent=1 // pred_fallthru
      _
    // Predicated region
    $region6: #{tpu_custom_call.1} parent=1 // pred_check
      _
    $region7: #{tpu_custom_call.1} parent=1 // pred_check_branch
      %29 = sbr.rel (0) target = $region9
    $region8: #{tpu_custom_call.1} parent=1 // pred_region
      %s31 = ssub.s32 1024, 1024
      %32 = vsyncadd [#allocation13], %s31
      %s33 = sshll.u32 [#allocation12], 4
      %s34 = int_to_ptr.vmem [resolvable:$true] %s33
      %39 = dma.hbm_to_vmem [thread:$0]  %s1, 1024, %s34, [#allocation13], 512, 512, 32
    $region9: #{tpu_custom_call.1} parent=1 // pred_fallthru
      _
    // Predicated region
    $region10: #{tpu_custom_call.1} parent=1 // pred_check
      _
    $region11: #{tpu_custom_call.1} parent=1 // pred_check_branch
      %41 = sbr.rel (0) target = $region13
    $region12: #{tpu_custom_call.1} parent=1 // pred_region
      %s43 = ssub.s32 8192, 8192
      %44 = vsyncadd [#allocation13], %s43
      %s45 = sshll.u32 [#allocation14], 4
      %s46 = int_to_ptr.vmem [resolvable:$true] %s45
      %51 = dma.hbm_to_vmem [thread:$0]  %s2, 8192, %s46, [#allocation13], 512, 512, 32
    $region13: #{tpu_custom_call.1} parent=1 // pred_fallthru
      _
    // Predicated region
    $region14: #{tpu_custom_call.1} parent=1 // pred_check
      _
    $region15: #{tpu_custom_call.1} parent=1 // pred_check_branch
      %53 = sbr.rel (0) target = $region17
    $region16: #{tpu_custom_call.1} parent=1 // pred_region
      _
    $region17: #{tpu_custom_call.1} parent=1 // pred_fallthru
      _
    // Predicated region
    $region18: #{tpu_custom_call.1} parent=1 // pred_check
      _
    $region19: #{tpu_custom_call.1} parent=1 // pred_check_branch
      %55 = sbr.rel (0) target = $region21
    $region20: #{tpu_custom_call.1} parent=1 // pred_region
      _
    $region21: #{tpu_custom_call.1} parent=1 // pred_fallthru
      _
    // Predicated region
    $region22: #{tpu_custom_call.1} parent=1 // pred_check
      _
    $region23: #{tpu_custom_call.1} parent=1 // pred_check_branch
      %57 = sbr.rel (0) target = $region25
    $region24: #{tpu_custom_call.1} parent=1 // pred_region
      _
    $region25: #{tpu_custom_call.1} parent=1 // pred_fallthru
      _
    // Predicated region
    $region26: #{tpu_custom_call.1} parent=1 // pred_check
      _
    $region27: #{tpu_custom_call.1} parent=1 // pred_check_branch
      %59 = sbr.rel (0) target = $region29
    $region28: #{tpu_custom_call.1} parent=1 // pred_region
      %60 = dma.done [#allocation10], 1024
    $region29: #{tpu_custom_call.1} parent=1 // pred_fallthru
      _
    // Predicated region
    $region30: #{tpu_custom_call.1} parent=1 // pred_check
      _
    $region31: #{tpu_custom_call.1} parent=1 // pred_check_branch
      %62 = sbr.rel (0) target = $region33
    $region32: #{tpu_custom_call.1} parent=1 // pred_region
      %63 = dma.done [#allocation13], 1024
    $region33: #{tpu_custom_call.1} parent=1 // pred_fallthru
      _
    // Predicated region
    $region34: #{tpu_custom_call.1} parent=1 // pred_check
      _
    $region35: #{tpu_custom_call.1} parent=1 // pred_check_branch
      %65 = sbr.rel (0) target = $region37
    $region36: #{tpu_custom_call.1} parent=1 // pred_region
      %66 = dma.done [#allocation13], 8192
    $region37: #{tpu_custom_call.1} parent=1 // pred_fallthru
      _
    %p67 = scmp.eq.s32.totalorder 0, 0
    // Predicated region
    $region38: #{tpu_custom_call.1} parent=1 // pred_check
      %p68 = pneg %p67
    $region39: #{tpu_custom_call.1} parent=1 // pred_check_branch
      %70 = sbr.rel (%p68) target = $region41
    $region40: #{tpu_custom_call.1} parent=1 // pred_region
      %71 = vst [vmem:[#allocation3] sm:$0xff] 0.0
      %72 = vst [vmem:[#allocation4] sm:$0xff] 0.0
      %73 = vst [vmem:[#allocation7] sm:$0xff] 0.0
      %vm74 = vcmask 7168
      %75 = vst.msk [vmem:[#allocation6] sm:$0xff] %vm74, 0.0
      %76 = vst.msk [vmem:[#allocation5] sm:$0xff] %vm74, -1e+30
    $region41: #{tpu_custom_call.1} parent=1 // pred_fallthru
      _
    %v77 = vld [vmem:[#allocation9] sm:$0xff]
    %v78 = vld [vmem:[#allocation9 + $0x8] sm:$0xff]
    %v79 = vld [vmem:[#allocation9 + $0x10] sm:$0xff]
    %v80 = vld [vmem:[#allocation9 + $0x18] sm:$0xff]
    %v81 = vld [vmem:[#allocation9 + $0x20] sm:$0xff]
    %v82 = vld [vmem:[#allocation9 + $0x28] sm:$0xff]
    %v83 = vld [vmem:[#allocation9 + $0x30] sm:$0xff]
    %v84 = vld [vmem:[#allocation9 + $0x38] sm:$0xff]
    %v85 = vld [vmem:[#allocation12] sm:$0xff]
    %v86 = vld [vmem:[#allocation12 + $0x8] sm:$0xff]
    %v87 = vld [vmem:[#allocation12 + $0x10] sm:$0xff]
    %v88 = vld [vmem:[#allocation12 + $0x18] sm:$0xff]
    %v89 = vld [vmem:[#allocation12 + $0x20] sm:$0xff]
    %v90 = vld [vmem:[#allocation12 + $0x28] sm:$0xff]
    %v91 = vld [vmem:[#allocation12 + $0x30] sm:$0xff]
    %v92 = vld [vmem:[#allocation12 + $0x38] sm:$0xff]
    %v93 = vld [vmem:[%s3] sm:$0xf]
    %v95 = vlaneseq
    %v96 = vshrl.u32 %v95, 7
    %v97 = vsub.s32 0, %v96
    %v98 = vrot.slane %v93, %v97
    %v99 = vlaneseq
    %v100 = vshrl.u32 %v99, 7
    %v101 = vsub.s32 1, %v100
    %v102 = vrot.slane %v93, %v101
    %v103 = vlaneseq
    %v104 = vshrl.u32 %v103, 7
    %v105 = vsub.s32 2, %v104
    %v106 = vrot.slane %v93, %v105
    %v107 = vlaneseq
    %v108 = vshrl.u32 %v107, 7
    %v109 = vsub.s32 3, %v108
    %v110 = vrot.slane %v93, %v109
    %vm115 = vcmask 130048
    %v117 = vsel %vm115, %v77, 0
    %v120 = vsel %vm115, %v78, 0
    %v123 = vsel %vm115, %v79, 0
    %v126 = vsel %vm115, %v80, 0
    %v129 = vsel %vm115, %v81, 0
    %v132 = vsel %vm115, %v82, 0
    %v135 = vsel %vm115, %v83, 0
    %v138 = vsel %vm115, %v84, 0
    %140 = vmatprep.subr.mxu0 0.0
    %141 = vmatpush1.msra.mxu0 0.0
    %142 = vmatprep.subr.mxu0 0.0
    %143 = vmatpush1.msra.mxu0 0.0
    %144 = vmatprep.subr.mxu0 0.0
    %145 = vmatpush1.msra.mxu0 0.0
    %146 = vmatprep.subr.mxu0 0.0
    %147 = vmatpush1.msra.mxu0 0.0
    %148 = vmatprep.subr.mxu0 0.0
    %149 = vmatpush1.msra.mxu0 0.0
    %150 = vmatprep.subr.mxu0 0.0
    %151 = vmatpush1.msra.mxu0 0.0
    %152 = vmatprep.subr.mxu0 0.0
    %153 = vmatpush1.msra.mxu0 0.0
    %154 = vmatprep.subr.mxu0 0.0
    %155 = vmatpush1.msra.mxu0 0.0
    %156 = vmatprep.subr.mxu0 0.0
    %157 = vmatpush1.msra.mxu0 0.0
    %158 = vmatprep.subr.mxu0 0.0
    %159 = vmatpush1.msra.mxu0 0.0
    %160 = vmatprep.subr.mxu0 0.0
    %161 = vmatpush1.msra.mxu0 0.0
    %162 = vmatprep.subr.mxu0 0.0
    %163 = vmatpush1.msra.mxu0 0.0
    %164 = vmatprep.subr.mxu0 0.0
    %165 = vmatpush1.msra.mxu0 0.0
    %166 = vmatprep.subr.mxu0 0.0
    %167 = vmatpush1.msra.mxu0 0.0
    %168 = vmatprep.subr.mxu0 %v90
    %169 = vmatpush1.msra.mxu0 %v89
    %170 = vmatprep.subr.mxu0 %v86
    %171 = vmatpush1.msra.mxu0 %v85
    %172 = vmatprep.subr.mxu0 0.0
    %173 = vmatpush2.msra.mxu0 0.0
    %174 = vmatprep.subr.mxu0 0.0
    %175 = vmatpush2.msra.mxu0 0.0
    %176 = vmatprep.subr.mxu0 0.0
    %177 = vmatpush2.msra.mxu0 0.0
    %178 = vmatprep.subr.mxu0 0.0
    %179 = vmatpush2.msra.mxu0 0.0
    %180 = vmatprep.subr.mxu0 0.0
    %181 = vmatpush2.msra.mxu0 0.0
    %182 = vmatprep.subr.mxu0 0.0
    %183 = vmatpush2.msra.mxu0 0.0
    %184 = vmatprep.subr.mxu0 0.0
    %185 = vmatpush2.msra.mxu0 0.0
    %186 = vmatprep.subr.mxu0 0.0
    %187 = vmatpush2.msra.mxu0 0.0
    %188 = vmatprep.subr.mxu0 0.0
    %189 = vmatpush2.msra.mxu0 0.0
    %190 = vmatprep.subr.mxu0 0.0
    %191 = vmatpush2.msra.mxu0 0.0
    %192 = vmatprep.subr.mxu0 0.0
    %193 = vmatpush2.msra.mxu0 0.0
    %194 = vmatprep.subr.mxu0 0.0
    %195 = vmatpush2.msra.mxu0 0.0
    %196 = vmatprep.subr.mxu0 0.0
    %197 = vmatpush2.msra.mxu0 0.0
    %198 = vmatprep.subr.mxu0 0.0
    %199 = vmatpush2.msra.mxu0 0.0
    %200 = vmatprep.subr.mxu0 0.0
    %201 = vmatpush2.msra.mxu0 0.0
    %202 = vmatprep.subr.mxu0 0.0
    %203 = vmatpush2.msra.mxu0 0.0
    %204 = vmatprep.mubr.f32.mxu0 0.0
    %205 = vmatmul.mubr.f32.gmra.mxu0 %v117
    %v206 = vpop.f32.mrf.mxu0
    %v207 = vadd.f32 %v98, %v206
    %v208 = vpop.f32.mrf.mxu0
    %v209 = vadd.f32 %v102, %v208
    %210 = vmatprep.mubr.f32.mxu0 0.0
    %211 = vmatmul.mubr.f32.gmra.mxu0 %v120
    %v212 = vpop.f32.mrf.mxu0
    %v213 = vadd.f32 %v98, %v212
    %v214 = vpop.f32.mrf.mxu0
    %v215 = vadd.f32 %v102, %v214
    %216 = vmatprep.mubr.f32.mxu0 0.0
    %217 = vmatmul.mubr.f32.gmra.mxu0 %v123
    %v218 = vpop.f32.mrf.mxu0
    %v219 = vadd.f32 %v98, %v218
    %v220 = vpop.f32.mrf.mxu0
    %v221 = vadd.f32 %v102, %v220
    %222 = vmatprep.mubr.f32.mxu0 0.0
    %223 = vmatmul.mubr.f32.gmra.mxu0 %v126
    %v224 = vpop.f32.mrf.mxu0
    %v225 = vadd.f32 %v98, %v224
    %v226 = vpop.f32.mrf.mxu0
    %v227 = vadd.f32 %v102, %v226
    %228 = vmatprep.mubr.f32.mxu0 0.0
    %229 = vmatmul.mubr.f32.gmra.mxu0 %v129
    %v230 = vpop.f32.mrf.mxu0
    %v231 = vadd.f32 %v98, %v230
    %v232 = vpop.f32.mrf.mxu0
    %v233 = vadd.f32 %v102, %v232
    %234 = vmatprep.mubr.f32.mxu0 0.0
    %235 = vmatmul.mubr.f32.gmra.mxu0 %v132
    %v236 = vpop.f32.mrf.mxu0
    %v237 = vadd.f32 %v98, %v236
    %v238 = vpop.f32.mrf.mxu0
    %v239 = vadd.f32 %v102, %v238
    %240 = vmatprep.mubr.f32.mxu0 0.0
    %241 = vmatmul.mubr.f32.gmra.mxu0 %v135
    %v242 = vpop.f32.mrf.mxu0
    %v243 = vadd.f32 %v98, %v242
    %v244 = vpop.f32.mrf.mxu0
    %v245 = vadd.f32 %v102, %v244
    %246 = vmatprep.mubr.f32.mxu0 0.0
    %247 = vmatmul.mubr.f32.gmra.mxu0 %v138
    %v248 = vpop.f32.mrf.mxu0
    %v249 = vadd.f32 %v98, %v248
    %v250 = vpop.f32.mrf.mxu0
    %v251 = vadd.f32 %v102, %v250
    %252 = vdwg.mxu0
    %253 = vmatprep.subr.mxu0 0.0
    %254 = vmatpush1.msra.mxu0 0.0
    %255 = vmatprep.subr.mxu0 0.0
    %256 = vmatpush1.msra.mxu0 0.0
    %257 = vmatprep.subr.mxu0 0.0
    %258 = vmatpush1.msra.mxu0 0.0
    %259 = vmatprep.subr.mxu0 0.0
    %260 = vmatpush1.msra.mxu0 0.0
    %261 = vmatprep.subr.mxu0 0.0
    %262 = vmatpush1.msra.mxu0 0.0
    %263 = vmatprep.subr.mxu0 0.0
    %264 = vmatpush1.msra.mxu0 0.0
    %265 = vmatprep.subr.mxu0 0.0
    %266 = vmatpush1.msra.mxu0 0.0
    %267 = vmatprep.subr.mxu0 0.0
    %268 = vmatpush1.msra.mxu0 0.0
    %269 = vmatprep.subr.mxu0 0.0
    %270 = vmatpush1.msra.mxu0 0.0
    %271 = vmatprep.subr.mxu0 0.0
    %272 = vmatpush1.msra.mxu0 0.0
    %273 = vmatprep.subr.mxu0 0.0
    %274 = vmatpush1.msra.mxu0 0.0
    %275 = vmatprep.subr.mxu0 0.0
    %276 = vmatpush1.msra.mxu0 0.0
    %277 = vmatprep.subr.mxu0 0.0
    %278 = vmatpush1.msra.mxu0 0.0
    %279 = vmatprep.subr.mxu0 0.0
    %280 = vmatpush1.msra.mxu0 0.0
    %281 = vmatprep.subr.mxu0 %v92
    %282 = vmatpush1.msra.mxu0 %v91
    %283 = vmatprep.subr.mxu0 %v88
    %284 = vmatpush1.msra.mxu0 %v87
    %285 = vmatprep.subr.mxu0 0.0
    %286 = vmatpush2.msra.mxu0 0.0
    %287 = vmatprep.subr.mxu0 0.0
    %288 = vmatpush2.msra.mxu0 0.0
    %289 = vmatprep.subr.mxu0 0.0
    %290 = vmatpush2.msra.mxu0 0.0
    %291 = vmatprep.subr.mxu0 0.0
    %292 = vmatpush2.msra.mxu0 0.0
    %293 = vmatprep.subr.mxu0 0.0
    %294 = vmatpush2.msra.mxu0 0.0
    %295 = vmatprep.subr.mxu0 0.0
    %296 = vmatpush2.msra.mxu0 0.0
    %297 = vmatprep.subr.mxu0 0.0
    %298 = vmatpush2.msra.mxu0 0.0
    %299 = vmatprep.subr.mxu0 0.0
    %300 = vmatpush2.msra.mxu0 0.0
    %301 = vmatprep.subr.mxu0 0.0
    %302 = vmatpush2.msra.mxu0 0.0
    %303 = vmatprep.subr.mxu0 0.0
    %304 = vmatpush2.msra.mxu0 0.0
    %305 = vmatprep.subr.mxu0 0.0
    %306 = vmatpush2.msra.mxu0 0.0
    %307 = vmatprep.subr.mxu0 0.0
    %308 = vmatpush2.msra.mxu0 0.0
    %309 = vmatprep.subr.mxu0 0.0
    %310 = vmatpush2.msra.mxu0 0.0
    %311 = vmatprep.subr.mxu0 0.0
    %312 = vmatpush2.msra.mxu0 0.0
    %313 = vmatprep.subr.mxu0 0.0
    %314 = vmatpush2.msra.mxu0 0.0
    %315 = vmatprep.subr.mxu0 0.0
    %316 = vmatpush2.msra.mxu0 0.0
    %317 = vmatprep.mubr.f32.mxu0 0.0
    %318 = vmatmul.mubr.f32.gmra.mxu0 %v117
    %v319 = vpop.f32.mrf.mxu0
    %v320 = vadd.f32 %v106, %v319
    %v321 = vpop.f32.mrf.mxu0
    %v322 = vadd.f32 %v110, %v321
    %323 = vmatprep.mubr.f32.mxu0 0.0
    %324 = vmatmul.mubr.f32.gmra.mxu0 %v120
    %v325 = vpop.f32.mrf.mxu0
    %v326 = vadd.f32 %v106, %v325
    %v327 = vpop.f32.mrf.mxu0
    %v328 = vadd.f32 %v110, %v327
    %329 = vmatprep.mubr.f32.mxu0 0.0
    %330 = vmatmul.mubr.f32.gmra.mxu0 %v123
    %v331 = vpop.f32.mrf.mxu0
    %v332 = vadd.f32 %v106, %v331
    %v333 = vpop.f32.mrf.mxu0
    %v334 = vadd.f32 %v110, %v333
    %335 = vmatprep.mubr.f32.mxu0 0.0
    %336 = vmatmul.mubr.f32.gmra.mxu0 %v126
    %v337 = vpop.f32.mrf.mxu0
    %v338 = vadd.f32 %v106, %v337
    %v339 = vpop.f32.mrf.mxu0
    %v340 = vadd.f32 %v110, %v339
    %341 = vmatprep.mubr.f32.mxu0 0.0
    %342 = vmatmul.mubr.f32.gmra.mxu0 %v129
    %v343 = vpop.f32.mrf.mxu0
    %v344 = vadd.f32 %v106, %v343
    %v345 = vpop.f32.mrf.mxu0
    %v346 = vadd.f32 %v110, %v345
    %347 = vmatprep.mubr.f32.mxu0 0.0
    %348 = vmatmul.mubr.f32.gmra.mxu0 %v132
    %v349 = vpop.f32.mrf.mxu0
    %v350 = vadd.f32 %v106, %v349
    %v351 = vpop.f32.mrf.mxu0
    %v352 = vadd.f32 %v110, %v351
    %353 = vmatprep.mubr.f32.mxu0 0.0
    %354 = vmatmul.mubr.f32.gmra.mxu0 %v135
    %v355 = vpop.f32.mrf.mxu0
    %v356 = vadd.f32 %v106, %v355
    %v357 = vpop.f32.mrf.mxu0
    %v358 = vadd.f32 %v110, %v357
    %359 = vmatprep.mubr.f32.mxu0 0.0
    %360 = vmatmul.mubr.f32.gmra.mxu0 %v138
    %v361 = vpop.f32.mrf.mxu0
    %v362 = vadd.f32 %v106, %v361
    %v363 = vpop.f32.mrf.mxu0
    %v364 = vadd.f32 %v110, %v363
    %365 = vdwg.mxu0
    %366 = vst [vmem:[#allocation2] sm:$0xff] %v207
    %367 = vst [vmem:[#allocation2 + $0x8] sm:$0xff] %v209
    %368 = vst [vmem:[#allocation2 + $0x10] sm:$0xff] %v320
    %369 = vst [vmem:[#allocation2 + $0x18] sm:$0xff] %v322
    %370 = vst [vmem:[#allocation2 + $0x20] sm:$0xff] %v213
    %371 = vst [vmem:[#allocation2 + $0x28] sm:$0xff] %v215
    %372 = vst [vmem:[#allocation2 + $0x30] sm:$0xff] %v326
    %373 = vst [vmem:[#allocation2 + $0x38] sm:$0xff] %v328
    %374 = vst [vmem:[#allocation2 + $0x40] sm:$0xff] %v219
    %375 = vst [vmem:[#allocation2 + $0x48] sm:$0xff] %v221
    %376 = vst [vmem:[#allocation2 + $0x50] sm:$0xff] %v332
    %377 = vst [vmem:[#allocation2 + $0x58] sm:$0xff] %v334
    %378 = vst [vmem:[#allocation2 + $0x60] sm:$0xff] %v225
    %379 = vst [vmem:[#allocation2 + $0x68] sm:$0xff] %v227
    %380 = vst [vmem:[#allocation2 + $0x70] sm:$0xff] %v338
    %381 = vst [vmem:[#allocation2 + $0x78] sm:$0xff] %v340
    %382 = vst [vmem:[#allocation2 + $0x80] sm:$0xff] %v231
    %383 = vst [vmem:[#allocation2 + $0x88] sm:$0xff] %v233
    %384 = vst [vmem:[#allocation2 + $0x90] sm:$0xff] %v344
    %385 = vst [vmem:[#allocation2 + $0x98] sm:$0xff] %v346
    %386 = vst [vmem:[#allocation2 + $0xa0] sm:$0xff] %v237
    %387 = vst [vmem:[#allocation2 + $0xa8] sm:$0xff] %v239
    %388 = vst [vmem:[#allocation2 + $0xb0] sm:$0xff] %v350
    %389 = vst [vmem:[#allocation2 + $0xb8] sm:$0xff] %v352
    %390 = vst [vmem:[#allocation2 + $0xc0] sm:$0xff] %v243
    %391 = vst [vmem:[#allocation2 + $0xc8] sm:$0xff] %v245
    %392 = vst [vmem:[#allocation2 + $0xd0] sm:$0xff] %v356
    %393 = vst [vmem:[#allocation2 + $0xd8] sm:$0xff] %v358
    %394 = vst [vmem:[#allocation2 + $0xe0] sm:$0xff] %v249
    %395 = vst [vmem:[#allocation2 + $0xe8] sm:$0xff] %v251
    %396 = vst [vmem:[#allocation2 + $0xf0] sm:$0xff] %v362
    %397 = vst [vmem:[#allocation2 + $0xf8] sm:$0xff] %v364
    %v398 = vld [vmem:[#allocation14] sm:$0xff]
    %v399 = vld [vmem:[#allocation14 + $0x8] sm:$0xff]
    %v400 = vld [vmem:[#allocation14 + $0x10] sm:$0xff]
    %v401 = vld [vmem:[#allocation14 + $0x18] sm:$0xff]
    %v402 = vld [vmem:[#allocation14 + $0x20] sm:$0xff]
    %v403 = vld [vmem:[#allocation14 + $0x28] sm:$0xff]
    %v404 = vld [vmem:[#allocation14 + $0x30] sm:$0xff]
    %v405 = vld [vmem:[#allocation14 + $0x38] sm:$0xff]
    %v406 = vld [vmem:[#allocation14 + $0x40] sm:$0xff]
    %v407 = vld [vmem:[#allocation14 + $0x48] sm:$0xff]
    %v408 = vld [vmem:[#allocation14 + $0x50] sm:$0xff]
    %v409 = vld [vmem:[#allocation14 + $0x58] sm:$0xff]
    %v410 = vld [vmem:[#allocation14 + $0x60] sm:$0xff]
    %v411 = vld [vmem:[#allocation14 + $0x68] sm:$0xff]
    %v412 = vld [vmem:[#allocation14 + $0x70] sm:$0xff]
    %v413 = vld [vmem:[#allocation14 + $0x78] sm:$0xff]
    %v414 = vld [vmem:[#allocation14 + $0x80] sm:$0xff]
    %v415 = vld [vmem:[#allocation14 + $0x88] sm:$0xff]
    %v416 = vld [vmem:[#allocation14 + $0x90] sm:$0xff]
    %v417 = vld [vmem:[#allocation14 + $0x98] sm:$0xff]
    %v418 = vld [vmem:[#allocation14 + $0xa0] sm:$0xff]
    %v419 = vld [vmem:[#allocation14 + $0xa8] sm:$0xff]
    %v420 = vld [vmem:[#allocation14 + $0xb0] sm:$0xff]
    %v421 = vld [vmem:[#allocation14 + $0xb8] sm:$0xff]
    %v422 = vld [vmem:[#allocation14 + $0xc0] sm:$0xff]
    %v423 = vld [vmem:[#allocation14 + $0xc8] sm:$0xff]
    %v424 = vld [vmem:[#allocation14 + $0xd0] sm:$0xff]
    %v425 = vld [vmem:[#allocation14 + $0xd8] sm:$0xff]
    %v426 = vld [vmem:[#allocation14 + $0xe0] sm:$0xff]
    %v427 = vld [vmem:[#allocation14 + $0xe8] sm:$0xff]
    %v428 = vld [vmem:[#allocation14 + $0xf0] sm:$0xff]
    %v429 = vld [vmem:[#allocation14 + $0xf8] sm:$0xff]
    %v430 = vld [vmem:[#allocation14 + $0x100] sm:$0xff]
    %v431 = vld [vmem:[#allocation14 + $0x108] sm:$0xff]
    %v432 = vld [vmem:[#allocation14 + $0x110] sm:$0xff]
    %v433 = vld [vmem:[#allocation14 + $0x118] sm:$0xff]
    %v434 = vld [vmem:[#allocation14 + $0x120] sm:$0xff]
    %v435 = vld [vmem:[#allocation14 + $0x128] sm:$0xff]
    %v436 = vld [vmem:[#allocation14 + $0x130] sm:$0xff]
    %v437 = vld [vmem:[#allocation14 + $0x138] sm:$0xff]
    %v438 = vld [vmem:[#allocation14 + $0x140] sm:$0xff]
    %v439 = vld [vmem:[#allocation14 + $0x148] sm:$0xff]
    %v440 = vld [vmem:[#allocation14 + $0x150] sm:$0xff]
    %v441 = vld [vmem:[#allocation14 + $0x158] sm:$0xff]
    %v442 = vld [vmem:[#allocation14 + $0x160] sm:$0xff]
    %v443 = vld [vmem:[#allocation14 + $0x168] sm:$0xff]
    %v444 = vld [vmem:[#allocation14 + $0x170] sm:$0xff]
    %v445 = vld [vmem:[#allocation14 + $0x178] sm:$0xff]
    %v446 = vld [vmem:[#allocation14 + $0x180] sm:$0xff]
    %v447 = vld [vmem:[#allocation14 + $0x188] sm:$0xff]
    %v448 = vld [vmem:[#allocation14 + $0x190] sm:$0xff]
    %v449 = vld [vmem:[#allocation14 + $0x198] sm:$0xff]
    %v450 = vld [vmem:[#allocation14 + $0x1a0] sm:$0xff]
    %v451 = vld [vmem:[#allocation14 + $0x1a8] sm:$0xff]
    %v452 = vld [vmem:[#allocation14 + $0x1b0] sm:$0xff]
    %v453 = vld [vmem:[#allocation14 + $0x1b8] sm:$0xff]
    %v454 = vld [vmem:[#allocation14 + $0x1c0] sm:$0xff]
    %v455 = vld [vmem:[#allocation14 + $0x1c8] sm:$0xff]
    %v456 = vld [vmem:[#allocation14 + $0x1d0] sm:$0xff]
    %v457 = vld [vmem:[#allocation14 + $0x1d8] sm:$0xff]
    %v458 = vld [vmem:[#allocation14 + $0x1e0] sm:$0xff]
    %v459 = vld [vmem:[#allocation14 + $0x1e8] sm:$0xff]
    %v460 = vld [vmem:[#allocation14 + $0x1f0] sm:$0xff]
    %v461 = vld [vmem:[#allocation14 + $0x1f8] sm:$0xff]
    %v462 = vld [vmem:[%s4] sm:$0x1]
    %v463 = vld [vmem:[#allocation8] sm:$0x1]
    %s464 = smul.u32 0, 4
    %s465 = smul.addr %s464, 8
    %s466 = scalar_lea.vmem [#allocation2], %s465
    %v467 = vld [vmem:[%s466] sm:$0xff]
    %v468 = vld [vmem:[%s466 + $0x8] sm:$0xff]
    %v469 = vld [vmem:[%s466 + $0x10] sm:$0xff]
    %v470 = vld [vmem:[%s466 + $0x18] sm:$0xff]
    %v471 = vld [vmem:[#allocation3] sm:$0xff]
    %472 = vmatprep.subr.mxu0 %v459
    %473 = vmatpush1.msra.mxu0 %v458
    %474 = vmatprep.subr.mxu0 %v455
    %475 = vmatpush1.msra.mxu0 %v454
    %476 = vmatprep.subr.mxu0 %v451
    %477 = vmatpush1.msra.mxu0 %v450
    %478 = vmatprep.subr.mxu0 %v447
    %479 = vmatpush1.msra.mxu0 %v446
    %480 = vmatprep.subr.mxu0 %v443
    %481 = vmatpush1.msra.mxu0 %v442
    %482 = vmatprep.subr.mxu0 %v439
    %483 = vmatpush1.msra.mxu0 %v438
    %484 = vmatprep.subr.mxu0 %v435
    %485 = vmatpush1.msra.mxu0 %v434
    %486 = vmatprep.subr.mxu0 %v431
    %487 = vmatpush1.msra.mxu0 %v430
    %488 = vmatprep.subr.mxu0 %v427
    %489 = vmatpush1.msra.mxu0 %v426
    %490 = vmatprep.subr.mxu0 %v423
    %491 = vmatpush1.msra.mxu0 %v422
    %492 = vmatprep.subr.mxu0 %v419
    %493 = vmatpush1.msra.mxu0 %v418
    %494 = vmatprep.subr.mxu0 %v415
    %495 = vmatpush1.msra.mxu0 %v414
    %496 = vmatprep.subr.mxu0 %v411
    %497 = vmatpush1.msra.mxu0 %v410
    %498 = vmatprep.subr.mxu0 %v407
    %499 = vmatpush1.msra.mxu0 %v406
    %500 = vmatprep.subr.mxu0 %v403
    %501 = vmatpush1.msra.mxu0 %v402
    %502 = vmatprep.subr.mxu0 %v399
    %503 = vmatpush1.msra.mxu0 %v398
    %504 = vmatprep.subr.mxu0 0.0
    %505 = vmatpush2.msra.mxu0 0.0
    %506 = vmatprep.subr.mxu0 0.0
    %507 = vmatpush2.msra.mxu0 0.0
    %508 = vmatprep.subr.mxu0 0.0
    %509 = vmatpush2.msra.mxu0 0.0
    %510 = vmatprep.subr.mxu0 0.0
    %511 = vmatpush2.msra.mxu0 0.0
    %512 = vmatprep.subr.mxu0 0.0
    %513 = vmatpush2.msra.mxu0 0.0
    %514 = vmatprep.subr.mxu0 0.0
    %515 = vmatpush2.msra.mxu0 0.0
    %516 = vmatprep.subr.mxu0 0.0
    %517 = vmatpush2.msra.mxu0 0.0
    %518 = vmatprep.subr.mxu0 0.0
    %519 = vmatpush2.msra.mxu0 0.0
    %520 = vmatprep.subr.mxu0 0.0
    %521 = vmatpush2.msra.mxu0 0.0
    %522 = vmatprep.subr.mxu0 0.0
    %523 = vmatpush2.msra.mxu0 0.0
    %524 = vmatprep.subr.mxu0 0.0
    %525 = vmatpush2.msra.mxu0 0.0
    %526 = vmatprep.subr.mxu0 0.0
    %527 = vmatpush2.msra.mxu0 0.0
    %528 = vmatprep.subr.mxu0 0.0
    %529 = vmatpush2.msra.mxu0 0.0
    %530 = vmatprep.subr.mxu0 0.0
    %531 = vmatpush2.msra.mxu0 0.0
    %532 = vmatprep.subr.mxu0 0.0
    %533 = vmatpush2.msra.mxu0 0.0
    %534 = vmatprep.subr.mxu0 0.0
    %535 = vmatpush2.msra.mxu0 0.0
    %536 = vmatprep.mubr.f32.mxu0 0.0
    %537 = vmatmul.mubr.f32.gmra.mxu0 %v471
    %v538 = vpop.f32.mrf.mxu0
    %v539 = vadd.f32 0.0, %v538
    %v540 = vpop.f32.mrf.mxu0
    %v541 = vadd.f32 0.0, %v540
    %542 = vdwg.mxu0
    %543 = vmatprep.subr.mxu0 %v461
    %544 = vmatpush1.msra.mxu0 %v460
    %545 = vmatprep.subr.mxu0 %v457
    %546 = vmatpush1.msra.mxu0 %v456
    %547 = vmatprep.subr.mxu0 %v453
    %548 = vmatpush1.msra.mxu0 %v452
    %549 = vmatprep.subr.mxu0 %v449
    %550 = vmatpush1.msra.mxu0 %v448
    %551 = vmatprep.subr.mxu0 %v445
    %552 = vmatpush1.msra.mxu0 %v444
    %553 = vmatprep.subr.mxu0 %v441
    %554 = vmatpush1.msra.mxu0 %v440
    %555 = vmatprep.subr.mxu0 %v437
    %556 = vmatpush1.msra.mxu0 %v436
    %557 = vmatprep.subr.mxu0 %v433
    %558 = vmatpush1.msra.mxu0 %v432
    %559 = vmatprep.subr.mxu0 %v429
    %560 = vmatpush1.msra.mxu0 %v428
    %561 = vmatprep.subr.mxu0 %v425
    %562 = vmatpush1.msra.mxu0 %v424
    %563 = vmatprep.subr.mxu0 %v421
    %564 = vmatpush1.msra.mxu0 %v420
    %565 = vmatprep.subr.mxu0 %v417
    %566 = vmatpush1.msra.mxu0 %v416
    %567 = vmatprep.subr.mxu0 %v413
    %568 = vmatpush1.msra.mxu0 %v412
    %569 = vmatprep.subr.mxu0 %v409
    %570 = vmatpush1.msra.mxu0 %v408
    %571 = vmatprep.subr.mxu0 %v405
    %572 = vmatpush1.msra.mxu0 %v404
    %573 = vmatprep.subr.mxu0 %v401
    %574 = vmatpush1.msra.mxu0 %v400
    %575 = vmatprep.subr.mxu0 0.0
    %576 = vmatpush2.msra.mxu0 0.0
    %577 = vmatprep.subr.mxu0 0.0
    %578 = vmatpush2.msra.mxu0 0.0
    %579 = vmatprep.subr.mxu0 0.0
    %580 = vmatpush2.msra.mxu0 0.0
    %581 = vmatprep.subr.mxu0 0.0
    %582 = vmatpush2.msra.mxu0 0.0
    %583 = vmatprep.subr.mxu0 0.0
    %584 = vmatpush2.msra.mxu0 0.0
    %585 = vmatprep.subr.mxu0 0.0
    %586 = vmatpush2.msra.mxu0 0.0
    %587 = vmatprep.subr.mxu0 0.0
    %588 = vmatpush2.msra.mxu0 0.0
    %589 = vmatprep.subr.mxu0 0.0
    %590 = vmatpush2.msra.mxu0 0.0
    %591 = vmatprep.subr.mxu0 0.0
    %592 = vmatpush2.msra.mxu0 0.0
    %593 = vmatprep.subr.mxu0 0.0
    %594 = vmatpush2.msra.mxu0 0.0
    %595 = vmatprep.subr.mxu0 0.0
    %596 = vmatpush2.msra.mxu0 0.0
    %597 = vmatprep.subr.mxu0 0.0
    %598 = vmatpush2.msra.mxu0 0.0
    %599 = vmatprep.subr.mxu0 0.0
    %600 = vmatpush2.msra.mxu0 0.0
    %601 = vmatprep.subr.mxu0 0.0
    %602 = vmatpush2.msra.mxu0 0.0
    %603 = vmatprep.subr.mxu0 0.0
    %604 = vmatpush2.msra.mxu0 0.0
    %605 = vmatprep.subr.mxu0 0.0
    %606 = vmatpush2.msra.mxu0 0.0
    %607 = vmatprep.mubr.f32.mxu0 0.0
    %608 = vmatmul.mubr.f32.gmra.mxu0 %v471
    %v609 = vpop.f32.mrf.mxu0
    %v610 = vadd.f32 0.0, %v609
    %v611 = vpop.f32.mrf.mxu0
    %v612 = vadd.f32 0.0, %v611
    %613 = vdwg.mxu0
    %v614 = vadd.f32 %v467, %v539
    %v615 = vadd.f32 %v468, %v541
    %v616 = vadd.f32 %v469, %v610
    %v617 = vadd.f32 %v470, %v612
    %v618 = vmul.f32 %v614, 0.5
    %v619 = vtanh.pop %v618
    %v620 = vmul.f32 %v619, 0.5
    %v621 = vadd.f32 %v620, 0.5
    %v622 = vmul.f32 %v615, 0.5
    %v623 = vtanh.pop %v622
    %v624 = vmul.f32 %v623, 0.5
    %v625 = vadd.f32 %v624, 0.5
    %v626 = vtanh.pop %v616
    %v627 = vmul.f32 %v617, 0.5
    %v628 = vtanh.pop %v627
    %v629 = vmul.f32 %v628, 0.5
    %v630 = vadd.f32 %v629, 0.5
    %v631 = vld [vmem:[#allocation4] sm:$0xff]
    %v632 = vmul.f32 %v625, %v631
    %v633 = vmul.f32 %v621, %v626
    %v634 = vadd.f32 %v632, %v633
    %v635 = vtanh.pop %v634
    %v636 = vmul.f32 %v630, %v635
    %637 = vst [vmem:[#allocation4] sm:$0xff] %v634
    %638 = vst [vmem:[#allocation3] sm:$0xff] %v636
    %v640 = vlaneseq
    %v641 = vshrl.u32 %v640, 7
    %v642 = vsub.s32 0, %v641
    %v643 = vrot.slane %v462, %v642
    %v645 = vmul.f32 %v636, %v643
    %646 = vadd.xlane.f32.xlu0 %v645
    %v647 = vpop.xlane.xlu0 %646
    %v649 = vlaneseq
    %v650 = vshrl.u32 %v649, 7
    %v651 = vsub.s32 0, %v650
    %v652 = vrot.slane %v463, %v651
    %v654 = vadd.f32 %v647, %v652
    %v655 = vld [vmem:[#allocation5] sm:$0xff]
    %v656 = vmax.f32 %v655, %v654
    %v657 = vsub.f32 %v655, %v656
    %v658 = vmul.f32 %v657, 1.442695
    %v659 = vpow.pop %v658
    %v660 = vsub.f32 %v654, %v656
    %v661 = vmul.f32 %v660, 1.442695
    %v662 = vpow.pop %v661
    %v663 = vld [vmem:[#allocation6] sm:$0xff]
    %v664 = vmul.f32 %v659, %v663
    %v665 = vadd.f32 %v664, %v662
    %vm666 = vcmask 7168
    %667 = vst.msk [vmem:[#allocation6] sm:$0xff] %vm666, %v665
    %v668 = vld [vmem:[#allocation7] sm:$0xff]
    %670 = vset.pattern.permute.xlu0 0
    %671 = vperm.xlu0 %670, %v659
    %v672 = vpop.permute.xlu0 %671
    %v674 = vmul.f32 %v672, %v668
    %676 = vset.pattern.permute.xlu0 0
    %677 = vperm.xlu0 %676, %v662
    %v678 = vpop.permute.xlu0 %677
    %v680 = vmul.f32 %v678, %v636
    %v681 = vadd.f32 %v674, %v680
    %682 = vst [vmem:[#allocation7] sm:$0xff] %v681
    %683 = vst.msk [vmem:[#allocation5] sm:$0xff] %vm666, %v656
    %s684 = smul.u32 1, 4
    %s685 = smul.addr %s684, 8
    %s686 = scalar_lea.vmem [#allocation2], %s685
    %v687 = vld [vmem:[%s686] sm:$0xff]
    %v688 = vld [vmem:[%s686 + $0x8] sm:$0xff]
    %v689 = vld [vmem:[%s686 + $0x10] sm:$0xff]
    %v690 = vld [vmem:[%s686 + $0x18] sm:$0xff]
    %v691 = vld [vmem:[#allocation3] sm:$0xff]
    %692 = vmatprep.subr.mxu0 %v459
    %693 = vmatpush1.msra.mxu0 %v458
    %694 = vmatprep.subr.mxu0 %v455
    %695 = vmatpush1.msra.mxu0 %v454
    %696 = vmatprep.subr.mxu0 %v451
    %697 = vmatpush1.msra.mxu0 %v450
    %698 = vmatprep.subr.mxu0 %v447
    %699 = vmatpush1.msra.mxu0 %v446
    %700 = vmatprep.subr.mxu0 %v443
    %701 = vmatpush1.msra.mxu0 %v442
    %702 = vmatprep.subr.mxu0 %v439
    %703 = vmatpush1.msra.mxu0 %v438
    %704 = vmatprep.subr.mxu0 %v435
    %705 = vmatpush1.msra.mxu0 %v434
    %706 = vmatprep.subr.mxu0 %v431
    %707 = vmatpush1.msra.mxu0 %v430
    %708 = vmatprep.subr.mxu0 %v427
    %709 = vmatpush1.msra.mxu0 %v426
    %710 = vmatprep.subr.mxu0 %v423
    %711 = vmatpush1.msra.mxu0 %v422
    %712 = vmatprep.subr.mxu0 %v419
    %713 = vmatpush1.msra.mxu0 %v418
    %714 = vmatprep.subr.mxu0 %v415
    %715 = vmatpush1.msra.mxu0 %v414
    %716 = vmatprep.subr.mxu0 %v411
    %717 = vmatpush1.msra.mxu0 %v410
    %718 = vmatprep.subr.mxu0 %v407
    %719 = vmatpush1.msra.mxu0 %v406
    %720 = vmatprep.subr.mxu0 %v403
    %721 = vmatpush1.msra.mxu0 %v402
    %722 = vmatprep.subr.mxu0 %v399
    %723 = vmatpush1.msra.mxu0 %v398
    %724 = vmatprep.subr.mxu0 0.0
    %725 = vmatpush2.msra.mxu0 0.0
    %726 = vmatprep.subr.mxu0 0.0
    %727 = vmatpush2.msra.mxu0 0.0
    %728 = vmatprep.subr.mxu0 0.0
    %729 = vmatpush2.msra.mxu0 0.0
    %730 = vmatprep.subr.mxu0 0.0
    %731 = vmatpush2.msra.mxu0 0.0
    %732 = vmatprep.subr.mxu0 0.0
    %733 = vmatpush2.msra.mxu0 0.0
    %734 = vmatprep.subr.mxu0 0.0
    %735 = vmatpush2.msra.mxu0 0.0
    %736 = vmatprep.subr.mxu0 0.0
    %737 = vmatpush2.msra.mxu0 0.0
    %738 = vmatprep.subr.mxu0 0.0
    %739 = vmatpush2.msra.mxu0 0.0
    %740 = vmatprep.subr.mxu0 0.0
    %741 = vmatpush2.msra.mxu0 0.0
    %742 = vmatprep.subr.mxu0 0.0
    %743 = vmatpush2.msra.mxu0 0.0
    %744 = vmatprep.subr.mxu0 0.0
    %745 = vmatpush2.msra.mxu0 0.0
    %746 = vmatprep.subr.mxu0 0.0
    %747 = vmatpush2.msra.mxu0 0.0
    %748 = vmatprep.subr.mxu0 0.0
    %749 = vmatpush2.msra.mxu0 0.0
    %750 = vmatprep.subr.mxu0 0.0
    %751 = vmatpush2.msra.mxu0 0.0
    %752 = vmatprep.subr.mxu0 0.0
    %753 = vmatpush2.msra.mxu0 0.0
    %754 = vmatprep.subr.mxu0 0.0
    %755 = vmatpush2.msra.mxu0 0.0
    %756 = vmatprep.mubr.f32.mxu0 0.0
    %757 = vmatmul.mubr.f32.gmra.mxu0 %v691
    %v758 = vpop.f32.mrf.mxu0
    %v759 = vadd.f32 0.0, %v758
    %v760 = vpop.f32.mrf.mxu0
    %v761 = vadd.f32 0.0, %v760
    %762 = vdwg.mxu0
    %763 = vmatprep.subr.mxu0 %v461
    %764 = vmatpush1.msra.mxu0 %v460
    %765 = vmatprep.subr.mxu0 %v457
    %766 = vmatpush1.msra.mxu0 %v456
    %767 = vmatprep.subr.mxu0 %v453
    %768 = vmatpush1.msra.mxu0 %v452
    %769 = vmatprep.subr.mxu0 %v449
    %770 = vmatpush1.msra.mxu0 %v448
    %771 = vmatprep.subr.mxu0 %v445
    %772 = vmatpush1.msra.mxu0 %v444
    %773 = vmatprep.subr.mxu0 %v441
    %774 = vmatpush1.msra.mxu0 %v440
    %775 = vmatprep.subr.mxu0 %v437
    %776 = vmatpush1.msra.mxu0 %v436
    %777 = vmatprep.subr.mxu0 %v433
    %778 = vmatpush1.msra.mxu0 %v432
    %779 = vmatprep.subr.mxu0 %v429
    %780 = vmatpush1.msra.mxu0 %v428
    %781 = vmatprep.subr.mxu0 %v425
    %782 = vmatpush1.msra.mxu0 %v424
    %783 = vmatprep.subr.mxu0 %v421
    %784 = vmatpush1.msra.mxu0 %v420
    %785 = vmatprep.subr.mxu0 %v417
    %786 = vmatpush1.msra.mxu0 %v416
    %787 = vmatprep.subr.mxu0 %v413
    %788 = vmatpush1.msra.mxu0 %v412
    %789 = vmatprep.subr.mxu0 %v409
    %790 = vmatpush1.msra.mxu0 %v408
    %791 = vmatprep.subr.mxu0 %v405
    %792 = vmatpush1.msra.mxu0 %v404
    %793 = vmatprep.subr.mxu0 %v401
    %794 = vmatpush1.msra.mxu0 %v400
    %795 = vmatprep.subr.mxu0 0.0
    %796 = vmatpush2.msra.mxu0 0.0
    %797 = vmatprep.subr.mxu0 0.0
    %798 = vmatpush2.msra.mxu0 0.0
    %799 = vmatprep.subr.mxu0 0.0
    %800 = vmatpush2.msra.mxu0 0.0
    %801 = vmatprep.subr.mxu0 0.0
    %802 = vmatpush2.msra.mxu0 0.0
    %803 = vmatprep.subr.mxu0 0.0
    %804 = vmatpush2.msra.mxu0 0.0
    %805 = vmatprep.subr.mxu0 0.0
    %806 = vmatpush2.msra.mxu0 0.0
    %807 = vmatprep.subr.mxu0 0.0
    %808 = vmatpush2.msra.mxu0 0.0
    %809 = vmatprep.subr.mxu0 0.0
    %810 = vmatpush2.msra.mxu0 0.0
    %811 = vmatprep.subr.mxu0 0.0
    %812 = vmatpush2.msra.mxu0 0.0
    %813 = vmatprep.subr.mxu0 0.0
    %814 = vmatpush2.msra.mxu0 0.0
    %815 = vmatprep.subr.mxu0 0.0
    %816 = vmatpush2.msra.mxu0 0.0
    %817 = vmatprep.subr.mxu0 0.0
    %818 = vmatpush2.msra.mxu0 0.0
    %819 = vmatprep.subr.mxu0 0.0
    %820 = vmatpush2.msra.mxu0 0.0
    %821 = vmatprep.subr.mxu0 0.0
    %822 = vmatpush2.msra.mxu0 0.0
    %823 = vmatprep.subr.mxu0 0.0
    %824 = vmatpush2.msra.mxu0 0.0
    %825 = vmatprep.subr.mxu0 0.0
    %826 = vmatpush2.msra.mxu0 0.0
    %827 = vmatprep.mubr.f32.mxu0 0.0
    %828 = vmatmul.mubr.f32.gmra.mxu0 %v691
    %v829 = vpop.f32.mrf.mxu0
    %v830 = vadd.f32 0.0, %v829
    %v831 = vpop.f32.mrf.mxu0
    %v832 = vadd.f32 0.0, %v831
    %833 = vdwg.mxu0
    %v834 = vadd.f32 %v687, %v759
    %v835 = vadd.f32 %v688, %v761
    %v836 = vadd.f32 %v689, %v830
    %v837 = vadd.f32 %v690, %v832
    %v838 = vmul.f32 %v834, 0.5
    %v839 = vtanh.pop %v838
    %v840 = vmul.f32 %v839, 0.5
    %v841 = vadd.f32 %v840, 0.5
    %v842 = vmul.f32 %v835, 0.5
    %v843 = vtanh.pop %v842
    %v844 = vmul.f32 %v843, 0.5
    %v845 = vadd.f32 %v844, 0.5
    %v846 = vtanh.pop %v836
    %v847 = vmul.f32 %v837, 0.5
    %v848 = vtanh.pop %v847
    %v849 = vmul.f32 %v848, 0.5
    %v850 = vadd.f32 %v849, 0.5
    %v851 = vld [vmem:[#allocation4] sm:$0xff]
    %v852 = vmul.f32 %v845, %v851
    %v853 = vmul.f32 %v841, %v846
    %v854 = vadd.f32 %v852, %v853
    %v855 = vtanh.pop %v854
    %v856 = vmul.f32 %v850, %v855
    %857 = vst [vmem:[#allocation4] sm:$0xff] %v854
    %858 = vst [vmem:[#allocation3] sm:$0xff] %v856
    %v859 = vmul.f32 %v856, %v643
    %860 = vadd.xlane.f32.xlu0 %v859
    %v861 = vpop.xlane.xlu0 %860
    %v862 = vadd.f32 %v861, %v652
    %v863 = vld [vmem:[#allocation5] sm:$0xff]
    %v864 = vmax.f32 %v863, %v862
    %v865 = vsub.f32 %v863, %v864
    %v866 = vmul.f32 %v865, 1.442695
    %v867 = vpow.pop %v866
    %v868 = vsub.f32 %v862, %v864
    %v869 = vmul.f32 %v868, 1.442695
    %v870 = vpow.pop %v869
    %v871 = vld [vmem:[#allocation6] sm:$0xff]
    %v872 = vmul.f32 %v867, %v871
    %v873 = vadd.f32 %v872, %v870
    %874 = vst.msk [vmem:[#allocation6] sm:$0xff] %vm666, %v873
    %v875 = vld [vmem:[#allocation7] sm:$0xff]
    %877 = vset.pattern.permute.xlu0 0
    %878 = vperm.xlu0 %877, %v867
    %v879 = vpop.permute.xlu0 %878
    %v881 = vmul.f32 %v879, %v875
    %883 = vset.pattern.permute.xlu0 0
    %884 = vperm.xlu0 %883, %v870
    %v885 = vpop.permute.xlu0 %884
    %v887 = vmul.f32 %v885, %v856
    %v888 = vadd.f32 %v881, %v887
    %889 = vst [vmem:[#allocation7] sm:$0xff] %v888
    %890 = vst.msk [vmem:[#allocation5] sm:$0xff] %vm666, %v864
    %s891 = smul.u32 2, 4
    %s892 = smul.addr %s891, 8
    %s893 = scalar_lea.vmem [#allocation2], %s892
    %v894 = vld [vmem:[%s893] sm:$0xff]
    %v895 = vld [vmem:[%s893 + $0x8] sm:$0xff]
    %v896 = vld [vmem:[%s893 + $0x10] sm:$0xff]
    %v897 = vld [vmem:[%s893 + $0x18] sm:$0xff]
    %v898 = vld [vmem:[#allocation3] sm:$0xff]
    %899 = vmatprep.subr.mxu0 %v459
    %900 = vmatpush1.msra.mxu0 %v458
    %901 = vmatprep.subr.mxu0 %v455
    %902 = vmatpush1.msra.mxu0 %v454
    %903 = vmatprep.subr.mxu0 %v451
    %904 = vmatpush1.msra.mxu0 %v450
    %905 = vmatprep.subr.mxu0 %v447
    %906 = vmatpush1.msra.mxu0 %v446
    %907 = vmatprep.subr.mxu0 %v443
    %908 = vmatpush1.msra.mxu0 %v442
    %909 = vmatprep.subr.mxu0 %v439
    %910 = vmatpush1.msra.mxu0 %v438
    %911 = vmatprep.subr.mxu0 %v435
    %912 = vmatpush1.msra.mxu0 %v434
    %913 = vmatprep.subr.mxu0 %v431
    %914 = vmatpush1.msra.mxu0 %v430
    %915 = vmatprep.subr.mxu0 %v427
    %916 = vmatpush1.msra.mxu0 %v426
    %917 = vmatprep.subr.mxu0 %v423
    %918 = vmatpush1.msra.mxu0 %v422
    %919 = vmatprep.subr.mxu0 %v419
    %920 = vmatpush1.msra.mxu0 %v418
    %921 = vmatprep.subr.mxu0 %v415
    %922 = vmatpush1.msra.mxu0 %v414
    %923 = vmatprep.subr.mxu0 %v411
    %924 = vmatpush1.msra.mxu0 %v410
    %925 = vmatprep.subr.mxu0 %v407
    %926 = vmatpush1.msra.mxu0 %v406
    %927 = vmatprep.subr.mxu0 %v403
    %928 = vmatpush1.msra.mxu0 %v402
    %929 = vmatprep.subr.mxu0 %v399
    %930 = vmatpush1.msra.mxu0 %v398
    %931 = vmatprep.subr.mxu0 0.0
    %932 = vmatpush2.msra.mxu0 0.0
    %933 = vmatprep.subr.mxu0 0.0
    %934 = vmatpush2.msra.mxu0 0.0
    %935 = vmatprep.subr.mxu0 0.0
    %936 = vmatpush2.msra.mxu0 0.0
    %937 = vmatprep.subr.mxu0 0.0
    %938 = vmatpush2.msra.mxu0 0.0
    %939 = vmatprep.subr.mxu0 0.0
    %940 = vmatpush2.msra.mxu0 0.0
    %941 = vmatprep.subr.mxu0 0.0
    %942 = vmatpush2.msra.mxu0 0.0
    %943 = vmatprep.subr.mxu0 0.0
    %944 = vmatpush2.msra.mxu0 0.0
    %945 = vmatprep.subr.mxu0 0.0
    %946 = vmatpush2.msra.mxu0 0.0
    %947 = vmatprep.subr.mxu0 0.0
    %948 = vmatpush2.msra.mxu0 0.0
    %949 = vmatprep.subr.mxu0 0.0
    %950 = vmatpush2.msra.mxu0 0.0
    %951 = vmatprep.subr.mxu0 0.0
    %952 = vmatpush2.msra.mxu0 0.0
    %953 = vmatprep.subr.mxu0 0.0
    %954 = vmatpush2.msra.mxu0 0.0
    %955 = vmatprep.subr.mxu0 0.0
    %956 = vmatpush2.msra.mxu0 0.0
    %957 = vmatprep.subr.mxu0 0.0
    %958 = vmatpush2.msra.mxu0 0.0
    %959 = vmatprep.subr.mxu0 0.0
    %960 = vmatpush2.msra.mxu0 0.0
    %961 = vmatprep.subr.mxu0 0.0
    %962 = vmatpush2.msra.mxu0 0.0
    %963 = vmatprep.mubr.f32.mxu0 0.0
    %964 = vmatmul.mubr.f32.gmra.mxu0 %v898
    %v965 = vpop.f32.mrf.mxu0
    %v966 = vadd.f32 0.0, %v965
    %v967 = vpop.f32.mrf.mxu0
    %v968 = vadd.f32 0.0, %v967
    %969 = vdwg.mxu0
    %970 = vmatprep.subr.mxu0 %v461
    %971 = vmatpush1.msra.mxu0 %v460
    %972 = vmatprep.subr.mxu0 %v457
    %973 = vmatpush1.msra.mxu0 %v456
    %974 = vmatprep.subr.mxu0 %v453
    %975 = vmatpush1.msra.mxu0 %v452
    %976 = vmatprep.subr.mxu0 %v449
    %977 = vmatpush1.msra.mxu0 %v448
    %978 = vmatprep.subr.mxu0 %v445
    %979 = vmatpush1.msra.mxu0 %v444
    %980 = vmatprep.subr.mxu0 %v441
    %981 = vmatpush1.msra.mxu0 %v440
    %982 = vmatprep.subr.mxu0 %v437
    %983 = vmatpush1.msra.mxu0 %v436
    %984 = vmatprep.subr.mxu0 %v433
    %985 = vmatpush1.msra.mxu0 %v432
    %986 = vmatprep.subr.mxu0 %v429
    %987 = vmatpush1.msra.mxu0 %v428
    %988 = vmatprep.subr.mxu0 %v425
    %989 = vmatpush1.msra.mxu0 %v424
    %990 = vmatprep.subr.mxu0 %v421
    %991 = vmatpush1.msra.mxu0 %v420
    %992 = vmatprep.subr.mxu0 %v417
    %993 = vmatpush1.msra.mxu0 %v416
    %994 = vmatprep.subr.mxu0 %v413
    %995 = vmatpush1.msra.mxu0 %v412
    %996 = vmatprep.subr.mxu0 %v409
    %997 = vmatpush1.msra.mxu0 %v408
    %998 = vmatprep.subr.mxu0 %v405
    %999 = vmatpush1.msra.mxu0 %v404
    %1000 = vmatprep.subr.mxu0 %v401
    %1001 = vmatpush1.msra.mxu0 %v400
    %1002 = vmatprep.subr.mxu0 0.0
    %1003 = vmatpush2.msra.mxu0 0.0
    %1004 = vmatprep.subr.mxu0 0.0
    %1005 = vmatpush2.msra.mxu0 0.0
    %1006 = vmatprep.subr.mxu0 0.0
    %1007 = vmatpush2.msra.mxu0 0.0
    %1008 = vmatprep.subr.mxu0 0.0
    %1009 = vmatpush2.msra.mxu0 0.0
    %1010 = vmatprep.subr.mxu0 0.0
    %1011 = vmatpush2.msra.mxu0 0.0
    %1012 = vmatprep.subr.mxu0 0.0
    %1013 = vmatpush2.msra.mxu0 0.0
    %1014 = vmatprep.subr.mxu0 0.0
    %1015 = vmatpush2.msra.mxu0 0.0
    %1016 = vmatprep.subr.mxu0 0.0
    %1017 = vmatpush2.msra.mxu0 0.0
    %1018 = vmatprep.subr.mxu0 0.0
    %1019 = vmatpush2.msra.mxu0 0.0
    %1020 = vmatprep.subr.mxu0 0.0
    %1021 = vmatpush2.msra.mxu0 0.0
    %1022 = vmatprep.subr.mxu0 0.0
    %1023 = vmatpush2.msra.mxu0 0.0
    %1024 = vmatprep.subr.mxu0 0.0
    %1025 = vmatpush2.msra.mxu0 0.0
    %1026 = vmatprep.subr.mxu0 0.0
    %1027 = vmatpush2.msra.mxu0 0.0
    %1028 = vmatprep.subr.mxu0 0.0
    %1029 = vmatpush2.msra.mxu0 0.0
    %1030 = vmatprep.subr.mxu0 0.0
    %1031 = vmatpush2.msra.mxu0 0.0
    %1032 = vmatprep.subr.mxu0 0.0
    %1033 = vmatpush2.msra.mxu0 0.0
    %1034 = vmatprep.mubr.f32.mxu0 0.0
    %1035 = vmatmul.mubr.f32.gmra.mxu0 %v898
    %v1036 = vpop.f32.mrf.mxu0
    %v1037 = vadd.f32 0.0, %v1036
    %v1038 = vpop.f32.mrf.mxu0
    %v1039 = vadd.f32 0.0, %v1038
    %1040 = vdwg.mxu0
    %v1041 = vadd.f32 %v894, %v966
    %v1042 = vadd.f32 %v895, %v968
    %v1043 = vadd.f32 %v896, %v1037
    %v1044 = vadd.f32 %v897, %v1039
    %v1045 = vmul.f32 %v1041, 0.5
    %v1046 = vtanh.pop %v1045
    %v1047 = vmul.f32 %v1046, 0.5
    %v1048 = vadd.f32 %v1047, 0.5
    %v1049 = vmul.f32 %v1042, 0.5
    %v1050 = vtanh.pop %v1049
    %v1051 = vmul.f32 %v1050, 0.5
    %v1052 = vadd.f32 %v1051, 0.5
    %v1053 = vtanh.pop %v1043
    %v1054 = vmul.f32 %v1044, 0.5
    %v1055 = vtanh.pop %v1054
    %v1056 = vmul.f32 %v1055, 0.5
    %v1057 = vadd.f32 %v1056, 0.5
    %v1058 = vld [vmem:[#allocation4] sm:$0xff]
    %v1059 = vmul.f32 %v1052, %v1058
    %v1060 = vmul.f32 %v1048, %v1053
    %v1061 = vadd.f32 %v1059, %v1060
    %v1062 = vtanh.pop %v1061
    %v1063 = vmul.f32 %v1057, %v1062
    %1064 = vst [vmem:[#allocation4] sm:$0xff] %v1061
    %1065 = vst [vmem:[#allocation3] sm:$0xff] %v1063
    %v1066 = vmul.f32 %v1063, %v643
    %1067 = vadd.xlane.f32.xlu0 %v1066
    %v1068 = vpop.xlane.xlu0 %1067
    %v1069 = vadd.f32 %v1068, %v652
    %v1070 = vld [vmem:[#allocation5] sm:$0xff]
    %v1071 = vmax.f32 %v1070, %v1069
    %v1072 = vsub.f32 %v1070, %v1071
    %v1073 = vmul.f32 %v1072, 1.442695
    %v1074 = vpow.pop %v1073
    %v1075 = vsub.f32 %v1069, %v1071
    %v1076 = vmul.f32 %v1075, 1.442695
    %v1077 = vpow.pop %v1076
    %v1078 = vld [vmem:[#allocation6] sm:$0xff]
    %v1079 = vmul.f32 %v1074, %v1078
    %v1080 = vadd.f32 %v1079, %v1077
    %1081 = vst.msk [vmem:[#allocation6] sm:$0xff] %vm666, %v1080
    %v1082 = vld [vmem:[#allocation7] sm:$0xff]
    %1084 = vset.pattern.permute.xlu0 0
    %1085 = vperm.xlu0 %1084, %v1074
    %v1086 = vpop.permute.xlu0 %1085
    %v1088 = vmul.f32 %v1086, %v1082
    %1090 = vset.pattern.permute.xlu0 0
    %1091 = vperm.xlu0 %1090, %v1077
    %v1092 = vpop.permute.xlu0 %1091
    %v1094 = vmul.f32 %v1092, %v1063
    %v1095 = vadd.f32 %v1088, %v1094
    %1096 = vst [vmem:[#allocation7] sm:$0xff] %v1095
    %1097 = vst.msk [vmem:[#allocation5] sm:$0xff] %vm666, %v1071
    %s1098 = smul.u32 3, 4
    %s1099 = smul.addr %s1098, 8
    %s1100 = scalar_lea.vmem [#allocation2], %s1099
    %v1101 = vld [vmem:[%s1100] sm:$0xff]
    %v1102 = vld [vmem:[%s1100 + $0x8] sm:$0xff]
    %v1103 = vld [vmem:[%s1100 + $0x10] sm:$0xff]
    %v1104 = vld [vmem:[%s1100 + $0x18] sm:$0xff]
    %v1105 = vld [vmem:[#allocation3] sm:$0xff]
    %1106 = vmatprep.subr.mxu0 %v459
    %1107 = vmatpush1.msra.mxu0 %v458
    %1108 = vmatprep.subr.mxu0 %v455
    %1109 = vmatpush1.msra.mxu0 %v454
    %1110 = vmatprep.subr.mxu0 %v451
    %1111 = vmatpush1.msra.mxu0 %v450
    %1112 = vmatprep.subr.mxu0 %v447
    %1113 = vmatpush1.msra.mxu0 %v446
    %1114 = vmatprep.subr.mxu0 %v443
    %1115 = vmatpush1.msra.mxu0 %v442
    %1116 = vmatprep.subr.mxu0 %v439
    %1117 = vmatpush1.msra.mxu0 %v438
    %1118 = vmatprep.subr.mxu0 %v435
    %1119 = vmatpush1.msra.mxu0 %v434
    %1120 = vmatprep.subr.mxu0 %v431
    %1121 = vmatpush1.msra.mxu0 %v430
    %1122 = vmatprep.subr.mxu0 %v427
    %1123 = vmatpush1.msra.mxu0 %v426
    %1124 = vmatprep.subr.mxu0 %v423
    %1125 = vmatpush1.msra.mxu0 %v422
    %1126 = vmatprep.subr.mxu0 %v419
    %1127 = vmatpush1.msra.mxu0 %v418
    %1128 = vmatprep.subr.mxu0 %v415
    %1129 = vmatpush1.msra.mxu0 %v414
    %1130 = vmatprep.subr.mxu0 %v411
    %1131 = vmatpush1.msra.mxu0 %v410
    %1132 = vmatprep.subr.mxu0 %v407
    %1133 = vmatpush1.msra.mxu0 %v406
    %1134 = vmatprep.subr.mxu0 %v403
    %1135 = vmatpush1.msra.mxu0 %v402
    %1136 = vmatprep.subr.mxu0 %v399
    %1137 = vmatpush1.msra.mxu0 %v398
    %1138 = vmatprep.subr.mxu0 0.0
    %1139 = vmatpush2.msra.mxu0 0.0
    %1140 = vmatprep.subr.mxu0 0.0
    %1141 = vmatpush2.msra.mxu0 0.0
    %1142 = vmatprep.subr.mxu0 0.0
    %1143 = vmatpush2.msra.mxu0 0.0
    %1144 = vmatprep.subr.mxu0 0.0
    %1145 = vmatpush2.msra.mxu0 0.0
    %1146 = vmatprep.subr.mxu0 0.0
    %1147 = vmatpush2.msra.mxu0 0.0
    %1148 = vmatprep.subr.mxu0 0.0
    %1149 = vmatpush2.msra.mxu0 0.0
    %1150 = vmatprep.subr.mxu0 0.0
    %1151 = vmatpush2.msra.mxu0 0.0
    %1152 = vmatprep.subr.mxu0 0.0
    %1153 = vmatpush2.msra.mxu0 0.0
    %1154 = vmatprep.subr.mxu0 0.0
    %1155 = vmatpush2.msra.mxu0 0.0
    %1156 = vmatprep.subr.mxu0 0.0
    %1157 = vmatpush2.msra.mxu0 0.0
    %1158 = vmatprep.subr.mxu0 0.0
    %1159 = vmatpush2.msra.mxu0 0.0
    %1160 = vmatprep.subr.mxu0 0.0
    %1161 = vmatpush2.msra.mxu0 0.0
    %1162 = vmatprep.subr.mxu0 0.0
    %1163 = vmatpush2.msra.mxu0 0.0
    %1164 = vmatprep.subr.mxu0 0.0
    %1165 = vmatpush2.msra.mxu0 0.0
    %1166 = vmatprep.subr.mxu0 0.0
    %1167 = vmatpush2.msra.mxu0 0.0
    %1168 = vmatprep.subr.mxu0 0.0
    %1169 = vmatpush2.msra.mxu0 0.0
    %1170 = vmatprep.mubr.f32.mxu0 0.0
    %1171 = vmatmul.mubr.f32.gmra.mxu0 %v1105
    %v1172 = vpop.f32.mrf.mxu0
    %v1173 = vadd.f32 0.0, %v1172
    %v1174 = vpop.f32.mrf.mxu0
    %v1175 = vadd.f32 0.0, %v1174
    %1176 = vdwg.mxu0
    %1177 = vmatprep.subr.mxu0 %v461
    %1178 = vmatpush1.msra.mxu0 %v460
    %1179 = vmatprep.subr.mxu0 %v457
    %1180 = vmatpush1.msra.mxu0 %v456
    %1181 = vmatprep.subr.mxu0 %v453
    %1182 = vmatpush1.msra.mxu0 %v452
    %1183 = vmatprep.subr.mxu0 %v449
    %1184 = vmatpush1.msra.mxu0 %v448
    %1185 = vmatprep.subr.mxu0 %v445
    %1186 = vmatpush1.msra.mxu0 %v444
    %1187 = vmatprep.subr.mxu0 %v441
    %1188 = vmatpush1.msra.mxu0 %v440
    %1189 = vmatprep.subr.mxu0 %v437
    %1190 = vmatpush1.msra.mxu0 %v436
    %1191 = vmatprep.subr.mxu0 %v433
    %1192 = vmatpush1.msra.mxu0 %v432
    %1193 = vmatprep.subr.mxu0 %v429
    %1194 = vmatpush1.msra.mxu0 %v428
    %1195 = vmatprep.subr.mxu0 %v425
    %1196 = vmatpush1.msra.mxu0 %v424
    %1197 = vmatprep.subr.mxu0 %v421
    %1198 = vmatpush1.msra.mxu0 %v420
    %1199 = vmatprep.subr.mxu0 %v417
    %1200 = vmatpush1.msra.mxu0 %v416
    %1201 = vmatprep.subr.mxu0 %v413
    %1202 = vmatpush1.msra.mxu0 %v412
    %1203 = vmatprep.subr.mxu0 %v409
    %1204 = vmatpush1.msra.mxu0 %v408
    %1205 = vmatprep.subr.mxu0 %v405
    %1206 = vmatpush1.msra.mxu0 %v404
    %1207 = vmatprep.subr.mxu0 %v401
    %1208 = vmatpush1.msra.mxu0 %v400
    %1209 = vmatprep.subr.mxu0 0.0
    %1210 = vmatpush2.msra.mxu0 0.0
    %1211 = vmatprep.subr.mxu0 0.0
    %1212 = vmatpush2.msra.mxu0 0.0
    %1213 = vmatprep.subr.mxu0 0.0
    %1214 = vmatpush2.msra.mxu0 0.0
    %1215 = vmatprep.subr.mxu0 0.0
    %1216 = vmatpush2.msra.mxu0 0.0
    %1217 = vmatprep.subr.mxu0 0.0
    %1218 = vmatpush2.msra.mxu0 0.0
    %1219 = vmatprep.subr.mxu0 0.0
    %1220 = vmatpush2.msra.mxu0 0.0
    %1221 = vmatprep.subr.mxu0 0.0
    %1222 = vmatpush2.msra.mxu0 0.0
    %1223 = vmatprep.subr.mxu0 0.0
    %1224 = vmatpush2.msra.mxu0 0.0
    %1225 = vmatprep.subr.mxu0 0.0
    %1226 = vmatpush2.msra.mxu0 0.0
    %1227 = vmatprep.subr.mxu0 0.0
    %1228 = vmatpush2.msra.mxu0 0.0
    %1229 = vmatprep.subr.mxu0 0.0
    %1230 = vmatpush2.msra.mxu0 0.0
    %1231 = vmatprep.subr.mxu0 0.0
    %1232 = vmatpush2.msra.mxu0 0.0
    %1233 = vmatprep.subr.mxu0 0.0
    %1234 = vmatpush2.msra.mxu0 0.0
    %1235 = vmatprep.subr.mxu0 0.0
    %1236 = vmatpush2.msra.mxu0 0.0
    %1237 = vmatprep.subr.mxu0 0.0
    %1238 = vmatpush2.msra.mxu0 0.0
    %1239 = vmatprep.subr.mxu0 0.0
    %1240 = vmatpush2.msra.mxu0 0.0
    %1241 = vmatprep.mubr.f32.mxu0 0.0
    %1242 = vmatmul.mubr.f32.gmra.mxu0 %v1105
    %v1243 = vpop.f32.mrf.mxu0
    %v1244 = vadd.f32 0.0, %v1243
    %v1245 = vpop.f32.mrf.mxu0
    %v1246 = vadd.f32 0.0, %v1245
    %1247 = vdwg.mxu0
    %v1248 = vadd.f32 %v1101, %v1173
    %v1249 = vadd.f32 %v1102, %v1175
    %v1250 = vadd.f32 %v1103, %v1244
    %v1251 = vadd.f32 %v1104, %v1246
    %v1252 = vmul.f32 %v1248, 0.5
    %v1253 = vtanh.pop %v1252
    %v1254 = vmul.f32 %v1253, 0.5
    %v1255 = vadd.f32 %v1254, 0.5
    %v1256 = vmul.f32 %v1249, 0.5
    %v1257 = vtanh.pop %v1256
    %v1258 = vmul.f32 %v1257, 0.5
    %v1259 = vadd.f32 %v1258, 0.5
    %v1260 = vtanh.pop %v1250
    %v1261 = vmul.f32 %v1251, 0.5
    %v1262 = vtanh.pop %v1261
    %v1263 = vmul.f32 %v1262, 0.5
    %v1264 = vadd.f32 %v1263, 0.5
    %v1265 = vld [vmem:[#allocation4] sm:$0xff]
    %v1266 = vmul.f32 %v1259, %v1265
    %v1267 = vmul.f32 %v1255, %v1260
    %v1268 = vadd.f32 %v1266, %v1267
    %v1269 = vtanh.pop %v1268
    %v1270 = vmul.f32 %v1264, %v1269
    %1271 = vst [vmem:[#allocation4] sm:$0xff] %v1268
    %1272 = vst [vmem:[#allocation3] sm:$0xff] %v1270
    %v1273 = vmul.f32 %v1270, %v643
    %1274 = vadd.xlane.f32.xlu0 %v1273
    %v1275 = vpop.xlane.xlu0 %1274
    %v1276 = vadd.f32 %v1275, %v652
    %v1277 = vld [vmem:[#allocation5] sm:$0xff]
    %v1278 = vmax.f32 %v1277, %v1276
    %v1279 = vsub.f32 %v1277, %v1278
    %v1280 = vmul.f32 %v1279, 1.442695
    %v1281 = vpow.pop %v1280
    %v1282 = vsub.f32 %v1276, %v1278
    %v1283 = vmul.f32 %v1282, 1.442695
    %v1284 = vpow.pop %v1283
    %v1285 = vld [vmem:[#allocation6] sm:$0xff]
    %v1286 = vmul.f32 %v1281, %v1285
    %v1287 = vadd.f32 %v1286, %v1284
    %1288 = vst.msk [vmem:[#allocation6] sm:$0xff] %vm666, %v1287
    %v1289 = vld [vmem:[#allocation7] sm:$0xff]
    %1291 = vset.pattern.permute.xlu0 0
    %1292 = vperm.xlu0 %1291, %v1281
    %v1293 = vpop.permute.xlu0 %1292
    %v1295 = vmul.f32 %v1293, %v1289
    %1297 = vset.pattern.permute.xlu0 0
    %1298 = vperm.xlu0 %1297, %v1284
    %v1299 = vpop.permute.xlu0 %1298
    %v1301 = vmul.f32 %v1299, %v1270
    %v1302 = vadd.f32 %v1295, %v1301
    %1303 = vst [vmem:[#allocation7] sm:$0xff] %v1302
    %1304 = vst.msk [vmem:[#allocation5] sm:$0xff] %vm666, %v1278
    %s1305 = smul.u32 4, 4
    %s1306 = smul.addr %s1305, 8
    %s1307 = scalar_lea.vmem [#allocation2], %s1306
    %v1308 = vld [vmem:[%s1307] sm:$0xff]
    %v1309 = vld [vmem:[%s1307 + $0x8] sm:$0xff]
    %v1310 = vld [vmem:[%s1307 + $0x10] sm:$0xff]
    %v1311 = vld [vmem:[%s1307 + $0x18] sm:$0xff]
    %v1312 = vld [vmem:[#allocation3] sm:$0xff]
    %1313 = vmatprep.subr.mxu0 %v459
    %1314 = vmatpush1.msra.mxu0 %v458
    %1315 = vmatprep.subr.mxu0 %v455
    %1316 = vmatpush1.msra.mxu0 %v454
    %1317 = vmatprep.subr.mxu0 %v451
    %1318 = vmatpush1.msra.mxu0 %v450
    %1319 = vmatprep.subr.mxu0 %v447
    %1320 = vmatpush1.msra.mxu0 %v446
    %1321 = vmatprep.subr.mxu0 %v443
    %1322 = vmatpush1.msra.mxu0 %v442
    %1323 = vmatprep.subr.mxu0 %v439
    %1324 = vmatpush1.msra.mxu0 %v438
    %1325 = vmatprep.subr.mxu0 %v435
    %1326 = vmatpush1.msra.mxu0 %v434
    %1327 = vmatprep.subr.mxu0 %v431
    %1328 = vmatpush1.msra.mxu0 %v430
    %1329 = vmatprep.subr.mxu0 %v427
    %1330 = vmatpush1.msra.mxu0 %v426
    %1331 = vmatprep.subr.mxu0 %v423
    %1332 = vmatpush1.msra.mxu0 %v422
    %1333 = vmatprep.subr.mxu0 %v419
    %1334 = vmatpush1.msra.mxu0 %v418
    %1335 = vmatprep.subr.mxu0 %v415
    %1336 = vmatpush1.msra.mxu0 %v414
    %1337 = vmatprep.subr.mxu0 %v411
    %1338 = vmatpush1.msra.mxu0 %v410
    %1339 = vmatprep.subr.mxu0 %v407
    %1340 = vmatpush1.msra.mxu0 %v406
    %1341 = vmatprep.subr.mxu0 %v403
    %1342 = vmatpush1.msra.mxu0 %v402
    %1343 = vmatprep.subr.mxu0 %v399
    %1344 = vmatpush1.msra.mxu0 %v398
    %1345 = vmatprep.subr.mxu0 0.0
    %1346 = vmatpush2.msra.mxu0 0.0
    %1347 = vmatprep.subr.mxu0 0.0
    %1348 = vmatpush2.msra.mxu0 0.0
    %1349 = vmatprep.subr.mxu0 0.0
    %1350 = vmatpush2.msra.mxu0 0.0
    %1351 = vmatprep.subr.mxu0 0.0
    %1352 = vmatpush2.msra.mxu0 0.0
    %1353 = vmatprep.subr.mxu0 0.0
    %1354 = vmatpush2.msra.mxu0 0.0
    %1355 = vmatprep.subr.mxu0 0.0
    %1356 = vmatpush2.msra.mxu0 0.0
    %1357 = vmatprep.subr.mxu0 0.0
    %1358 = vmatpush2.msra.mxu0 0.0
    %1359 = vmatprep.subr.mxu0 0.0
    %1360 = vmatpush2.msra.mxu0 0.0
    %1361 = vmatprep.subr.mxu0 0.0
    %1362 = vmatpush2.msra.mxu0 0.0
    %1363 = vmatprep.subr.mxu0 0.0
    %1364 = vmatpush2.msra.mxu0 0.0
    %1365 = vmatprep.subr.mxu0 0.0
    %1366 = vmatpush2.msra.mxu0 0.0
    %1367 = vmatprep.subr.mxu0 0.0
    %1368 = vmatpush2.msra.mxu0 0.0
    %1369 = vmatprep.subr.mxu0 0.0
    %1370 = vmatpush2.msra.mxu0 0.0
    %1371 = vmatprep.subr.mxu0 0.0
    %1372 = vmatpush2.msra.mxu0 0.0
    %1373 = vmatprep.subr.mxu0 0.0
    %1374 = vmatpush2.msra.mxu0 0.0
    %1375 = vmatprep.subr.mxu0 0.0
    %1376 = vmatpush2.msra.mxu0 0.0
    %1377 = vmatprep.mubr.f32.mxu0 0.0
    %1378 = vmatmul.mubr.f32.gmra.mxu0 %v1312
    %v1379 = vpop.f32.mrf.mxu0
    %v1380 = vadd.f32 0.0, %v1379
    %v1381 = vpop.f32.mrf.mxu0
    %v1382 = vadd.f32 0.0, %v1381
    %1383 = vdwg.mxu0
    %1384 = vmatprep.subr.mxu0 %v461
    %1385 = vmatpush1.msra.mxu0 %v460
    %1386 = vmatprep.subr.mxu0 %v457
    %1387 = vmatpush1.msra.mxu0 %v456
    %1388 = vmatprep.subr.mxu0 %v453
    %1389 = vmatpush1.msra.mxu0 %v452
    %1390 = vmatprep.subr.mxu0 %v449
    %1391 = vmatpush1.msra.mxu0 %v448
    %1392 = vmatprep.subr.mxu0 %v445
    %1393 = vmatpush1.msra.mxu0 %v444
    %1394 = vmatprep.subr.mxu0 %v441
    %1395 = vmatpush1.msra.mxu0 %v440
    %1396 = vmatprep.subr.mxu0 %v437
    %1397 = vmatpush1.msra.mxu0 %v436
    %1398 = vmatprep.subr.mxu0 %v433
    %1399 = vmatpush1.msra.mxu0 %v432
    %1400 = vmatprep.subr.mxu0 %v429
    %1401 = vmatpush1.msra.mxu0 %v428
    %1402 = vmatprep.subr.mxu0 %v425
    %1403 = vmatpush1.msra.mxu0 %v424
    %1404 = vmatprep.subr.mxu0 %v421
    %1405 = vmatpush1.msra.mxu0 %v420
    %1406 = vmatprep.subr.mxu0 %v417
    %1407 = vmatpush1.msra.mxu0 %v416
    %1408 = vmatprep.subr.mxu0 %v413
    %1409 = vmatpush1.msra.mxu0 %v412
    %1410 = vmatprep.subr.mxu0 %v409
    %1411 = vmatpush1.msra.mxu0 %v408
    %1412 = vmatprep.subr.mxu0 %v405
    %1413 = vmatpush1.msra.mxu0 %v404
    %1414 = vmatprep.subr.mxu0 %v401
    %1415 = vmatpush1.msra.mxu0 %v400
    %1416 = vmatprep.subr.mxu0 0.0
    %1417 = vmatpush2.msra.mxu0 0.0
    %1418 = vmatprep.subr.mxu0 0.0
    %1419 = vmatpush2.msra.mxu0 0.0
    %1420 = vmatprep.subr.mxu0 0.0
    %1421 = vmatpush2.msra.mxu0 0.0
    %1422 = vmatprep.subr.mxu0 0.0
    %1423 = vmatpush2.msra.mxu0 0.0
    %1424 = vmatprep.subr.mxu0 0.0
    %1425 = vmatpush2.msra.mxu0 0.0
    %1426 = vmatprep.subr.mxu0 0.0
    %1427 = vmatpush2.msra.mxu0 0.0
    %1428 = vmatprep.subr.mxu0 0.0
    %1429 = vmatpush2.msra.mxu0 0.0
    %1430 = vmatprep.subr.mxu0 0.0
    %1431 = vmatpush2.msra.mxu0 0.0
    %1432 = vmatprep.subr.mxu0 0.0
    %1433 = vmatpush2.msra.mxu0 0.0
    %1434 = vmatprep.subr.mxu0 0.0
    %1435 = vmatpush2.msra.mxu0 0.0
    %1436 = vmatprep.subr.mxu0 0.0
    %1437 = vmatpush2.msra.mxu0 0.0
    %1438 = vmatprep.subr.mxu0 0.0
    %1439 = vmatpush2.msra.mxu0 0.0
    %1440 = vmatprep.subr.mxu0 0.0
    %1441 = vmatpush2.msra.mxu0 0.0
    %1442 = vmatprep.subr.mxu0 0.0
    %1443 = vmatpush2.msra.mxu0 0.0
    %1444 = vmatprep.subr.mxu0 0.0
    %1445 = vmatpush2.msra.mxu0 0.0
    %1446 = vmatprep.subr.mxu0 0.0
    %1447 = vmatpush2.msra.mxu0 0.0
    %1448 = vmatprep.mubr.f32.mxu0 0.0
    %1449 = vmatmul.mubr.f32.gmra.mxu0 %v1312
    %v1450 = vpop.f32.mrf.mxu0
    %v1451 = vadd.f32 0.0, %v1450
    %v1452 = vpop.f32.mrf.mxu0
    %v1453 = vadd.f32 0.0, %v1452
    %1454 = vdwg.mxu0
    %v1455 = vadd.f32 %v1308, %v1380
    %v1456 = vadd.f32 %v1309, %v1382
    %v1457 = vadd.f32 %v1310, %v1451
    %v1458 = vadd.f32 %v1311, %v1453
    %v1459 = vmul.f32 %v1455, 0.5
    %v1460 = vtanh.pop %v1459
    %v1461 = vmul.f32 %v1460, 0.5
    %v1462 = vadd.f32 %v1461, 0.5
    %v1463 = vmul.f32 %v1456, 0.5
    %v1464 = vtanh.pop %v1463
    %v1465 = vmul.f32 %v1464, 0.5
    %v1466 = vadd.f32 %v1465, 0.5
    %v1467 = vtanh.pop %v1457
    %v1468 = vmul.f32 %v1458, 0.5
    %v1469 = vtanh.pop %v1468
    %v1470 = vmul.f32 %v1469, 0.5
    %v1471 = vadd.f32 %v1470, 0.5
    %v1472 = vld [vmem:[#allocation4] sm:$0xff]
    %v1473 = vmul.f32 %v1466, %v1472
    %v1474 = vmul.f32 %v1462, %v1467
    %v1475 = vadd.f32 %v1473, %v1474
    %v1476 = vtanh.pop %v1475
    %v1477 = vmul.f32 %v1471, %v1476
    %1478 = vst [vmem:[#allocation4] sm:$0xff] %v1475
    %1479 = vst [vmem:[#allocation3] sm:$0xff] %v1477
    %v1480 = vmul.f32 %v1477, %v643
    %1481 = vadd.xlane.f32.xlu0 %v1480
    %v1482 = vpop.xlane.xlu0 %1481
    %v1483 = vadd.f32 %v1482, %v652
    %v1484 = vld [vmem:[#allocation5] sm:$0xff]
    %v1485 = vmax.f32 %v1484, %v1483
    %v1486 = vsub.f32 %v1484, %v1485
    %v1487 = vmul.f32 %v1486, 1.442695
    %v1488 = vpow.pop %v1487
    %v1489 = vsub.f32 %v1483, %v1485
    %v1490 = vmul.f32 %v1489, 1.442695
    %v1491 = vpow.pop %v1490
    %v1492 = vld [vmem:[#allocation6] sm:$0xff]
    %v1493 = vmul.f32 %v1488, %v1492
    %v1494 = vadd.f32 %v1493, %v1491
    %1495 = vst.msk [vmem:[#allocation6] sm:$0xff] %vm666, %v1494
    %v1496 = vld [vmem:[#allocation7] sm:$0xff]
    %1498 = vset.pattern.permute.xlu0 0
    %1499 = vperm.xlu0 %1498, %v1488
    %v1500 = vpop.permute.xlu0 %1499
    %v1502 = vmul.f32 %v1500, %v1496
    %1504 = vset.pattern.permute.xlu0 0
    %1505 = vperm.xlu0 %1504, %v1491
    %v1506 = vpop.permute.xlu0 %1505
    %v1508 = vmul.f32 %v1506, %v1477
    %v1509 = vadd.f32 %v1502, %v1508
    %1510 = vst [vmem:[#allocation7] sm:$0xff] %v1509
    %1511 = vst.msk [vmem:[#allocation5] sm:$0xff] %vm666, %v1485
    %s1512 = smul.u32 5, 4
    %s1513 = smul.addr %s1512, 8
    %s1514 = scalar_lea.vmem [#allocation2], %s1513
    %v1515 = vld [vmem:[%s1514] sm:$0xff]
    %v1516 = vld [vmem:[%s1514 + $0x8] sm:$0xff]
    %v1517 = vld [vmem:[%s1514 + $0x10] sm:$0xff]
    %v1518 = vld [vmem:[%s1514 + $0x18] sm:$0xff]
    %v1519 = vld [vmem:[#allocation3] sm:$0xff]
    %1520 = vmatprep.subr.mxu0 %v459
    %1521 = vmatpush1.msra.mxu0 %v458
    %1522 = vmatprep.subr.mxu0 %v455
    %1523 = vmatpush1.msra.mxu0 %v454
    %1524 = vmatprep.subr.mxu0 %v451
    %1525 = vmatpush1.msra.mxu0 %v450
    %1526 = vmatprep.subr.mxu0 %v447
    %1527 = vmatpush1.msra.mxu0 %v446
    %1528 = vmatprep.subr.mxu0 %v443
    %1529 = vmatpush1.msra.mxu0 %v442
    %1530 = vmatprep.subr.mxu0 %v439
    %1531 = vmatpush1.msra.mxu0 %v438
    %1532 = vmatprep.subr.mxu0 %v435
    %1533 = vmatpush1.msra.mxu0 %v434
    %1534 = vmatprep.subr.mxu0 %v431
    %1535 = vmatpush1.msra.mxu0 %v430
    %1536 = vmatprep.subr.mxu0 %v427
    %1537 = vmatpush1.msra.mxu0 %v426
    %1538 = vmatprep.subr.mxu0 %v423
    %1539 = vmatpush1.msra.mxu0 %v422
    %1540 = vmatprep.subr.mxu0 %v419
    %1541 = vmatpush1.msra.mxu0 %v418
    %1542 = vmatprep.subr.mxu0 %v415
    %1543 = vmatpush1.msra.mxu0 %v414
    %1544 = vmatprep.subr.mxu0 %v411
    %1545 = vmatpush1.msra.mxu0 %v410
    %1546 = vmatprep.subr.mxu0 %v407
    %1547 = vmatpush1.msra.mxu0 %v406
    %1548 = vmatprep.subr.mxu0 %v403
    %1549 = vmatpush1.msra.mxu0 %v402
    %1550 = vmatprep.subr.mxu0 %v399
    %1551 = vmatpush1.msra.mxu0 %v398
    %1552 = vmatprep.subr.mxu0 0.0
    %1553 = vmatpush2.msra.mxu0 0.0
    %1554 = vmatprep.subr.mxu0 0.0
    %1555 = vmatpush2.msra.mxu0 0.0
    %1556 = vmatprep.subr.mxu0 0.0
    %1557 = vmatpush2.msra.mxu0 0.0
    %1558 = vmatprep.subr.mxu0 0.0
    %1559 = vmatpush2.msra.mxu0 0.0
    %1560 = vmatprep.subr.mxu0 0.0
    %1561 = vmatpush2.msra.mxu0 0.0
    %1562 = vmatprep.subr.mxu0 0.0
    %1563 = vmatpush2.msra.mxu0 0.0
    %1564 = vmatprep.subr.mxu0 0.0
    %1565 = vmatpush2.msra.mxu0 0.0
    %1566 = vmatprep.subr.mxu0 0.0
    %1567 = vmatpush2.msra.mxu0 0.0
    %1568 = vmatprep.subr.mxu0 0.0
    %1569 = vmatpush2.msra.mxu0 0.0
    %1570 = vmatprep.subr.mxu0 0.0
    %1571 = vmatpush2.msra.mxu0 0.0
    %1572 = vmatprep.subr.mxu0 0.0
    %1573 = vmatpush2.msra.mxu0 0.0
    %1574 = vmatprep.subr.mxu0 0.0
    %1575 = vmatpush2.msra.mxu0 0.0
    %1576 = vmatprep.subr.mxu0 0.0
    %1577 = vmatpush2.msra.mxu0 0.0
    %1578 = vmatprep.subr.mxu0 0.0
    %1579 = vmatpush2.msra.mxu0 0.0
    %1580 = vmatprep.subr.mxu0 0.0
    %1581 = vmatpush2.msra.mxu0 0.0
    %1582 = vmatprep.subr.mxu0 0.0
    %1583 = vmatpush2.msra.mxu0 0.0
    %1584 = vmatprep.mubr.f32.mxu0 0.0
    %1585 = vmatmul.mubr.f32.gmra.mxu0 %v1519
    %v1586 = vpop.f32.mrf.mxu0
    %v1587 = vadd.f32 0.0, %v1586
    %v1588 = vpop.f32.mrf.mxu0
    %v1589 = vadd.f32 0.0, %v1588
    %1590 = vdwg.mxu0
    %1591 = vmatprep.subr.mxu0 %v461
    %1592 = vmatpush1.msra.mxu0 %v460
    %1593 = vmatprep.subr.mxu0 %v457
    %1594 = vmatpush1.msra.mxu0 %v456
    %1595 = vmatprep.subr.mxu0 %v453
    %1596 = vmatpush1.msra.mxu0 %v452
    %1597 = vmatprep.subr.mxu0 %v449
    %1598 = vmatpush1.msra.mxu0 %v448
    %1599 = vmatprep.subr.mxu0 %v445
    %1600 = vmatpush1.msra.mxu0 %v444
    %1601 = vmatprep.subr.mxu0 %v441
    %1602 = vmatpush1.msra.mxu0 %v440
    %1603 = vmatprep.subr.mxu0 %v437
    %1604 = vmatpush1.msra.mxu0 %v436
    %1605 = vmatprep.subr.mxu0 %v433
    %1606 = vmatpush1.msra.mxu0 %v432
    %1607 = vmatprep.subr.mxu0 %v429
    %1608 = vmatpush1.msra.mxu0 %v428
    %1609 = vmatprep.subr.mxu0 %v425
    %1610 = vmatpush1.msra.mxu0 %v424
    %1611 = vmatprep.subr.mxu0 %v421
    %1612 = vmatpush1.msra.mxu0 %v420
    %1613 = vmatprep.subr.mxu0 %v417
    %1614 = vmatpush1.msra.mxu0 %v416
    %1615 = vmatprep.subr.mxu0 %v413
    %1616 = vmatpush1.msra.mxu0 %v412
    %1617 = vmatprep.subr.mxu0 %v409
    %1618 = vmatpush1.msra.mxu0 %v408
    %1619 = vmatprep.subr.mxu0 %v405
    %1620 = vmatpush1.msra.mxu0 %v404
    %1621 = vmatprep.subr.mxu0 %v401
    %1622 = vmatpush1.msra.mxu0 %v400
    %1623 = vmatprep.subr.mxu0 0.0
    %1624 = vmatpush2.msra.mxu0 0.0
    %1625 = vmatprep.subr.mxu0 0.0
    %1626 = vmatpush2.msra.mxu0 0.0
    %1627 = vmatprep.subr.mxu0 0.0
    %1628 = vmatpush2.msra.mxu0 0.0
    %1629 = vmatprep.subr.mxu0 0.0
    %1630 = vmatpush2.msra.mxu0 0.0
    %1631 = vmatprep.subr.mxu0 0.0
    %1632 = vmatpush2.msra.mxu0 0.0
    %1633 = vmatprep.subr.mxu0 0.0
    %1634 = vmatpush2.msra.mxu0 0.0
    %1635 = vmatprep.subr.mxu0 0.0
    %1636 = vmatpush2.msra.mxu0 0.0
    %1637 = vmatprep.subr.mxu0 0.0
    %1638 = vmatpush2.msra.mxu0 0.0
    %1639 = vmatprep.subr.mxu0 0.0
    %1640 = vmatpush2.msra.mxu0 0.0
    %1641 = vmatprep.subr.mxu0 0.0
    %1642 = vmatpush2.msra.mxu0 0.0
    %1643 = vmatprep.subr.mxu0 0.0
    %1644 = vmatpush2.msra.mxu0 0.0
    %1645 = vmatprep.subr.mxu0 0.0
    %1646 = vmatpush2.msra.mxu0 0.0
    %1647 = vmatprep.subr.mxu0 0.0
    %1648 = vmatpush2.msra.mxu0 0.0
    %1649 = vmatprep.subr.mxu0 0.0
    %1650 = vmatpush2.msra.mxu0 0.0
    %1651 = vmatprep.subr.mxu0 0.0
    %1652 = vmatpush2.msra.mxu0 0.0
    %1653 = vmatprep.subr.mxu0 0.0
    %1654 = vmatpush2.msra.mxu0 0.0
    %1655 = vmatprep.mubr.f32.mxu0 0.0
    %1656 = vmatmul.mubr.f32.gmra.mxu0 %v1519
    %v1657 = vpop.f32.mrf.mxu0
    %v1658 = vadd.f32 0.0, %v1657
    %v1659 = vpop.f32.mrf.mxu0
    %v1660 = vadd.f32 0.0, %v1659
    %1661 = vdwg.mxu0
    %v1662 = vadd.f32 %v1515, %v1587
    %v1663 = vadd.f32 %v1516, %v1589
    %v1664 = vadd.f32 %v1517, %v1658
    %v1665 = vadd.f32 %v1518, %v1660
    %v1666 = vmul.f32 %v1662, 0.5
    %v1667 = vtanh.pop %v1666
    %v1668 = vmul.f32 %v1667, 0.5
    %v1669 = vadd.f32 %v1668, 0.5
    %v1670 = vmul.f32 %v1663, 0.5
    %v1671 = vtanh.pop %v1670
    %v1672 = vmul.f32 %v1671, 0.5
    %v1673 = vadd.f32 %v1672, 0.5
    %v1674 = vtanh.pop %v1664
    %v1675 = vmul.f32 %v1665, 0.5
    %v1676 = vtanh.pop %v1675
    %v1677 = vmul.f32 %v1676, 0.5
    %v1678 = vadd.f32 %v1677, 0.5
    %v1679 = vld [vmem:[#allocation4] sm:$0xff]
    %v1680 = vmul.f32 %v1673, %v1679
    %v1681 = vmul.f32 %v1669, %v1674
    %v1682 = vadd.f32 %v1680, %v1681
    %v1683 = vtanh.pop %v1682
    %v1684 = vmul.f32 %v1678, %v1683
    %1685 = vst [vmem:[#allocation4] sm:$0xff] %v1682
    %1686 = vst [vmem:[#allocation3] sm:$0xff] %v1684
    %v1687 = vmul.f32 %v1684, %v643
    %1688 = vadd.xlane.f32.xlu0 %v1687
    %v1689 = vpop.xlane.xlu0 %1688
    %v1690 = vadd.f32 %v1689, %v652
    %v1691 = vld [vmem:[#allocation5] sm:$0xff]
    %v1692 = vmax.f32 %v1691, %v1690
    %v1693 = vsub.f32 %v1691, %v1692
    %v1694 = vmul.f32 %v1693, 1.442695
    %v1695 = vpow.pop %v1694
    %v1696 = vsub.f32 %v1690, %v1692
    %v1697 = vmul.f32 %v1696, 1.442695
    %v1698 = vpow.pop %v1697
    %v1699 = vld [vmem:[#allocation6] sm:$0xff]
    %v1700 = vmul.f32 %v1695, %v1699
    %v1701 = vadd.f32 %v1700, %v1698
    %1702 = vst.msk [vmem:[#allocation6] sm:$0xff] %vm666, %v1701
    %v1703 = vld [vmem:[#allocation7] sm:$0xff]
    %1705 = vset.pattern.permute.xlu0 0
    %1706 = vperm.xlu0 %1705, %v1695
    %v1707 = vpop.permute.xlu0 %1706
    %v1709 = vmul.f32 %v1707, %v1703
    %1711 = vset.pattern.permute.xlu0 0
    %1712 = vperm.xlu0 %1711, %v1698
    %v1713 = vpop.permute.xlu0 %1712
    %v1715 = vmul.f32 %v1713, %v1684
    %v1716 = vadd.f32 %v1709, %v1715
    %1717 = vst [vmem:[#allocation7] sm:$0xff] %v1716
    %1718 = vst.msk [vmem:[#allocation5] sm:$0xff] %vm666, %v1692
    %s1719 = smul.u32 6, 4
    %s1720 = smul.addr %s1719, 8
    %s1721 = scalar_lea.vmem [#allocation2], %s1720
    %v1722 = vld [vmem:[%s1721] sm:$0xff]
    %v1723 = vld [vmem:[%s1721 + $0x8] sm:$0xff]
    %v1724 = vld [vmem:[%s1721 + $0x10] sm:$0xff]
    %v1725 = vld [vmem:[%s1721 + $0x18] sm:$0xff]
    %v1726 = vld [vmem:[#allocation3] sm:$0xff]
    %1727 = vmatprep.subr.mxu0 %v459
    %1728 = vmatpush1.msra.mxu0 %v458
    %1729 = vmatprep.subr.mxu0 %v455
    %1730 = vmatpush1.msra.mxu0 %v454
    %1731 = vmatprep.subr.mxu0 %v451
    %1732 = vmatpush1.msra.mxu0 %v450
    %1733 = vmatprep.subr.mxu0 %v447
    %1734 = vmatpush1.msra.mxu0 %v446
    %1735 = vmatprep.subr.mxu0 %v443
    %1736 = vmatpush1.msra.mxu0 %v442
    %1737 = vmatprep.subr.mxu0 %v439
    %1738 = vmatpush1.msra.mxu0 %v438
    %1739 = vmatprep.subr.mxu0 %v435
    %1740 = vmatpush1.msra.mxu0 %v434
    %1741 = vmatprep.subr.mxu0 %v431
    %1742 = vmatpush1.msra.mxu0 %v430
    %1743 = vmatprep.subr.mxu0 %v427
    %1744 = vmatpush1.msra.mxu0 %v426
    %1745 = vmatprep.subr.mxu0 %v423
    %1746 = vmatpush1.msra.mxu0 %v422
    %1747 = vmatprep.subr.mxu0 %v419
    %1748 = vmatpush1.msra.mxu0 %v418
    %1749 = vmatprep.subr.mxu0 %v415
    %1750 = vmatpush1.msra.mxu0 %v414
    %1751 = vmatprep.subr.mxu0 %v411
    %1752 = vmatpush1.msra.mxu0 %v410
    %1753 = vmatprep.subr.mxu0 %v407
    %1754 = vmatpush1.msra.mxu0 %v406
    %1755 = vmatprep.subr.mxu0 %v403
    %1756 = vmatpush1.msra.mxu0 %v402
    %1757 = vmatprep.subr.mxu0 %v399
    %1758 = vmatpush1.msra.mxu0 %v398
    %1759 = vmatprep.subr.mxu0 0.0
    %1760 = vmatpush2.msra.mxu0 0.0
    %1761 = vmatprep.subr.mxu0 0.0
    %1762 = vmatpush2.msra.mxu0 0.0
    %1763 = vmatprep.subr.mxu0 0.0
    %1764 = vmatpush2.msra.mxu0 0.0
    %1765 = vmatprep.subr.mxu0 0.0
    %1766 = vmatpush2.msra.mxu0 0.0
    %1767 = vmatprep.subr.mxu0 0.0
    %1768 = vmatpush2.msra.mxu0 0.0
    %1769 = vmatprep.subr.mxu0 0.0
    %1770 = vmatpush2.msra.mxu0 0.0
    %1771 = vmatprep.subr.mxu0 0.0
    %1772 = vmatpush2.msra.mxu0 0.0
    %1773 = vmatprep.subr.mxu0 0.0
    %1774 = vmatpush2.msra.mxu0 0.0
    %1775 = vmatprep.subr.mxu0 0.0
    %1776 = vmatpush2.msra.mxu0 0.0
    %1777 = vmatprep.subr.mxu0 0.0
    %1778 = vmatpush2.msra.mxu0 0.0
    %1779 = vmatprep.subr.mxu0 0.0
    %1780 = vmatpush2.msra.mxu0 0.0
    %1781 = vmatprep.subr.mxu0 0.0
    %1782 = vmatpush2.msra.mxu0 0.0
    %1783 = vmatprep.subr.mxu0 0.0
    %1784 = vmatpush2.msra.mxu0 0.0
    %1785 = vmatprep.subr.mxu0 0.0
    %1786 = vmatpush2.msra.mxu0 0.0
    %1787 = vmatprep.subr.mxu0 0.0
    %1788 = vmatpush2.msra.mxu0 0.0
    %1789 = vmatprep.subr.mxu0 0.0
    %1790 = vmatpush2.msra.mxu0 0.0
    %1791 = vmatprep.mubr.f32.mxu0 0.0
    %1792 = vmatmul.mubr.f32.gmra.mxu0 %v1726
    %v1793 = vpop.f32.mrf.mxu0
    %v1794 = vadd.f32 0.0, %v1793
    %v1795 = vpop.f32.mrf.mxu0
    %v1796 = vadd.f32 0.0, %v1795
    %1797 = vdwg.mxu0
    %1798 = vmatprep.subr.mxu0 %v461
    %1799 = vmatpush1.msra.mxu0 %v460
    %1800 = vmatprep.subr.mxu0 %v457
    %1801 = vmatpush1.msra.mxu0 %v456
    %1802 = vmatprep.subr.mxu0 %v453
    %1803 = vmatpush1.msra.mxu0 %v452
    %1804 = vmatprep.subr.mxu0 %v449
    %1805 = vmatpush1.msra.mxu0 %v448
    %1806 = vmatprep.subr.mxu0 %v445
    %1807 = vmatpush1.msra.mxu0 %v444
    %1808 = vmatprep.subr.mxu0 %v441
    %1809 = vmatpush1.msra.mxu0 %v440
    %1810 = vmatprep.subr.mxu0 %v437
    %1811 = vmatpush1.msra.mxu0 %v436
    %1812 = vmatprep.subr.mxu0 %v433
    %1813 = vmatpush1.msra.mxu0 %v432
    %1814 = vmatprep.subr.mxu0 %v429
    %1815 = vmatpush1.msra.mxu0 %v428
    %1816 = vmatprep.subr.mxu0 %v425
    %1817 = vmatpush1.msra.mxu0 %v424
    %1818 = vmatprep.subr.mxu0 %v421
    %1819 = vmatpush1.msra.mxu0 %v420
    %1820 = vmatprep.subr.mxu0 %v417
    %1821 = vmatpush1.msra.mxu0 %v416
    %1822 = vmatprep.subr.mxu0 %v413
    %1823 = vmatpush1.msra.mxu0 %v412
    %1824 = vmatprep.subr.mxu0 %v409
    %1825 = vmatpush1.msra.mxu0 %v408
    %1826 = vmatprep.subr.mxu0 %v405
    %1827 = vmatpush1.msra.mxu0 %v404
    %1828 = vmatprep.subr.mxu0 %v401
    %1829 = vmatpush1.msra.mxu0 %v400
    %1830 = vmatprep.subr.mxu0 0.0
    %1831 = vmatpush2.msra.mxu0 0.0
    %1832 = vmatprep.subr.mxu0 0.0
    %1833 = vmatpush2.msra.mxu0 0.0
    %1834 = vmatprep.subr.mxu0 0.0
    %1835 = vmatpush2.msra.mxu0 0.0
    %1836 = vmatprep.subr.mxu0 0.0
    %1837 = vmatpush2.msra.mxu0 0.0
    %1838 = vmatprep.subr.mxu0 0.0
    %1839 = vmatpush2.msra.mxu0 0.0
    %1840 = vmatprep.subr.mxu0 0.0
    %1841 = vmatpush2.msra.mxu0 0.0
    %1842 = vmatprep.subr.mxu0 0.0
    %1843 = vmatpush2.msra.mxu0 0.0
    %1844 = vmatprep.subr.mxu0 0.0
    %1845 = vmatpush2.msra.mxu0 0.0
    %1846 = vmatprep.subr.mxu0 0.0
    %1847 = vmatpush2.msra.mxu0 0.0
    %1848 = vmatprep.subr.mxu0 0.0
    %1849 = vmatpush2.msra.mxu0 0.0
    %1850 = vmatprep.subr.mxu0 0.0
    %1851 = vmatpush2.msra.mxu0 0.0
    %1852 = vmatprep.subr.mxu0 0.0
    %1853 = vmatpush2.msra.mxu0 0.0
    %1854 = vmatprep.subr.mxu0 0.0
    %1855 = vmatpush2.msra.mxu0 0.0
    %1856 = vmatprep.subr.mxu0 0.0
    %1857 = vmatpush2.msra.mxu0 0.0
    %1858 = vmatprep.subr.mxu0 0.0
    %1859 = vmatpush2.msra.mxu0 0.0
    %1860 = vmatprep.subr.mxu0 0.0
    %1861 = vmatpush2.msra.mxu0 0.0
    %1862 = vmatprep.mubr.f32.mxu0 0.0
    %1863 = vmatmul.mubr.f32.gmra.mxu0 %v1726
    %v1864 = vpop.f32.mrf.mxu0
    %v1865 = vadd.f32 0.0, %v1864
    %v1866 = vpop.f32.mrf.mxu0
    %v1867 = vadd.f32 0.0, %v1866
    %1868 = vdwg.mxu0
    %v1869 = vadd.f32 %v1722, %v1794
    %v1870 = vadd.f32 %v1723, %v1796
    %v1871 = vadd.f32 %v1724, %v1865
    %v1872 = vadd.f32 %v1725, %v1867
    %v1873 = vmul.f32 %v1869, 0.5
    %v1874 = vtanh.pop %v1873
    %v1875 = vmul.f32 %v1874, 0.5
    %v1876 = vadd.f32 %v1875, 0.5
    %v1877 = vmul.f32 %v1870, 0.5
    %v1878 = vtanh.pop %v1877
    %v1879 = vmul.f32 %v1878, 0.5
    %v1880 = vadd.f32 %v1879, 0.5
    %v1881 = vtanh.pop %v1871
    %v1882 = vmul.f32 %v1872, 0.5
    %v1883 = vtanh.pop %v1882
    %v1884 = vmul.f32 %v1883, 0.5
    %v1885 = vadd.f32 %v1884, 0.5
    %v1886 = vld [vmem:[#allocation4] sm:$0xff]
    %v1887 = vmul.f32 %v1880, %v1886
    %v1888 = vmul.f32 %v1876, %v1881
    %v1889 = vadd.f32 %v1887, %v1888
    %v1890 = vtanh.pop %v1889
    %v1891 = vmul.f32 %v1885, %v1890
    %1892 = vst [vmem:[#allocation4] sm:$0xff] %v1889
    %1893 = vst [vmem:[#allocation3] sm:$0xff] %v1891
    %v1894 = vmul.f32 %v1891, %v643
    %1895 = vadd.xlane.f32.xlu0 %v1894
    %v1896 = vpop.xlane.xlu0 %1895
    %v1897 = vadd.f32 %v1896, %v652
    %v1898 = vld [vmem:[#allocation5] sm:$0xff]
    %v1899 = vmax.f32 %v1898, %v1897
    %v1900 = vsub.f32 %v1898, %v1899
    %v1901 = vmul.f32 %v1900, 1.442695
    %v1902 = vpow.pop %v1901
    %v1903 = vsub.f32 %v1897, %v1899
    %v1904 = vmul.f32 %v1903, 1.442695
    %v1905 = vpow.pop %v1904
    %v1906 = vld [vmem:[#allocation6] sm:$0xff]
    %v1907 = vmul.f32 %v1902, %v1906
    %v1908 = vadd.f32 %v1907, %v1905
    %1909 = vst.msk [vmem:[#allocation6] sm:$0xff] %vm666, %v1908
    %v1910 = vld [vmem:[#allocation7] sm:$0xff]
    %1912 = vset.pattern.permute.xlu0 0
    %1913 = vperm.xlu0 %1912, %v1902
    %v1914 = vpop.permute.xlu0 %1913
    %v1916 = vmul.f32 %v1914, %v1910
    %1918 = vset.pattern.permute.xlu0 0
    %1919 = vperm.xlu0 %1918, %v1905
    %v1920 = vpop.permute.xlu0 %1919
    %v1922 = vmul.f32 %v1920, %v1891
    %v1923 = vadd.f32 %v1916, %v1922
    %1924 = vst [vmem:[#allocation7] sm:$0xff] %v1923
    %1925 = vst.msk [vmem:[#allocation5] sm:$0xff] %vm666, %v1899
    %s1926 = smul.u32 7, 4
    %s1927 = smul.addr %s1926, 8
    %s1928 = scalar_lea.vmem [#allocation2], %s1927
    %v1929 = vld [vmem:[%s1928] sm:$0xff]
    %v1930 = vld [vmem:[%s1928 + $0x8] sm:$0xff]
    %v1931 = vld [vmem:[%s1928 + $0x10] sm:$0xff]
    %v1932 = vld [vmem:[%s1928 + $0x18] sm:$0xff]
    %v1933 = vld [vmem:[#allocation3] sm:$0xff]
    %1934 = vmatprep.subr.mxu0 %v459
    %1935 = vmatpush1.msra.mxu0 %v458
    %1936 = vmatprep.subr.mxu0 %v455
    %1937 = vmatpush1.msra.mxu0 %v454
    %1938 = vmatprep.subr.mxu0 %v451
    %1939 = vmatpush1.msra.mxu0 %v450
    %1940 = vmatprep.subr.mxu0 %v447
    %1941 = vmatpush1.msra.mxu0 %v446
    %1942 = vmatprep.subr.mxu0 %v443
    %1943 = vmatpush1.msra.mxu0 %v442
    %1944 = vmatprep.subr.mxu0 %v439
    %1945 = vmatpush1.msra.mxu0 %v438
    %1946 = vmatprep.subr.mxu0 %v435
    %1947 = vmatpush1.msra.mxu0 %v434
    %1948 = vmatprep.subr.mxu0 %v431
    %1949 = vmatpush1.msra.mxu0 %v430
    %1950 = vmatprep.subr.mxu0 %v427
    %1951 = vmatpush1.msra.mxu0 %v426
    %1952 = vmatprep.subr.mxu0 %v423
    %1953 = vmatpush1.msra.mxu0 %v422
    %1954 = vmatprep.subr.mxu0 %v419
    %1955 = vmatpush1.msra.mxu0 %v418
    %1956 = vmatprep.subr.mxu0 %v415
    %1957 = vmatpush1.msra.mxu0 %v414
    %1958 = vmatprep.subr.mxu0 %v411
    %1959 = vmatpush1.msra.mxu0 %v410
    %1960 = vmatprep.subr.mxu0 %v407
    %1961 = vmatpush1.msra.mxu0 %v406
    %1962 = vmatprep.subr.mxu0 %v403
    %1963 = vmatpush1.msra.mxu0 %v402
    %1964 = vmatprep.subr.mxu0 %v399
    %1965 = vmatpush1.msra.mxu0 %v398
    %1966 = vmatprep.subr.mxu0 0.0
    %1967 = vmatpush2.msra.mxu0 0.0
    %1968 = vmatprep.subr.mxu0 0.0
    %1969 = vmatpush2.msra.mxu0 0.0
    %1970 = vmatprep.subr.mxu0 0.0
    %1971 = vmatpush2.msra.mxu0 0.0
    %1972 = vmatprep.subr.mxu0 0.0
    %1973 = vmatpush2.msra.mxu0 0.0
    %1974 = vmatprep.subr.mxu0 0.0
    %1975 = vmatpush2.msra.mxu0 0.0
    %1976 = vmatprep.subr.mxu0 0.0
    %1977 = vmatpush2.msra.mxu0 0.0
    %1978 = vmatprep.subr.mxu0 0.0
    %1979 = vmatpush2.msra.mxu0 0.0
    %1980 = vmatprep.subr.mxu0 0.0
    %1981 = vmatpush2.msra.mxu0 0.0
    %1982 = vmatprep.subr.mxu0 0.0
    %1983 = vmatpush2.msra.mxu0 0.0
    %1984 = vmatprep.subr.mxu0 0.0
    %1985 = vmatpush2.msra.mxu0 0.0
    %1986 = vmatprep.subr.mxu0 0.0
    %1987 = vmatpush2.msra.mxu0 0.0
    %1988 = vmatprep.subr.mxu0 0.0
    %1989 = vmatpush2.msra.mxu0 0.0
    %1990 = vmatprep.subr.mxu0 0.0
    %1991 = vmatpush2.msra.mxu0 0.0
    %1992 = vmatprep.subr.mxu0 0.0
    %1993 = vmatpush2.msra.mxu0 0.0
    %1994 = vmatprep.subr.mxu0 0.0
    %1995 = vmatpush2.msra.mxu0 0.0
    %1996 = vmatprep.subr.mxu0 0.0
    %1997 = vmatpush2.msra.mxu0 0.0
    %1998 = vmatprep.mubr.f32.mxu0 0.0
    %1999 = vmatmul.mubr.f32.gmra.mxu0 %v1933
    %v2000 = vpop.f32.mrf.mxu0
    %v2001 = vadd.f32 0.0, %v2000
    %v2002 = vpop.f32.mrf.mxu0
    %v2003 = vadd.f32 0.0, %v2002
    %2004 = vdwg.mxu0
    %2005 = vmatprep.subr.mxu0 %v461
    %2006 = vmatpush1.msra.mxu0 %v460
    %2007 = vmatprep.subr.mxu0 %v457
    %2008 = vmatpush1.msra.mxu0 %v456
    %2009 = vmatprep.subr.mxu0 %v453
    %2010 = vmatpush1.msra.mxu0 %v452
    %2011 = vmatprep.subr.mxu0 %v449
    %2012 = vmatpush1.msra.mxu0 %v448
    %2013 = vmatprep.subr.mxu0 %v445
    %2014 = vmatpush1.msra.mxu0 %v444
    %2015 = vmatprep.subr.mxu0 %v441
    %2016 = vmatpush1.msra.mxu0 %v440
    %2017 = vmatprep.subr.mxu0 %v437
    %2018 = vmatpush1.msra.mxu0 %v436
    %2019 = vmatprep.subr.mxu0 %v433
    %2020 = vmatpush1.msra.mxu0 %v432
    %2021 = vmatprep.subr.mxu0 %v429
    %2022 = vmatpush1.msra.mxu0 %v428
    %2023 = vmatprep.subr.mxu0 %v425
    %2024 = vmatpush1.msra.mxu0 %v424
    %2025 = vmatprep.subr.mxu0 %v421
    %2026 = vmatpush1.msra.mxu0 %v420
    %2027 = vmatprep.subr.mxu0 %v417
    %2028 = vmatpush1.msra.mxu0 %v416
    %2029 = vmatprep.subr.mxu0 %v413
    %2030 = vmatpush1.msra.mxu0 %v412
    %2031 = vmatprep.subr.mxu0 %v409
    %2032 = vmatpush1.msra.mxu0 %v408
    %2033 = vmatprep.subr.mxu0 %v405
    %2034 = vmatpush1.msra.mxu0 %v404
    %2035 = vmatprep.subr.mxu0 %v401
    %2036 = vmatpush1.msra.mxu0 %v400
    %2037 = vmatprep.subr.mxu0 0.0
    %2038 = vmatpush2.msra.mxu0 0.0
    %2039 = vmatprep.subr.mxu0 0.0
    %2040 = vmatpush2.msra.mxu0 0.0
    %2041 = vmatprep.subr.mxu0 0.0
    %2042 = vmatpush2.msra.mxu0 0.0
    %2043 = vmatprep.subr.mxu0 0.0
    %2044 = vmatpush2.msra.mxu0 0.0
    %2045 = vmatprep.subr.mxu0 0.0
    %2046 = vmatpush2.msra.mxu0 0.0
    %2047 = vmatprep.subr.mxu0 0.0
    %2048 = vmatpush2.msra.mxu0 0.0
    %2049 = vmatprep.subr.mxu0 0.0
    %2050 = vmatpush2.msra.mxu0 0.0
    %2051 = vmatprep.subr.mxu0 0.0
    %2052 = vmatpush2.msra.mxu0 0.0
    %2053 = vmatprep.subr.mxu0 0.0
    %2054 = vmatpush2.msra.mxu0 0.0
    %2055 = vmatprep.subr.mxu0 0.0
    %2056 = vmatpush2.msra.mxu0 0.0
    %2057 = vmatprep.subr.mxu0 0.0
    %2058 = vmatpush2.msra.mxu0 0.0
    %2059 = vmatprep.subr.mxu0 0.0
    %2060 = vmatpush2.msra.mxu0 0.0
    %2061 = vmatprep.subr.mxu0 0.0
    %2062 = vmatpush2.msra.mxu0 0.0
    %2063 = vmatprep.subr.mxu0 0.0
    %2064 = vmatpush2.msra.mxu0 0.0
    %2065 = vmatprep.subr.mxu0 0.0
    %2066 = vmatpush2.msra.mxu0 0.0
    %2067 = vmatprep.subr.mxu0 0.0
    %2068 = vmatpush2.msra.mxu0 0.0
    %2069 = vmatprep.mubr.f32.mxu0 0.0
    %2070 = vmatmul.mubr.f32.gmra.mxu0 %v1933
    %v2071 = vpop.f32.mrf.mxu0
    %v2072 = vadd.f32 0.0, %v2071
    %v2073 = vpop.f32.mrf.mxu0
    %v2074 = vadd.f32 0.0, %v2073
    %2075 = vdwg.mxu0
    %v2076 = vadd.f32 %v1929, %v2001
    %v2077 = vadd.f32 %v1930, %v2003
    %v2078 = vadd.f32 %v1931, %v2072
    %v2079 = vadd.f32 %v1932, %v2074
    %v2080 = vmul.f32 %v2076, 0.5
    %v2081 = vtanh.pop %v2080
    %v2082 = vmul.f32 %v2081, 0.5
    %v2083 = vadd.f32 %v2082, 0.5
    %v2084 = vmul.f32 %v2077, 0.5
    %v2085 = vtanh.pop %v2084
    %v2086 = vmul.f32 %v2085, 0.5
    %v2087 = vadd.f32 %v2086, 0.5
    %v2088 = vtanh.pop %v2078
    %v2089 = vmul.f32 %v2079, 0.5
    %v2090 = vtanh.pop %v2089
    %v2091 = vmul.f32 %v2090, 0.5
    %v2092 = vadd.f32 %v2091, 0.5
    %v2093 = vld [vmem:[#allocation4] sm:$0xff]
    %v2094 = vmul.f32 %v2087, %v2093
    %v2095 = vmul.f32 %v2083, %v2088
    %v2096 = vadd.f32 %v2094, %v2095
    %v2097 = vtanh.pop %v2096
    %v2098 = vmul.f32 %v2092, %v2097
    %2099 = vst [vmem:[#allocation4] sm:$0xff] %v2096
    %2100 = vst [vmem:[#allocation3] sm:$0xff] %v2098
    %v2101 = vmul.f32 %v2098, %v643
    %2102 = vadd.xlane.f32.xlu0 %v2101
    %v2103 = vpop.xlane.xlu0 %2102
    %v2104 = vadd.f32 %v2103, %v652
    %v2105 = vld [vmem:[#allocation5] sm:$0xff]
    %v2106 = vmax.f32 %v2105, %v2104
    %v2107 = vsub.f32 %v2105, %v2106
    %v2108 = vmul.f32 %v2107, 1.442695
    %v2109 = vpow.pop %v2108
    %v2110 = vsub.f32 %v2104, %v2106
    %v2111 = vmul.f32 %v2110, 1.442695
    %v2112 = vpow.pop %v2111
    %v2113 = vld [vmem:[#allocation6] sm:$0xff]
    %v2114 = vmul.f32 %v2109, %v2113
    %v2115 = vadd.f32 %v2114, %v2112
    %2116 = vst.msk [vmem:[#allocation6] sm:$0xff] %vm666, %v2115
    %v2117 = vld [vmem:[#allocation7] sm:$0xff]
    %2119 = vset.pattern.permute.xlu0 0
    %2120 = vperm.xlu0 %2119, %v2109
    %v2121 = vpop.permute.xlu0 %2120
    %v2123 = vmul.f32 %v2121, %v2117
    %2125 = vset.pattern.permute.xlu0 0
    %2126 = vperm.xlu0 %2125, %v2112
    %v2127 = vpop.permute.xlu0 %2126
    %v2129 = vmul.f32 %v2127, %v2098
    %v2130 = vadd.f32 %v2123, %v2129
    %2131 = vst [vmem:[#allocation7] sm:$0xff] %v2130
    %2132 = vst.msk [vmem:[#allocation5] sm:$0xff] %vm666, %v2106
    // Predicated region
    $region42: #{tpu_custom_call.1} parent=1 // pred_check
      %p2133 = pneg %p67
    $region43: #{tpu_custom_call.1} parent=1 // pred_check_branch
      %2135 = sbr.rel (%p2133) target = $region45
    $region44: #{tpu_custom_call.1} parent=1 // pred_region
      %v2136 = vld [vmem:[#allocation6] sm:$0xff]
      %v2137 = vrcp.pop %v2136
      %v2138 = vld [vmem:[#allocation7] sm:$0xff]
      %2140 = vset.pattern.permute.xlu0 0
      %2141 = vperm.xlu0 %2140, %v2137
      %v2142 = vpop.permute.xlu0 %2141
      %v2144 = vmul.f32 %v2138, %v2142
      %2145 = vst [vmem:[#allocation15] sm:$0xff] %v2144
    $region45: #{tpu_custom_call.1} parent=1 // pred_fallthru
      _
    // Predicated region
    $region46: #{tpu_custom_call.1} parent=1 // pred_check
      _
    $region47: #{tpu_custom_call.1} parent=1 // pred_check_branch
      %2147 = sbr.rel (0) target = $region49
    $region48: #{tpu_custom_call.1} parent=1 // pred_region
      %s2149 = ssub.s32 128, 128
      %2150 = vsyncadd [#allocation11], %s2149
      %s2152 = sshll.u32 [#allocation15], 4
      %s2153 = int_to_ptr.vmem [resolvable:$true] %s2152
      %2155 = dma.vmem_to_hbm [thread:$0]  %s2153, 128, %s6, [#allocation11]
    $region49: #{tpu_custom_call.1} parent=1 // pred_fallthru
      _
    // Predicated region
    $region50: #{tpu_custom_call.1} parent=1 // pred_check
      _
    $region51: #{tpu_custom_call.1} parent=1 // pred_check_branch
      %2157 = sbr.rel (0) target = $region53
    $region52: #{tpu_custom_call.1} parent=1 // pred_region
      %2158 = dma.done [#allocation11], 128
    $region53: #{tpu_custom_call.1} parent=1 // pred_fallthru
      _
    %2159 = vsyncpa [#allocation10], 1
    %2160 = vsyncpa [#allocation13], 1
    %2161 = vsyncpa [#allocation11], 1

// kernel: tpu_custom_call.1
$region0: #{tpu_custom_call.1}
  #allocation0 [shape = 'u32[]', space=smem, size = 0x4, offset = 0x4, fixed_abs, tag = 'smem constant byte address 0x4 - core index']
  #allocation1 [shape = 'u32[144,128]{1,0:T(1,128)}', space=vmem, size = 0x12000, scoped, tag = 'internal scratch']
  #allocation2 [shape = 'f32[64,512]{1,0:T(8,128)}', space=vmem, size = 0x20000, scoped, tag = 'scratch operand']
  #allocation3 [shape = 'f32[8,128]{1,0:T(8,128)}', space=vmem, size = 0x1000, scoped, tag = 'scratch operand']
  #allocation4 [shape = 'f32[8,128]{1,0:T(8,128)}', space=vmem, size = 0x1000, scoped, tag = 'scratch operand']
  #allocation5 [shape = 'f32[8,1]{1,0:T(8,128)}', space=vmem, size = 0x1000, scoped, tag = 'scratch operand']
  #allocation6 [shape = 'f32[8,1]{1,0:T(8,128)}', space=vmem, size = 0x1000, scoped, tag = 'scratch operand']
  #allocation7 [shape = 'f32[8,128]{1,0:T(8,128)}', space=vmem, size = 0x1000, scoped, tag = 'scratch operand']
  #allocation8 [shape = 'f32[1,1]{1,0:T(1,128)S(1)}', space=vmem, size = 0x200, scoped, tag = 'scoped memory for tpu_custom_call.1']
  %s0 = inlined_call_operand.hbm [shape: f32[8,8,16], index: 0, kind: input, shape index: {}]
  %s1 = inlined_call_operand.hbm [shape: f32[16,512], index: 1, kind: input, shape index: {}]
  %s2 = inlined_call_operand.hbm [shape: f32[128,512], index: 2, kind: input, shape index: {}]
  %s3 = inlined_call_operand.vmem [shape: f32[1,512], index: 3, kind: input, shape index: {}]
  %s4 = inlined_call_operand.vmem [shape: f32[1,128], index: 4, kind: input, shape index: {}]
  %s5 = inlined_call_operand.<no memory space> [shape: f32[1,1], index: 5, kind: input, shape index: {}]
  %s6 = inlined_call_operand.hbm [shape: f32[8,128], index: 6, kind: output, shape index: {}]
  %s7 = sld [smem:[#allocation0]]
  $region54: #{tpu_custom_call.1} parent=0
    _
  %s9 = ssub.s32 1, %s7
  %s10 = scalar_select 0, %s9, %s7
  %v11 = vstv %s5
  %12 = vst [vmem:[#allocation8] sm:$0x1] %v11
  $region1: #{tpu_custom_call.1} parent=0
    #allocation9 [shape = 'u8[32768]{0}', space=vmem, size = 0x8000, scoped, tag = 'input window, operand 0, single buffered']
    #allocation10 [shape = 's32[1]{0}', space=sflag, size = 0x4, scoped, tag = 'scoped memory for tpu_custom_call.1']
    #allocation11 [shape = 's32[1]{0}', space=sflag, size = 0x4, scoped, tag = 'scoped memory for tpu_custom_call.1']
    #allocation12 [shape = 'u8[32768]{0}', space=vmem, size = 0x8000, scoped, tag = 'input window, operand 1, single buffered']
    #allocation13 [shape = 's32[1]{0}', space=sflag, size = 0x4, scoped, tag = 'scoped memory for tpu_custom_call.1']
    #allocation14 [shape = 'u8[262144]{0}', space=vmem, size = 0x40000, scoped, tag = 'input window, operand 2, single buffered']
    #allocation15 [shape = 'u8[4096]{0}', space=vmem, size = 0x1000, scoped, tag = 'output window, operand 0, single buffered']
    %13 = vsyncpa [#allocation10], 0
    %14 = vsyncpa [#allocation13], 0
    %15 = vsyncpa [#allocation11], 0
    // Predicated region
    $region2: #{tpu_custom_call.1} parent=1 // pred_check
      _
    $region3: #{tpu_custom_call.1} parent=1 // pred_check_branch
      %17 = sbr.rel (0) target = $region5
    $region4: #{tpu_custom_call.1} parent=1 // pred_region
      %s19 = ssub.s32 1024, 1024
      %20 = vsyncadd [#allocation10], %s19
      %s21 = sshll.u32 [#allocation9], 4
      %s22 = int_to_ptr.vmem [resolvable:$true] %s21
      %27 = dma.hbm_to_vmem [thread:$0]  %s0, 1024, %s22, [#allocation10], 128, 128, 8
    $region5: #{tpu_custom_call.1} parent=1 // pred_fallthru
      _
    // Predicated region
    $region6: #{tpu_custom_call.1} parent=1 // pred_check
      _
    $region7: #{tpu_custom_call.1} parent=1 // pred_check_branch
      %29 = sbr.rel (0) target = $region9
    $region8: #{tpu_custom_call.1} parent=1 // pred_region
      %s31 = ssub.s32 1024, 1024
      %32 = vsyncadd [#allocation13], %s31
      %s33 = sshll.u32 [#allocation12], 4
      %s34 = int_to_ptr.vmem [resolvable:$true] %s33
      %39 = dma.hbm_to_vmem [thread:$0]  %s1, 1024, %s34, [#allocation13], 512, 512, 32
    $region9: #{tpu_custom_call.1} parent=1 // pred_fallthru
      _
    // Predicated region
    $region10: #{tpu_custom_call.1} parent=1 // pred_check
      _
    $region11: #{tpu_custom_call.1} parent=1 // pred_check_branch
      %41 = sbr.rel (0) target = $region13
    $region12: #{tpu_custom_call.1} parent=1 // pred_region
      %s43 = ssub.s32 8192, 8192
      %44 = vsyncadd [#allocation13], %s43
      %s45 = sshll.u32 [#allocation14], 4
      %s46 = int_to_ptr.vmem [resolvable:$true] %s45
      %51 = dma.hbm_to_vmem [thread:$0]  %s2, 8192, %s46, [#allocation13], 512, 512, 32
    $region13: #{tpu_custom_call.1} parent=1 // pred_fallthru
      _
    // Predicated region
    $region14: #{tpu_custom_call.1} parent=1 // pred_check
      _
    $region15: #{tpu_custom_call.1} parent=1 // pred_check_branch
      %53 = sbr.rel (0) target = $region17
    $region16: #{tpu_custom_call.1} parent=1 // pred_region
      _
    $region17: #{tpu_custom_call.1} parent=1 // pred_fallthru
      _
    // Predicated region
    $region18: #{tpu_custom_call.1} parent=1 // pred_check
      _
    $region19: #{tpu_custom_call.1} parent=1 // pred_check_branch
      %55 = sbr.rel (0) target = $region21
    $region20: #{tpu_custom_call.1} parent=1 // pred_region
      _
    $region21: #{tpu_custom_call.1} parent=1 // pred_fallthru
      _
    // Predicated region
    $region22: #{tpu_custom_call.1} parent=1 // pred_check
      _
    $region23: #{tpu_custom_call.1} parent=1 // pred_check_branch
      %57 = sbr.rel (0) target = $region25
    $region24: #{tpu_custom_call.1} parent=1 // pred_region
      _
    $region25: #{tpu_custom_call.1} parent=1 // pred_fallthru
      _
    // Predicated region
    $region26: #{tpu_custom_call.1} parent=1 // pred_check
      _
    $region27: #{tpu_custom_call.1} parent=1 // pred_check_branch
      %59 = sbr.rel (0) target = $region29
    $region28: #{tpu_custom_call.1} parent=1 // pred_region
      %60 = dma.done [#allocation10], 1024
    $region29: #{tpu_custom_call.1} parent=1 // pred_fallthru
      _
    // Predicated region
    $region30: #{tpu_custom_call.1} parent=1 // pred_check
      _
    $region31: #{tpu_custom_call.1} parent=1 // pred_check_branch
      %62 = sbr.rel (0) target = $region33
    $region32: #{tpu_custom_call.1} parent=1 // pred_region
      %63 = dma.done [#allocation13], 1024
    $region33: #{tpu_custom_call.1} parent=1 // pred_fallthru
      _
    // Predicated region
    $region34: #{tpu_custom_call.1} parent=1 // pred_check
      _
    $region35: #{tpu_custom_call.1} parent=1 // pred_check_branch
      %65 = sbr.rel (0) target = $region37
    $region36: #{tpu_custom_call.1} parent=1 // pred_region
      %66 = dma.done [#allocation13], 8192
    $region37: #{tpu_custom_call.1} parent=1 // pred_fallthru
      _
    %p67 = scmp.eq.s32.totalorder 0, 0
    // Predicated region
    $region38: #{tpu_custom_call.1} parent=1 // pred_check
      %p68 = pneg %p67
    $region39: #{tpu_custom_call.1} parent=1 // pred_check_branch
      %70 = sbr.rel (%p68) target = $region41
    $region40: #{tpu_custom_call.1} parent=1 // pred_region
      %71 = vst [vmem:[#allocation3] sm:$0xff] 0.0
      %72 = vst [vmem:[#allocation4] sm:$0xff] 0.0
      %73 = vst [vmem:[#allocation7] sm:$0xff] 0.0
      %vm74 = vcmask 7168
      %75 = vst.msk [vmem:[#allocation6] sm:$0xff] %vm74, 0.0
      %76 = vst.msk [vmem:[#allocation5] sm:$0xff] %vm74, -1e+30
    $region41: #{tpu_custom_call.1} parent=1 // pred_fallthru
      _
    %v77 = vld [vmem:[#allocation9] sm:$0xff]
    %v78 = vld [vmem:[#allocation9 + $0x8] sm:$0xff]
    %v79 = vld [vmem:[#allocation9 + $0x10] sm:$0xff]
    %v80 = vld [vmem:[#allocation9 + $0x18] sm:$0xff]
    %v81 = vld [vmem:[#allocation9 + $0x20] sm:$0xff]
    %v82 = vld [vmem:[#allocation9 + $0x28] sm:$0xff]
    %v83 = vld [vmem:[#allocation9 + $0x30] sm:$0xff]
    %v84 = vld [vmem:[#allocation9 + $0x38] sm:$0xff]
    %v85 = vld [vmem:[#allocation12] sm:$0xff]
    %v86 = vld [vmem:[#allocation12 + $0x8] sm:$0xff]
    %v87 = vld [vmem:[#allocation12 + $0x10] sm:$0xff]
    %v88 = vld [vmem:[#allocation12 + $0x18] sm:$0xff]
    %v89 = vld [vmem:[#allocation12 + $0x20] sm:$0xff]
    %v90 = vld [vmem:[#allocation12 + $0x28] sm:$0xff]
    %v91 = vld [vmem:[#allocation12 + $0x30] sm:$0xff]
    %v92 = vld [vmem:[#allocation12 + $0x38] sm:$0xff]
    %v93 = vld [vmem:[%s3] sm:$0xf]
    %v95 = vlaneseq
    %v96 = vshrl.u32 %v95, 7
    %v97 = vsub.s32 0, %v96
    %v98 = vrot.slane %v93, %v97
    %v99 = vlaneseq
    %v100 = vshrl.u32 %v99, 7
    %v101 = vsub.s32 1, %v100
    %v102 = vrot.slane %v93, %v101
    %v103 = vlaneseq
    %v104 = vshrl.u32 %v103, 7
    %v105 = vsub.s32 2, %v104
    %v106 = vrot.slane %v93, %v105
    %v107 = vlaneseq
    %v108 = vshrl.u32 %v107, 7
    %v109 = vsub.s32 3, %v108
    %v110 = vrot.slane %v93, %v109
    %vm115 = vcmask 130048
    %v117 = vsel %vm115, %v77, 0
    %v120 = vsel %vm115, %v78, 0
    %v123 = vsel %vm115, %v79, 0
    %v126 = vsel %vm115, %v80, 0
    %v129 = vsel %vm115, %v81, 0
    %v132 = vsel %vm115, %v82, 0
    %v135 = vsel %vm115, %v83, 0
    %v138 = vsel %vm115, %v84, 0
    %140 = vmatprep.subr.mxu0 0.0
    %141 = vmatpush1.msra.mxu0 0.0
    %142 = vmatprep.subr.mxu0 0.0
    %143 = vmatpush1.msra.mxu0 0.0
    %144 = vmatprep.subr.mxu0 0.0
    %145 = vmatpush1.msra.mxu0 0.0
    %146 = vmatprep.subr.mxu0 0.0
    %147 = vmatpush1.msra.mxu0 0.0
    %148 = vmatprep.subr.mxu0 0.0
    %149 = vmatpush1.msra.mxu0 0.0
    %150 = vmatprep.subr.mxu0 0.0
    %151 = vmatpush1.msra.mxu0 0.0
    %152 = vmatprep.subr.mxu0 0.0
    %153 = vmatpush1.msra.mxu0 0.0
    %154 = vmatprep.subr.mxu0 0.0
    %155 = vmatpush1.msra.mxu0 0.0
    %156 = vmatprep.subr.mxu0 0.0
    %157 = vmatpush1.msra.mxu0 0.0
    %158 = vmatprep.subr.mxu0 0.0
    %159 = vmatpush1.msra.mxu0 0.0
    %160 = vmatprep.subr.mxu0 0.0
    %161 = vmatpush1.msra.mxu0 0.0
    %162 = vmatprep.subr.mxu0 0.0
    %163 = vmatpush1.msra.mxu0 0.0
    %164 = vmatprep.subr.mxu0 0.0
    %165 = vmatpush1.msra.mxu0 0.0
    %166 = vmatprep.subr.mxu0 0.0
    %167 = vmatpush1.msra.mxu0 0.0
    %168 = vmatprep.subr.mxu0 %v90
    %169 = vmatpush1.msra.mxu0 %v89
    %170 = vmatprep.subr.mxu0 %v86
    %171 = vmatpush1.msra.mxu0 %v85
    %172 = vmatprep.subr.mxu0 0.0
    %173 = vmatpush2.msra.mxu0 0.0
    %174 = vmatprep.subr.mxu0 0.0
    %175 = vmatpush2.msra.mxu0 0.0
    %176 = vmatprep.subr.mxu0 0.0
    %177 = vmatpush2.msra.mxu0 0.0
    %178 = vmatprep.subr.mxu0 0.0
    %179 = vmatpush2.msra.mxu0 0.0
    %180 = vmatprep.subr.mxu0 0.0
    %181 = vmatpush2.msra.mxu0 0.0
    %182 = vmatprep.subr.mxu0 0.0
    %183 = vmatpush2.msra.mxu0 0.0
    %184 = vmatprep.subr.mxu0 0.0
    %185 = vmatpush2.msra.mxu0 0.0
    %186 = vmatprep.subr.mxu0 0.0
    %187 = vmatpush2.msra.mxu0 0.0
    %188 = vmatprep.subr.mxu0 0.0
    %189 = vmatpush2.msra.mxu0 0.0
    %190 = vmatprep.subr.mxu0 0.0
    %191 = vmatpush2.msra.mxu0 0.0
    %192 = vmatprep.subr.mxu0 0.0
    %193 = vmatpush2.msra.mxu0 0.0
    %194 = vmatprep.subr.mxu0 0.0
    %195 = vmatpush2.msra.mxu0 0.0
    %196 = vmatprep.subr.mxu0 0.0
    %197 = vmatpush2.msra.mxu0 0.0
    %198 = vmatprep.subr.mxu0 0.0
    %199 = vmatpush2.msra.mxu0 0.0
    %200 = vmatprep.subr.mxu0 0.0
    %201 = vmatpush2.msra.mxu0 0.0
    %202 = vmatprep.subr.mxu0 0.0
    %203 = vmatpush2.msra.mxu0 0.0
    %204 = vmatprep.mubr.f32.mxu0 0.0
    %205 = vmatmul.mubr.f32.gmra.mxu0 %v117
    %v206 = vpop.f32.mrf.mxu0
    %v207 = vadd.f32 %v98, %v206
    %v208 = vpop.f32.mrf.mxu0
    %v209 = vadd.f32 %v102, %v208
    %210 = vmatprep.mubr.f32.mxu0 0.0
    %211 = vmatmul.mubr.f32.gmra.mxu0 %v120
    %v212 = vpop.f32.mrf.mxu0
    %v213 = vadd.f32 %v98, %v212
    %v214 = vpop.f32.mrf.mxu0
    %v215 = vadd.f32 %v102, %v214
    %216 = vmatprep.mubr.f32.mxu0 0.0
    %217 = vmatmul.mubr.f32.gmra.mxu0 %v123
    %v218 = vpop.f32.mrf.mxu0
    %v219 = vadd.f32 %v98, %v218
    %v220 = vpop.f32.mrf.mxu0
    %v221 = vadd.f32 %v102, %v220
    %222 = vmatprep.mubr.f32.mxu0 0.0
    %223 = vmatmul.mubr.f32.gmra.mxu0 %v126
    %v224 = vpop.f32.mrf.mxu0
    %v225 = vadd.f32 %v98, %v224
    %v226 = vpop.f32.mrf.mxu0
    %v227 = vadd.f32 %v102, %v226
    %228 = vmatprep.mubr.f32.mxu0 0.0
    %229 = vmatmul.mubr.f32.gmra.mxu0 %v129
    %v230 = vpop.f32.mrf.mxu0
    %v231 = vadd.f32 %v98, %v230
    %v232 = vpop.f32.mrf.mxu0
    %v233 = vadd.f32 %v102, %v232
    %234 = vmatprep.mubr.f32.mxu0 0.0
    %235 = vmatmul.mubr.f32.gmra.mxu0 %v132
    %v236 = vpop.f32.mrf.mxu0
    %v237 = vadd.f32 %v98, %v236
    %v238 = vpop.f32.mrf.mxu0
    %v239 = vadd.f32 %v102, %v238
    %240 = vmatprep.mubr.f32.mxu0 0.0
    %241 = vmatmul.mubr.f32.gmra.mxu0 %v135
    %v242 = vpop.f32.mrf.mxu0
    %v243 = vadd.f32 %v98, %v242
    %v244 = vpop.f32.mrf.mxu0
    %v245 = vadd.f32 %v102, %v244
    %246 = vmatprep.mubr.f32.mxu0 0.0
    %247 = vmatmul.mubr.f32.gmra.mxu0 %v138
    %v248 = vpop.f32.mrf.mxu0
    %v249 = vadd.f32 %v98, %v248
    %v250 = vpop.f32.mrf.mxu0
    %v251 = vadd.f32 %v102, %v250
    %252 = vdwg.mxu0
    %253 = vmatprep.subr.mxu0 0.0
    %254 = vmatpush1.msra.mxu0 0.0
    %255 = vmatprep.subr.mxu0 0.0
    %256 = vmatpush1.msra.mxu0 0.0
    %257 = vmatprep.subr.mxu0 0.0
    %258 = vmatpush1.msra.mxu0 0.0
    %259 = vmatprep.subr.mxu0 0.0
    %260 = vmatpush1.msra.mxu0 0.0
    %261 = vmatprep.subr.mxu0 0.0
    %262 = vmatpush1.msra.mxu0 0.0
    %263 = vmatprep.subr.mxu0 0.0
    %264 = vmatpush1.msra.mxu0 0.0
    %265 = vmatprep.subr.mxu0 0.0
    %266 = vmatpush1.msra.mxu0 0.0
    %267 = vmatprep.subr.mxu0 0.0
    %268 = vmatpush1.msra.mxu0 0.0
    %269 = vmatprep.subr.mxu0 0.0
    %270 = vmatpush1.msra.mxu0 0.0
    %271 = vmatprep.subr.mxu0 0.0
    %272 = vmatpush1.msra.mxu0 0.0
    %273 = vmatprep.subr.mxu0 0.0
    %274 = vmatpush1.msra.mxu0 0.0
    %275 = vmatprep.subr.mxu0 0.0
    %276 = vmatpush1.msra.mxu0 0.0
    %277 = vmatprep.subr.mxu0 0.0
    %278 = vmatpush1.msra.mxu0 0.0
    %279 = vmatprep.subr.mxu0 0.0
    %280 = vmatpush1.msra.mxu0 0.0
    %281 = vmatprep.subr.mxu0 %v92
    %282 = vmatpush1.msra.mxu0 %v91
    %283 = vmatprep.subr.mxu0 %v88
    %284 = vmatpush1.msra.mxu0 %v87
    %285 = vmatprep.subr.mxu0 0.0
    %286 = vmatpush2.msra.mxu0 0.0
    %287 = vmatprep.subr.mxu0 0.0
    %288 = vmatpush2.msra.mxu0 0.0
    %289 = vmatprep.subr.mxu0 0.0
    %290 = vmatpush2.msra.mxu0 0.0
    %291 = vmatprep.subr.mxu0 0.0
    %292 = vmatpush2.msra.mxu0 0.0
    %293 = vmatprep.subr.mxu0 0.0
    %294 = vmatpush2.msra.mxu0 0.0
    %295 = vmatprep.subr.mxu0 0.0
    %296 = vmatpush2.msra.mxu0 0.0
    %297 = vmatprep.subr.mxu0 0.0
    %298 = vmatpush2.msra.mxu0 0.0
    %299 = vmatprep.subr.mxu0 0.0
    %300 = vmatpush2.msra.mxu0 0.0
    %301 = vmatprep.subr.mxu0 0.0
    %302 = vmatpush2.msra.mxu0 0.0
    %303 = vmatprep.subr.mxu0 0.0
    %304 = vmatpush2.msra.mxu0 0.0
    %305 = vmatprep.subr.mxu0 0.0
    %306 = vmatpush2.msra.mxu0 0.0
    %307 = vmatprep.subr.mxu0 0.0
    %308 = vmatpush2.msra.mxu0 0.0
    %309 = vmatprep.subr.mxu0 0.0
    %310 = vmatpush2.msra.mxu0 0.0
    %311 = vmatprep.subr.mxu0 0.0
    %312 = vmatpush2.msra.mxu0 0.0
    %313 = vmatprep.subr.mxu0 0.0
    %314 = vmatpush2.msra.mxu0 0.0
    %315 = vmatprep.subr.mxu0 0.0
    %316 = vmatpush2.msra.mxu0 0.0
    %317 = vmatprep.mubr.f32.mxu0 0.0
    %318 = vmatmul.mubr.f32.gmra.mxu0 %v117
    %v319 = vpop.f32.mrf.mxu0
    %v320 = vadd.f32 %v106, %v319
    %v321 = vpop.f32.mrf.mxu0
    %v322 = vadd.f32 %v110, %v321
    %323 = vmatprep.mubr.f32.mxu0 0.0
    %324 = vmatmul.mubr.f32.gmra.mxu0 %v120
    %v325 = vpop.f32.mrf.mxu0
    %v326 = vadd.f32 %v106, %v325
    %v327 = vpop.f32.mrf.mxu0
    %v328 = vadd.f32 %v110, %v327
    %329 = vmatprep.mubr.f32.mxu0 0.0
    %330 = vmatmul.mubr.f32.gmra.mxu0 %v123
    %v331 = vpop.f32.mrf.mxu0
    %v332 = vadd.f32 %v106, %v331
    %v333 = vpop.f32.mrf.mxu0
    %v334 = vadd.f32 %v110, %v333
    %335 = vmatprep.mubr.f32.mxu0 0.0
    %336 = vmatmul.mubr.f32.gmra.mxu0 %v126
    %v337 = vpop.f32.mrf.mxu0
    %v338 = vadd.f32 %v106, %v337
    %v339 = vpop.f32.mrf.mxu0
    %v340 = vadd.f32 %v110, %v339
    %341 = vmatprep.mubr.f32.mxu0 0.0
    %342 = vmatmul.mubr.f32.gmra.mxu0 %v129
    %v343 = vpop.f32.mrf.mxu0
    %v344 = vadd.f32 %v106, %v343
    %v345 = vpop.f32.mrf.mxu0
    %v346 = vadd.f32 %v110, %v345
    %347 = vmatprep.mubr.f32.mxu0 0.0
    %348 = vmatmul.mubr.f32.gmra.mxu0 %v132
    %v349 = vpop.f32.mrf.mxu0
    %v350 = vadd.f32 %v106, %v349
    %v351 = vpop.f32.mrf.mxu0
    %v352 = vadd.f32 %v110, %v351
    %353 = vmatprep.mubr.f32.mxu0 0.0
    %354 = vmatmul.mubr.f32.gmra.mxu0 %v135
    %v355 = vpop.f32.mrf.mxu0
    %v356 = vadd.f32 %v106, %v355
    %v357 = vpop.f32.mrf.mxu0
    %v358 = vadd.f32 %v110, %v357
    %359 = vmatprep.mubr.f32.mxu0 0.0
    %360 = vmatmul.mubr.f32.gmra.mxu0 %v138
    %v361 = vpop.f32.mrf.mxu0
    %v362 = vadd.f32 %v106, %v361
    %v363 = vpop.f32.mrf.mxu0
    %v364 = vadd.f32 %v110, %v363
    %365 = vdwg.mxu0
    %366 = vst [vmem:[#allocation2] sm:$0xff] %v207
    %367 = vst [vmem:[#allocation2 + $0x8] sm:$0xff] %v209
    %368 = vst [vmem:[#allocation2 + $0x10] sm:$0xff] %v320
    %369 = vst [vmem:[#allocation2 + $0x18] sm:$0xff] %v322
    %370 = vst [vmem:[#allocation2 + $0x20] sm:$0xff] %v213
    %371 = vst [vmem:[#allocation2 + $0x28] sm:$0xff] %v215
    %372 = vst [vmem:[#allocation2 + $0x30] sm:$0xff] %v326
    %373 = vst [vmem:[#allocation2 + $0x38] sm:$0xff] %v328
    %374 = vst [vmem:[#allocation2 + $0x40] sm:$0xff] %v219
    %375 = vst [vmem:[#allocation2 + $0x48] sm:$0xff] %v221
    %376 = vst [vmem:[#allocation2 + $0x50] sm:$0xff] %v332
    %377 = vst [vmem:[#allocation2 + $0x58] sm:$0xff] %v334
    %378 = vst [vmem:[#allocation2 + $0x60] sm:$0xff] %v225
    %379 = vst [vmem:[#allocation2 + $0x68] sm:$0xff] %v227
    %380 = vst [vmem:[#allocation2 + $0x70] sm:$0xff] %v338
    %381 = vst [vmem:[#allocation2 + $0x78] sm:$0xff] %v340
    %382 = vst [vmem:[#allocation2 + $0x80] sm:$0xff] %v231
    %383 = vst [vmem:[#allocation2 + $0x88] sm:$0xff] %v233
    %384 = vst [vmem:[#allocation2 + $0x90] sm:$0xff] %v344
    %385 = vst [vmem:[#allocation2 + $0x98] sm:$0xff] %v346
    %386 = vst [vmem:[#allocation2 + $0xa0] sm:$0xff] %v237
    %387 = vst [vmem:[#allocation2 + $0xa8] sm:$0xff] %v239
    %388 = vst [vmem:[#allocation2 + $0xb0] sm:$0xff] %v350
    %389 = vst [vmem:[#allocation2 + $0xb8] sm:$0xff] %v352
    %390 = vst [vmem:[#allocation2 + $0xc0] sm:$0xff] %v243
    %391 = vst [vmem:[#allocation2 + $0xc8] sm:$0xff] %v245
    %392 = vst [vmem:[#allocation2 + $0xd0] sm:$0xff] %v356
    %393 = vst [vmem:[#allocation2 + $0xd8] sm:$0xff] %v358
    %394 = vst [vmem:[#allocation2 + $0xe0] sm:$0xff] %v249
    %395 = vst [vmem:[#allocation2 + $0xe8] sm:$0xff] %v251
    %396 = vst [vmem:[#allocation2 + $0xf0] sm:$0xff] %v362
    %397 = vst [vmem:[#allocation2 + $0xf8] sm:$0xff] %v364
    %v398 = vld [vmem:[#allocation14] sm:$0xff]
    %v399 = vld [vmem:[#allocation14 + $0x8] sm:$0xff]
    %v400 = vld [vmem:[#allocation14 + $0x10] sm:$0xff]
    %v401 = vld [vmem:[#allocation14 + $0x18] sm:$0xff]
    %v402 = vld [vmem:[#allocation14 + $0x20] sm:$0xff]
    %v403 = vld [vmem:[#allocation14 + $0x28] sm:$0xff]
    %v404 = vld [vmem:[#allocation14 + $0x30] sm:$0xff]
    %v405 = vld [vmem:[#allocation14 + $0x38] sm:$0xff]
    %v406 = vld [vmem:[#allocation14 + $0x40] sm:$0xff]
    %v407 = vld [vmem:[#allocation14 + $0x48] sm:$0xff]
    %v408 = vld [vmem:[#allocation14 + $0x50] sm:$0xff]
    %v409 = vld [vmem:[#allocation14 + $0x58] sm:$0xff]
    %v410 = vld [vmem:[#allocation14 + $0x60] sm:$0xff]
    %v411 = vld [vmem:[#allocation14 + $0x68] sm:$0xff]
    %v412 = vld [vmem:[#allocation14 + $0x70] sm:$0xff]
    %v413 = vld [vmem:[#allocation14 + $0x78] sm:$0xff]
    %v414 = vld [vmem:[#allocation14 + $0x80] sm:$0xff]
    %v415 = vld [vmem:[#allocation14 + $0x88] sm:$0xff]
    %v416 = vld [vmem:[#allocation14 + $0x90] sm:$0xff]
    %v417 = vld [vmem:[#allocation14 + $0x98] sm:$0xff]
    %v418 = vld [vmem:[#allocation14 + $0xa0] sm:$0xff]
    %v419 = vld [vmem:[#allocation14 + $0xa8] sm:$0xff]
    %v420 = vld [vmem:[#allocation14 + $0xb0] sm:$0xff]
    %v421 = vld [vmem:[#allocation14 + $0xb8] sm:$0xff]
    %v422 = vld [vmem:[#allocation14 + $0xc0] sm:$0xff]
    %v423 = vld [vmem:[#allocation14 + $0xc8] sm:$0xff]
    %v424 = vld [vmem:[#allocation14 + $0xd0] sm:$0xff]
    %v425 = vld [vmem:[#allocation14 + $0xd8] sm:$0xff]
    %v426 = vld [vmem:[#allocation14 + $0xe0] sm:$0xff]
    %v427 = vld [vmem:[#allocation14 + $0xe8] sm:$0xff]
    %v428 = vld [vmem:[#allocation14 + $0xf0] sm:$0xff]
    %v429 = vld [vmem:[#allocation14 + $0xf8] sm:$0xff]
    %v430 = vld [vmem:[#allocation14 + $0x100] sm:$0xff]
    %v431 = vld [vmem:[#allocation14 + $0x108] sm:$0xff]
    %v432 = vld [vmem:[#allocation14 + $0x110] sm:$0xff]
    %v433 = vld [vmem:[#allocation14 + $0x118] sm:$0xff]
    %v434 = vld [vmem:[#allocation14 + $0x120] sm:$0xff]
    %v435 = vld [vmem:[#allocation14 + $0x128] sm:$0xff]
    %v436 = vld [vmem:[#allocation14 + $0x130] sm:$0xff]
    %v437 = vld [vmem:[#allocation14 + $0x138] sm:$0xff]
    %v438 = vld [vmem:[#allocation14 + $0x140] sm:$0xff]
    %v439 = vld [vmem:[#allocation14 + $0x148] sm:$0xff]
    %v440 = vld [vmem:[#allocation14 + $0x150] sm:$0xff]
    %v441 = vld [vmem:[#allocation14 + $0x158] sm:$0xff]
    %v442 = vld [vmem:[#allocation14 + $0x160] sm:$0xff]
    %v443 = vld [vmem:[#allocation14 + $0x168] sm:$0xff]
    %v444 = vld [vmem:[#allocation14 + $0x170] sm:$0xff]
    %v445 = vld [vmem:[#allocation14 + $0x178] sm:$0xff]
    %v446 = vld [vmem:[#allocation14 + $0x180] sm:$0xff]
    %v447 = vld [vmem:[#allocation14 + $0x188] sm:$0xff]
    %v448 = vld [vmem:[#allocation14 + $0x190] sm:$0xff]
    %v449 = vld [vmem:[#allocation14 + $0x198] sm:$0xff]
    %v450 = vld [vmem:[#allocation14 + $0x1a0] sm:$0xff]
    %v451 = vld [vmem:[#allocation14 + $0x1a8] sm:$0xff]
    %v452 = vld [vmem:[#allocation14 + $0x1b0] sm:$0xff]
    %v453 = vld [vmem:[#allocation14 + $0x1b8] sm:$0xff]
    %v454 = vld [vmem:[#allocation14 + $0x1c0] sm:$0xff]
    %v455 = vld [vmem:[#allocation14 + $0x1c8] sm:$0xff]
    %v456 = vld [vmem:[#allocation14 + $0x1d0] sm:$0xff]
    %v457 = vld [vmem:[#allocation14 + $0x1d8] sm:$0xff]
    %v458 = vld [vmem:[#allocation14 + $0x1e0] sm:$0xff]
    %v459 = vld [vmem:[#allocation14 + $0x1e8] sm:$0xff]
    %v460 = vld [vmem:[#allocation14 + $0x1f0] sm:$0xff]
    %v461 = vld [vmem:[#allocation14 + $0x1f8] sm:$0xff]
    %v462 = vld [vmem:[%s4] sm:$0x1]
    %v463 = vld [vmem:[#allocation8] sm:$0x1]
    %s464 = smul.u32 0, 4
    %s465 = smul.addr %s464, 8
    %s466 = scalar_lea.vmem [#allocation2], %s465
    %v467 = vld [vmem:[%s466] sm:$0xff]
    %v468 = vld [vmem:[%s466 + $0x8] sm:$0xff]
    %v469 = vld [vmem:[%s466 + $0x10] sm:$0xff]
    %v470 = vld [vmem:[%s466 + $0x18] sm:$0xff]
    %v471 = vld [vmem:[#allocation3] sm:$0xff]
    %472 = vmatprep.subr.mxu0 %v459
    %473 = vmatpush1.msra.mxu0 %v458
    %474 = vmatprep.subr.mxu0 %v455
    %475 = vmatpush1.msra.mxu0 %v454
    %476 = vmatprep.subr.mxu0 %v451
    %477 = vmatpush1.msra.mxu0 %v450
    %478 = vmatprep.subr.mxu0 %v447
    %479 = vmatpush1.msra.mxu0 %v446
    %480 = vmatprep.subr.mxu0 %v443
    %481 = vmatpush1.msra.mxu0 %v442
    %482 = vmatprep.subr.mxu0 %v439
    %483 = vmatpush1.msra.mxu0 %v438
    %484 = vmatprep.subr.mxu0 %v435
    %485 = vmatpush1.msra.mxu0 %v434
    %486 = vmatprep.subr.mxu0 %v431
    %487 = vmatpush1.msra.mxu0 %v430
    %488 = vmatprep.subr.mxu0 %v427
    %489 = vmatpush1.msra.mxu0 %v426
    %490 = vmatprep.subr.mxu0 %v423
    %491 = vmatpush1.msra.mxu0 %v422
    %492 = vmatprep.subr.mxu0 %v419
    %493 = vmatpush1.msra.mxu0 %v418
    %494 = vmatprep.subr.mxu0 %v415
    %495 = vmatpush1.msra.mxu0 %v414
    %496 = vmatprep.subr.mxu0 %v411
    %497 = vmatpush1.msra.mxu0 %v410
    %498 = vmatprep.subr.mxu0 %v407
    %499 = vmatpush1.msra.mxu0 %v406
    %500 = vmatprep.subr.mxu0 %v403
    %501 = vmatpush1.msra.mxu0 %v402
    %502 = vmatprep.subr.mxu0 %v399
    %503 = vmatpush1.msra.mxu0 %v398
    %504 = vmatprep.subr.mxu0 0.0
    %505 = vmatpush2.msra.mxu0 0.0
    %506 = vmatprep.subr.mxu0 0.0
    %507 = vmatpush2.msra.mxu0 0.0
    %508 = vmatprep.subr.mxu0 0.0
    %509 = vmatpush2.msra.mxu0 0.0
    %510 = vmatprep.subr.mxu0 0.0
    %511 = vmatpush2.msra.mxu0 0.0
    %512 = vmatprep.subr.mxu0 0.0
    %513 = vmatpush2.msra.mxu0 0.0
    %514 = vmatprep.subr.mxu0 0.0
    %515 = vmatpush2.msra.mxu0 0.0
    %516 = vmatprep.subr.mxu0 0.0
    %517 = vmatpush2.msra.mxu0 0.0
    %518 = vmatprep.subr.mxu0 0.0
    %519 = vmatpush2.msra.mxu0 0.0
    %520 = vmatprep.subr.mxu0 0.0
    %521 = vmatpush2.msra.mxu0 0.0
    %522 = vmatprep.subr.mxu0 0.0
    %523 = vmatpush2.msra.mxu0 0.0
    %524 = vmatprep.subr.mxu0 0.0
    %525 = vmatpush2.msra.mxu0 0.0
    %526 = vmatprep.subr.mxu0 0.0
    %527 = vmatpush2.msra.mxu0 0.0
    %528 = vmatprep.subr.mxu0 0.0
    %529 = vmatpush2.msra.mxu0 0.0
    %530 = vmatprep.subr.mxu0 0.0
    %531 = vmatpush2.msra.mxu0 0.0
    %532 = vmatprep.subr.mxu0 0.0
    %533 = vmatpush2.msra.mxu0 0.0
    %534 = vmatprep.subr.mxu0 0.0
    %535 = vmatpush2.msra.mxu0 0.0
    %536 = vmatprep.mubr.f32.mxu0 0.0
    %537 = vmatmul.mubr.f32.gmra.mxu0 %v471
    %v538 = vpop.f32.mrf.mxu0
    %v539 = vadd.f32 0.0, %v538
    %v540 = vpop.f32.mrf.mxu0
    %v541 = vadd.f32 0.0, %v540
    %542 = vdwg.mxu0
    %543 = vmatprep.subr.mxu0 %v461
    %544 = vmatpush1.msra.mxu0 %v460
    %545 = vmatprep.subr.mxu0 %v457
    %546 = vmatpush1.msra.mxu0 %v456
    %547 = vmatprep.subr.mxu0 %v453
    %548 = vmatpush1.msra.mxu0 %v452
    %549 = vmatprep.subr.mxu0 %v449
    %550 = vmatpush1.msra.mxu0 %v448
    %551 = vmatprep.subr.mxu0 %v445
    %552 = vmatpush1.msra.mxu0 %v444
    %553 = vmatprep.subr.mxu0 %v441
    %554 = vmatpush1.msra.mxu0 %v440
    %555 = vmatprep.subr.mxu0 %v437
    %556 = vmatpush1.msra.mxu0 %v436
    %557 = vmatprep.subr.mxu0 %v433
    %558 = vmatpush1.msra.mxu0 %v432
    %559 = vmatprep.subr.mxu0 %v429
    %560 = vmatpush1.msra.mxu0 %v428
    %561 = vmatprep.subr.mxu0 %v425
    %562 = vmatpush1.msra.mxu0 %v424
    %563 = vmatprep.subr.mxu0 %v421
    %564 = vmatpush1.msra.mxu0 %v420
    %565 = vmatprep.subr.mxu0 %v417
    %566 = vmatpush1.msra.mxu0 %v416
    %567 = vmatprep.subr.mxu0 %v413
    %568 = vmatpush1.msra.mxu0 %v412
    %569 = vmatprep.subr.mxu0 %v409
    %570 = vmatpush1.msra.mxu0 %v408
    %571 = vmatprep.subr.mxu0 %v405
    %572 = vmatpush1.msra.mxu0 %v404
    %573 = vmatprep.subr.mxu0 %v401
    %574 = vmatpush1.msra.mxu0 %v400
    %575 = vmatprep.subr.mxu0 0.0
    %576 = vmatpush2.msra.mxu0 0.0
    %577 = vmatprep.subr.mxu0 0.0
    %578 = vmatpush2.msra.mxu0 0.0
    %579 = vmatprep.subr.mxu0 0.0
    %580 = vmatpush2.msra.mxu0 0.0
    %581 = vmatprep.subr.mxu0 0.0
    %582 = vmatpush2.msra.mxu0 0.0
    %583 = vmatprep.subr.mxu0 0.0
    %584 = vmatpush2.msra.mxu0 0.0
    %585 = vmatprep.subr.mxu0 0.0
    %586 = vmatpush2.msra.mxu0 0.0
    %587 = vmatprep.subr.mxu0 0.0
    %588 = vmatpush2.msra.mxu0 0.0
    %589 = vmatprep.subr.mxu0 0.0
    %590 = vmatpush2.msra.mxu0 0.0
    %591 = vmatprep.subr.mxu0 0.0
    %592 = vmatpush2.msra.mxu0 0.0
    %593 = vmatprep.subr.mxu0 0.0
    %594 = vmatpush2.msra.mxu0 0.0
    %595 = vmatprep.subr.mxu0 0.0
    %596 = vmatpush2.msra.mxu0 0.0
    %597 = vmatprep.subr.mxu0 0.0
    %598 = vmatpush2.msra.mxu0 0.0
    %599 = vmatprep.subr.mxu0 0.0
    %600 = vmatpush2.msra.mxu0 0.0
    %601 = vmatprep.subr.mxu0 0.0
    %602 = vmatpush2.msra.mxu0 0.0
    %603 = vmatprep.subr.mxu0 0.0
    %604 = vmatpush2.msra.mxu0 0.0
    %605 = vmatprep.subr.mxu0 0.0
    %606 = vmatpush2.msra.mxu0 0.0
    %607 = vmatprep.mubr.f32.mxu0 0.0
    %608 = vmatmul.mubr.f32.gmra.mxu0 %v471
    %v609 = vpop.f32.mrf.mxu0
    %v610 = vadd.f32 0.0, %v609
    %v611 = vpop.f32.mrf.mxu0
    %v612 = vadd.f32 0.0, %v611
    %613 = vdwg.mxu0
    %v614 = vadd.f32 %v467, %v539
    %v615 = vadd.f32 %v468, %v541
    %v616 = vadd.f32 %v469, %v610
    %v617 = vadd.f32 %v470, %v612
    %v618 = vmul.f32 %v614, 0.5
    %v619 = vtanh.pop %v618
    %v620 = vmul.f32 %v619, 0.5
    %v621 = vadd.f32 %v620, 0.5
    %v622 = vmul.f32 %v615, 0.5
    %v623 = vtanh.pop %v622
    %v624 = vmul.f32 %v623, 0.5
    %v625 = vadd.f32 %v624, 0.5
    %v626 = vtanh.pop %v616
    %v627 = vmul.f32 %v617, 0.5
    %v628 = vtanh.pop %v627
    %v629 = vmul.f32 %v628, 0.5
    %v630 = vadd.f32 %v629, 0.5
    %v631 = vld [vmem:[#allocation4] sm:$0xff]
    %v632 = vmul.f32 %v625, %v631
    %v633 = vmul.f32 %v621, %v626
    %v634 = vadd.f32 %v632, %v633
    %v635 = vtanh.pop %v634
    %v636 = vmul.f32 %v630, %v635
    %637 = vst [vmem:[#allocation4] sm:$0xff] %v634
    %638 = vst [vmem:[#allocation3] sm:$0xff] %v636
    %v640 = vlaneseq
    %v641 = vshrl.u32 %v640, 7
    %v642 = vsub.s32 0, %v641
    %v643 = vrot.slane %v462, %v642
    %v645 = vmul.f32 %v636, %v643
    %646 = vadd.xlane.f32.xlu0 %v645
    %v647 = vpop.xlane.xlu0 %646
    %v649 = vlaneseq
    %v650 = vshrl.u32 %v649, 7
    %v651 = vsub.s32 0, %v650
    %v652 = vrot.slane %v463, %v651
    %v654 = vadd.f32 %v647, %v652
    %v655 = vld [vmem:[#allocation5] sm:$0xff]
    %v656 = vmax.f32 %v655, %v654
    %v657 = vsub.f32 %v655, %v656
    %v658 = vmul.f32 %v657, 1.442695
    %v659 = vpow.pop %v658
    %v660 = vsub.f32 %v654, %v656
    %v661 = vmul.f32 %v660, 1.442695
    %v662 = vpow.pop %v661
    %v663 = vld [vmem:[#allocation6] sm:$0xff]
    %v664 = vmul.f32 %v659, %v663
    %v665 = vadd.f32 %v664, %v662
    %vm666 = vcmask 7168
    %667 = vst.msk [vmem:[#allocation6] sm:$0xff] %vm666, %v665
    %v668 = vld [vmem:[#allocation7] sm:$0xff]
    %670 = vset.pattern.permute.xlu0 0
    %671 = vperm.xlu0 %670, %v659
    %v672 = vpop.permute.xlu0 %671
    %v674 = vmul.f32 %v672, %v668
    %676 = vset.pattern.permute.xlu0 0
    %677 = vperm.xlu0 %676, %v662
    %v678 = vpop.permute.xlu0 %677
    %v680 = vmul.f32 %v678, %v636
    %v681 = vadd.f32 %v674, %v680
    %682 = vst [vmem:[#allocation7] sm:$0xff] %v681
    %683 = vst.msk [vmem:[#allocation5] sm:$0xff] %vm666, %v656
    %s684 = smul.u32 1, 4
    %s685 = smul.addr %s684, 8
    %s686 = scalar_lea.vmem [#allocation2], %s685
    %v687 = vld [vmem:[%s686] sm:$0xff]
    %v688 = vld [vmem:[%s686 + $0x8] sm:$0xff]
    %v689 = vld [vmem:[%s686 + $0x10] sm:$0xff]
    %v690 = vld [vmem:[%s686 + $0x18] sm:$0xff]
    %v691 = vld [vmem:[#allocation3] sm:$0xff]
    %692 = vmatprep.subr.mxu0 %v459
    %693 = vmatpush1.msra.mxu0 %v458
    %694 = vmatprep.subr.mxu0 %v455
    %695 = vmatpush1.msra.mxu0 %v454
    %696 = vmatprep.subr.mxu0 %v451
    %697 = vmatpush1.msra.mxu0 %v450
    %698 = vmatprep.subr.mxu0 %v447
    %699 = vmatpush1.msra.mxu0 %v446
    %700 = vmatprep.subr.mxu0 %v443
    %701 = vmatpush1.msra.mxu0 %v442
    %702 = vmatprep.subr.mxu0 %v439
    %703 = vmatpush1.msra.mxu0 %v438
    %704 = vmatprep.subr.mxu0 %v435
    %705 = vmatpush1.msra.mxu0 %v434
    %706 = vmatprep.subr.mxu0 %v431
    %707 = vmatpush1.msra.mxu0 %v430
    %708 = vmatprep.subr.mxu0 %v427
    %709 = vmatpush1.msra.mxu0 %v426
    %710 = vmatprep.subr.mxu0 %v423
    %711 = vmatpush1.msra.mxu0 %v422
    %712 = vmatprep.subr.mxu0 %v419
    %713 = vmatpush1.msra.mxu0 %v418
    %714 = vmatprep.subr.mxu0 %v415
    %715 = vmatpush1.msra.mxu0 %v414
    %716 = vmatprep.subr.mxu0 %v411
    %717 = vmatpush1.msra.mxu0 %v410
    %718 = vmatprep.subr.mxu0 %v407
    %719 = vmatpush1.msra.mxu0 %v406
    %720 = vmatprep.subr.mxu0 %v403
    %721 = vmatpush1.msra.mxu0 %v402
    %722 = vmatprep.subr.mxu0 %v399
    %723 = vmatpush1.msra.mxu0 %v398
    %724 = vmatprep.subr.mxu0 0.0
    %725 = vmatpush2.msra.mxu0 0.0
    %726 = vmatprep.subr.mxu0 0.0
    %727 = vmatpush2.msra.mxu0 0.0
    %728 = vmatprep.subr.mxu0 0.0
    %729 = vmatpush2.msra.mxu0 0.0
    %730 = vmatprep.subr.mxu0 0.0
    %731 = vmatpush2.msra.mxu0 0.0
    %732 = vmatprep.subr.mxu0 0.0
    %733 = vmatpush2.msra.mxu0 0.0
    %734 = vmatprep.subr.mxu0 0.0
    %735 = vmatpush2.msra.mxu0 0.0
    %736 = vmatprep.subr.mxu0 0.0
    %737 = vmatpush2.msra.mxu0 0.0
    %738 = vmatprep.subr.mxu0 0.0
    %739 = vmatpush2.msra.mxu0 0.0
    %740 = vmatprep.subr.mxu0 0.0
    %741 = vmatpush2.msra.mxu0 0.0
    %742 = vmatprep.subr.mxu0 0.0
    %743 = vmatpush2.msra.mxu0 0.0
    %744 = vmatprep.subr.mxu0 0.0
    %745 = vmatpush2.msra.mxu0 0.0
    %746 = vmatprep.subr.mxu0 0.0
    %747 = vmatpush2.msra.mxu0 0.0
    %748 = vmatprep.subr.mxu0 0.0
    %749 = vmatpush2.msra.mxu0 0.0
    %750 = vmatprep.subr.mxu0 0.0
    %751 = vmatpush2.msra.mxu0 0.0
    %752 = vmatprep.subr.mxu0 0.0
    %753 = vmatpush2.msra.mxu0 0.0
    %754 = vmatprep.subr.mxu0 0.0
    %755 = vmatpush2.msra.mxu0 0.0
    %756 = vmatprep.mubr.f32.mxu0 0.0
    %757 = vmatmul.mubr.f32.gmra.mxu0 %v691
    %v758 = vpop.f32.mrf.mxu0
    %v759 = vadd.f32 0.0, %v758
    %v760 = vpop.f32.mrf.mxu0
    %v761 = vadd.f32 0.0, %v760
    %762 = vdwg.mxu0
    %763 = vmatprep.subr.mxu0 %v461
    %764 = vmatpush1.msra.mxu0 %v460
    %765 = vmatprep.subr.mxu0 %v457
    %766 = vmatpush1.msra.mxu0 %v456
    %767 = vmatprep.subr.mxu0 %v453
    %768 = vmatpush1.msra.mxu0 %v452
    %769 = vmatprep.subr.mxu0 %v449
    %770 = vmatpush1.msra.mxu0 %v448
    %771 = vmatprep.subr.mxu0 %v445
    %772 = vmatpush1.msra.mxu0 %v444
    %773 = vmatprep.subr.mxu0 %v441
    %774 = vmatpush1.msra.mxu0 %v440
    %775 = vmatprep.subr.mxu0 %v437
    %776 = vmatpush1.msra.mxu0 %v436
    %777 = vmatprep.subr.mxu0 %v433
    %778 = vmatpush1.msra.mxu0 %v432
    %779 = vmatprep.subr.mxu0 %v429
    %780 = vmatpush1.msra.mxu0 %v428
    %781 = vmatprep.subr.mxu0 %v425
    %782 = vmatpush1.msra.mxu0 %v424
    %783 = vmatprep.subr.mxu0 %v421
    %784 = vmatpush1.msra.mxu0 %v420
    %785 = vmatprep.subr.mxu0 %v417
    %786 = vmatpush1.msra.mxu0 %v416
    %787 = vmatprep.subr.mxu0 %v413
    %788 = vmatpush1.msra.mxu0 %v412
    %789 = vmatprep.subr.mxu0 %v409
    %790 = vmatpush1.msra.mxu0 %v408
    %791 = vmatprep.subr.mxu0 %v405
    %792 = vmatpush1.msra.mxu0 %v404
    %793 = vmatprep.subr.mxu0 %v401
    %794 = vmatpush1.msra.mxu0 %v400
    %795 = vmatprep.subr.mxu0 0.0
    %796 = vmatpush2.msra.mxu0 0.0
    %797 = vmatprep.subr.mxu0 0.0
    %798 = vmatpush2.msra.mxu0 0.0
    %799 = vmatprep.subr.mxu0 0.0
    %800 = vmatpush2.msra.mxu0 0.0
    %801 = vmatprep.subr.mxu0 0.0
    %802 = vmatpush2.msra.mxu0 0.0
    %803 = vmatprep.subr.mxu0 0.0
    %804 = vmatpush2.msra.mxu0 0.0
    %805 = vmatprep.subr.mxu0 0.0
    %806 = vmatpush2.msra.mxu0 0.0
    %807 = vmatprep.subr.mxu0 0.0
    %808 = vmatpush2.msra.mxu0 0.0
    %809 = vmatprep.subr.mxu0 0.0
    %810 = vmatpush2.msra.mxu0 0.0
    %811 = vmatprep.subr.mxu0 0.0
    %812 = vmatpush2.msra.mxu0 0.0
    %813 = vmatprep.subr.mxu0 0.0
    %814 = vmatpush2.msra.mxu0 0.0
    %815 = vmatprep.subr.mxu0 0.0
    %816 = vmatpush2.msra.mxu0 0.0
    %817 = vmatprep.subr.mxu0 0.0
    %818 = vmatpush2.msra.mxu0 0.0
    %819 = vmatprep.subr.mxu0 0.0
    %820 = vmatpush2.msra.mxu0 0.0
    %821 = vmatprep.subr.mxu0 0.0
    %822 = vmatpush2.msra.mxu0 0.0
    %823 = vmatprep.subr.mxu0 0.0
    %824 = vmatpush2.msra.mxu0 0.0
    %825 = vmatprep.subr.mxu0 0.0
    %826 = vmatpush2.msra.mxu0 0.0
    %827 = vmatprep.mubr.f32.mxu0 0.0
    %828 = vmatmul.mubr.f32.gmra.mxu0 %v691
    %v829 = vpop.f32.mrf.mxu0
    %v830 = vadd.f32 0.0, %v829
    %v831 = vpop.f32.mrf.mxu0
    %v832 = vadd.f32 0.0, %v831
    %833 = vdwg.mxu0
    %v834 = vadd.f32 %v687, %v759
    %v835 = vadd.f32 %v688, %v761
    %v836 = vadd.f32 %v689, %v830
    %v837 = vadd.f32 %v690, %v832
    %v838 = vmul.f32 %v834, 0.5
    %v839 = vtanh.pop %v838
    %v840 = vmul.f32 %v839, 0.5
    %v841 = vadd.f32 %v840, 0.5
    %v842 = vmul.f32 %v835, 0.5
    %v843 = vtanh.pop %v842
    %v844 = vmul.f32 %v843, 0.5
    %v845 = vadd.f32 %v844, 0.5
    %v846 = vtanh.pop %v836
    %v847 = vmul.f32 %v837, 0.5
    %v848 = vtanh.pop %v847
    %v849 = vmul.f32 %v848, 0.5
    %v850 = vadd.f32 %v849, 0.5
    %v851 = vld [vmem:[#allocation4] sm:$0xff]
    %v852 = vmul.f32 %v845, %v851
    %v853 = vmul.f32 %v841, %v846
    %v854 = vadd.f32 %v852, %v853
    %v855 = vtanh.pop %v854
    %v856 = vmul.f32 %v850, %v855
    %857 = vst [vmem:[#allocation4] sm:$0xff] %v854
    %858 = vst [vmem:[#allocation3] sm:$0xff] %v856
    %v859 = vmul.f32 %v856, %v643
    %860 = vadd.xlane.f32.xlu0 %v859
    %v861 = vpop.xlane.xlu0 %860
    %v862 = vadd.f32 %v861, %v652
    %v863 = vld [vmem:[#allocation5] sm:$0xff]
    %v864 = vmax.f32 %v863, %v862
    %v865 = vsub.f32 %v863, %v864
    %v866 = vmul.f32 %v865, 1.442695
    %v867 = vpow.pop %v866
    %v868 = vsub.f32 %v862, %v864
    %v869 = vmul.f32 %v868, 1.442695
    %v870 = vpow.pop %v869
    %v871 = vld [vmem:[#allocation6] sm:$0xff]
    %v872 = vmul.f32 %v867, %v871
    %v873 = vadd.f32 %v872, %v870
    %874 = vst.msk [vmem:[#allocation6] sm:$0xff] %vm666, %v873
    %v875 = vld [vmem:[#allocation7] sm:$0xff]
    %877 = vset.pattern.permute.xlu0 0
    %878 = vperm.xlu0 %877, %v867
    %v879 = vpop.permute.xlu0 %878
    %v881 = vmul.f32 %v879, %v875
    %883 = vset.pattern.permute.xlu0 0
    %884 = vperm.xlu0 %883, %v870
    %v885 = vpop.permute.xlu0 %884
    %v887 = vmul.f32 %v885, %v856
    %v888 = vadd.f32 %v881, %v887
    %889 = vst [vmem:[#allocation7] sm:$0xff] %v888
    %890 = vst.msk [vmem:[#allocation5] sm:$0xff] %vm666, %v864
    %s891 = smul.u32 2, 4
    %s892 = smul.addr %s891, 8
    %s893 = scalar_lea.vmem [#allocation2], %s892
    %v894 = vld [vmem:[%s893] sm:$0xff]
    %v895 = vld [vmem:[%s893 + $0x8] sm:$0xff]
    %v896 = vld [vmem:[%s893 + $0x10] sm:$0xff]
    %v897 = vld [vmem:[%s893 + $0x18] sm:$0xff]
    %v898 = vld [vmem:[#allocation3] sm:$0xff]
    %899 = vmatprep.subr.mxu0 %v459
    %900 = vmatpush1.msra.mxu0 %v458
    %901 = vmatprep.subr.mxu0 %v455
    %902 = vmatpush1.msra.mxu0 %v454
    %903 = vmatprep.subr.mxu0 %v451
    %904 = vmatpush1.msra.mxu0 %v450
    %905 = vmatprep.subr.mxu0 %v447
    %906 = vmatpush1.msra.mxu0 %v446
    %907 = vmatprep.subr.mxu0 %v443
    %908 = vmatpush1.msra.mxu0 %v442
    %909 = vmatprep.subr.mxu0 %v439
    %910 = vmatpush1.msra.mxu0 %v438
    %911 = vmatprep.subr.mxu0 %v435
    %912 = vmatpush1.msra.mxu0 %v434
    %913 = vmatprep.subr.mxu0 %v431
    %914 = vmatpush1.msra.mxu0 %v430
    %915 = vmatprep.subr.mxu0 %v427
    %916 = vmatpush1.msra.mxu0 %v426
    %917 = vmatprep.subr.mxu0 %v423
    %918 = vmatpush1.msra.mxu0 %v422
    %919 = vmatprep.subr.mxu0 %v419
    %920 = vmatpush1.msra.mxu0 %v418
    %921 = vmatprep.subr.mxu0 %v415
    %922 = vmatpush1.msra.mxu0 %v414
    %923 = vmatprep.subr.mxu0 %v411
    %924 = vmatpush1.msra.mxu0 %v410
    %925 = vmatprep.subr.mxu0 %v407
    %926 = vmatpush1.msra.mxu0 %v406
    %927 = vmatprep.subr.mxu0 %v403
    %928 = vmatpush1.msra.mxu0 %v402
    %929 = vmatprep.subr.mxu0 %v399
    %930 = vmatpush1.msra.mxu0 %v398
    %931 = vmatprep.subr.mxu0 0.0
    %932 = vmatpush2.msra.mxu0 0.0
    %933 = vmatprep.subr.mxu0 0.0
    %934 = vmatpush2.msra.mxu0 0.0
    %935 = vmatprep.subr.mxu0 0.0
    %936 = vmatpush2.msra.mxu0 0.0
    %937 = vmatprep.subr.mxu0 0.0
    %938 = vmatpush2.msra.mxu0 0.0
    %939 = vmatprep.subr.mxu0 0.0
    %940 = vmatpush2.msra.mxu0 0.0
    %941 = vmatprep.subr.mxu0 0.0
    %942 = vmatpush2.msra.mxu0 0.0
    %943 = vmatprep.subr.mxu0 0.0
    %944 = vmatpush2.msra.mxu0 0.0
    %945 = vmatprep.subr.mxu0 0.0
    %946 = vmatpush2.msra.mxu0 0.0
    %947 = vmatprep.subr.mxu0 0.0
    %948 = vmatpush2.msra.mxu0 0.0
    %949 = vmatprep.subr.mxu0 0.0
    %950 = vmatpush2.msra.mxu0 0.0
    %951 = vmatprep.subr.mxu0 0.0
    %952 = vmatpush2.msra.mxu0 0.0
    %953 = vmatprep.subr.mxu0 0.0
    %954 = vmatpush2.msra.mxu0 0.0
    %955 = vmatprep.subr.mxu0 0.0
    %956 = vmatpush2.msra.mxu0 0.0
    %957 = vmatprep.subr.mxu0 0.0
    %958 = vmatpush2.msra.mxu0 0.0
    %959 = vmatprep.subr.mxu0 0.0
    %960 = vmatpush2.msra.mxu0 0.0
    %961 = vmatprep.subr.mxu0 0.0
    %962 = vmatpush2.msra.mxu0 0.0
    %963 = vmatprep.mubr.f32.mxu0 0.0
    %964 = vmatmul.mubr.f32.gmra.mxu0 %v898
    %v965 = vpop.f32.mrf.mxu0
    %v966 = vadd.f32 0.0, %v965
    %v967 = vpop.f32.mrf.mxu0
    %v968 = vadd.f32 0.0, %v967
    %969 = vdwg.mxu0
    %970 = vmatprep.subr.mxu0 %v461
    %971 = vmatpush1.msra.mxu0 %v460
    %972 = vmatprep.subr.mxu0 %v457
    %973 = vmatpush1.msra.mxu0 %v456
    %974 = vmatprep.subr.mxu0 %v453
    %975 = vmatpush1.msra.mxu0 %v452
    %976 = vmatprep.subr.mxu0 %v449
    %977 = vmatpush1.msra.mxu0 %v448
    %978 = vmatprep.subr.mxu0 %v445
    %979 = vmatpush1.msra.mxu0 %v444
    %980 = vmatprep.subr.mxu0 %v441
    %981 = vmatpush1.msra.mxu0 %v440
    %982 = vmatprep.subr.mxu0 %v437
    %983 = vmatpush1.msra.mxu0 %v436
    %984 = vmatprep.subr.mxu0 %v433
    %985 = vmatpush1.msra.mxu0 %v432
    %986 = vmatprep.subr.mxu0 %v429
    %987 = vmatpush1.msra.mxu0 %v428
    %988 = vmatprep.subr.mxu0 %v425
    %989 = vmatpush1.msra.mxu0 %v424
    %990 = vmatprep.subr.mxu0 %v421
    %991 = vmatpush1.msra.mxu0 %v420
    %992 = vmatprep.subr.mxu0 %v417
    %993 = vmatpush1.msra.mxu0 %v416
    %994 = vmatprep.subr.mxu0 %v413
    %995 = vmatpush1.msra.mxu0 %v412
    %996 = vmatprep.subr.mxu0 %v409
    %997 = vmatpush1.msra.mxu0 %v408
    %998 = vmatprep.subr.mxu0 %v405
    %999 = vmatpush1.msra.mxu0 %v404
    %1000 = vmatprep.subr.mxu0 %v401
    %1001 = vmatpush1.msra.mxu0 %v400
    %1002 = vmatprep.subr.mxu0 0.0
    %1003 = vmatpush2.msra.mxu0 0.0
    %1004 = vmatprep.subr.mxu0 0.0
    %1005 = vmatpush2.msra.mxu0 0.0
    %1006 = vmatprep.subr.mxu0 0.0
    %1007 = vmatpush2.msra.mxu0 0.0
    %1008 = vmatprep.subr.mxu0 0.0
    %1009 = vmatpush2.msra.mxu0 0.0
    %1010 = vmatprep.subr.mxu0 0.0
    %1011 = vmatpush2.msra.mxu0 0.0
    %1012 = vmatprep.subr.mxu0 0.0
    %1013 = vmatpush2.msra.mxu0 0.0
    %1014 = vmatprep.subr.mxu0 0.0
    %1015 = vmatpush2.msra.mxu0 0.0
    %1016 = vmatprep.subr.mxu0 0.0
    %1017 = vmatpush2.msra.mxu0 0.0
    %1018 = vmatprep.subr.mxu0 0.0
    %1019 = vmatpush2.msra.mxu0 0.0
    %1020 = vmatprep.subr.mxu0 0.0
    %1021 = vmatpush2.msra.mxu0 0.0
    %1022 = vmatprep.subr.mxu0 0.0
    %1023 = vmatpush2.msra.mxu0 0.0
    %1024 = vmatprep.subr.mxu0 0.0
    %1025 = vmatpush2.msra.mxu0 0.0
    %1026 = vmatprep.subr.mxu0 0.0
    %1027 = vmatpush2.msra.mxu0 0.0
    %1028 = vmatprep.subr.mxu0 0.0
    %1029 = vmatpush2.msra.mxu0 0.0
    %1030 = vmatprep.subr.mxu0 0.0
    %1031 = vmatpush2.msra.mxu0 0.0
    %1032 = vmatprep.subr.mxu0 0.0
    %1033 = vmatpush2.msra.mxu0 0.0
    %1034 = vmatprep.mubr.f32.mxu0 0.0
    %1035 = vmatmul.mubr.f32.gmra.mxu0 %v898
    %v1036 = vpop.f32.mrf.mxu0
    %v1037 = vadd.f32 0.0, %v1036
    %v1038 = vpop.f32.mrf.mxu0
    %v1039 = vadd.f32 0.0, %v1038
    %1040 = vdwg.mxu0
    %v1041 = vadd.f32 %v894, %v966
    %v1042 = vadd.f32 %v895, %v968
    %v1043 = vadd.f32 %v896, %v1037
    %v1044 = vadd.f32 %v897, %v1039
    %v1045 = vmul.f32 %v1041, 0.5
    %v1046 = vtanh.pop %v1045
    %v1047 = vmul.f32 %v1046, 0.5
    %v1048 = vadd.f32 %v1047, 0.5
    %v1049 = vmul.f32 %v1042, 0.5
    %v1050 = vtanh.pop %v1049
    %v1051 = vmul.f32 %v1050, 0.5
    %v1052 = vadd.f32 %v1051, 0.5
    %v1053 = vtanh.pop %v1043
    %v1054 = vmul.f32 %v1044, 0.5
    %v1055 = vtanh.pop %v1054
    %v1056 = vmul.f32 %v1055, 0.5
    %v1057 = vadd.f32 %v1056, 0.5
    %v1058 = vld [vmem:[#allocation4] sm:$0xff]
    %v1059 = vmul.f32 %v1052, %v1058
    %v1060 = vmul.f32 %v1048, %v1053
    %v1061 = vadd.f32 %v1059, %v1060
    %v1062 = vtanh.pop %v1061
    %v1063 = vmul.f32 %v1057, %v1062
    %1064 = vst [vmem:[#allocation4] sm:$0xff] %v1061
    %1065 = vst [vmem:[#allocation3] sm:$0xff] %v1063
    %v1066 = vmul.f32 %v1063, %v643
    %1067 = vadd.xlane.f32.xlu0 %v1066
    %v1068 = vpop.xlane.xlu0 %1067
    %v1069 = vadd.f32 %v1068, %v652
    %v1070 = vld [vmem:[#allocation5] sm:$0xff]
    %v1071 = vmax.f32 %v1070, %v1069
    %v1072 = vsub.f32 %v1070, %v1071
    %v1073 = vmul.f32 %v1072, 1.442695
    %v1074 = vpow.pop %v1073
    %v1075 = vsub.f32 %v1069, %v1071
    %v1076 = vmul.f32 %v1075, 1.442695
    %v1077 = vpow.pop %v1076
    %v1078 = vld [vmem:[#allocation6] sm:$0xff]
    %v1079 = vmul.f32 %v1074, %v1078
    %v1080 = vadd.f32 %v1079, %v1077
    %1081 = vst.msk [vmem:[#allocation6] sm:$0xff] %vm666, %v1080
    %v1082 = vld [vmem:[#allocation7] sm:$0xff]
    %1084 = vset.pattern.permute.xlu0 0
    %1085 = vperm.xlu0 %1084, %v1074
    %v1086 = vpop.permute.xlu0 %1085
    %v1088 = vmul.f32 %v1086, %v1082
    %1090 = vset.pattern.permute.xlu0 0
    %1091 = vperm.xlu0 %1090, %v1077
    %v1092 = vpop.permute.xlu0 %1091
    %v1094 = vmul.f32 %v1092, %v1063
    %v1095 = vadd.f32 %v1088, %v1094
    %1096 = vst [vmem:[#allocation7] sm:$0xff] %v1095
    %1097 = vst.msk [vmem:[#allocation5] sm:$0xff] %vm666, %v1071
    %s1098 = smul.u32 3, 4
    %s1099 = smul.addr %s1098, 8
    %s1100 = scalar_lea.vmem [#allocation2], %s1099
    %v1101 = vld [vmem:[%s1100] sm:$0xff]
    %v1102 = vld [vmem:[%s1100 + $0x8] sm:$0xff]
    %v1103 = vld [vmem:[%s1100 + $0x10] sm:$0xff]
    %v1104 = vld [vmem:[%s1100 + $0x18] sm:$0xff]
    %v1105 = vld [vmem:[#allocation3] sm:$0xff]
    %1106 = vmatprep.subr.mxu0 %v459
    %1107 = vmatpush1.msra.mxu0 %v458
    %1108 = vmatprep.subr.mxu0 %v455
    %1109 = vmatpush1.msra.mxu0 %v454
    %1110 = vmatprep.subr.mxu0 %v451
    %1111 = vmatpush1.msra.mxu0 %v450
    %1112 = vmatprep.subr.mxu0 %v447
    %1113 = vmatpush1.msra.mxu0 %v446
    %1114 = vmatprep.subr.mxu0 %v443
    %1115 = vmatpush1.msra.mxu0 %v442
    %1116 = vmatprep.subr.mxu0 %v439
    %1117 = vmatpush1.msra.mxu0 %v438
    %1118 = vmatprep.subr.mxu0 %v435
    %1119 = vmatpush1.msra.mxu0 %v434
    %1120 = vmatprep.subr.mxu0 %v431
    %1121 = vmatpush1.msra.mxu0 %v430
    %1122 = vmatprep.subr.mxu0 %v427
    %1123 = vmatpush1.msra.mxu0 %v426
    %1124 = vmatprep.subr.mxu0 %v423
    %1125 = vmatpush1.msra.mxu0 %v422
    %1126 = vmatprep.subr.mxu0 %v419
    %1127 = vmatpush1.msra.mxu0 %v418
    %1128 = vmatprep.subr.mxu0 %v415
    %1129 = vmatpush1.msra.mxu0 %v414
    %1130 = vmatprep.subr.mxu0 %v411
    %1131 = vmatpush1.msra.mxu0 %v410
    %1132 = vmatprep.subr.mxu0 %v407
    %1133 = vmatpush1.msra.mxu0 %v406
    %1134 = vmatprep.subr.mxu0 %v403
    %1135 = vmatpush1.msra.mxu0 %v402
    %1136 = vmatprep.subr.mxu0 %v399
    %1137 = vmatpush1.msra.mxu0 %v398
    %1138 = vmatprep.subr.mxu0 0.0
    %1139 = vmatpush2.msra.mxu0 0.0
    %1140 = vmatprep.subr.mxu0 0.0
    %1141 = vmatpush2.msra.mxu0 0.0
    %1142 = vmatprep.subr.mxu0 0.0
    %1143 = vmatpush2.msra.mxu0 0.0
    %1144 = vmatprep.subr.mxu0 0.0
    %1145 = vmatpush2.msra.mxu0 0.0
    %1146 = vmatprep.subr.mxu0 0.0
    %1147 = vmatpush2.msra.mxu0 0.0
    %1148 = vmatprep.subr.mxu0 0.0
    %1149 = vmatpush2.msra.mxu0 0.0
    %1150 = vmatprep.subr.mxu0 0.0
    %1151 = vmatpush2.msra.mxu0 0.0
    %1152 = vmatprep.subr.mxu0 0.0
    %1153 = vmatpush2.msra.mxu0 0.0
    %1154 = vmatprep.subr.mxu0 0.0
    %1155 = vmatpush2.msra.mxu0 0.0
    %1156 = vmatprep.subr.mxu0 0.0
    %1157 = vmatpush2.msra.mxu0 0.0
    %1158 = vmatprep.subr.mxu0 0.0
    %1159 = vmatpush2.msra.mxu0 0.0
    %1160 = vmatprep.subr.mxu0 0.0
    %1161 = vmatpush2.msra.mxu0 0.0
    %1162 = vmatprep.subr.mxu0 0.0
    %1163 = vmatpush2.msra.mxu0 0.0
    %1164 = vmatprep.subr.mxu0 0.0
    %1165 = vmatpush2.msra.mxu0 0.0
    %1166 = vmatprep.subr.mxu0 0.0
    %1167 = vmatpush2.msra.mxu0 0.0
    %1168 = vmatprep.subr.mxu0 0.0
    %1169 = vmatpush2.msra.mxu0 0.0
    %1170 = vmatprep.mubr.f32.mxu0 0.0
    %1171 = vmatmul.mubr.f32.gmra.mxu0 %v1105
    %v1172 = vpop.f32.mrf.mxu0
    %v1173 = vadd.f32 0.0, %v1172
    %v1174 = vpop.f32.mrf.mxu0
    %v1175 = vadd.f32 0.0, %v1174
    %1176 = vdwg.mxu0
    %1177 = vmatprep.subr.mxu0 %v461
    %1178 = vmatpush1.msra.mxu0 %v460
    %1179 = vmatprep.subr.mxu0 %v457
    %1180 = vmatpush1.msra.mxu0 %v456
    %1181 = vmatprep.subr.mxu0 %v453
    %1182 = vmatpush1.msra.mxu0 %v452
    %1183 = vmatprep.subr.mxu0 %v449
    %1184 = vmatpush1.msra.mxu0 %v448
    %1185 = vmatprep.subr.mxu0 %v445
    %1186 = vmatpush1.msra.mxu0 %v444
    %1187 = vmatprep.subr.mxu0 %v441
    %1188 = vmatpush1.msra.mxu0 %v440
    %1189 = vmatprep.subr.mxu0 %v437
    %1190 = vmatpush1.msra.mxu0 %v436
    %1191 = vmatprep.subr.mxu0 %v433
    %1192 = vmatpush1.msra.mxu0 %v432
    %1193 = vmatprep.subr.mxu0 %v429
    %1194 = vmatpush1.msra.mxu0 %v428
    %1195 = vmatprep.subr.mxu0 %v425
    %1196 = vmatpush1.msra.mxu0 %v424
    %1197 = vmatprep.subr.mxu0 %v421
    %1198 = vmatpush1.msra.mxu0 %v420
    %1199 = vmatprep.subr.mxu0 %v417
    %1200 = vmatpush1.msra.mxu0 %v416
    %1201 = vmatprep.subr.mxu0 %v413
    %1202 = vmatpush1.msra.mxu0 %v412
    %1203 = vmatprep.subr.mxu0 %v409
    %1204 = vmatpush1.msra.mxu0 %v408
    %1205 = vmatprep.subr.mxu0 %v405
    %1206 = vmatpush1.msra.mxu0 %v404
    %1207 = vmatprep.subr.mxu0 %v401
    %1208 = vmatpush1.msra.mxu0 %v400
    %1209 = vmatprep.subr.mxu0 0.0
    %1210 = vmatpush2.msra.mxu0 0.0
    %1211 = vmatprep.subr.mxu0 0.0
    %1212 = vmatpush2.msra.mxu0 0.0
    %1213 = vmatprep.subr.mxu0 0.0
    %1214 = vmatpush2.msra.mxu0 0.0
    %1215 = vmatprep.subr.mxu0 0.0
    %1216 = vmatpush2.msra.mxu0 0.0
    %1217 = vmatprep.subr.mxu0 0.0
    %1218 = vmatpush2.msra.mxu0 0.0
    %1219 = vmatprep.subr.mxu0 0.0
    %1220 = vmatpush2.msra.mxu0 0.0
    %1221 = vmatprep.subr.mxu0 0.0
    %1222 = vmatpush2.msra.mxu0 0.0
    %1223 = vmatprep.subr.mxu0 0.0
    %1224 = vmatpush2.msra.mxu0 0.0
    %1225 = vmatprep.subr.mxu0 0.0
    %1226 = vmatpush2.msra.mxu0 0.0
    %1227 = vmatprep.subr.mxu0 0.0
    %1228 = vmatpush2.msra.mxu0 0.0
    %1229 = vmatprep.subr.mxu0 0.0
    %1230 = vmatpush2.msra.mxu0 0.0
    %1231 = vmatprep.subr.mxu0 0.0
    %1232 = vmatpush2.msra.mxu0 0.0
    %1233 = vmatprep.subr.mxu0 0.0
    %1234 = vmatpush2.msra.mxu0 0.0
    %1235 = vmatprep.subr.mxu0 0.0
    %1236 = vmatpush2.msra.mxu0 0.0
    %1237 = vmatprep.subr.mxu0 0.0
    %1238 = vmatpush2.msra.mxu0 0.0
    %1239 = vmatprep.subr.mxu0 0.0
    %1240 = vmatpush2.msra.mxu0 0.0
    %1241 = vmatprep.mubr.f32.mxu0 0.0
    %1242 = vmatmul.mubr.f32.gmra.mxu0 %v1105
    %v1243 = vpop.f32.mrf.mxu0
    %v1244 = vadd.f32 0.0, %v1243
    %v1245 = vpop.f32.mrf.mxu0
    %v1246 = vadd.f32 0.0, %v1245
    %1247 = vdwg.mxu0
    %v1248 = vadd.f32 %v1101, %v1173
    %v1249 = vadd.f32 %v1102, %v1175
    %v1250 = vadd.f32 %v1103, %v1244
    %v1251 = vadd.f32 %v1104, %v1246
    %v1252 = vmul.f32 %v1248, 0.5
    %v1253 = vtanh.pop %v1252
    %v1254 = vmul.f32 %v1253, 0.5
    %v1255 = vadd.f32 %v1254, 0.5
    %v1256 = vmul.f32 %v1249, 0.5
    %v1257 = vtanh.pop %v1256
    %v1258 = vmul.f32 %v1257, 0.5
    %v1259 = vadd.f32 %v1258, 0.5
    %v1260 = vtanh.pop %v1250
    %v1261 = vmul.f32 %v1251, 0.5
    %v1262 = vtanh.pop %v1261
    %v1263 = vmul.f32 %v1262, 0.5
    %v1264 = vadd.f32 %v1263, 0.5
    %v1265 = vld [vmem:[#allocation4] sm:$0xff]
    %v1266 = vmul.f32 %v1259, %v1265
    %v1267 = vmul.f32 %v1255, %v1260
    %v1268 = vadd.f32 %v1266, %v1267
    %v1269 = vtanh.pop %v1268
    %v1270 = vmul.f32 %v1264, %v1269
    %1271 = vst [vmem:[#allocation4] sm:$0xff] %v1268
    %1272 = vst [vmem:[#allocation3] sm:$0xff] %v1270
    %v1273 = vmul.f32 %v1270, %v643
    %1274 = vadd.xlane.f32.xlu0 %v1273
    %v1275 = vpop.xlane.xlu0 %1274
    %v1276 = vadd.f32 %v1275, %v652
    %v1277 = vld [vmem:[#allocation5] sm:$0xff]
    %v1278 = vmax.f32 %v1277, %v1276
    %v1279 = vsub.f32 %v1277, %v1278
    %v1280 = vmul.f32 %v1279, 1.442695
    %v1281 = vpow.pop %v1280
    %v1282 = vsub.f32 %v1276, %v1278
    %v1283 = vmul.f32 %v1282, 1.442695
    %v1284 = vpow.pop %v1283
    %v1285 = vld [vmem:[#allocation6] sm:$0xff]
    %v1286 = vmul.f32 %v1281, %v1285
    %v1287 = vadd.f32 %v1286, %v1284
    %1288 = vst.msk [vmem:[#allocation6] sm:$0xff] %vm666, %v1287
    %v1289 = vld [vmem:[#allocation7] sm:$0xff]
    %1291 = vset.pattern.permute.xlu0 0
    %1292 = vperm.xlu0 %1291, %v1281
    %v1293 = vpop.permute.xlu0 %1292
    %v1295 = vmul.f32 %v1293, %v1289
    %1297 = vset.pattern.permute.xlu0 0
    %1298 = vperm.xlu0 %1297, %v1284
    %v1299 = vpop.permute.xlu0 %1298
    %v1301 = vmul.f32 %v1299, %v1270
    %v1302 = vadd.f32 %v1295, %v1301
    %1303 = vst [vmem:[#allocation7] sm:$0xff] %v1302
    %1304 = vst.msk [vmem:[#allocation5] sm:$0xff] %vm666, %v1278
    %s1305 = smul.u32 4, 4
    %s1306 = smul.addr %s1305, 8
    %s1307 = scalar_lea.vmem [#allocation2], %s1306
    %v1308 = vld [vmem:[%s1307] sm:$0xff]
    %v1309 = vld [vmem:[%s1307 + $0x8] sm:$0xff]
    %v1310 = vld [vmem:[%s1307 + $0x10] sm:$0xff]
    %v1311 = vld [vmem:[%s1307 + $0x18] sm:$0xff]
    %v1312 = vld [vmem:[#allocation3] sm:$0xff]
    %1313 = vmatprep.subr.mxu0 %v459
    %1314 = vmatpush1.msra.mxu0 %v458
    %1315 = vmatprep.subr.mxu0 %v455
    %1316 = vmatpush1.msra.mxu0 %v454
    %1317 = vmatprep.subr.mxu0 %v451
    %1318 = vmatpush1.msra.mxu0 %v450
    %1319 = vmatprep.subr.mxu0 %v447
    %1320 = vmatpush1.msra.mxu0 %v446
    %1321 = vmatprep.subr.mxu0 %v443
    %1322 = vmatpush1.msra.mxu0 %v442
    %1323 = vmatprep.subr.mxu0 %v439
    %1324 = vmatpush1.msra.mxu0 %v438
    %1325 = vmatprep.subr.mxu0 %v435
    %1326 = vmatpush1.msra.mxu0 %v434
    %1327 = vmatprep.subr.mxu0 %v431
    %1328 = vmatpush1.msra.mxu0 %v430
    %1329 = vmatprep.subr.mxu0 %v427
    %1330 = vmatpush1.msra.mxu0 %v426
    %1331 = vmatprep.subr.mxu0 %v423
    %1332 = vmatpush1.msra.mxu0 %v422
    %1333 = vmatprep.subr.mxu0 %v419
    %1334 = vmatpush1.msra.mxu0 %v418
    %1335 = vmatprep.subr.mxu0 %v415
    %1336 = vmatpush1.msra.mxu0 %v414
    %1337 = vmatprep.subr.mxu0 %v411
    %1338 = vmatpush1.msra.mxu0 %v410
    %1339 = vmatprep.subr.mxu0 %v407
    %1340 = vmatpush1.msra.mxu0 %v406
    %1341 = vmatprep.subr.mxu0 %v403
    %1342 = vmatpush1.msra.mxu0 %v402
    %1343 = vmatprep.subr.mxu0 %v399
    %1344 = vmatpush1.msra.mxu0 %v398
    %1345 = vmatprep.subr.mxu0 0.0
    %1346 = vmatpush2.msra.mxu0 0.0
    %1347 = vmatprep.subr.mxu0 0.0
    %1348 = vmatpush2.msra.mxu0 0.0
    %1349 = vmatprep.subr.mxu0 0.0
    %1350 = vmatpush2.msra.mxu0 0.0
    %1351 = vmatprep.subr.mxu0 0.0
    %1352 = vmatpush2.msra.mxu0 0.0
    %1353 = vmatprep.subr.mxu0 0.0
    %1354 = vmatpush2.msra.mxu0 0.0
    %1355 = vmatprep.subr.mxu0 0.0
    %1356 = vmatpush2.msra.mxu0 0.0
    %1357 = vmatprep.subr.mxu0 0.0
    %1358 = vmatpush2.msra.mxu0 0.0
    %1359 = vmatprep.subr.mxu0 0.0
    %1360 = vmatpush2.msra.mxu0 0.0
    %1361 = vmatprep.subr.mxu0 0.0
    %1362 = vmatpush2.msra.mxu0 0.0
    %1363 = vmatprep.subr.mxu0 0.0
    %1364 = vmatpush2.msra.mxu0 0.0
    %1365 = vmatprep.subr.mxu0 0.0
    %1366 = vmatpush2.msra.mxu0 0.0
    %1367 = vmatprep.subr.mxu0 0.0
    %1368 = vmatpush2.msra.mxu0 0.0
    %1369 = vmatprep.subr.mxu0 0.0
    %1370 = vmatpush2.msra.mxu0 0.0
    %1371 = vmatprep.subr.mxu0 0.0
    %1372 = vmatpush2.msra.mxu0 0.0
    %1373 = vmatprep.subr.mxu0 0.0
    %1374 = vmatpush2.msra.mxu0 0.0
    %1375 = vmatprep.subr.mxu0 0.0
    %1376 = vmatpush2.msra.mxu0 0.0
    %1377 = vmatprep.mubr.f32.mxu0 0.0
    %1378 = vmatmul.mubr.f32.gmra.mxu0 %v1312
    %v1379 = vpop.f32.mrf.mxu0
    %v1380 = vadd.f32 0.0, %v1379
    %v1381 = vpop.f32.mrf.mxu0
    %v1382 = vadd.f32 0.0, %v1381
    %1383 = vdwg.mxu0
    %1384 = vmatprep.subr.mxu0 %v461
    %1385 = vmatpush1.msra.mxu0 %v460
    %1386 = vmatprep.subr.mxu0 %v457
    %1387 = vmatpush1.msra.mxu0 %v456
    %1388 = vmatprep.subr.mxu0 %v453
    %1389 = vmatpush1.msra.mxu0 %v452
    %1390 = vmatprep.subr.mxu0 %v449
    %1391 = vmatpush1.msra.mxu0 %v448
    %1392 = vmatprep.subr.mxu0 %v445
    %1393 = vmatpush1.msra.mxu0 %v444
    %1394 = vmatprep.subr.mxu0 %v441
    %1395 = vmatpush1.msra.mxu0 %v440
    %1396 = vmatprep.subr.mxu0 %v437
    %1397 = vmatpush1.msra.mxu0 %v436
    %1398 = vmatprep.subr.mxu0 %v433
    %1399 = vmatpush1.msra.mxu0 %v432
    %1400 = vmatprep.subr.mxu0 %v429
    %1401 = vmatpush1.msra.mxu0 %v428
    %1402 = vmatprep.subr.mxu0 %v425
    %1403 = vmatpush1.msra.mxu0 %v424
    %1404 = vmatprep.subr.mxu0 %v421
    %1405 = vmatpush1.msra.mxu0 %v420
    %1406 = vmatprep.subr.mxu0 %v417
    %1407 = vmatpush1.msra.mxu0 %v416
    %1408 = vmatprep.subr.mxu0 %v413
    %1409 = vmatpush1.msra.mxu0 %v412
    %1410 = vmatprep.subr.mxu0 %v409
    %1411 = vmatpush1.msra.mxu0 %v408
    %1412 = vmatprep.subr.mxu0 %v405
    %1413 = vmatpush1.msra.mxu0 %v404
    %1414 = vmatprep.subr.mxu0 %v401
    %1415 = vmatpush1.msra.mxu0 %v400
    %1416 = vmatprep.subr.mxu0 0.0
    %1417 = vmatpush2.msra.mxu0 0.0
    %1418 = vmatprep.subr.mxu0 0.0
    %1419 = vmatpush2.msra.mxu0 0.0
    %1420 = vmatprep.subr.mxu0 0.0
    %1421 = vmatpush2.msra.mxu0 0.0
    %1422 = vmatprep.subr.mxu0 0.0
    %1423 = vmatpush2.msra.mxu0 0.0
    %1424 = vmatprep.subr.mxu0 0.0
    %1425 = vmatpush2.msra.mxu0 0.0
    %1426 = vmatprep.subr.mxu0 0.0
    %1427 = vmatpush2.msra.mxu0 0.0
    %1428 = vmatprep.subr.mxu0 0.0
    %1429 = vmatpush2.msra.mxu0 0.0
    %1430 = vmatprep.subr.mxu0 0.0
    %1431 = vmatpush2.msra.mxu0 0.0
    %1432 = vmatprep.subr.mxu0 0.0
    %1433 = vmatpush2.msra.mxu0 0.0
    %1434 = vmatprep.subr.mxu0 0.0
    %1435 = vmatpush2.msra.mxu0 0.0
    %1436 = vmatprep.subr.mxu0 0.0
    %1437 = vmatpush2.msra.mxu0 0.0
    %1438 = vmatprep.subr.mxu0 0.0
    %1439 = vmatpush2.msra.mxu0 0.0
    %1440 = vmatprep.subr.mxu0 0.0
    %1441 = vmatpush2.msra.mxu0 0.0
    %1442 = vmatprep.subr.mxu0 0.0
    %1443 = vmatpush2.msra.mxu0 0.0
    %1444 = vmatprep.subr.mxu0 0.0
    %1445 = vmatpush2.msra.mxu0 0.0
    %1446 = vmatprep.subr.mxu0 0.0
    %1447 = vmatpush2.msra.mxu0 0.0
    %1448 = vmatprep.mubr.f32.mxu0 0.0
    %1449 = vmatmul.mubr.f32.gmra.mxu0 %v1312
    %v1450 = vpop.f32.mrf.mxu0
    %v1451 = vadd.f32 0.0, %v1450
    %v1452 = vpop.f32.mrf.mxu0
    %v1453 = vadd.f32 0.0, %v1452
    %1454 = vdwg.mxu0
    %v1455 = vadd.f32 %v1308, %v1380
    %v1456 = vadd.f32 %v1309, %v1382
    %v1457 = vadd.f32 %v1310, %v1451
    %v1458 = vadd.f32 %v1311, %v1453
    %v1459 = vmul.f32 %v1455, 0.5
    %v1460 = vtanh.pop %v1459
    %v1461 = vmul.f32 %v1460, 0.5
    %v1462 = vadd.f32 %v1461, 0.5
    %v1463 = vmul.f32 %v1456, 0.5
    %v1464 = vtanh.pop %v1463
    %v1465 = vmul.f32 %v1464, 0.5
    %v1466 = vadd.f32 %v1465, 0.5
    %v1467 = vtanh.pop %v1457
    %v1468 = vmul.f32 %v1458, 0.5
    %v1469 = vtanh.pop %v1468
    %v1470 = vmul.f32 %v1469, 0.5
    %v1471 = vadd.f32 %v1470, 0.5
    %v1472 = vld [vmem:[#allocation4] sm:$0xff]
    %v1473 = vmul.f32 %v1466, %v1472
    %v1474 = vmul.f32 %v1462, %v1467
    %v1475 = vadd.f32 %v1473, %v1474
    %v1476 = vtanh.pop %v1475
    %v1477 = vmul.f32 %v1471, %v1476
    %1478 = vst [vmem:[#allocation4] sm:$0xff] %v1475
    %1479 = vst [vmem:[#allocation3] sm:$0xff] %v1477
    %v1480 = vmul.f32 %v1477, %v643
    %1481 = vadd.xlane.f32.xlu0 %v1480
    %v1482 = vpop.xlane.xlu0 %1481
    %v1483 = vadd.f32 %v1482, %v652
    %v1484 = vld [vmem:[#allocation5] sm:$0xff]
    %v1485 = vmax.f32 %v1484, %v1483
    %v1486 = vsub.f32 %v1484, %v1485
    %v1487 = vmul.f32 %v1486, 1.442695
    %v1488 = vpow.pop %v1487
    %v1489 = vsub.f32 %v1483, %v1485
    %v1490 = vmul.f32 %v1489, 1.442695
    %v1491 = vpow.pop %v1490
    %v1492 = vld [vmem:[#allocation6] sm:$0xff]
    %v1493 = vmul.f32 %v1488, %v1492
    %v1494 = vadd.f32 %v1493, %v1491
    %1495 = vst.msk [vmem:[#allocation6] sm:$0xff] %vm666, %v1494
    %v1496 = vld [vmem:[#allocation7] sm:$0xff]
    %1498 = vset.pattern.permute.xlu0 0
    %1499 = vperm.xlu0 %1498, %v1488
    %v1500 = vpop.permute.xlu0 %1499
    %v1502 = vmul.f32 %v1500, %v1496
    %1504 = vset.pattern.permute.xlu0 0
    %1505 = vperm.xlu0 %1504, %v1491
    %v1506 = vpop.permute.xlu0 %1505
    %v1508 = vmul.f32 %v1506, %v1477
    %v1509 = vadd.f32 %v1502, %v1508
    %1510 = vst [vmem:[#allocation7] sm:$0xff] %v1509
    %1511 = vst.msk [vmem:[#allocation5] sm:$0xff] %vm666, %v1485
    %s1512 = smul.u32 5, 4
    %s1513 = smul.addr %s1512, 8
    %s1514 = scalar_lea.vmem [#allocation2], %s1513
    %v1515 = vld [vmem:[%s1514] sm:$0xff]
    %v1516 = vld [vmem:[%s1514 + $0x8] sm:$0xff]
    %v1517 = vld [vmem:[%s1514 + $0x10] sm:$0xff]
    %v1518 = vld [vmem:[%s1514 + $0x18] sm:$0xff]
    %v1519 = vld [vmem:[#allocation3] sm:$0xff]
    %1520 = vmatprep.subr.mxu0 %v459
    %1521 = vmatpush1.msra.mxu0 %v458
    %1522 = vmatprep.subr.mxu0 %v455
    %1523 = vmatpush1.msra.mxu0 %v454
    %1524 = vmatprep.subr.mxu0 %v451
    %1525 = vmatpush1.msra.mxu0 %v450
    %1526 = vmatprep.subr.mxu0 %v447
    %1527 = vmatpush1.msra.mxu0 %v446
    %1528 = vmatprep.subr.mxu0 %v443
    %1529 = vmatpush1.msra.mxu0 %v442
    %1530 = vmatprep.subr.mxu0 %v439
    %1531 = vmatpush1.msra.mxu0 %v438
    %1532 = vmatprep.subr.mxu0 %v435
    %1533 = vmatpush1.msra.mxu0 %v434
    %1534 = vmatprep.subr.mxu0 %v431
    %1535 = vmatpush1.msra.mxu0 %v430
    %1536 = vmatprep.subr.mxu0 %v427
    %1537 = vmatpush1.msra.mxu0 %v426
    %1538 = vmatprep.subr.mxu0 %v423
    %1539 = vmatpush1.msra.mxu0 %v422
    %1540 = vmatprep.subr.mxu0 %v419
    %1541 = vmatpush1.msra.mxu0 %v418
    %1542 = vmatprep.subr.mxu0 %v415
    %1543 = vmatpush1.msra.mxu0 %v414
    %1544 = vmatprep.subr.mxu0 %v411
    %1545 = vmatpush1.msra.mxu0 %v410
    %1546 = vmatprep.subr.mxu0 %v407
    %1547 = vmatpush1.msra.mxu0 %v406
    %1548 = vmatprep.subr.mxu0 %v403
    %1549 = vmatpush1.msra.mxu0 %v402
    %1550 = vmatprep.subr.mxu0 %v399
    %1551 = vmatpush1.msra.mxu0 %v398
    %1552 = vmatprep.subr.mxu0 0.0
    %1553 = vmatpush2.msra.mxu0 0.0
    %1554 = vmatprep.subr.mxu0 0.0
    %1555 = vmatpush2.msra.mxu0 0.0
    %1556 = vmatprep.subr.mxu0 0.0
    %1557 = vmatpush2.msra.mxu0 0.0
    %1558 = vmatprep.subr.mxu0 0.0
    %1559 = vmatpush2.msra.mxu0 0.0
    %1560 = vmatprep.subr.mxu0 0.0
    %1561 = vmatpush2.msra.mxu0 0.0
    %1562 = vmatprep.subr.mxu0 0.0
    %1563 = vmatpush2.msra.mxu0 0.0
    %1564 = vmatprep.subr.mxu0 0.0
    %1565 = vmatpush2.msra.mxu0 0.0
    %1566 = vmatprep.subr.mxu0 0.0
    %1567 = vmatpush2.msra.mxu0 0.0
    %1568 = vmatprep.subr.mxu0 0.0
    %1569 = vmatpush2.msra.mxu0 0.0
    %1570 = vmatprep.subr.mxu0 0.0
    %1571 = vmatpush2.msra.mxu0 0.0
    %1572 = vmatprep.subr.mxu0 0.0
    %1573 = vmatpush2.msra.mxu0 0.0
    %1574 = vmatprep.subr.mxu0 0.0
    %1575 = vmatpush2.msra.mxu0 0.0
    %1576 = vmatprep.subr.mxu0 0.0
    %1577 = vmatpush2.msra.mxu0 0.0
    %1578 = vmatprep.subr.mxu0 0.0
    %1579 = vmatpush2.msra.mxu0 0.0
    %1580 = vmatprep.subr.mxu0 0.0
    %1581 = vmatpush2.msra.mxu0 0.0
    %1582 = vmatprep.subr.mxu0 0.0
    %1583 = vmatpush2.msra.mxu0 0.0
    %1584 = vmatprep.mubr.f32.mxu0 0.0
    %1585 = vmatmul.mubr.f32.gmra.mxu0 %v1519
    %v1586 = vpop.f32.mrf.mxu0
    %v1587 = vadd.f32 0.0, %v1586
    %v1588 = vpop.f32.mrf.mxu0
    %v1589 = vadd.f32 0.0, %v1588
    %1590 = vdwg.mxu0
    %1591 = vmatprep.subr.mxu0 %v461
    %1592 = vmatpush1.msra.mxu0 %v460
    %1593 = vmatprep.subr.mxu0 %v457
    %1594 = vmatpush1.msra.mxu0 %v456
    %1595 = vmatprep.subr.mxu0 %v453
    %1596 = vmatpush1.msra.mxu0 %v452
    %1597 = vmatprep.subr.mxu0 %v449
    %1598 = vmatpush1.msra.mxu0 %v448
    %1599 = vmatprep.subr.mxu0 %v445
    %1600 = vmatpush1.msra.mxu0 %v444
    %1601 = vmatprep.subr.mxu0 %v441
    %1602 = vmatpush1.msra.mxu0 %v440
    %1603 = vmatprep.subr.mxu0 %v437
    %1604 = vmatpush1.msra.mxu0 %v436
    %1605 = vmatprep.subr.mxu0 %v433
    %1606 = vmatpush1.msra.mxu0 %v432
    %1607 = vmatprep.subr.mxu0 %v429
    %1608 = vmatpush1.msra.mxu0 %v428
    %1609 = vmatprep.subr.mxu0 %v425
    %1610 = vmatpush1.msra.mxu0 %v424
    %1611 = vmatprep.subr.mxu0 %v421
    %1612 = vmatpush1.msra.mxu0 %v420
    %1613 = vmatprep.subr.mxu0 %v417
    %1614 = vmatpush1.msra.mxu0 %v416
    %1615 = vmatprep.subr.mxu0 %v413
    %1616 = vmatpush1.msra.mxu0 %v412
    %1617 = vmatprep.subr.mxu0 %v409
    %1618 = vmatpush1.msra.mxu0 %v408
    %1619 = vmatprep.subr.mxu0 %v405
    %1620 = vmatpush1.msra.mxu0 %v404
    %1621 = vmatprep.subr.mxu0 %v401
    %1622 = vmatpush1.msra.mxu0 %v400
    %1623 = vmatprep.subr.mxu0 0.0
    %1624 = vmatpush2.msra.mxu0 0.0
    %1625 = vmatprep.subr.mxu0 0.0
    %1626 = vmatpush2.msra.mxu0 0.0
    %1627 = vmatprep.subr.mxu0 0.0
    %1628 = vmatpush2.msra.mxu0 0.0
    %1629 = vmatprep.subr.mxu0 0.0
    %1630 = vmatpush2.msra.mxu0 0.0
    %1631 = vmatprep.subr.mxu0 0.0
    %1632 = vmatpush2.msra.mxu0 0.0
    %1633 = vmatprep.subr.mxu0 0.0
    %1634 = vmatpush2.msra.mxu0 0.0
    %1635 = vmatprep.subr.mxu0 0.0
    %1636 = vmatpush2.msra.mxu0 0.0
    %1637 = vmatprep.subr.mxu0 0.0
    %1638 = vmatpush2.msra.mxu0 0.0
    %1639 = vmatprep.subr.mxu0 0.0
    %1640 = vmatpush2.msra.mxu0 0.0
    %1641 = vmatprep.subr.mxu0 0.0
    %1642 = vmatpush2.msra.mxu0 0.0
    %1643 = vmatprep.subr.mxu0 0.0
    %1644 = vmatpush2.msra.mxu0 0.0
    %1645 = vmatprep.subr.mxu0 0.0
    %1646 = vmatpush2.msra.mxu0 0.0
    %1647 = vmatprep.subr.mxu0 0.0
    %1648 = vmatpush2.msra.mxu0 0.0
    %1649 = vmatprep.subr.mxu0 0.0
    %1650 = vmatpush2.msra.mxu0 0.0
    %1651 = vmatprep.subr.mxu0 0.0
    %1652 = vmatpush2.msra.mxu0 0.0
    %1653 = vmatprep.subr.mxu0 0.0
    %1654 = vmatpush2.msra.mxu0 0.0
    %1655 = vmatprep.mubr.f32.mxu0 0.0
    %1656 = vmatmul.mubr.f32.gmra.mxu0 %v1519
    %v1657 = vpop.f32.mrf.mxu0
    %v1658 = vadd.f32 0.0, %v1657
    %v1659 = vpop.f32.mrf.mxu0
    %v1660 = vadd.f32 0.0, %v1659
    %1661 = vdwg.mxu0
    %v1662 = vadd.f32 %v1515, %v1587
    %v1663 = vadd.f32 %v1516, %v1589
    %v1664 = vadd.f32 %v1517, %v1658
    %v1665 = vadd.f32 %v1518, %v1660
    %v1666 = vmul.f32 %v1662, 0.5
    %v1667 = vtanh.pop %v1666
    %v1668 = vmul.f32 %v1667, 0.5
    %v1669 = vadd.f32 %v1668, 0.5
    %v1670 = vmul.f32 %v1663, 0.5
    %v1671 = vtanh.pop %v1670
    %v1672 = vmul.f32 %v1671, 0.5
    %v1673 = vadd.f32 %v1672, 0.5
    %v1674 = vtanh.pop %v1664
    %v1675 = vmul.f32 %v1665, 0.5
    %v1676 = vtanh.pop %v1675
    %v1677 = vmul.f32 %v1676, 0.5
    %v1678 = vadd.f32 %v1677, 0.5
    %v1679 = vld [vmem:[#allocation4] sm:$0xff]
    %v1680 = vmul.f32 %v1673, %v1679
    %v1681 = vmul.f32 %v1669, %v1674
    %v1682 = vadd.f32 %v1680, %v1681
    %v1683 = vtanh.pop %v1682
    %v1684 = vmul.f32 %v1678, %v1683
    %1685 = vst [vmem:[#allocation4] sm:$0xff] %v1682
    %1686 = vst [vmem:[#allocation3] sm:$0xff] %v1684
    %v1687 = vmul.f32 %v1684, %v643
    %1688 = vadd.xlane.f32.xlu0 %v1687
    %v1689 = vpop.xlane.xlu0 %1688
    %v1690 = vadd.f32 %v1689, %v652
    %v1691 = vld [vmem:[#allocation5] sm:$0xff]
    %v1692 = vmax.f32 %v1691, %v1690
    %v1693 = vsub.f32 %v1691, %v1692
    %v1694 = vmul.f32 %v1693, 1.442695
    %v1695 = vpow.pop %v1694
    %v1696 = vsub.f32 %v1690, %v1692
    %v1697 = vmul.f32 %v1696, 1.442695
    %v1698 = vpow.pop %v1697
    %v1699 = vld [vmem:[#allocation6] sm:$0xff]
    %v1700 = vmul.f32 %v1695, %v1699
    %v1701 = vadd.f32 %v1700, %v1698
    %1702 = vst.msk [vmem:[#allocation6] sm:$0xff] %vm666, %v1701
    %v1703 = vld [vmem:[#allocation7] sm:$0xff]
    %1705 = vset.pattern.permute.xlu0 0
    %1706 = vperm.xlu0 %1705, %v1695
    %v1707 = vpop.permute.xlu0 %1706
    %v1709 = vmul.f32 %v1707, %v1703
    %1711 = vset.pattern.permute.xlu0 0
    %1712 = vperm.xlu0 %1711, %v1698
    %v1713 = vpop.permute.xlu0 %1712
    %v1715 = vmul.f32 %v1713, %v1684
    %v1716 = vadd.f32 %v1709, %v1715
    %1717 = vst [vmem:[#allocation7] sm:$0xff] %v1716
    %1718 = vst.msk [vmem:[#allocation5] sm:$0xff] %vm666, %v1692
    %s1719 = smul.u32 6, 4
    %s1720 = smul.addr %s1719, 8
    %s1721 = scalar_lea.vmem [#allocation2], %s1720
    %v1722 = vld [vmem:[%s1721] sm:$0xff]
    %v1723 = vld [vmem:[%s1721 + $0x8] sm:$0xff]
    %v1724 = vld [vmem:[%s1721 + $0x10] sm:$0xff]
    %v1725 = vld [vmem:[%s1721 + $0x18] sm:$0xff]
    %v1726 = vld [vmem:[#allocation3] sm:$0xff]
    %1727 = vmatprep.subr.mxu0 %v459
    %1728 = vmatpush1.msra.mxu0 %v458
    %1729 = vmatprep.subr.mxu0 %v455
    %1730 = vmatpush1.msra.mxu0 %v454
    %1731 = vmatprep.subr.mxu0 %v451
    %1732 = vmatpush1.msra.mxu0 %v450
    %1733 = vmatprep.subr.mxu0 %v447
    %1734 = vmatpush1.msra.mxu0 %v446
    %1735 = vmatprep.subr.mxu0 %v443
    %1736 = vmatpush1.msra.mxu0 %v442
    %1737 = vmatprep.subr.mxu0 %v439
    %1738 = vmatpush1.msra.mxu0 %v438
    %1739 = vmatprep.subr.mxu0 %v435
    %1740 = vmatpush1.msra.mxu0 %v434
    %1741 = vmatprep.subr.mxu0 %v431
    %1742 = vmatpush1.msra.mxu0 %v430
    %1743 = vmatprep.subr.mxu0 %v427
    %1744 = vmatpush1.msra.mxu0 %v426
    %1745 = vmatprep.subr.mxu0 %v423
    %1746 = vmatpush1.msra.mxu0 %v422
    %1747 = vmatprep.subr.mxu0 %v419
    %1748 = vmatpush1.msra.mxu0 %v418
    %1749 = vmatprep.subr.mxu0 %v415
    %1750 = vmatpush1.msra.mxu0 %v414
    %1751 = vmatprep.subr.mxu0 %v411
    %1752 = vmatpush1.msra.mxu0 %v410
    %1753 = vmatprep.subr.mxu0 %v407
    %1754 = vmatpush1.msra.mxu0 %v406
    %1755 = vmatprep.subr.mxu0 %v403
    %1756 = vmatpush1.msra.mxu0 %v402
    %1757 = vmatprep.subr.mxu0 %v399
    %1758 = vmatpush1.msra.mxu0 %v398
    %1759 = vmatprep.subr.mxu0 0.0
    %1760 = vmatpush2.msra.mxu0 0.0
    %1761 = vmatprep.subr.mxu0 0.0
    %1762 = vmatpush2.msra.mxu0 0.0
    %1763 = vmatprep.subr.mxu0 0.0
    %1764 = vmatpush2.msra.mxu0 0.0
    %1765 = vmatprep.subr.mxu0 0.0
    %1766 = vmatpush2.msra.mxu0 0.0
    %1767 = vmatprep.subr.mxu0 0.0
    %1768 = vmatpush2.msra.mxu0 0.0
    %1769 = vmatprep.subr.mxu0 0.0
    %1770 = vmatpush2.msra.mxu0 0.0
    %1771 = vmatprep.subr.mxu0 0.0
    %1772 = vmatpush2.msra.mxu0 0.0
    %1773 = vmatprep.subr.mxu0 0.0
    %1774 = vmatpush2.msra.mxu0 0.0
    %1775 = vmatprep.subr.mxu0 0.0
    %1776 = vmatpush2.msra.mxu0 0.0
    %1777 = vmatprep.subr.mxu0 0.0
    %1778 = vmatpush2.msra.mxu0 0.0
    %1779 = vmatprep.subr.mxu0 0.0
    %1780 = vmatpush2.msra.mxu0 0.0
    %1781 = vmatprep.subr.mxu0 0.0
    %1782 = vmatpush2.msra.mxu0 0.0
    %1783 = vmatprep.subr.mxu0 0.0
    %1784 = vmatpush2.msra.mxu0 0.0
    %1785 = vmatprep.subr.mxu0 0.0
    %1786 = vmatpush2.msra.mxu0 0.0
    %1787 = vmatprep.subr.mxu0 0.0
    %1788 = vmatpush2.msra.mxu0 0.0
    %1789 = vmatprep.subr.mxu0 0.0
    %1790 = vmatpush2.msra.mxu0 0.0
    %1791 = vmatprep.mubr.f32.mxu0 0.0
    %1792 = vmatmul.mubr.f32.gmra.mxu0 %v1726
    %v1793 = vpop.f32.mrf.mxu0
    %v1794 = vadd.f32 0.0, %v1793
    %v1795 = vpop.f32.mrf.mxu0
    %v1796 = vadd.f32 0.0, %v1795
    %1797 = vdwg.mxu0
    %1798 = vmatprep.subr.mxu0 %v461
    %1799 = vmatpush1.msra.mxu0 %v460
    %1800 = vmatprep.subr.mxu0 %v457
    %1801 = vmatpush1.msra.mxu0 %v456
    %1802 = vmatprep.subr.mxu0 %v453
    %1803 = vmatpush1.msra.mxu0 %v452
    %1804 = vmatprep.subr.mxu0 %v449
    %1805 = vmatpush1.msra.mxu0 %v448
    %1806 = vmatprep.subr.mxu0 %v445
    %1807 = vmatpush1.msra.mxu0 %v444
    %1808 = vmatprep.subr.mxu0 %v441
    %1809 = vmatpush1.msra.mxu0 %v440
    %1810 = vmatprep.subr.mxu0 %v437
    %1811 = vmatpush1.msra.mxu0 %v436
    %1812 = vmatprep.subr.mxu0 %v433
    %1813 = vmatpush1.msra.mxu0 %v432
    %1814 = vmatprep.subr.mxu0 %v429
    %1815 = vmatpush1.msra.mxu0 %v428
    %1816 = vmatprep.subr.mxu0 %v425
    %1817 = vmatpush1.msra.mxu0 %v424
    %1818 = vmatprep.subr.mxu0 %v421
    %1819 = vmatpush1.msra.mxu0 %v420
    %1820 = vmatprep.subr.mxu0 %v417
    %1821 = vmatpush1.msra.mxu0 %v416
    %1822 = vmatprep.subr.mxu0 %v413
    %1823 = vmatpush1.msra.mxu0 %v412
    %1824 = vmatprep.subr.mxu0 %v409
    %1825 = vmatpush1.msra.mxu0 %v408
    %1826 = vmatprep.subr.mxu0 %v405
    %1827 = vmatpush1.msra.mxu0 %v404
    %1828 = vmatprep.subr.mxu0 %v401
    %1829 = vmatpush1.msra.mxu0 %v400
    %1830 = vmatprep.subr.mxu0 0.0
    %1831 = vmatpush2.msra.mxu0 0.0
    %1832 = vmatprep.subr.mxu0 0.0
    %1833 = vmatpush2.msra.mxu0 0.0
    %1834 = vmatprep.subr.mxu0 0.0
    %1835 = vmatpush2.msra.mxu0 0.0
    %1836 = vmatprep.subr.mxu0 0.0
    %1837 = vmatpush2.msra.mxu0 0.0
    %1838 = vmatprep.subr.mxu0 0.0
    %1839 = vmatpush2.msra.mxu0 0.0
    %1840 = vmatprep.subr.mxu0 0.0
    %1841 = vmatpush2.msra.mxu0 0.0
    %1842 = vmatprep.subr.mxu0 0.0
    %1843 = vmatpush2.msra.mxu0 0.0
    %1844 = vmatprep.subr.mxu0 0.0
    %1845 = vmatpush2.msra.mxu0 0.0
    %1846 = vmatprep.subr.mxu0 0.0
    %1847 = vmatpush2.msra.mxu0 0.0
    %1848 = vmatprep.subr.mxu0 0.0
    %1849 = vmatpush2.msra.mxu0 0.0
    %1850 = vmatprep.subr.mxu0 0.0
    %1851 = vmatpush2.msra.mxu0 0.0
    %1852 = vmatprep.subr.mxu0 0.0
    %1853 = vmatpush2.msra.mxu0 0.0
    %1854 = vmatprep.subr.mxu0 0.0
    %1855 = vmatpush2.msra.mxu0 0.0
    %1856 = vmatprep.subr.mxu0 0.0
    %1857 = vmatpush2.msra.mxu0 0.0
    %1858 = vmatprep.subr.mxu0 0.0
    %1859 = vmatpush2.msra.mxu0 0.0
    %1860 = vmatprep.subr.mxu0 0.0
    %1861 = vmatpush2.msra.mxu0 0.0
    %1862 = vmatprep.mubr.f32.mxu0 0.0
    %1863 = vmatmul.mubr.f32.gmra.mxu0 %v1726
    %v1864 = vpop.f32.mrf.mxu0
    %v1865 = vadd.f32 0.0, %v1864
    %v1866 = vpop.f32.mrf.mxu0
    %v1867 = vadd.f32 0.0, %v1866
    %1868 = vdwg.mxu0
    %v1869 = vadd.f32 %v1722, %v1794
    %v1870 = vadd.f32 %v1723, %v1796
    %v1871 = vadd.f32 %v1724, %v1865
    %v1872 = vadd.f32 %v1725, %v1867
    %v1873 = vmul.f32 %v1869, 0.5
    %v1874 = vtanh.pop %v1873
    %v1875 = vmul.f32 %v1874, 0.5
    %v1876 = vadd.f32 %v1875, 0.5
    %v1877 = vmul.f32 %v1870, 0.5
    %v1878 = vtanh.pop %v1877
    %v1879 = vmul.f32 %v1878, 0.5
    %v1880 = vadd.f32 %v1879, 0.5
    %v1881 = vtanh.pop %v1871
    %v1882 = vmul.f32 %v1872, 0.5
    %v1883 = vtanh.pop %v1882
    %v1884 = vmul.f32 %v1883, 0.5
    %v1885 = vadd.f32 %v1884, 0.5
    %v1886 = vld [vmem:[#allocation4] sm:$0xff]
    %v1887 = vmul.f32 %v1880, %v1886
    %v1888 = vmul.f32 %v1876, %v1881
    %v1889 = vadd.f32 %v1887, %v1888
    %v1890 = vtanh.pop %v1889
    %v1891 = vmul.f32 %v1885, %v1890
    %1892 = vst [vmem:[#allocation4] sm:$0xff] %v1889
    %1893 = vst [vmem:[#allocation3] sm:$0xff] %v1891
    %v1894 = vmul.f32 %v1891, %v643
    %1895 = vadd.xlane.f32.xlu0 %v1894
    %v1896 = vpop.xlane.xlu0 %1895
    %v1897 = vadd.f32 %v1896, %v652
    %v1898 = vld [vmem:[#allocation5] sm:$0xff]
    %v1899 = vmax.f32 %v1898, %v1897
    %v1900 = vsub.f32 %v1898, %v1899
    %v1901 = vmul.f32 %v1900, 1.442695
    %v1902 = vpow.pop %v1901
    %v1903 = vsub.f32 %v1897, %v1899
    %v1904 = vmul.f32 %v1903, 1.442695
    %v1905 = vpow.pop %v1904
    %v1906 = vld [vmem:[#allocation6] sm:$0xff]
    %v1907 = vmul.f32 %v1902, %v1906
    %v1908 = vadd.f32 %v1907, %v1905
    %1909 = vst.msk [vmem:[#allocation6] sm:$0xff] %vm666, %v1908
    %v1910 = vld [vmem:[#allocation7] sm:$0xff]
    %1912 = vset.pattern.permute.xlu0 0
    %1913 = vperm.xlu0 %1912, %v1902
    %v1914 = vpop.permute.xlu0 %1913
    %v1916 = vmul.f32 %v1914, %v1910
    %1918 = vset.pattern.permute.xlu0 0
    %1919 = vperm.xlu0 %1918, %v1905
    %v1920 = vpop.permute.xlu0 %1919
    %v1922 = vmul.f32 %v1920, %v1891
    %v1923 = vadd.f32 %v1916, %v1922
    %1924 = vst [vmem:[#allocation7] sm:$0xff] %v1923
    %1925 = vst.msk [vmem:[#allocation5] sm:$0xff] %vm666, %v1899
    %s1926 = smul.u32 7, 4
    %s1927 = smul.addr %s1926, 8
    %s1928 = scalar_lea.vmem [#allocation2], %s1927
    %v1929 = vld [vmem:[%s1928] sm:$0xff]
    %v1930 = vld [vmem:[%s1928 + $0x8] sm:$0xff]
    %v1931 = vld [vmem:[%s1928 + $0x10] sm:$0xff]
    %v1932 = vld [vmem:[%s1928 + $0x18] sm:$0xff]
    %v1933 = vld [vmem:[#allocation3] sm:$0xff]
    %1934 = vmatprep.subr.mxu0 %v459
    %1935 = vmatpush1.msra.mxu0 %v458
    %1936 = vmatprep.subr.mxu0 %v455
    %1937 = vmatpush1.msra.mxu0 %v454
    %1938 = vmatprep.subr.mxu0 %v451
    %1939 = vmatpush1.msra.mxu0 %v450
    %1940 = vmatprep.subr.mxu0 %v447
    %1941 = vmatpush1.msra.mxu0 %v446
    %1942 = vmatprep.subr.mxu0 %v443
    %1943 = vmatpush1.msra.mxu0 %v442
    %1944 = vmatprep.subr.mxu0 %v439
    %1945 = vmatpush1.msra.mxu0 %v438
    %1946 = vmatprep.subr.mxu0 %v435
    %1947 = vmatpush1.msra.mxu0 %v434
    %1948 = vmatprep.subr.mxu0 %v431
    %1949 = vmatpush1.msra.mxu0 %v430
    %1950 = vmatprep.subr.mxu0 %v427
    %1951 = vmatpush1.msra.mxu0 %v426
    %1952 = vmatprep.subr.mxu0 %v423
    %1953 = vmatpush1.msra.mxu0 %v422
    %1954 = vmatprep.subr.mxu0 %v419
    %1955 = vmatpush1.msra.mxu0 %v418
    %1956 = vmatprep.subr.mxu0 %v415
    %1957 = vmatpush1.msra.mxu0 %v414
    %1958 = vmatprep.subr.mxu0 %v411
    %1959 = vmatpush1.msra.mxu0 %v410
    %1960 = vmatprep.subr.mxu0 %v407
    %1961 = vmatpush1.msra.mxu0 %v406
    %1962 = vmatprep.subr.mxu0 %v403
    %1963 = vmatpush1.msra.mxu0 %v402
    %1964 = vmatprep.subr.mxu0 %v399
    %1965 = vmatpush1.msra.mxu0 %v398
    %1966 = vmatprep.subr.mxu0 0.0
    %1967 = vmatpush2.msra.mxu0 0.0
    %1968 = vmatprep.subr.mxu0 0.0
    %1969 = vmatpush2.msra.mxu0 0.0
    %1970 = vmatprep.subr.mxu0 0.0
    %1971 = vmatpush2.msra.mxu0 0.0
    %1972 = vmatprep.subr.mxu0 0.0
    %1973 = vmatpush2.msra.mxu0 0.0
    %1974 = vmatprep.subr.mxu0 0.0
    %1975 = vmatpush2.msra.mxu0 0.0
    %1976 = vmatprep.subr.mxu0 0.0
    %1977 = vmatpush2.msra.mxu0 0.0
    %1978 = vmatprep.subr.mxu0 0.0
    %1979 = vmatpush2.msra.mxu0 0.0
    %1980 = vmatprep.subr.mxu0 0.0
    %1981 = vmatpush2.msra.mxu0 0.0
    %1982 = vmatprep.subr.mxu0 0.0
    %1983 = vmatpush2.msra.mxu0 0.0
    %1984 = vmatprep.subr.mxu0 0.0
    %1985 = vmatpush2.msra.mxu0 0.0
    %1986 = vmatprep.subr.mxu0 0.0
    %1987 = vmatpush2.msra.mxu0 0.0
    %1988 = vmatprep.subr.mxu0 0.0
    %1989 = vmatpush2.msra.mxu0 0.0
    %1990 = vmatprep.subr.mxu0 0.0
    %1991 = vmatpush2.msra.mxu0 0.0
    %1992 = vmatprep.subr.mxu0 0.0
    %1993 = vmatpush2.msra.mxu0 0.0
    %1994 = vmatprep.subr.mxu0 0.0
    %1995 = vmatpush2.msra.mxu0 0.0
    %1996 = vmatprep.subr.mxu0 0.0
    %1997 = vmatpush2.msra.mxu0 0.0
    %1998 = vmatprep.mubr.f32.mxu0 0.0
    %1999 = vmatmul.mubr.f32.gmra.mxu0 %v1933
    %v2000 = vpop.f32.mrf.mxu0
    %v2001 = vadd.f32 0.0, %v2000
    %v2002 = vpop.f32.mrf.mxu0
    %v2003 = vadd.f32 0.0, %v2002
    %2004 = vdwg.mxu0
    %2005 = vmatprep.subr.mxu0 %v461
    %2006 = vmatpush1.msra.mxu0 %v460
    %2007 = vmatprep.subr.mxu0 %v457
    %2008 = vmatpush1.msra.mxu0 %v456
    %2009 = vmatprep.subr.mxu0 %v453
    %2010 = vmatpush1.msra.mxu0 %v452
    %2011 = vmatprep.subr.mxu0 %v449
    %2012 = vmatpush1.msra.mxu0 %v448
    %2013 = vmatprep.subr.mxu0 %v445
    %2014 = vmatpush1.msra.mxu0 %v444
    %2015 = vmatprep.subr.mxu0 %v441
    %2016 = vmatpush1.msra.mxu0 %v440
    %2017 = vmatprep.subr.mxu0 %v437
    %2018 = vmatpush1.msra.mxu0 %v436
    %2019 = vmatprep.subr.mxu0 %v433
    %2020 = vmatpush1.msra.mxu0 %v432
    %2021 = vmatprep.subr.mxu0 %v429
    %2022 = vmatpush1.msra.mxu0 %v428
    %2023 = vmatprep.subr.mxu0 %v425
    %2024 = vmatpush1.msra.mxu0 %v424
    %2025 = vmatprep.subr.mxu0 %v421
    %2026 = vmatpush1.msra.mxu0 %v420
    %2027 = vmatprep.subr.mxu0 %v417
    %2028 = vmatpush1.msra.mxu0 %v416
    %2029 = vmatprep.subr.mxu0 %v413
    %2030 = vmatpush1.msra.mxu0 %v412
    %2031 = vmatprep.subr.mxu0 %v409
    %2032 = vmatpush1.msra.mxu0 %v408
    %2033 = vmatprep.subr.mxu0 %v405
    %2034 = vmatpush1.msra.mxu0 %v404
    %2035 = vmatprep.subr.mxu0 %v401
    %2036 = vmatpush1.msra.mxu0 %v400
    %2037 = vmatprep.subr.mxu0 0.0
    %2038 = vmatpush2.msra.mxu0 0.0
    %2039 = vmatprep.subr.mxu0 0.0
    %2040 = vmatpush2.msra.mxu0 0.0
    %2041 = vmatprep.subr.mxu0 0.0
    %2042 = vmatpush2.msra.mxu0 0.0
    %2043 = vmatprep.subr.mxu0 0.0
    %2044 = vmatpush2.msra.mxu0 0.0
    %2045 = vmatprep.subr.mxu0 0.0
    %2046 = vmatpush2.msra.mxu0 0.0
    %2047 = vmatprep.subr.mxu0 0.0
    %2048 = vmatpush2.msra.mxu0 0.0
    %2049 = vmatprep.subr.mxu0 0.0
    %2050 = vmatpush2.msra.mxu0 0.0
    %2051 = vmatprep.subr.mxu0 0.0
    %2052 = vmatpush2.msra.mxu0 0.0
    %2053 = vmatprep.subr.mxu0 0.0
    %2054 = vmatpush2.msra.mxu0 0.0
    %2055 = vmatprep.subr.mxu0 0.0
    %2056 = vmatpush2.msra.mxu0 0.0
    %2057 = vmatprep.subr.mxu0 0.0
    %2058 = vmatpush2.msra.mxu0 0.0
    %2059 = vmatprep.subr.mxu0 0.0
    %2060 = vmatpush2.msra.mxu0 0.0
    %2061 = vmatprep.subr.mxu0 0.0
    %2062 = vmatpush2.msra.mxu0 0.0
    %2063 = vmatprep.subr.mxu0 0.0
    %2064 = vmatpush2.msra.mxu0 0.0
    %2065 = vmatprep.subr.mxu0 0.0
    %2066 = vmatpush2.msra.mxu0 0.0
    %2067 = vmatprep.subr.mxu0 0.0
    %2068 = vmatpush2.msra.mxu0 0.0
    %2069 = vmatprep.mubr.f32.mxu0 0.0
    %2070 = vmatmul.mubr.f32.gmra.mxu0 %v1933
    %v2071 = vpop.f32.mrf.mxu0
    %v2072 = vadd.f32 0.0, %v2071
    %v2073 = vpop.f32.mrf.mxu0
    %v2074 = vadd.f32 0.0, %v2073
    %2075 = vdwg.mxu0
    %v2076 = vadd.f32 %v1929, %v2001
    %v2077 = vadd.f32 %v1930, %v2003
    %v2078 = vadd.f32 %v1931, %v2072
    %v2079 = vadd.f32 %v1932, %v2074
    %v2080 = vmul.f32 %v2076, 0.5
    %v2081 = vtanh.pop %v2080
    %v2082 = vmul.f32 %v2081, 0.5
    %v2083 = vadd.f32 %v2082, 0.5
    %v2084 = vmul.f32 %v2077, 0.5
    %v2085 = vtanh.pop %v2084
    %v2086 = vmul.f32 %v2085, 0.5
    %v2087 = vadd.f32 %v2086, 0.5
    %v2088 = vtanh.pop %v2078
    %v2089 = vmul.f32 %v2079, 0.5
    %v2090 = vtanh.pop %v2089
    %v2091 = vmul.f32 %v2090, 0.5
    %v2092 = vadd.f32 %v2091, 0.5
    %v2093 = vld [vmem:[#allocation4] sm:$0xff]
    %v2094 = vmul.f32 %v2087, %v2093
    %v2095 = vmul.f32 %v2083, %v2088
    %v2096 = vadd.f32 %v2094, %v2095
    %v2097 = vtanh.pop %v2096
    %v2098 = vmul.f32 %v2092, %v2097
    %2099 = vst [vmem:[#allocation4] sm:$0xff] %v2096
    %2100 = vst [vmem:[#allocation3] sm:$0xff] %v2098
    %v2101 = vmul.f32 %v2098, %v643
    %2102 = vadd.xlane.f32.xlu0 %v2101
    %v2103 = vpop.xlane.xlu0 %2102
    %v2104 = vadd.f32 %v2103, %v652
    %v2105 = vld [vmem:[#allocation5] sm:$0xff]
    %v2106 = vmax.f32 %v2105, %v2104
    %v2107 = vsub.f32 %v2105, %v2106
    %v2108 = vmul.f32 %v2107, 1.442695
    %v2109 = vpow.pop %v2108
    %v2110 = vsub.f32 %v2104, %v2106
    %v2111 = vmul.f32 %v2110, 1.442695
    %v2112 = vpow.pop %v2111
    %v2113 = vld [vmem:[#allocation6] sm:$0xff]
    %v2114 = vmul.f32 %v2109, %v2113
    %v2115 = vadd.f32 %v2114, %v2112
    %2116 = vst.msk [vmem:[#allocation6] sm:$0xff] %vm666, %v2115
    %v2117 = vld [vmem:[#allocation7] sm:$0xff]
    %2119 = vset.pattern.permute.xlu0 0
    %2120 = vperm.xlu0 %2119, %v2109
    %v2121 = vpop.permute.xlu0 %2120
    %v2123 = vmul.f32 %v2121, %v2117
    %2125 = vset.pattern.permute.xlu0 0
    %2126 = vperm.xlu0 %2125, %v2112
    %v2127 = vpop.permute.xlu0 %2126
    %v2129 = vmul.f32 %v2127, %v2098
    %v2130 = vadd.f32 %v2123, %v2129
    %2131 = vst [vmem:[#allocation7] sm:$0xff] %v2130
    %2132 = vst.msk [vmem:[#allocation5] sm:$0xff] %vm666, %v2106
    // Predicated region
    $region42: #{tpu_custom_call.1} parent=1 // pred_check
      %p2133 = pneg %p67
    $region43: #{tpu_custom_call.1} parent=1 // pred_check_branch
      %2135 = sbr.rel (%p2133) target = $region45
    $region44: #{tpu_custom_call.1} parent=1 // pred_region
      %v2136 = vld [vmem:[#allocation6] sm:$0xff]
      %v2137 = vrcp.pop %v2136
      %v2138 = vld [vmem:[#allocation7] sm:$0xff]
      %2140 = vset.pattern.permute.xlu0 0
      %2141 = vperm.xlu0 %2140, %v2137
      %v2142 = vpop.permute.xlu0 %2141
      %v2144 = vmul.f32 %v2138, %v2142
      %2145 = vst [vmem:[#allocation15] sm:$0xff] %v2144
    $region45: #{tpu_custom_call.1} parent=1 // pred_fallthru
      _
    // Predicated region
    $region46: #{tpu_custom_call.1} parent=1 // pred_check
      _
    $region47: #{tpu_custom_call.1} parent=1 // pred_check_branch
      %2147 = sbr.rel (0) target = $region49
    $region48: #{tpu_custom_call.1} parent=1 // pred_region
      %s2149 = ssub.s32 128, 128
      %2150 = vsyncadd [#allocation11], %s2149
      %s2152 = sshll.u32 [#allocation15], 4
      %s2153 = int_to_ptr.vmem [resolvable:$true] %s2152
      %2155 = dma.vmem_to_hbm [thread:$0]  %s2153, 128, %s6, [#allocation11]
    $region49: #{tpu_custom_call.1} parent=1 // pred_fallthru
      _
    // Predicated region
    $region50: #{tpu_custom_call.1} parent=1 // pred_check
      _
    $region51: #{tpu_custom_call.1} parent=1 // pred_check_branch
      %2157 = sbr.rel (0) target = $region53
    $region52: #{tpu_custom_call.1} parent=1 // pred_region
      %2158 = dma.done [#allocation11], 128
    $region53: #{tpu_custom_call.1} parent=1 // pred_fallthru
      _
    %2159 = vsyncpa [#allocation10], 1
    %2160 = vsyncpa [#allocation13], 1
    %2161 = vsyncpa [#allocation11], 1

</llo_original>
